<compile_context>
chip_gen: v7x
topology: tpu7x:2x2x1
jax: 0.10.0
libtpu: 0.0.40
codegen_flags: <defaults>
</compile_context>

<pallas_src>
import math

import jax
import jax.numpy as jnp
from jax import lax
from jax.experimental import pallas as pl
from jax.experimental.pallas import tpu as pltpu

# ----------------------------- config -------------------------------------
HIDDEN = 128          # hidden_size (module default; lane-dense)
N_MP_LAYERS = 3       # n_mp_layers (kept small for the test run; default is 10)
NUM_TYPES = 2         # num_particle_types
PTYPE_DIM = 7         # particle_type_dim  (node_dim)
DIM = 2               # output dim
WINDOW = 7            # window_size
EDGE_DIM = WINDOW * (DIM + 1)   # 21
OUT_PAD = 128         # decoder output padded to a full lane width

LEAK = 0.01           # torch LeakyReLU default negative_slope

VMEM_SPEC = pl.BlockSpec(memory_space=pltpu.MemorySpace.VMEM)


def _round_up(x, m):
    return ((x + m - 1) // m) * m


def _detect_fuse_k():
    """K=256/384 first-layer fusion only pays off on 256-deep MXUs (v6e/v7x);
    keep the pre-split K=128 form on the v5 family (128-deep MXU)."""
    try:
        kind = jax.devices()[0].device_kind.lower()
        return "v5" not in kind
    except Exception:
        return True


FUSE_K = _detect_fuse_k()

# Stacked-weight / stacked-bias index layout (shared by prep_params & kernel).
#   wsq (all 128x128 weights, bf16):
#     0: node_in.w2   1: node_in.w3   2: edge_in.w2   3: edge_in.w3
#     4: node_out.w1  5: node_out.w2  6: node_out.w3 (zero-padded to 128 out)
#     per layer l (split  mode, base=7+9l): we1a we1b we1c we2 we3 wn1a wn1b wn2 wn3
#     per layer l (fused  mode, base=7+4l): we2 we3 wn2 wn3
#   bias ([NB,1,128] f32):
#     0-2: node_in b1..b3   3-5: edge_in b1..b3   6-8: node_out b1..b3(padded)
#     per layer l (base=9+6l): be1 be2 be3 bn1 bn2 bn3
_SQ_BASE = 7
_SQ_PER_LAYER = 4 if FUSE_K else 9
_B_BASE = 9


# ------------------------------ kernel ------------------------------------
def fused_forward_kernel(*refs):
    if FUSE_K:
        (node_emb_ref, edge_attr_ref, gcat_ref, gdd_ref,
         w_nin1, w_ein1, wsq, we1, wn1, bias, out_ref) = refs
    else:
        (node_emb_ref, edge_attr_ref, gcat_ref, gdd_ref,
         w_nin1, w_ein1, wsq, bias, out_ref) = refs
        we1 = wn1 = None

    e_pad = gdd_ref.shape[0]

    def lrelu(x):
        return jnp.where(x > 0, x, LEAK * x)

    def dotbf(a_bf, w):
        # bf16 x bf16 -> f32 accumulation (operand already bf16).
        return jnp.dot(a_bf, w, preferred_element_type=jnp.float32)

    def dot16(a, w):
        return jnp.dot(a.astype(jnp.bfloat16), w,
                       preferred_element_type=jnp.float32)

    # ---------------- Encoders ----------------
    nf = lrelu(dot16(node_emb_ref[...], w_nin1[...]) + bias[0])
    nf = lrelu(dot16(nf, wsq[0]) + bias[1])
    nf = dot16(nf, wsq[1]) + bias[2]                       # [Np, H]

    ef = lrelu(dot16(edge_attr_ref[...], w_ein1[...]) + bias[3])
    ef = lrelu(dot16(ef, wsq[2]) + bias[4])
    ef = dot16(ef, wsq[3]) + bias[5]                       # [E, H]

    # Graph structure (loaded once; resident in VMEM for all layers).
    gcat = gcat_ref[...]            # [2E, Np] bf16: rows [0,E)=onehot(src), [E,2E)=onehot(dst)
    gdd = gdd_ref[...]              # [E,  Np] bf16: onehot(dst) * dist (pre-scaled host-side)

    # ---------------- Message-passing layers (statically unrolled) ----------
    for l in range(N_MP_LAYERS):
        nf_bf = nf.astype(jnp.bfloat16)       # hoisted casts, reused below
        ef_bf = ef.astype(jnp.bfloat16)
        bl = _B_BASE + 6 * l
        base = _SQ_BASE + _SQ_PER_LAYER * l

        # Fused endpoint gather: one [2E,Np]@[Np,H] bf16 matmul, split at E.
        gath = dotbf(gcat, nf_bf)                          # [2E, H] f32
        x_j = gath[:e_pad]                                 # source features
        x_i = gath[e_pad:]                                 # destination features

        # --- edge ("message") MLP ---
        if FUSE_K:
            ein_cat = jnp.concatenate(
                [x_i.astype(jnp.bfloat16), x_j.astype(jnp.bfloat16), ef_bf],
                axis=-1)                                   # [E, 3H]
            h = lrelu(dotbf(ein_cat, we1[l]) + bias[bl + 0])
            we2_i, we3_i = base + 0, base + 1
            wn2_i, wn3_i = base + 2, base + 3
        else:
            h = lrelu(dot16(x_i, wsq[base + 0]) + dot16(x_j, wsq[base + 1])
                      + dotbf(ef_bf, wsq[base + 2]) + bias[bl + 0])
            we2_i, we3_i = base + 3, base + 4
            wn1a_i, wn1b_i = base + 5, base + 6
            wn2_i, wn3_i = base + 7, base + 8

        h = lrelu(dot16(h, wsq[we2_i]) + bias[bl + 1])
        msg = dot16(h, wsq[we3_i]) + bias[bl + 2]          # [E, H]

        # Scatter-sum of dist-scaled messages onto destination nodes:
        # contract the edge (leading) axis of the pre-scaled bf16 one-hot.
        aggr = lax.dot_general(
            gdd, msg.astype(jnp.bfloat16),
            dimension_numbers=(((0,), (0,)), ((), ())),
            preferred_element_type=jnp.float32)            # [Np, H]

        # --- node-update MLP ---
        if FUSE_K:
            nin_cat = jnp.concatenate(
                [nf_bf, aggr.astype(jnp.bfloat16)], axis=-1)   # [Np, 2H]
            g = lrelu(dotbf(nin_cat, wn1[l]) + bias[bl + 3])
        else:
            g = lrelu(dotbf(nf_bf, wsq[wn1a_i]) + dot16(aggr, wsq[wn1b_i])
                      + bias[bl + 3])
        g = lrelu(dot16(g, wsq[wn2_i]) + bias[bl + 4])
        nupd = dot16(g, wsq[wn3_i]) + bias[bl + 5]         # [Np, H]

        # Residuals.
        nf = nf + nupd
        ef = ef + msg

    # ---------------- Decoder (zero-padded to OUT_PAD lanes) ----------------
    o = lrelu(dot16(nf, wsq[4]) + bias[6])
    o = lrelu(dot16(o, wsq[5]) + bias[7])
    o = dot16(o, wsq[6]) + bias[8]                         # [Np, OUT_PAD]
    out_ref[...] = o.astype(out_ref.dtype)


# ------------------------------ parameters ---------------------------------
def init_linear(key, fan_in, fan_out):
    kw, kb = jax.random.split(key)
    lim = 1.0 / math.sqrt(fan_in)
    w = jax.random.uniform(kw, (fan_in, fan_out), jnp.float32, -lim, lim)
    b = jax.random.uniform(kb, (1, fan_out), jnp.float32, -lim, lim)
    return w, b


def init_mlp(key, din, dh, dout):
    k1, k2, k3 = jax.random.split(key, 3)
    w1, b1 = init_linear(k1, din, dh)
    w2, b2 = init_linear(k2, dh, dh)
    w3, b3 = init_linear(k3, dh, dout)
    return (w1, b1, w2, b2, w3, b3)


def init_params(key):
    keys = jax.random.split(key, 4 + N_MP_LAYERS)
    # xavier_uniform for the embedding table
    lim = math.sqrt(6.0 / (NUM_TYPES + PTYPE_DIM))
    embed = jax.random.uniform(keys[0], (NUM_TYPES, PTYPE_DIM), jnp.float32,
                               -lim, lim)
    params = {
        "embed": embed,
        "node_in": init_mlp(keys[1], PTYPE_DIM, HIDDEN, HIDDEN),
        "edge_in": init_mlp(keys[2], EDGE_DIM, HIDDEN, HIDDEN),
        "node_out": init_mlp(keys[3], HIDDEN, HIDDEN, DIM),
        "layers": [],
    }
    for i in range(N_MP_LAYERS):
        ke, kn = jax.random.split(keys[4 + i])
        params["layers"].append(
            (init_mlp(ke, 3 * HIDDEN, HIDDEN, HIDDEN),   # lin_edge
             init_mlp(kn, 2 * HIDDEN, HIDDEN, HIDDEN)))  # lin_node
    return params


def prep_params(params):
    """Flatten params into the kernel's argument order:
       - all 128x128 weights stacked into one bf16 array (wsq),
       - all [1,128] biases stacked into one f32 array,
       - first-layer weights of lin_edge / lin_node kept whole (FUSE_K) or
         pre-split into 128x128 blocks (v5),
       - decoder last layer zero-padded to OUT_PAD lanes."""
    H = HIDDEN
    nin = params["node_in"]
    ein = params["edge_in"]
    nout = params["node_out"]
    w3p = jnp.zeros((H, OUT_PAD), jnp.float32).at[:, :DIM].set(nout[4])
    b3p = jnp.zeros((1, OUT_PAD), jnp.float32).at[:, :DIM].set(nout[5])

    sq = [nin[2], nin[4], ein[2], ein[4], nout[0], nout[2], w3p]
    biases = [nin[1], nin[3], nin[5], ein[1], ein[3], ein[5],
              nout[1], nout[3], b3p]

    we1_list, wn1_list = [], []
    for (ep, npm) in params["layers"]:
        we1, be1, we2, be2, we3, be3 = ep
        wn1, bn1, wn2, bn2, wn3, bn3 = npm
        if FUSE_K:
            sq += [we2, we3, wn2, wn3]
            we1_list.append(we1)            # [3H, H]
            wn1_list.append(wn1)            # [2H, H]
        else:
            sq += [we1[:H], we1[H:2 * H], we1[2 * H:], we2, we3,
                   wn1[:H], wn1[H:], wn2, wn3]
        biases += [be1, be2, be3, bn1, bn2, bn3]

    wsq = jnp.stack(sq, axis=0).astype(jnp.bfloat16)      # [NW, 128, 128]
    bias = jnp.stack(biases, axis=0)                      # [NB, 1, 128] f32

    flat = [nin[0].astype(jnp.bfloat16),                  # node_in w1 [7,128]
            ein[0].astype(jnp.bfloat16),                  # edge_in w1 [21,128]
            wsq]
    if FUSE_K:
        flat += [jnp.stack(we1_list, 0).astype(jnp.bfloat16),   # [L,3H,H]
                 jnp.stack(wn1_list, 0).astype(jnp.bfloat16)]   # [L,2H,H]
    flat += [bias]
    return tuple(flat)


# ------------------------------- forward -----------------------------------
def forward(embed, flat_params, x_types, edge_attr, edge_index, node_dist):
    n = x_types.shape[0]
    e = edge_attr.shape[0]
    n_pad = _round_up(n, 128)     # lane-dense one-hot matrices + node rows
    e_pad = _round_up(e, 16)      # sublane alignment for bf16 edge rows

    # Embedding lookup (glue) + zero-pad rows (padded rows never reach the
    # real outputs: one-hot gather never selects them, scatter never writes
    # to them, and we slice them away at the end).
    node_emb = jnp.take(embed, x_types, axis=0)                       # [n, 7]
    node_emb = jnp.pad(node_emb, ((0, n_pad - n), (0, 0)))

    edge_attr_p = jnp.pad(edge_attr, ((0, e_pad - e), (0, 0)))
    dist_p = jnp.pad(node_dist, ((0, e_pad - e), (0, 0)))             # pads -> 0

    src = jnp.pad(edge_index[0], (0, e_pad - e), constant_values=-1)  # x_j index
    dst = jnp.pad(edge_index[1], (0, e_pad - e), constant_values=-1)  # x_i / aggr
    node_ids = jnp.arange(n_pad)
    # bf16 one-hots are exact (0/1); gathers/scatter run on the bf16 MXU path.
    gsrc = (src[:, None] == node_ids[None, :]).astype(jnp.bfloat16)   # [E, Np]
    gdst_b = (dst[:, None] == node_ids[None, :])
    gcat = jnp.concatenate([gsrc, gdst_b.astype(jnp.bfloat16)], axis=0)  # [2E, Np]
    # Layer-invariant dist scaling folded into the scatter operand once.
    # (dist is bf16-rounded here; review-acknowledged tolerance vs. pure f32.)
    gdst_dist = (gdst_b.astype(jnp.float32) * dist_p).astype(jnp.bfloat16)

    args = (node_emb, edge_attr_p, gcat, gdst_dist) + tuple(flat_params)
    out_padded = pl.pallas_call(
        fused_forward_kernel,
        out_shape=jax.ShapeDtypeStruct((n_pad, OUT_PAD), jnp.float32),
        in_specs=[VMEM_SPEC] * len(args),
        out_specs=VMEM_SPEC,
        compiler_params=pltpu.CompilerParams(
            vmem_limit_bytes=32 * 1024 * 1024),
    )(*args)

    return out_padded[:n, :DIM]


# --------------------------------- main -------------------------------------
if __name__ == "__main__":
    key = jax.random.PRNGKey(0)
    kp, kx, ke, ks, kd, kn = jax.random.split(key, 6)

    N_NODES = 16
    N_EDGES = 48

    params = init_params(kp)
    flat_params = prep_params(params)

    x_types = jax.random.randint(kx, (N_NODES,), 0, NUM_TYPES, dtype=jnp.int32)
    edge_attr = jax.random.normal(ke, (N_EDGES, EDGE_DIM), dtype=jnp.float32)
    src = jax.random.randint(ks, (N_EDGES,), 0, N_NODES, dtype=jnp.int32)
    dst = jax.random.randint(kd, (N_EDGES,), 0, N_NODES, dtype=jnp.int32)
    edge_index = jnp.stack([src, dst], axis=0)                        # [2, E]
    node_dist = jax.random.uniform(kn, (N_EDGES, 1), dtype=jnp.float32)

    fwd = jax.jit(forward)
    out = fwd(params["embed"], flat_params, x_types, edge_attr, edge_index,
              node_dist)
    out = jax.block_until_ready(out)
    assert out.shape == (N_NODES, DIM) and out.dtype == jnp.float32
    assert bool(jnp.all(jnp.isfinite(out)))
    print("KERNEL_OK")
</pallas_src>

<mosaic_0001>
module attributes {stable_mosaic.version = 11 : i64} {
  func.func @fused_forward_kernel(%arg0: memref<128x7xf32, #tpu.memory_space<vmem>>, %arg1: memref<48x21xf32, #tpu.memory_space<vmem>>, %arg2: memref<96x128xbf16, #tpu.memory_space<vmem>>, %arg3: memref<48x128xbf16, #tpu.memory_space<vmem>>, %arg4: memref<7x128xbf16, #tpu.memory_space<vmem>>, %arg5: memref<21x128xbf16, #tpu.memory_space<vmem>>, %arg6: memref<19x128x128xbf16, #tpu.memory_space<vmem>>, %arg7: memref<3x384x128xbf16, #tpu.memory_space<vmem>>, %arg8: memref<3x256x128xbf16, #tpu.memory_space<vmem>>, %arg9: memref<27x1x128xf32, #tpu.memory_space<vmem>>, %arg10: memref<128x128xf32, #tpu.memory_space<vmem>>) attributes {dimension_semantics = [], scalar_prefetch = 0 : i64, scratch_operands = 0 : i64, tpu.core_type = #tpu.core_type<tc>} {
    %c0 = arith.constant 0 : index
    %c0_0 = arith.constant 0 : index
    %0 = vector.load %arg0[%c0, %c0_0] : memref<128x7xf32, #tpu.memory_space<vmem>>, vector<128x7xf32>
    %c0_1 = arith.constant 0 : index
    %c0_2 = arith.constant 0 : index
    %1 = vector.load %arg4[%c0_1, %c0_2] : memref<7x128xbf16, #tpu.memory_space<vmem>>, vector<7x128xbf16>
    %2 = arith.truncf %0 : vector<128x7xf32> to vector<128x7xbf16>
    %cst = arith.constant dense<0.000000e+00> : vector<128x128xf32>
    %3 = tpu.matmul %2, %1, %cst {dimension_numbers = #tpu.dot_dimension_numbers<[1], [0], [0], [1], [0, 0, 1, 1], [], []>} : vector<128x7xbf16>, vector<7x128xbf16>, vector<128x128xf32> -> vector<128x128xf32>
    %c0_3 = arith.constant 0 : index
    %c0_4 = arith.constant 0 : index
    %c0_5 = arith.constant 0 : index
    %4 = vector.load %arg9[%c0_3, %c0_4, %c0_5] : memref<27x1x128xf32, #tpu.memory_space<vmem>>, vector<1x1x128xf32>
    %5 = vector.shape_cast %4 : vector<1x1x128xf32> to vector<1x128xf32>
    %6 = vector.broadcast %5 : vector<1x128xf32> to vector<128x128xf32>
    %7 = arith.addf %3, %6 : vector<128x128xf32>
    %cst_6 = arith.constant 0.000000e+00 : f32
    %8 = vector.broadcast %cst_6 : f32 to vector<128x128xf32>
    %9 = arith.cmpf ogt, %7, %8 : vector<128x128xf32>
    %cst_7 = arith.constant 0.00999999977 : f32
    %10 = vector.broadcast %cst_7 : f32 to vector<128x128xf32>
    %11 = arith.mulf %10, %7 : vector<128x128xf32>
    %12 = arith.select %9, %7, %11 : vector<128x128xi1>, vector<128x128xf32>
    %c0_8 = arith.constant 0 : index
    %c0_9 = arith.constant 0 : index
    %c0_10 = arith.constant 0 : index
    %13 = vector.load %arg6[%c0_8, %c0_9, %c0_10] : memref<19x128x128xbf16, #tpu.memory_space<vmem>>, vector<1x128x128xbf16>
    %14 = vector.shape_cast %13 : vector<1x128x128xbf16> to vector<128x128xbf16>
    %15 = arith.truncf %12 : vector<128x128xf32> to vector<128x128xbf16>
    %cst_11 = arith.constant dense<0.000000e+00> : vector<128x128xf32>
    %16 = tpu.matmul %15, %14, %cst_11 {dimension_numbers = #tpu.dot_dimension_numbers<[1], [0], [0], [1], [0, 0, 1, 1], [], []>} : vector<128x128xbf16>, vector<128x128xbf16>, vector<128x128xf32> -> vector<128x128xf32>
    %c1 = arith.constant 1 : index
    %c0_12 = arith.constant 0 : index
    %c0_13 = arith.constant 0 : index
    %17 = vector.load %arg9[%c1, %c0_12, %c0_13] : memref<27x1x128xf32, #tpu.memory_space<vmem>>, vector<1x1x128xf32>
    %18 = vector.shape_cast %17 : vector<1x1x128xf32> to vector<1x128xf32>
    %19 = vector.broadcast %18 : vector<1x128xf32> to vector<128x128xf32>
    %20 = arith.addf %16, %19 : vector<128x128xf32>
    %cst_14 = arith.constant 0.000000e+00 : f32
    %21 = vector.broadcast %cst_14 : f32 to vector<128x128xf32>
    %22 = arith.cmpf ogt, %20, %21 : vector<128x128xf32>
    %cst_15 = arith.constant 0.00999999977 : f32
    %23 = vector.broadcast %cst_15 : f32 to vector<128x128xf32>
    %24 = arith.mulf %23, %20 : vector<128x128xf32>
    %25 = arith.select %22, %20, %24 : vector<128x128xi1>, vector<128x128xf32>
    %c1_16 = arith.constant 1 : index
    %c0_17 = arith.constant 0 : index
    %c0_18 = arith.constant 0 : index
    %26 = vector.load %arg6[%c1_16, %c0_17, %c0_18] : memref<19x128x128xbf16, #tpu.memory_space<vmem>>, vector<1x128x128xbf16>
    %27 = vector.shape_cast %26 : vector<1x128x128xbf16> to vector<128x128xbf16>
    %28 = arith.truncf %25 : vector<128x128xf32> to vector<128x128xbf16>
    %cst_19 = arith.constant dense<0.000000e+00> : vector<128x128xf32>
    %29 = tpu.matmul %28, %27, %cst_19 {dimension_numbers = #tpu.dot_dimension_numbers<[1], [0], [0], [1], [0, 0, 1, 1], [], []>} : vector<128x128xbf16>, vector<128x128xbf16>, vector<128x128xf32> -> vector<128x128xf32>
    %c2 = arith.constant 2 : index
    %c0_20 = arith.constant 0 : index
    %c0_21 = arith.constant 0 : index
    %30 = vector.load %arg9[%c2, %c0_20, %c0_21] : memref<27x1x128xf32, #tpu.memory_space<vmem>>, vector<1x1x128xf32>
    %31 = vector.shape_cast %30 : vector<1x1x128xf32> to vector<1x128xf32>
    %32 = vector.broadcast %31 : vector<1x128xf32> to vector<128x128xf32>
    %33 = arith.addf %29, %32 : vector<128x128xf32>
    %c0_22 = arith.constant 0 : index
    %c0_23 = arith.constant 0 : index
    %34 = vector.load %arg1[%c0_22, %c0_23] : memref<48x21xf32, #tpu.memory_space<vmem>>, vector<48x21xf32>
    %c0_24 = arith.constant 0 : index
    %c0_25 = arith.constant 0 : index
    %35 = vector.load %arg5[%c0_24, %c0_25] : memref<21x128xbf16, #tpu.memory_space<vmem>>, vector<21x128xbf16>
    %36 = arith.truncf %34 : vector<48x21xf32> to vector<48x21xbf16>
    %cst_26 = arith.constant dense<0.000000e+00> : vector<48x128xf32>
    %37 = tpu.matmul %36, %35, %cst_26 {dimension_numbers = #tpu.dot_dimension_numbers<[1], [0], [0], [1], [0, 0, 1, 1], [], []>} : vector<48x21xbf16>, vector<21x128xbf16>, vector<48x128xf32> -> vector<48x128xf32>
    %c3 = arith.constant 3 : index
    %c0_27 = arith.constant 0 : index
    %c0_28 = arith.constant 0 : index
    %38 = vector.load %arg9[%c3, %c0_27, %c0_28] : memref<27x1x128xf32, #tpu.memory_space<vmem>>, vector<1x1x128xf32>
    %39 = vector.shape_cast %38 : vector<1x1x128xf32> to vector<1x128xf32>
    %40 = vector.broadcast %39 : vector<1x128xf32> to vector<48x128xf32>
    %41 = arith.addf %37, %40 : vector<48x128xf32>
    %cst_29 = arith.constant 0.000000e+00 : f32
    %42 = vector.broadcast %cst_29 : f32 to vector<48x128xf32>
    %43 = arith.cmpf ogt, %41, %42 : vector<48x128xf32>
    %cst_30 = arith.constant 0.00999999977 : f32
    %44 = vector.broadcast %cst_30 : f32 to vector<48x128xf32>
    %45 = arith.mulf %44, %41 : vector<48x128xf32>
    %46 = arith.select %43, %41, %45 : vector<48x128xi1>, vector<48x128xf32>
    %c2_31 = arith.constant 2 : index
    %c0_32 = arith.constant 0 : index
    %c0_33 = arith.constant 0 : index
    %47 = vector.load %arg6[%c2_31, %c0_32, %c0_33] : memref<19x128x128xbf16, #tpu.memory_space<vmem>>, vector<1x128x128xbf16>
    %48 = vector.shape_cast %47 : vector<1x128x128xbf16> to vector<128x128xbf16>
    %49 = arith.truncf %46 : vector<48x128xf32> to vector<48x128xbf16>
    %cst_34 = arith.constant dense<0.000000e+00> : vector<48x128xf32>
    %50 = tpu.matmul %49, %48, %cst_34 {dimension_numbers = #tpu.dot_dimension_numbers<[1], [0], [0], [1], [0, 0, 1, 1], [], []>} : vector<48x128xbf16>, vector<128x128xbf16>, vector<48x128xf32> -> vector<48x128xf32>
    %c4 = arith.constant 4 : index
    %c0_35 = arith.constant 0 : index
    %c0_36 = arith.constant 0 : index
    %51 = vector.load %arg9[%c4, %c0_35, %c0_36] : memref<27x1x128xf32, #tpu.memory_space<vmem>>, vector<1x1x128xf32>
    %52 = vector.shape_cast %51 : vector<1x1x128xf32> to vector<1x128xf32>
    %53 = vector.broadcast %52 : vector<1x128xf32> to vector<48x128xf32>
    %54 = arith.addf %50, %53 : vector<48x128xf32>
    %cst_37 = arith.constant 0.000000e+00 : f32
    %55 = vector.broadcast %cst_37 : f32 to vector<48x128xf32>
    %56 = arith.cmpf ogt, %54, %55 : vector<48x128xf32>
    %cst_38 = arith.constant 0.00999999977 : f32
    %57 = vector.broadcast %cst_38 : f32 to vector<48x128xf32>
    %58 = arith.mulf %57, %54 : vector<48x128xf32>
    %59 = arith.select %56, %54, %58 : vector<48x128xi1>, vector<48x128xf32>
    %c3_39 = arith.constant 3 : index
    %c0_40 = arith.constant 0 : index
    %c0_41 = arith.constant 0 : index
    %60 = vector.load %arg6[%c3_39, %c0_40, %c0_41] : memref<19x128x128xbf16, #tpu.memory_space<vmem>>, vector<1x128x128xbf16>
    %61 = vector.shape_cast %60 : vector<1x128x128xbf16> to vector<128x128xbf16>
    %62 = arith.truncf %59 : vector<48x128xf32> to vector<48x128xbf16>
    %cst_42 = arith.constant dense<0.000000e+00> : vector<48x128xf32>
    %63 = tpu.matmul %62, %61, %cst_42 {dimension_numbers = #tpu.dot_dimension_numbers<[1], [0], [0], [1], [0, 0, 1, 1], [], []>} : vector<48x128xbf16>, vector<128x128xbf16>, vector<48x128xf32> -> vector<48x128xf32>
    %c5 = arith.constant 5 : index
    %c0_43 = arith.constant 0 : index
    %c0_44 = arith.constant 0 : index
    %64 = vector.load %arg9[%c5, %c0_43, %c0_44] : memref<27x1x128xf32, #tpu.memory_space<vmem>>, vector<1x1x128xf32>
    %65 = vector.shape_cast %64 : vector<1x1x128xf32> to vector<1x128xf32>
    %66 = vector.broadcast %65 : vector<1x128xf32> to vector<48x128xf32>
    %67 = arith.addf %63, %66 : vector<48x128xf32>
    %c0_45 = arith.constant 0 : index
    %c0_46 = arith.constant 0 : index
    %68 = vector.load %arg2[%c0_45, %c0_46] : memref<96x128xbf16, #tpu.memory_space<vmem>>, vector<96x128xbf16>
    %c0_47 = arith.constant 0 : index
    %c0_48 = arith.constant 0 : index
    %69 = vector.load %arg3[%c0_47, %c0_48] : memref<48x128xbf16, #tpu.memory_space<vmem>>, vector<48x128xbf16>
    %70 = arith.truncf %33 : vector<128x128xf32> to vector<128x128xbf16>
    %71 = arith.truncf %67 : vector<48x128xf32> to vector<48x128xbf16>
    %cst_49 = arith.constant dense<0.000000e+00> : vector<96x128xf32>
    %72 = tpu.matmul %68, %70, %cst_49 {dimension_numbers = #tpu.dot_dimension_numbers<[1], [0], [0], [1], [0, 0, 1, 1], [], []>} : vector<96x128xbf16>, vector<128x128xbf16>, vector<96x128xf32> -> vector<96x128xf32>
    %73 = vector.extract_strided_slice %72 {offsets = [0, 0], sizes = [48, 128], strides = [1, 1]} : vector<96x128xf32> to vector<48x128xf32>
    %74 = vector.extract_strided_slice %72 {offsets = [48, 0], sizes = [48, 128], strides = [1, 1]} : vector<96x128xf32> to vector<48x128xf32>
    %75 = arith.truncf %74 : vector<48x128xf32> to vector<48x128xbf16>
    %76 = arith.truncf %73 : vector<48x128xf32> to vector<48x128xbf16>
    %77 = tpu.concatenate %75, %76, %71 in 1 : vector<48x128xbf16>, vector<48x128xbf16>, vector<48x128xbf16> -> vector<48x384xbf16>
    %c0_50 = arith.constant 0 : index
    %c0_51 = arith.constant 0 : index
    %c0_52 = arith.constant 0 : index
    %78 = vector.load %arg7[%c0_50, %c0_51, %c0_52] : memref<3x384x128xbf16, #tpu.memory_space<vmem>>, vector<1x384x128xbf16>
    %79 = vector.shape_cast %78 : vector<1x384x128xbf16> to vector<384x128xbf16>
    %cst_53 = arith.constant dense<0.000000e+00> : vector<48x128xf32>
    %80 = tpu.matmul %77, %79, %cst_53 {dimension_numbers = #tpu.dot_dimension_numbers<[1], [0], [0], [1], [0, 0, 1, 1], [], []>} : vector<48x384xbf16>, vector<384x128xbf16>, vector<48x128xf32> -> vector<48x128xf32>
    %c9 = arith.constant 9 : index
    %c0_54 = arith.constant 0 : index
    %c0_55 = arith.constant 0 : index
    %81 = vector.load %arg9[%c9, %c0_54, %c0_55] : memref<27x1x128xf32, #tpu.memory_space<vmem>>, vector<1x1x128xf32>
    %82 = vector.shape_cast %81 : vector<1x1x128xf32> to vector<1x128xf32>
    %83 = vector.broadcast %82 : vector<1x128xf32> to vector<48x128xf32>
    %84 = arith.addf %80, %83 : vector<48x128xf32>
    %cst_56 = arith.constant 0.000000e+00 : f32
    %85 = vector.broadcast %cst_56 : f32 to vector<48x128xf32>
    %86 = arith.cmpf ogt, %84, %85 : vector<48x128xf32>
    %cst_57 = arith.constant 0.00999999977 : f32
    %87 = vector.broadcast %cst_57 : f32 to vector<48x128xf32>
    %88 = arith.mulf %87, %84 : vector<48x128xf32>
    %89 = arith.select %86, %84, %88 : vector<48x128xi1>, vector<48x128xf32>
    %c7 = arith.constant 7 : index
    %c0_58 = arith.constant 0 : index
    %c0_59 = arith.constant 0 : index
    %90 = vector.load %arg6[%c7, %c0_58, %c0_59] : memref<19x128x128xbf16, #tpu.memory_space<vmem>>, vector<1x128x128xbf16>
    %91 = vector.shape_cast %90 : vector<1x128x128xbf16> to vector<128x128xbf16>
    %92 = arith.truncf %89 : vector<48x128xf32> to vector<48x128xbf16>
    %cst_60 = arith.constant dense<0.000000e+00> : vector<48x128xf32>
    %93 = tpu.matmul %92, %91, %cst_60 {dimension_numbers = #tpu.dot_dimension_numbers<[1], [0], [0], [1], [0, 0, 1, 1], [], []>} : vector<48x128xbf16>, vector<128x128xbf16>, vector<48x128xf32> -> vector<48x128xf32>
    %c10 = arith.constant 10 : index
    %c0_61 = arith.constant 0 : index
    %c0_62 = arith.constant 0 : index
    %94 = vector.load %arg9[%c10, %c0_61, %c0_62] : memref<27x1x128xf32, #tpu.memory_space<vmem>>, vector<1x1x128xf32>
    %95 = vector.shape_cast %94 : vector<1x1x128xf32> to vector<1x128xf32>
    %96 = vector.broadcast %95 : vector<1x128xf32> to vector<48x128xf32>
    %97 = arith.addf %93, %96 : vector<48x128xf32>
    %cst_63 = arith.constant 0.000000e+00 : f32
    %98 = vector.broadcast %cst_63 : f32 to vector<48x128xf32>
    %99 = arith.cmpf ogt, %97, %98 : vector<48x128xf32>
    %cst_64 = arith.constant 0.00999999977 : f32
    %100 = vector.broadcast %cst_64 : f32 to vector<48x128xf32>
    %101 = arith.mulf %100, %97 : vector<48x128xf32>
    %102 = arith.select %99, %97, %101 : vector<48x128xi1>, vector<48x128xf32>
    %c8 = arith.constant 8 : index
    %c0_65 = arith.constant 0 : index
    %c0_66 = arith.constant 0 : index
    %103 = vector.load %arg6[%c8, %c0_65, %c0_66] : memref<19x128x128xbf16, #tpu.memory_space<vmem>>, vector<1x128x128xbf16>
    %104 = vector.shape_cast %103 : vector<1x128x128xbf16> to vector<128x128xbf16>
    %105 = arith.truncf %102 : vector<48x128xf32> to vector<48x128xbf16>
    %cst_67 = arith.constant dense<0.000000e+00> : vector<48x128xf32>
    %106 = tpu.matmul %105, %104, %cst_67 {dimension_numbers = #tpu.dot_dimension_numbers<[1], [0], [0], [1], [0, 0, 1, 1], [], []>} : vector<48x128xbf16>, vector<128x128xbf16>, vector<48x128xf32> -> vector<48x128xf32>
    %c11 = arith.constant 11 : index
    %c0_68 = arith.constant 0 : index
    %c0_69 = arith.constant 0 : index
    %107 = vector.load %arg9[%c11, %c0_68, %c0_69] : memref<27x1x128xf32, #tpu.memory_space<vmem>>, vector<1x1x128xf32>
    %108 = vector.shape_cast %107 : vector<1x1x128xf32> to vector<1x128xf32>
    %109 = vector.broadcast %108 : vector<1x128xf32> to vector<48x128xf32>
    %110 = arith.addf %106, %109 : vector<48x128xf32>
    %111 = arith.truncf %110 : vector<48x128xf32> to vector<48x128xbf16>
    %cst_70 = arith.constant dense<0.000000e+00> : vector<128x128xf32>
    %112 = tpu.matmul %69, %111, %cst_70 {dimension_numbers = #tpu.dot_dimension_numbers<[0], [0], [1], [1], [0, 1, 1, 1], [], []>} : vector<48x128xbf16>, vector<48x128xbf16>, vector<128x128xf32> -> vector<128x128xf32>
    %113 = arith.truncf %112 : vector<128x128xf32> to vector<128x128xbf16>
    %114 = tpu.concatenate %70, %113 in 1 : vector<128x128xbf16>, vector<128x128xbf16> -> vector<128x256xbf16>
    %c0_71 = arith.constant 0 : index
    %c0_72 = arith.constant 0 : index
    %c0_73 = arith.constant 0 : index
    %115 = vector.load %arg8[%c0_71, %c0_72, %c0_73] : memref<3x256x128xbf16, #tpu.memory_space<vmem>>, vector<1x256x128xbf16>
    %116 = vector.shape_cast %115 : vector<1x256x128xbf16> to vector<256x128xbf16>
    %cst_74 = arith.constant dense<0.000000e+00> : vector<128x128xf32>
    %117 = tpu.matmul %114, %116, %cst_74 {dimension_numbers = #tpu.dot_dimension_numbers<[1], [0], [0], [1], [0, 0, 1, 1], [], []>} : vector<128x256xbf16>, vector<256x128xbf16>, vector<128x128xf32> -> vector<128x128xf32>
    %c12 = arith.constant 12 : index
    %c0_75 = arith.constant 0 : index
    %c0_76 = arith.constant 0 : index
    %118 = vector.load %arg9[%c12, %c0_75, %c0_76] : memref<27x1x128xf32, #tpu.memory_space<vmem>>, vector<1x1x128xf32>
    %119 = vector.shape_cast %118 : vector<1x1x128xf32> to vector<1x128xf32>
    %120 = vector.broadcast %119 : vector<1x128xf32> to vector<128x128xf32>
    %121 = arith.addf %117, %120 : vector<128x128xf32>
    %cst_77 = arith.constant 0.000000e+00 : f32
    %122 = vector.broadcast %cst_77 : f32 to vector<128x128xf32>
    %123 = arith.cmpf ogt, %121, %122 : vector<128x128xf32>
    %cst_78 = arith.constant 0.00999999977 : f32
    %124 = vector.broadcast %cst_78 : f32 to vector<128x128xf32>
    %125 = arith.mulf %124, %121 : vector<128x128xf32>
    %126 = arith.select %123, %121, %125 : vector<128x128xi1>, vector<128x128xf32>
    %c9_79 = arith.constant 9 : index
    %c0_80 = arith.constant 0 : index
    %c0_81 = arith.constant 0 : index
    %127 = vector.load %arg6[%c9_79, %c0_80, %c0_81] : memref<19x128x128xbf16, #tpu.memory_space<vmem>>, vector<1x128x128xbf16>
    %128 = vector.shape_cast %127 : vector<1x128x128xbf16> to vector<128x128xbf16>
    %129 = arith.truncf %126 : vector<128x128xf32> to vector<128x128xbf16>
    %cst_82 = arith.constant dense<0.000000e+00> : vector<128x128xf32>
    %130 = tpu.matmul %129, %128, %cst_82 {dimension_numbers = #tpu.dot_dimension_numbers<[1], [0], [0], [1], [0, 0, 1, 1], [], []>} : vector<128x128xbf16>, vector<128x128xbf16>, vector<128x128xf32> -> vector<128x128xf32>
    %c13 = arith.constant 13 : index
    %c0_83 = arith.constant 0 : index
    %c0_84 = arith.constant 0 : index
    %131 = vector.load %arg9[%c13, %c0_83, %c0_84] : memref<27x1x128xf32, #tpu.memory_space<vmem>>, vector<1x1x128xf32>
    %132 = vector.shape_cast %131 : vector<1x1x128xf32> to vector<1x128xf32>
    %133 = vector.broadcast %132 : vector<1x128xf32> to vector<128x128xf32>
    %134 = arith.addf %130, %133 : vector<128x128xf32>
    %cst_85 = arith.constant 0.000000e+00 : f32
    %135 = vector.broadcast %cst_85 : f32 to vector<128x128xf32>
    %136 = arith.cmpf ogt, %134, %135 : vector<128x128xf32>
    %cst_86 = arith.constant 0.00999999977 : f32
    %137 = vector.broadcast %cst_86 : f32 to vector<128x128xf32>
    %138 = arith.mulf %137, %134 : vector<128x128xf32>
    %139 = arith.select %136, %134, %138 : vector<128x128xi1>, vector<128x128xf32>
    %c10_87 = arith.constant 10 : index
    %c0_88 = arith.constant 0 : index
    %c0_89 = arith.constant 0 : index
    %140 = vector.load %arg6[%c10_87, %c0_88, %c0_89] : memref<19x128x128xbf16, #tpu.memory_space<vmem>>, vector<1x128x128xbf16>
    %141 = vector.shape_cast %140 : vector<1x128x128xbf16> to vector<128x128xbf16>
    %142 = arith.truncf %139 : vector<128x128xf32> to vector<128x128xbf16>
    %cst_90 = arith.constant dense<0.000000e+00> : vector<128x128xf32>
    %143 = tpu.matmul %142, %141, %cst_90 {dimension_numbers = #tpu.dot_dimension_numbers<[1], [0], [0], [1], [0, 0, 1, 1], [], []>} : vector<128x128xbf16>, vector<128x128xbf16>, vector<128x128xf32> -> vector<128x128xf32>
    %c14 = arith.constant 14 : index
    %c0_91 = arith.constant 0 : index
    %c0_92 = arith.constant 0 : index
    %144 = vector.load %arg9[%c14, %c0_91, %c0_92] : memref<27x1x128xf32, #tpu.memory_space<vmem>>, vector<1x1x128xf32>
    %145 = vector.shape_cast %144 : vector<1x1x128xf32> to vector<1x128xf32>
    %146 = vector.broadcast %145 : vector<1x128xf32> to vector<128x128xf32>
    %147 = arith.addf %143, %146 : vector<128x128xf32>
    %148 = arith.addf %33, %147 : vector<128x128xf32>
    %149 = arith.addf %67, %110 : vector<48x128xf32>
    %150 = arith.truncf %148 : vector<128x128xf32> to vector<128x128xbf16>
    %151 = arith.truncf %149 : vector<48x128xf32> to vector<48x128xbf16>
    %cst_93 = arith.constant dense<0.000000e+00> : vector<96x128xf32>
    %152 = tpu.matmul %68, %150, %cst_93 {dimension_numbers = #tpu.dot_dimension_numbers<[1], [0], [0], [1], [0, 0, 1, 1], [], []>} : vector<96x128xbf16>, vector<128x128xbf16>, vector<96x128xf32> -> vector<96x128xf32>
    %153 = vector.extract_strided_slice %152 {offsets = [0, 0], sizes = [48, 128], strides = [1, 1]} : vector<96x128xf32> to vector<48x128xf32>
    %154 = vector.extract_strided_slice %152 {offsets = [48, 0], sizes = [48, 128], strides = [1, 1]} : vector<96x128xf32> to vector<48x128xf32>
    %155 = arith.truncf %154 : vector<48x128xf32> to vector<48x128xbf16>
    %156 = arith.truncf %153 : vector<48x128xf32> to vector<48x128xbf16>
    %157 = tpu.concatenate %155, %156, %151 in 1 : vector<48x128xbf16>, vector<48x128xbf16>, vector<48x128xbf16> -> vector<48x384xbf16>
    %c1_94 = arith.constant 1 : index
    %c0_95 = arith.constant 0 : index
    %c0_96 = arith.constant 0 : index
    %158 = vector.load %arg7[%c1_94, %c0_95, %c0_96] : memref<3x384x128xbf16, #tpu.memory_space<vmem>>, vector<1x384x128xbf16>
    %159 = vector.shape_cast %158 : vector<1x384x128xbf16> to vector<384x128xbf16>
    %cst_97 = arith.constant dense<0.000000e+00> : vector<48x128xf32>
    %160 = tpu.matmul %157, %159, %cst_97 {dimension_numbers = #tpu.dot_dimension_numbers<[1], [0], [0], [1], [0, 0, 1, 1], [], []>} : vector<48x384xbf16>, vector<384x128xbf16>, vector<48x128xf32> -> vector<48x128xf32>
    %c15 = arith.constant 15 : index
    %c0_98 = arith.constant 0 : index
    %c0_99 = arith.constant 0 : index
    %161 = vector.load %arg9[%c15, %c0_98, %c0_99] : memref<27x1x128xf32, #tpu.memory_space<vmem>>, vector<1x1x128xf32>
    %162 = vector.shape_cast %161 : vector<1x1x128xf32> to vector<1x128xf32>
    %163 = vector.broadcast %162 : vector<1x128xf32> to vector<48x128xf32>
    %164 = arith.addf %160, %163 : vector<48x128xf32>
    %cst_100 = arith.constant 0.000000e+00 : f32
    %165 = vector.broadcast %cst_100 : f32 to vector<48x128xf32>
    %166 = arith.cmpf ogt, %164, %165 : vector<48x128xf32>
    %cst_101 = arith.constant 0.00999999977 : f32
    %167 = vector.broadcast %cst_101 : f32 to vector<48x128xf32>
    %168 = arith.mulf %167, %164 : vector<48x128xf32>
    %169 = arith.select %166, %164, %168 : vector<48x128xi1>, vector<48x128xf32>
    %c11_102 = arith.constant 11 : index
    %c0_103 = arith.constant 0 : index
    %c0_104 = arith.constant 0 : index
    %170 = vector.load %arg6[%c11_102, %c0_103, %c0_104] : memref<19x128x128xbf16, #tpu.memory_space<vmem>>, vector<1x128x128xbf16>
    %171 = vector.shape_cast %170 : vector<1x128x128xbf16> to vector<128x128xbf16>
    %172 = arith.truncf %169 : vector<48x128xf32> to vector<48x128xbf16>
    %cst_105 = arith.constant dense<0.000000e+00> : vector<48x128xf32>
    %173 = tpu.matmul %172, %171, %cst_105 {dimension_numbers = #tpu.dot_dimension_numbers<[1], [0], [0], [1], [0, 0, 1, 1], [], []>} : vector<48x128xbf16>, vector<128x128xbf16>, vector<48x128xf32> -> vector<48x128xf32>
    %c16 = arith.constant 16 : index
    %c0_106 = arith.constant 0 : index
    %c0_107 = arith.constant 0 : index
    %174 = vector.load %arg9[%c16, %c0_106, %c0_107] : memref<27x1x128xf32, #tpu.memory_space<vmem>>, vector<1x1x128xf32>
    %175 = vector.shape_cast %174 : vector<1x1x128xf32> to vector<1x128xf32>
    %176 = vector.broadcast %175 : vector<1x128xf32> to vector<48x128xf32>
    %177 = arith.addf %173, %176 : vector<48x128xf32>
    %cst_108 = arith.constant 0.000000e+00 : f32
    %178 = vector.broadcast %cst_108 : f32 to vector<48x128xf32>
    %179 = arith.cmpf ogt, %177, %178 : vector<48x128xf32>
    %cst_109 = arith.constant 0.00999999977 : f32
    %180 = vector.broadcast %cst_109 : f32 to vector<48x128xf32>
    %181 = arith.mulf %180, %177 : vector<48x128xf32>
    %182 = arith.select %179, %177, %181 : vector<48x128xi1>, vector<48x128xf32>
    %c12_110 = arith.constant 12 : index
    %c0_111 = arith.constant 0 : index
    %c0_112 = arith.constant 0 : index
    %183 = vector.load %arg6[%c12_110, %c0_111, %c0_112] : memref<19x128x128xbf16, #tpu.memory_space<vmem>>, vector<1x128x128xbf16>
    %184 = vector.shape_cast %183 : vector<1x128x128xbf16> to vector<128x128xbf16>
    %185 = arith.truncf %182 : vector<48x128xf32> to vector<48x128xbf16>
    %cst_113 = arith.constant dense<0.000000e+00> : vector<48x128xf32>
    %186 = tpu.matmul %185, %184, %cst_113 {dimension_numbers = #tpu.dot_dimension_numbers<[1], [0], [0], [1], [0, 0, 1, 1], [], []>} : vector<48x128xbf16>, vector<128x128xbf16>, vector<48x128xf32> -> vector<48x128xf32>
    %c17 = arith.constant 17 : index
    %c0_114 = arith.constant 0 : index
    %c0_115 = arith.constant 0 : index
    %187 = vector.load %arg9[%c17, %c0_114, %c0_115] : memref<27x1x128xf32, #tpu.memory_space<vmem>>, vector<1x1x128xf32>
    %188 = vector.shape_cast %187 : vector<1x1x128xf32> to vector<1x128xf32>
    %189 = vector.broadcast %188 : vector<1x128xf32> to vector<48x128xf32>
    %190 = arith.addf %186, %189 : vector<48x128xf32>
    %191 = arith.truncf %190 : vector<48x128xf32> to vector<48x128xbf16>
    %cst_116 = arith.constant dense<0.000000e+00> : vector<128x128xf32>
    %192 = tpu.matmul %69, %191, %cst_116 {dimension_numbers = #tpu.dot_dimension_numbers<[0], [0], [1], [1], [0, 1, 1, 1], [], []>} : vector<48x128xbf16>, vector<48x128xbf16>, vector<128x128xf32> -> vector<128x128xf32>
    %193 = arith.truncf %192 : vector<128x128xf32> to vector<128x128xbf16>
    %194 = tpu.concatenate %150, %193 in 1 : vector<128x128xbf16>, vector<128x128xbf16> -> vector<128x256xbf16>
    %c1_117 = arith.constant 1 : index
    %c0_118 = arith.constant 0 : index
    %c0_119 = arith.constant 0 : index
    %195 = vector.load %arg8[%c1_117, %c0_118, %c0_119] : memref<3x256x128xbf16, #tpu.memory_space<vmem>>, vector<1x256x128xbf16>
    %196 = vector.shape_cast %195 : vector<1x256x128xbf16> to vector<256x128xbf16>
    %cst_120 = arith.constant dense<0.000000e+00> : vector<128x128xf32>
    %197 = tpu.matmul %194, %196, %cst_120 {dimension_numbers = #tpu.dot_dimension_numbers<[1], [0], [0], [1], [0, 0, 1, 1], [], []>} : vector<128x256xbf16>, vector<256x128xbf16>, vector<128x128xf32> -> vector<128x128xf32>
    %c18 = arith.constant 18 : index
    %c0_121 = arith.constant 0 : index
    %c0_122 = arith.constant 0 : index
    %198 = vector.load %arg9[%c18, %c0_121, %c0_122] : memref<27x1x128xf32, #tpu.memory_space<vmem>>, vector<1x1x128xf32>
    %199 = vector.shape_cast %198 : vector<1x1x128xf32> to vector<1x128xf32>
    %200 = vector.broadcast %199 : vector<1x128xf32> to vector<128x128xf32>
    %201 = arith.addf %197, %200 : vector<128x128xf32>
    %cst_123 = arith.constant 0.000000e+00 : f32
    %202 = vector.broadcast %cst_123 : f32 to vector<128x128xf32>
    %203 = arith.cmpf ogt, %201, %202 : vector<128x128xf32>
    %cst_124 = arith.constant 0.00999999977 : f32
    %204 = vector.broadcast %cst_124 : f32 to vector<128x128xf32>
    %205 = arith.mulf %204, %201 : vector<128x128xf32>
    %206 = arith.select %203, %201, %205 : vector<128x128xi1>, vector<128x128xf32>
    %c13_125 = arith.constant 13 : index
    %c0_126 = arith.constant 0 : index
    %c0_127 = arith.constant 0 : index
    %207 = vector.load %arg6[%c13_125, %c0_126, %c0_127] : memref<19x128x128xbf16, #tpu.memory_space<vmem>>, vector<1x128x128xbf16>
    %208 = vector.shape_cast %207 : vector<1x128x128xbf16> to vector<128x128xbf16>
    %209 = arith.truncf %206 : vector<128x128xf32> to vector<128x128xbf16>
    %cst_128 = arith.constant dense<0.000000e+00> : vector<128x128xf32>
    %210 = tpu.matmul %209, %208, %cst_128 {dimension_numbers = #tpu.dot_dimension_numbers<[1], [0], [0], [1], [0, 0, 1, 1], [], []>} : vector<128x128xbf16>, vector<128x128xbf16>, vector<128x128xf32> -> vector<128x128xf32>
    %c19 = arith.constant 19 : index
    %c0_129 = arith.constant 0 : index
    %c0_130 = arith.constant 0 : index
    %211 = vector.load %arg9[%c19, %c0_129, %c0_130] : memref<27x1x128xf32, #tpu.memory_space<vmem>>, vector<1x1x128xf32>
    %212 = vector.shape_cast %211 : vector<1x1x128xf32> to vector<1x128xf32>
    %213 = vector.broadcast %212 : vector<1x128xf32> to vector<128x128xf32>
    %214 = arith.addf %210, %213 : vector<128x128xf32>
    %cst_131 = arith.constant 0.000000e+00 : f32
    %215 = vector.broadcast %cst_131 : f32 to vector<128x128xf32>
    %216 = arith.cmpf ogt, %214, %215 : vector<128x128xf32>
    %cst_132 = arith.constant 0.00999999977 : f32
    %217 = vector.broadcast %cst_132 : f32 to vector<128x128xf32>
    %218 = arith.mulf %217, %214 : vector<128x128xf32>
    %219 = arith.select %216, %214, %218 : vector<128x128xi1>, vector<128x128xf32>
    %c14_133 = arith.constant 14 : index
    %c0_134 = arith.constant 0 : index
    %c0_135 = arith.constant 0 : index
    %220 = vector.load %arg6[%c14_133, %c0_134, %c0_135] : memref<19x128x128xbf16, #tpu.memory_space<vmem>>, vector<1x128x128xbf16>
    %221 = vector.shape_cast %220 : vector<1x128x128xbf16> to vector<128x128xbf16>
    %222 = arith.truncf %219 : vector<128x128xf32> to vector<128x128xbf16>
    %cst_136 = arith.constant dense<0.000000e+00> : vector<128x128xf32>
    %223 = tpu.matmul %222, %221, %cst_136 {dimension_numbers = #tpu.dot_dimension_numbers<[1], [0], [0], [1], [0, 0, 1, 1], [], []>} : vector<128x128xbf16>, vector<128x128xbf16>, vector<128x128xf32> -> vector<128x128xf32>
    %c20 = arith.constant 20 : index
    %c0_137 = arith.constant 0 : index
    %c0_138 = arith.constant 0 : index
    %224 = vector.load %arg9[%c20, %c0_137, %c0_138] : memref<27x1x128xf32, #tpu.memory_space<vmem>>, vector<1x1x128xf32>
    %225 = vector.shape_cast %224 : vector<1x1x128xf32> to vector<1x128xf32>
    %226 = vector.broadcast %225 : vector<1x128xf32> to vector<128x128xf32>
    %227 = arith.addf %223, %226 : vector<128x128xf32>
    %228 = arith.addf %148, %227 : vector<128x128xf32>
    %229 = arith.addf %149, %190 : vector<48x128xf32>
    %230 = arith.truncf %228 : vector<128x128xf32> to vector<128x128xbf16>
    %231 = arith.truncf %229 : vector<48x128xf32> to vector<48x128xbf16>
    %cst_139 = arith.constant dense<0.000000e+00> : vector<96x128xf32>
    %232 = tpu.matmul %68, %230, %cst_139 {dimension_numbers = #tpu.dot_dimension_numbers<[1], [0], [0], [1], [0, 0, 1, 1], [], []>} : vector<96x128xbf16>, vector<128x128xbf16>, vector<96x128xf32> -> vector<96x128xf32>
    %233 = vector.extract_strided_slice %232 {offsets = [0, 0], sizes = [48, 128], strides = [1, 1]} : vector<96x128xf32> to vector<48x128xf32>
    %234 = vector.extract_strided_slice %232 {offsets = [48, 0], sizes = [48, 128], strides = [1, 1]} : vector<96x128xf32> to vector<48x128xf32>
    %235 = arith.truncf %234 : vector<48x128xf32> to vector<48x128xbf16>
    %236 = arith.truncf %233 : vector<48x128xf32> to vector<48x128xbf16>
    %237 = tpu.concatenate %235, %236, %231 in 1 : vector<48x128xbf16>, vector<48x128xbf16>, vector<48x128xbf16> -> vector<48x384xbf16>
    %c2_140 = arith.constant 2 : index
    %c0_141 = arith.constant 0 : index
    %c0_142 = arith.constant 0 : index
    %238 = vector.load %arg7[%c2_140, %c0_141, %c0_142] : memref<3x384x128xbf16, #tpu.memory_space<vmem>>, vector<1x384x128xbf16>
    %239 = vector.shape_cast %238 : vector<1x384x128xbf16> to vector<384x128xbf16>
    %cst_143 = arith.constant dense<0.000000e+00> : vector<48x128xf32>
    %240 = tpu.matmul %237, %239, %cst_143 {dimension_numbers = #tpu.dot_dimension_numbers<[1], [0], [0], [1], [0, 0, 1, 1], [], []>} : vector<48x384xbf16>, vector<384x128xbf16>, vector<48x128xf32> -> vector<48x128xf32>
    %c21 = arith.constant 21 : index
    %c0_144 = arith.constant 0 : index
    %c0_145 = arith.constant 0 : index
    %241 = vector.load %arg9[%c21, %c0_144, %c0_145] : memref<27x1x128xf32, #tpu.memory_space<vmem>>, vector<1x1x128xf32>
    %242 = vector.shape_cast %241 : vector<1x1x128xf32> to vector<1x128xf32>
    %243 = vector.broadcast %242 : vector<1x128xf32> to vector<48x128xf32>
    %244 = arith.addf %240, %243 : vector<48x128xf32>
    %cst_146 = arith.constant 0.000000e+00 : f32
    %245 = vector.broadcast %cst_146 : f32 to vector<48x128xf32>
    %246 = arith.cmpf ogt, %244, %245 : vector<48x128xf32>
    %cst_147 = arith.constant 0.00999999977 : f32
    %247 = vector.broadcast %cst_147 : f32 to vector<48x128xf32>
    %248 = arith.mulf %247, %244 : vector<48x128xf32>
    %249 = arith.select %246, %244, %248 : vector<48x128xi1>, vector<48x128xf32>
    %c15_148 = arith.constant 15 : index
    %c0_149 = arith.constant 0 : index
    %c0_150 = arith.constant 0 : index
    %250 = vector.load %arg6[%c15_148, %c0_149, %c0_150] : memref<19x128x128xbf16, #tpu.memory_space<vmem>>, vector<1x128x128xbf16>
    %251 = vector.shape_cast %250 : vector<1x128x128xbf16> to vector<128x128xbf16>
    %252 = arith.truncf %249 : vector<48x128xf32> to vector<48x128xbf16>
    %cst_151 = arith.constant dense<0.000000e+00> : vector<48x128xf32>
    %253 = tpu.matmul %252, %251, %cst_151 {dimension_numbers = #tpu.dot_dimension_numbers<[1], [0], [0], [1], [0, 0, 1, 1], [], []>} : vector<48x128xbf16>, vector<128x128xbf16>, vector<48x128xf32> -> vector<48x128xf32>
    %c22 = arith.constant 22 : index
    %c0_152 = arith.constant 0 : index
    %c0_153 = arith.constant 0 : index
    %254 = vector.load %arg9[%c22, %c0_152, %c0_153] : memref<27x1x128xf32, #tpu.memory_space<vmem>>, vector<1x1x128xf32>
    %255 = vector.shape_cast %254 : vector<1x1x128xf32> to vector<1x128xf32>
    %256 = vector.broadcast %255 : vector<1x128xf32> to vector<48x128xf32>
    %257 = arith.addf %253, %256 : vector<48x128xf32>
    %cst_154 = arith.constant 0.000000e+00 : f32
    %258 = vector.broadcast %cst_154 : f32 to vector<48x128xf32>
    %259 = arith.cmpf ogt, %257, %258 : vector<48x128xf32>
    %cst_155 = arith.constant 0.00999999977 : f32
    %260 = vector.broadcast %cst_155 : f32 to vector<48x128xf32>
    %261 = arith.mulf %260, %257 : vector<48x128xf32>
    %262 = arith.select %259, %257, %261 : vector<48x128xi1>, vector<48x128xf32>
    %c16_156 = arith.constant 16 : index
    %c0_157 = arith.constant 0 : index
    %c0_158 = arith.constant 0 : index
    %263 = vector.load %arg6[%c16_156, %c0_157, %c0_158] : memref<19x128x128xbf16, #tpu.memory_space<vmem>>, vector<1x128x128xbf16>
    %264 = vector.shape_cast %263 : vector<1x128x128xbf16> to vector<128x128xbf16>
    %265 = arith.truncf %262 : vector<48x128xf32> to vector<48x128xbf16>
    %cst_159 = arith.constant dense<0.000000e+00> : vector<48x128xf32>
    %266 = tpu.matmul %265, %264, %cst_159 {dimension_numbers = #tpu.dot_dimension_numbers<[1], [0], [0], [1], [0, 0, 1, 1], [], []>} : vector<48x128xbf16>, vector<128x128xbf16>, vector<48x128xf32> -> vector<48x128xf32>
    %c23 = arith.constant 23 : index
    %c0_160 = arith.constant 0 : index
    %c0_161 = arith.constant 0 : index
    %267 = vector.load %arg9[%c23, %c0_160, %c0_161] : memref<27x1x128xf32, #tpu.memory_space<vmem>>, vector<1x1x128xf32>
    %268 = vector.shape_cast %267 : vector<1x1x128xf32> to vector<1x128xf32>
    %269 = vector.broadcast %268 : vector<1x128xf32> to vector<48x128xf32>
    %270 = arith.addf %266, %269 : vector<48x128xf32>
    %271 = arith.truncf %270 : vector<48x128xf32> to vector<48x128xbf16>
    %cst_162 = arith.constant dense<0.000000e+00> : vector<128x128xf32>
    %272 = tpu.matmul %69, %271, %cst_162 {dimension_numbers = #tpu.dot_dimension_numbers<[0], [0], [1], [1], [0, 1, 1, 1], [], []>} : vector<48x128xbf16>, vector<48x128xbf16>, vector<128x128xf32> -> vector<128x128xf32>
    %273 = arith.truncf %272 : vector<128x128xf32> to vector<128x128xbf16>
    %274 = tpu.concatenate %230, %273 in 1 : vector<128x128xbf16>, vector<128x128xbf16> -> vector<128x256xbf16>
    %c2_163 = arith.constant 2 : index
    %c0_164 = arith.constant 0 : index
    %c0_165 = arith.constant 0 : index
    %275 = vector.load %arg8[%c2_163, %c0_164, %c0_165] : memref<3x256x128xbf16, #tpu.memory_space<vmem>>, vector<1x256x128xbf16>
    %276 = vector.shape_cast %275 : vector<1x256x128xbf16> to vector<256x128xbf16>
    %cst_166 = arith.constant dense<0.000000e+00> : vector<128x128xf32>
    %277 = tpu.matmul %274, %276, %cst_166 {dimension_numbers = #tpu.dot_dimension_numbers<[1], [0], [0], [1], [0, 0, 1, 1], [], []>} : vector<128x256xbf16>, vector<256x128xbf16>, vector<128x128xf32> -> vector<128x128xf32>
    %c24 = arith.constant 24 : index
    %c0_167 = arith.constant 0 : index
    %c0_168 = arith.constant 0 : index
    %278 = vector.load %arg9[%c24, %c0_167, %c0_168] : memref<27x1x128xf32, #tpu.memory_space<vmem>>, vector<1x1x128xf32>
    %279 = vector.shape_cast %278 : vector<1x1x128xf32> to vector<1x128xf32>
    %280 = vector.broadcast %279 : vector<1x128xf32> to vector<128x128xf32>
    %281 = arith.addf %277, %280 : vector<128x128xf32>
    %cst_169 = arith.constant 0.000000e+00 : f32
    %282 = vector.broadcast %cst_169 : f32 to vector<128x128xf32>
    %283 = arith.cmpf ogt, %281, %282 : vector<128x128xf32>
    %cst_170 = arith.constant 0.00999999977 : f32
    %284 = vector.broadcast %cst_170 : f32 to vector<128x128xf32>
    %285 = arith.mulf %284, %281 : vector<128x128xf32>
    %286 = arith.select %283, %281, %285 : vector<128x128xi1>, vector<128x128xf32>
    %c17_171 = arith.constant 17 : index
    %c0_172 = arith.constant 0 : index
    %c0_173 = arith.constant 0 : index
    %287 = vector.load %arg6[%c17_171, %c0_172, %c0_173] : memref<19x128x128xbf16, #tpu.memory_space<vmem>>, vector<1x128x128xbf16>
    %288 = vector.shape_cast %287 : vector<1x128x128xbf16> to vector<128x128xbf16>
    %289 = arith.truncf %286 : vector<128x128xf32> to vector<128x128xbf16>
    %cst_174 = arith.constant dense<0.000000e+00> : vector<128x128xf32>
    %290 = tpu.matmul %289, %288, %cst_174 {dimension_numbers = #tpu.dot_dimension_numbers<[1], [0], [0], [1], [0, 0, 1, 1], [], []>} : vector<128x128xbf16>, vector<128x128xbf16>, vector<128x128xf32> -> vector<128x128xf32>
    %c25 = arith.constant 25 : index
    %c0_175 = arith.constant 0 : index
    %c0_176 = arith.constant 0 : index
    %291 = vector.load %arg9[%c25, %c0_175, %c0_176] : memref<27x1x128xf32, #tpu.memory_space<vmem>>, vector<1x1x128xf32>
    %292 = vector.shape_cast %291 : vector<1x1x128xf32> to vector<1x128xf32>
    %293 = vector.broadcast %292 : vector<1x128xf32> to vector<128x128xf32>
    %294 = arith.addf %290, %293 : vector<128x128xf32>
    %cst_177 = arith.constant 0.000000e+00 : f32
    %295 = vector.broadcast %cst_177 : f32 to vector<128x128xf32>
    %296 = arith.cmpf ogt, %294, %295 : vector<128x128xf32>
    %cst_178 = arith.constant 0.00999999977 : f32
    %297 = vector.broadcast %cst_178 : f32 to vector<128x128xf32>
    %298 = arith.mulf %297, %294 : vector<128x128xf32>
    %299 = arith.select %296, %294, %298 : vector<128x128xi1>, vector<128x128xf32>
    %c18_179 = arith.constant 18 : index
    %c0_180 = arith.constant 0 : index
    %c0_181 = arith.constant 0 : index
    %300 = vector.load %arg6[%c18_179, %c0_180, %c0_181] : memref<19x128x128xbf16, #tpu.memory_space<vmem>>, vector<1x128x128xbf16>
    %301 = vector.shape_cast %300 : vector<1x128x128xbf16> to vector<128x128xbf16>
    %302 = arith.truncf %299 : vector<128x128xf32> to vector<128x128xbf16>
    %cst_182 = arith.constant dense<0.000000e+00> : vector<128x128xf32>
    %303 = tpu.matmul %302, %301, %cst_182 {dimension_numbers = #tpu.dot_dimension_numbers<[1], [0], [0], [1], [0, 0, 1, 1], [], []>} : vector<128x128xbf16>, vector<128x128xbf16>, vector<128x128xf32> -> vector<128x128xf32>
    %c26 = arith.constant 26 : index
    %c0_183 = arith.constant 0 : index
    %c0_184 = arith.constant 0 : index
    %304 = vector.load %arg9[%c26, %c0_183, %c0_184] : memref<27x1x128xf32, #tpu.memory_space<vmem>>, vector<1x1x128xf32>
    %305 = vector.shape_cast %304 : vector<1x1x128xf32> to vector<1x128xf32>
    %306 = vector.broadcast %305 : vector<1x128xf32> to vector<128x128xf32>
    %307 = arith.addf %303, %306 : vector<128x128xf32>
    %308 = arith.addf %228, %307 : vector<128x128xf32>
    %c4_185 = arith.constant 4 : index
    %c0_186 = arith.constant 0 : index
    %c0_187 = arith.constant 0 : index
    %309 = vector.load %arg6[%c4_185, %c0_186, %c0_187] : memref<19x128x128xbf16, #tpu.memory_space<vmem>>, vector<1x128x128xbf16>
    %310 = vector.shape_cast %309 : vector<1x128x128xbf16> to vector<128x128xbf16>
    %311 = arith.truncf %308 : vector<128x128xf32> to vector<128x128xbf16>
    %cst_188 = arith.constant dense<0.000000e+00> : vector<128x128xf32>
    %312 = tpu.matmul %311, %310, %cst_188 {dimension_numbers = #tpu.dot_dimension_numbers<[1], [0], [0], [1], [0, 0, 1, 1], [], []>} : vector<128x128xbf16>, vector<128x128xbf16>, vector<128x128xf32> -> vector<128x128xf32>
    %c6 = arith.constant 6 : index
    %c0_189 = arith.constant 0 : index
    %c0_190 = arith.constant 0 : index
    %313 = vector.load %arg9[%c6, %c0_189, %c0_190] : memref<27x1x128xf32, #tpu.memory_space<vmem>>, vector<1x1x128xf32>
    %314 = vector.shape_cast %313 : vector<1x1x128xf32> to vector<1x128xf32>
    %315 = vector.broadcast %314 : vector<1x128xf32> to vector<128x128xf32>
    %316 = arith.addf %312, %315 : vector<128x128xf32>
    %cst_191 = arith.constant 0.000000e+00 : f32
    %317 = vector.broadcast %cst_191 : f32 to vector<128x128xf32>
    %318 = arith.cmpf ogt, %316, %317 : vector<128x128xf32>
    %cst_192 = arith.constant 0.00999999977 : f32
    %319 = vector.broadcast %cst_192 : f32 to vector<128x128xf32>
    %320 = arith.mulf %319, %316 : vector<128x128xf32>
    %321 = arith.select %318, %316, %320 : vector<128x128xi1>, vector<128x128xf32>
    %c5_193 = arith.constant 5 : index
    %c0_194 = arith.constant 0 : index
    %c0_195 = arith.constant 0 : index
    %322 = vector.load %arg6[%c5_193, %c0_194, %c0_195] : memref<19x128x128xbf16, #tpu.memory_space<vmem>>, vector<1x128x128xbf16>
    %323 = vector.shape_cast %322 : vector<1x128x128xbf16> to vector<128x128xbf16>
    %324 = arith.truncf %321 : vector<128x128xf32> to vector<128x128xbf16>
    %cst_196 = arith.constant dense<0.000000e+00> : vector<128x128xf32>
    %325 = tpu.matmul %324, %323, %cst_196 {dimension_numbers = #tpu.dot_dimension_numbers<[1], [0], [0], [1], [0, 0, 1, 1], [], []>} : vector<128x128xbf16>, vector<128x128xbf16>, vector<128x128xf32> -> vector<128x128xf32>
    %c7_197 = arith.constant 7 : index
    %c0_198 = arith.constant 0 : index
    %c0_199 = arith.constant 0 : index
    %326 = vector.load %arg9[%c7_197, %c0_198, %c0_199] : memref<27x1x128xf32, #tpu.memory_space<vmem>>, vector<1x1x128xf32>
    %327 = vector.shape_cast %326 : vector<1x1x128xf32> to vector<1x128xf32>
    %328 = vector.broadcast %327 : vector<1x128xf32> to vector<128x128xf32>
    %329 = arith.addf %325, %328 : vector<128x128xf32>
    %cst_200 = arith.constant 0.000000e+00 : f32
    %330 = vector.broadcast %cst_200 : f32 to vector<128x128xf32>
    %331 = arith.cmpf ogt, %329, %330 : vector<128x128xf32>
    %cst_201 = arith.constant 0.00999999977 : f32
    %332 = vector.broadcast %cst_201 : f32 to vector<128x128xf32>
    %333 = arith.mulf %332, %329 : vector<128x128xf32>
    %334 = arith.select %331, %329, %333 : vector<128x128xi1>, vector<128x128xf32>
    %c6_202 = arith.constant 6 : index
    %c0_203 = arith.constant 0 : index
    %c0_204 = arith.constant 0 : index
    %335 = vector.load %arg6[%c6_202, %c0_203, %c0_204] : memref<19x128x128xbf16, #tpu.memory_space<vmem>>, vector<1x128x128xbf16>
    %336 = vector.shape_cast %335 : vector<1x128x128xbf16> to vector<128x128xbf16>
    %337 = arith.truncf %334 : vector<128x128xf32> to vector<128x128xbf16>
    %cst_205 = arith.constant dense<0.000000e+00> : vector<128x128xf32>
    %338 = tpu.matmul %337, %336, %cst_205 {dimension_numbers = #tpu.dot_dimension_numbers<[1], [0], [0], [1], [0, 0, 1, 1], [], []>} : vector<128x128xbf16>, vector<128x128xbf16>, vector<128x128xf32> -> vector<128x128xf32>
    %c8_206 = arith.constant 8 : index
    %c0_207 = arith.constant 0 : index
    %c0_208 = arith.constant 0 : index
    %339 = vector.load %arg9[%c8_206, %c0_207, %c0_208] : memref<27x1x128xf32, #tpu.memory_space<vmem>>, vector<1x1x128xf32>
    %340 = vector.shape_cast %339 : vector<1x1x128xf32> to vector<1x128xf32>
    %341 = vector.broadcast %340 : vector<1x128xf32> to vector<128x128xf32>
    %342 = arith.addf %338, %341 : vector<128x128xf32>
    %c0_209 = arith.constant 0 : index
    %c0_210 = arith.constant 0 : index
    %343 = vector.load %arg10[%c0_209, %c0_210] : memref<128x128xf32, #tpu.memory_space<vmem>>, vector<128x128xf32>
    tpu.vector_store %arg10[%c0_209, %c0_210], %342 {strides = array<i32>} : memref<128x128xf32, #tpu.memory_space<vmem>>, vector<128x128xf32>,
    return
  }
}

</mosaic_0001>

<llo_original>
// kernel: forward.1
$region0: #{forward.1}
  #allocation0 [shape = 'u32[]', space=smem, size = 0x4, offset = 0x4, fixed_abs, tag = 'smem constant byte address 0x4 - core index']
  #allocation1 [shape = 'u32[144,128]{1,0:T(1,128)}', space=vmem, size = 0x12000, scoped, tag = 'internal scratch']
  %s0 = inlined_call_operand.vmem [shape: f32[128,7], index: 0, kind: input, shape index: {}]
  %s1 = inlined_call_operand.vmem [shape: f32[48,21], index: 1, kind: input, shape index: {}]
  %s2 = inlined_call_operand.vmem [shape: bf16[96,128], index: 2, kind: input, shape index: {}]
  %s3 = inlined_call_operand.vmem [shape: bf16[48,128], index: 3, kind: input, shape index: {}]
  %s4 = inlined_call_operand.vmem [shape: bf16[7,128], index: 4, kind: input, shape index: {}]
  %s5 = inlined_call_operand.vmem [shape: bf16[21,128], index: 5, kind: input, shape index: {}]
  %s6 = inlined_call_operand.hbm [shape: bf16[19,128,128], index: 6, kind: input, shape index: {}]
  %s7 = inlined_call_operand.hbm [shape: bf16[3,384,128], index: 7, kind: input, shape index: {}]
  %s8 = inlined_call_operand.vmem [shape: bf16[3,256,128], index: 8, kind: input, shape index: {}]
  %s9 = inlined_call_operand.vmem [shape: f32[27,1,128], index: 9, kind: input, shape index: {}]
  %s10 = inlined_call_operand.vmem [shape: f32[128,128], index: 10, kind: output, shape index: {}]
  %s11 = sld [smem:[#allocation0]]
  $region58: #{forward.1} parent=0
    _
  %s13 = ssub.s32 1, %s11
  %s14 = scalar_select 0, %s13, %s11
  $region1: #{forward.1} parent=0
    #allocation2 [shape = 'u8[622592]{0}', space=vmem, size = 0x98000, scoped, tag = 'input window, operand 6, single buffered']
    #allocation3 [shape = 's32[1]{0}', space=sflag, size = 0x4, scoped, tag = 'scoped memory for forward.1']
    #allocation4 [shape = 'u8[294912]{0}', space=vmem, size = 0x48000, scoped, tag = 'input window, operand 7, single buffered']
    #allocation5 [shape = 's32[1]{0}', space=sflag, size = 0x4, scoped, tag = 'scoped memory for forward.1']
    %15 = vsyncpa [#allocation3], 0
    %16 = vsyncpa [#allocation5], 0
    // Predicated region
    $region2: #{forward.1} parent=1 // pred_check
      _
    $region3: #{forward.1} parent=1 // pred_check_branch
      %18 = sbr.rel (0) target = $region5
    $region4: #{forward.1} parent=1 // pred_region
      _
    $region5: #{forward.1} parent=1 // pred_fallthru
      _
    // Predicated region
    $region6: #{forward.1} parent=1 // pred_check
      _
    $region7: #{forward.1} parent=1 // pred_check_branch
      %20 = sbr.rel (0) target = $region9
    $region8: #{forward.1} parent=1 // pred_region
      _
    $region9: #{forward.1} parent=1 // pred_fallthru
      _
    // Predicated region
    $region10: #{forward.1} parent=1 // pred_check
      _
    $region11: #{forward.1} parent=1 // pred_check_branch
      %22 = sbr.rel (0) target = $region13
    $region12: #{forward.1} parent=1 // pred_region
      _
    $region13: #{forward.1} parent=1 // pred_fallthru
      _
    // Predicated region
    $region14: #{forward.1} parent=1 // pred_check
      _
    $region15: #{forward.1} parent=1 // pred_check_branch
      %24 = sbr.rel (0) target = $region17
    $region16: #{forward.1} parent=1 // pred_region
      _
    $region17: #{forward.1} parent=1 // pred_fallthru
      _
    // Predicated region
    $region18: #{forward.1} parent=1 // pred_check
      _
    $region19: #{forward.1} parent=1 // pred_check_branch
      %26 = sbr.rel (0) target = $region21
    $region20: #{forward.1} parent=1 // pred_region
      _
    $region21: #{forward.1} parent=1 // pred_fallthru
      _
    // Predicated region
    $region22: #{forward.1} parent=1 // pred_check
      _
    $region23: #{forward.1} parent=1 // pred_check_branch
      %28 = sbr.rel (0) target = $region25
    $region24: #{forward.1} parent=1 // pred_region
      _
    $region25: #{forward.1} parent=1 // pred_fallthru
      _
    // Predicated region
    $region26: #{forward.1} parent=1 // pred_check
      _
    $region27: #{forward.1} parent=1 // pred_check_branch
      %30 = sbr.rel (0) target = $region29
    $region28: #{forward.1} parent=1 // pred_region
      %s32 = ssub.s32 19456, 19456
      %33 = vsyncadd [#allocation3], %s32
      %s34 = sshll.u32 [#allocation2], 4
      %s35 = int_to_ptr.vmem [resolvable:$true] %s34
      %40 = dma.hbm_to_vmem [thread:$0]  %s6, 19456, %s35, [#allocation3], 64, 64, 4
    $region29: #{forward.1} parent=1 // pred_fallthru
      _
    // Predicated region
    $region30: #{forward.1} parent=1 // pred_check
      _
    $region31: #{forward.1} parent=1 // pred_check_branch
      %42 = sbr.rel (0) target = $region33
    $region32: #{forward.1} parent=1 // pred_region
      %s44 = ssub.s32 9216, 9216
      %45 = vsyncadd [#allocation5], %s44
      %s46 = sshll.u32 [#allocation4], 4
      %s47 = int_to_ptr.vmem [resolvable:$true] %s46
      %52 = dma.hbm_to_vmem [thread:$0]  %s7, 9216, %s47, [#allocation5], 64, 64, 4
    $region33: #{forward.1} parent=1 // pred_fallthru
      _
    // Predicated region
    $region34: #{forward.1} parent=1 // pred_check
      _
    $region35: #{forward.1} parent=1 // pred_check_branch
      %54 = sbr.rel (0) target = $region37
    $region36: #{forward.1} parent=1 // pred_region
      _
    $region37: #{forward.1} parent=1 // pred_fallthru
      _
    // Predicated region
    $region38: #{forward.1} parent=1 // pred_check
      _
    $region39: #{forward.1} parent=1 // pred_check_branch
      %56 = sbr.rel (0) target = $region41
    $region40: #{forward.1} parent=1 // pred_region
      _
    $region41: #{forward.1} parent=1 // pred_fallthru
      _
    // Predicated region
    $region42: #{forward.1} parent=1 // pred_check
      _
    $region43: #{forward.1} parent=1 // pred_check_branch
      %58 = sbr.rel (0) target = $region45
    $region44: #{forward.1} parent=1 // pred_region
      %59 = dma.done [#allocation3], 19456
    $region45: #{forward.1} parent=1 // pred_fallthru
      _
    // Predicated region
    $region46: #{forward.1} parent=1 // pred_check
      _
    $region47: #{forward.1} parent=1 // pred_check_branch
      %61 = sbr.rel (0) target = $region49
    $region48: #{forward.1} parent=1 // pred_region
      %62 = dma.done [#allocation5], 9216
    $region49: #{forward.1} parent=1 // pred_fallthru
      _
    %v64 = vld [vmem:[%s0] sm:$0xff]
    %v65 = vld [vmem:[%s0 + $0x8] sm:$0xff]
    %v66 = vld [vmem:[%s0 + $0x10] sm:$0xff]
    %v67 = vld [vmem:[%s0 + $0x18] sm:$0xff]
    %v68 = vld [vmem:[%s0 + $0x20] sm:$0xff]
    %v69 = vld [vmem:[%s0 + $0x28] sm:$0xff]
    %v70 = vld [vmem:[%s0 + $0x30] sm:$0xff]
    %v71 = vld [vmem:[%s0 + $0x38] sm:$0xff]
    %v72 = vld [vmem:[%s0 + $0x40] sm:$0xff]
    %v73 = vld [vmem:[%s0 + $0x48] sm:$0xff]
    %v74 = vld [vmem:[%s0 + $0x50] sm:$0xff]
    %v75 = vld [vmem:[%s0 + $0x58] sm:$0xff]
    %v76 = vld [vmem:[%s0 + $0x60] sm:$0xff]
    %v77 = vld [vmem:[%s0 + $0x68] sm:$0xff]
    %v78 = vld [vmem:[%s0 + $0x70] sm:$0xff]
    %v79 = vld [vmem:[%s0 + $0x78] sm:$0xff]
    %v80 = vld [vmem:[%s4] sm:$0xf]
    %v81 = vpack.c.bf16 %v65, %v64
    %v82 = vpack.c.bf16 %v67, %v66
    %v83 = vpack.c.bf16 %v69, %v68
    %v84 = vpack.c.bf16 %v71, %v70
    %v85 = vpack.c.bf16 %v73, %v72
    %v86 = vpack.c.bf16 %v75, %v74
    %v87 = vpack.c.bf16 %v77, %v76
    %v88 = vpack.c.bf16 %v79, %v78
    %v89 = vld [vmem:[%s9] sm:$0x1]
    %v91 = vlaneseq
    %v92 = vshrl.u32 %v91, 7
    %v93 = vsub.s32 0, %v92
    %v94 = vrot.slane %v89, %v93
    %vm96 = vcmask 56320
    %v98 = vsel %vm96, %v81, 0
    %v101 = vsel %vm96, %v82, 0
    %v104 = vsel %vm96, %v83, 0
    %v107 = vsel %vm96, %v84, 0
    %v110 = vsel %vm96, %v85, 0
    %v113 = vsel %vm96, %v86, 0
    %v116 = vsel %vm96, %v87, 0
    %v119 = vsel %vm96, %v88, 0
    %vm121 = vcmask 1042432
    %vm122 = vcmask 1043456
    %v123 = vsel %vm121, 4294967295, 65535
    %v124 = vsel %vm122, %v123, 0
    %v126 = vand.u32 %v80, %v124
    %128 = vmatprep.subr.bf16.mxu0 0
    %129 = vmatpush1.bf16.msra.mxu0 %v126
    %130 = vmatprep.subr.bf16.mxu0 0
    %131 = vmatpush1.bf16.msra.mxu0 0
    %132 = vmatprep.subr.bf16.mxu0 0
    %133 = vmatpush1.bf16.msra.mxu0 0
    %134 = vmatprep.subr.bf16.mxu0 0
    %135 = vmatpush1.bf16.msra.mxu0 0
    %136 = vmatprep.subr.bf16.mxu0 0
    %137 = vmatpush1.bf16.msra.mxu0 0
    %138 = vmatprep.subr.bf16.mxu0 0
    %139 = vmatpush1.bf16.msra.mxu0 0
    %140 = vmatprep.subr.bf16.mxu0 0
    %141 = vmatpush1.bf16.msra.mxu0 0
    %142 = vmatprep.subr.bf16.mxu0 0
    %143 = vmatpush1.bf16.msra.mxu0 0
    %144 = vmatprep.subr.bf16.mxu0 0
    %145 = vmatpush1.bf16.msra.mxu0 0
    %146 = vmatprep.subr.bf16.mxu0 0
    %147 = vmatpush1.bf16.msra.mxu0 0
    %148 = vmatprep.subr.bf16.mxu0 0
    %149 = vmatpush1.bf16.msra.mxu0 0
    %150 = vmatprep.subr.bf16.mxu0 0
    %151 = vmatpush1.bf16.msra.mxu0 0
    %152 = vmatprep.subr.bf16.mxu0 0
    %153 = vmatpush1.bf16.msra.mxu0 0
    %154 = vmatprep.subr.bf16.mxu0 0
    %155 = vmatpush1.bf16.msra.mxu0 0
    %156 = vmatprep.subr.bf16.mxu0 0
    %157 = vmatpush1.bf16.msra.mxu0 0
    %158 = vmatprep.subr.bf16.mxu0 0
    %159 = vmatpush1.bf16.msra.mxu0 0
    %160 = vmatprep.mubr.bf16.mxu0 0
    %161 = vmatmul.mubr.bf16.gmra.mrb[0].mxu0 %v98
    %v162 = vpop.f32.mrb[0].mxu0
    %v163 = vadd.f32 %v94, %v162
    %v164 = vpop.f32.mrb[0].mxu0
    %v165 = vpop.f32.mrb[0].mxu0
    %v166 = vadd.f32 %v94, %v165
    %v167 = vpop.f32.mrb[0].mxu0
    %168 = vmatprep.mubr.bf16.mxu0 0
    %169 = vmatmul.mubr.bf16.gmra.mrb[0].mxu0 %v101
    %v170 = vpop.f32.mrb[0].mxu0
    %v171 = vadd.f32 %v94, %v170
    %v172 = vpop.f32.mrb[0].mxu0
    %v173 = vpop.f32.mrb[0].mxu0
    %v174 = vadd.f32 %v94, %v173
    %v175 = vpop.f32.mrb[0].mxu0
    %176 = vmatprep.mubr.bf16.mxu0 0
    %177 = vmatmul.mubr.bf16.gmra.mrb[0].mxu0 %v104
    %v178 = vpop.f32.mrb[0].mxu0
    %v179 = vadd.f32 %v94, %v178
    %v180 = vpop.f32.mrb[0].mxu0
    %v181 = vpop.f32.mrb[0].mxu0
    %v182 = vadd.f32 %v94, %v181
    %v183 = vpop.f32.mrb[0].mxu0
    %184 = vmatprep.mubr.bf16.mxu0 0
    %185 = vmatmul.mubr.bf16.gmra.mrb[0].mxu0 %v107
    %v186 = vpop.f32.mrb[0].mxu0
    %v187 = vadd.f32 %v94, %v186
    %v188 = vpop.f32.mrb[0].mxu0
    %v189 = vpop.f32.mrb[0].mxu0
    %v190 = vadd.f32 %v94, %v189
    %v191 = vpop.f32.mrb[0].mxu0
    %192 = vmatprep.mubr.bf16.mxu0 0
    %193 = vmatmul.mubr.bf16.gmra.mrb[0].mxu0 %v110
    %v194 = vpop.f32.mrb[0].mxu0
    %v195 = vadd.f32 %v94, %v194
    %v196 = vpop.f32.mrb[0].mxu0
    %v197 = vpop.f32.mrb[0].mxu0
    %v198 = vadd.f32 %v94, %v197
    %v199 = vpop.f32.mrb[0].mxu0
    %200 = vmatprep.mubr.bf16.mxu0 0
    %201 = vmatmul.mubr.bf16.gmra.mrb[0].mxu0 %v113
    %v202 = vpop.f32.mrb[0].mxu0
    %v203 = vadd.f32 %v94, %v202
    %v204 = vpop.f32.mrb[0].mxu0
    %v205 = vpop.f32.mrb[0].mxu0
    %v206 = vadd.f32 %v94, %v205
    %v207 = vpop.f32.mrb[0].mxu0
    %208 = vmatprep.mubr.bf16.mxu0 0
    %209 = vmatmul.mubr.bf16.gmra.mrb[0].mxu0 %v116
    %v210 = vpop.f32.mrb[0].mxu0
    %v211 = vadd.f32 %v94, %v210
    %v212 = vpop.f32.mrb[0].mxu0
    %v213 = vpop.f32.mrb[0].mxu0
    %v214 = vadd.f32 %v94, %v213
    %v215 = vpop.f32.mrb[0].mxu0
    %216 = vmatprep.mubr.bf16.mxu0 0
    %217 = vmatmul.mubr.bf16.gmra.mrb[0].mxu0 %v119
    %v218 = vpop.f32.mrb[0].mxu0
    %v219 = vadd.f32 %v94, %v218
    %v220 = vpop.f32.mrb[0].mxu0
    %v221 = vpop.f32.mrb[0].mxu0
    %v222 = vadd.f32 %v94, %v221
    %v223 = vpop.f32.mrb[0].mxu0
    %224 = vdwg.mxu0
    %vm225 = vcmp.gt.f32.partialorder %v163, 0.0
    %vm226 = vcmp.gt.f32.partialorder %v166, 0.0
    %vm227 = vcmp.gt.f32.partialorder %v171, 0.0
    %vm228 = vcmp.gt.f32.partialorder %v174, 0.0
    %vm229 = vcmp.gt.f32.partialorder %v179, 0.0
    %vm230 = vcmp.gt.f32.partialorder %v182, 0.0
    %vm231 = vcmp.gt.f32.partialorder %v187, 0.0
    %vm232 = vcmp.gt.f32.partialorder %v190, 0.0
    %vm233 = vcmp.gt.f32.partialorder %v195, 0.0
    %vm234 = vcmp.gt.f32.partialorder %v198, 0.0
    %vm235 = vcmp.gt.f32.partialorder %v203, 0.0
    %vm236 = vcmp.gt.f32.partialorder %v206, 0.0
    %vm237 = vcmp.gt.f32.partialorder %v211, 0.0
    %vm238 = vcmp.gt.f32.partialorder %v214, 0.0
    %vm239 = vcmp.gt.f32.partialorder %v219, 0.0
    %vm240 = vcmp.gt.f32.partialorder %v222, 0.0
    %v241 = vmul.f32 %v163, 0.01
    %v242 = vmul.f32 %v166, 0.01
    %v243 = vmul.f32 %v171, 0.01
    %v244 = vmul.f32 %v174, 0.01
    %v245 = vmul.f32 %v179, 0.01
    %v246 = vmul.f32 %v182, 0.01
    %v247 = vmul.f32 %v187, 0.01
    %v248 = vmul.f32 %v190, 0.01
    %v249 = vmul.f32 %v195, 0.01
    %v250 = vmul.f32 %v198, 0.01
    %v251 = vmul.f32 %v203, 0.01
    %v252 = vmul.f32 %v206, 0.01
    %v253 = vmul.f32 %v211, 0.01
    %v254 = vmul.f32 %v214, 0.01
    %v255 = vmul.f32 %v219, 0.01
    %v256 = vmul.f32 %v222, 0.01
    %v257 = vsel %vm225, %v163, %v241
    %v258 = vsel %vm226, %v166, %v242
    %v259 = vsel %vm227, %v171, %v243
    %v260 = vsel %vm228, %v174, %v244
    %v261 = vsel %vm229, %v179, %v245
    %v262 = vsel %vm230, %v182, %v246
    %v263 = vsel %vm231, %v187, %v247
    %v264 = vsel %vm232, %v190, %v248
    %v265 = vsel %vm233, %v195, %v249
    %v266 = vsel %vm234, %v198, %v250
    %v267 = vsel %vm235, %v203, %v251
    %v268 = vsel %vm236, %v206, %v252
    %v269 = vsel %vm237, %v211, %v253
    %v270 = vsel %vm238, %v214, %v254
    %v271 = vsel %vm239, %v219, %v255
    %v272 = vsel %vm240, %v222, %v256
    %v273 = vld [vmem:[#allocation2] sm:$0xf]
    %v274 = vld [vmem:[#allocation2 + $0x4] sm:$0xf]
    %v275 = vld [vmem:[#allocation2 + $0x8] sm:$0xf]
    %v276 = vld [vmem:[#allocation2 + $0xc] sm:$0xf]
    %v277 = vld [vmem:[#allocation2 + $0x10] sm:$0xf]
    %v278 = vld [vmem:[#allocation2 + $0x14] sm:$0xf]
    %v279 = vld [vmem:[#allocation2 + $0x18] sm:$0xf]
    %v280 = vld [vmem:[#allocation2 + $0x1c] sm:$0xf]
    %v281 = vld [vmem:[#allocation2 + $0x20] sm:$0xf]
    %v282 = vld [vmem:[#allocation2 + $0x24] sm:$0xf]
    %v283 = vld [vmem:[#allocation2 + $0x28] sm:$0xf]
    %v284 = vld [vmem:[#allocation2 + $0x2c] sm:$0xf]
    %v285 = vld [vmem:[#allocation2 + $0x30] sm:$0xf]
    %v286 = vld [vmem:[#allocation2 + $0x34] sm:$0xf]
    %v287 = vld [vmem:[#allocation2 + $0x38] sm:$0xf]
    %v288 = vld [vmem:[#allocation2 + $0x3c] sm:$0xf]
    %v289 = vpack.c.bf16 %v258, %v257
    %v290 = vpack.c.bf16 %v260, %v259
    %v291 = vpack.c.bf16 %v262, %v261
    %v292 = vpack.c.bf16 %v264, %v263
    %v293 = vpack.c.bf16 %v266, %v265
    %v294 = vpack.c.bf16 %v268, %v267
    %v295 = vpack.c.bf16 %v270, %v269
    %v296 = vpack.c.bf16 %v272, %v271
    %s297 = scalar_lea.vmem %s9, 1
    %v298 = vld [vmem:[%s297] sm:$0x1]
    %v300 = vlaneseq
    %v301 = vshrl.u32 %v300, 7
    %v302 = vsub.s32 0, %v301
    %v303 = vrot.slane %v298, %v302
    %v321 = vunpack.c.l.b16 %v273
    %v322 = vunpack.c.l.b16 %v274
    %v323 = vunpack.c.l.b16 %v275
    %v324 = vunpack.c.l.b16 %v276
    %v325 = vunpack.c.l.b16 %v277
    %v326 = vunpack.c.l.b16 %v278
    %v327 = vunpack.c.l.b16 %v279
    %v328 = vunpack.c.l.b16 %v280
    %v329 = vunpack.c.l.b16 %v281
    %v330 = vunpack.c.l.b16 %v282
    %v331 = vunpack.c.l.b16 %v283
    %v332 = vunpack.c.l.b16 %v284
    %v333 = vunpack.c.l.b16 %v285
    %v334 = vunpack.c.l.b16 %v286
    %v335 = vunpack.c.l.b16 %v287
    %v336 = vunpack.c.l.b16 %v288
    %v337 = vpack.c.b16 %v322, %v321
    %v338 = vpack.c.b16 %v324, %v323
    %v339 = vpack.c.b16 %v326, %v325
    %v340 = vpack.c.b16 %v328, %v327
    %v341 = vpack.c.b16 %v330, %v329
    %v342 = vpack.c.b16 %v332, %v331
    %v343 = vpack.c.b16 %v334, %v333
    %v344 = vpack.c.b16 %v336, %v335
    %353 = vmatprep.subr.bf16.mxu0 0
    %354 = vmatpush1.bf16.msra.mxu0 %v337
    %355 = vmatprep.subr.bf16.mxu0 0
    %356 = vmatpush1.bf16.msra.mxu0 %v338
    %357 = vmatprep.subr.bf16.mxu0 0
    %358 = vmatpush1.bf16.msra.mxu0 %v339
    %359 = vmatprep.subr.bf16.mxu0 0
    %360 = vmatpush1.bf16.msra.mxu0 %v340
    %361 = vmatprep.subr.bf16.mxu0 0
    %362 = vmatpush1.bf16.msra.mxu0 %v341
    %363 = vmatprep.subr.bf16.mxu0 0
    %364 = vmatpush1.bf16.msra.mxu0 %v342
    %365 = vmatprep.subr.bf16.mxu0 0
    %366 = vmatpush1.bf16.msra.mxu0 %v343
    %367 = vmatprep.subr.bf16.mxu0 0
    %368 = vmatpush1.bf16.msra.mxu0 %v344
    %369 = vmatprep.subr.bf16.mxu0 0
    %370 = vmatpush1.bf16.msra.mxu0 0
    %371 = vmatprep.subr.bf16.mxu0 0
    %372 = vmatpush1.bf16.msra.mxu0 0
    %373 = vmatprep.subr.bf16.mxu0 0
    %374 = vmatpush1.bf16.msra.mxu0 0
    %375 = vmatprep.subr.bf16.mxu0 0
    %376 = vmatpush1.bf16.msra.mxu0 0
    %377 = vmatprep.subr.bf16.mxu0 0
    %378 = vmatpush1.bf16.msra.mxu0 0
    %379 = vmatprep.subr.bf16.mxu0 0
    %380 = vmatpush1.bf16.msra.mxu0 0
    %381 = vmatprep.subr.bf16.mxu0 0
    %382 = vmatpush1.bf16.msra.mxu0 0
    %383 = vmatprep.subr.bf16.mxu0 0
    %384 = vmatpush1.bf16.msra.mxu0 0
    %385 = vmatprep.mubr.bf16.mxu0 0
    %386 = vmatmul.mubr.bf16.gmra.mrb[0].mxu0 %v289
    %v387 = vpop.f32.mrb[0].mxu0
    %v388 = vadd.f32 %v303, %v387
    %v389 = vpop.f32.mrb[0].mxu0
    %v390 = vpop.f32.mrb[0].mxu0
    %v391 = vadd.f32 %v303, %v390
    %v392 = vpop.f32.mrb[0].mxu0
    %393 = vmatprep.mubr.bf16.mxu0 0
    %394 = vmatmul.mubr.bf16.gmra.mrb[0].mxu0 %v290
    %v395 = vpop.f32.mrb[0].mxu0
    %v396 = vadd.f32 %v303, %v395
    %v397 = vpop.f32.mrb[0].mxu0
    %v398 = vpop.f32.mrb[0].mxu0
    %v399 = vadd.f32 %v303, %v398
    %v400 = vpop.f32.mrb[0].mxu0
    %401 = vmatprep.mubr.bf16.mxu0 0
    %402 = vmatmul.mubr.bf16.gmra.mrb[0].mxu0 %v291
    %v403 = vpop.f32.mrb[0].mxu0
    %v404 = vadd.f32 %v303, %v403
    %v405 = vpop.f32.mrb[0].mxu0
    %v406 = vpop.f32.mrb[0].mxu0
    %v407 = vadd.f32 %v303, %v406
    %v408 = vpop.f32.mrb[0].mxu0
    %409 = vmatprep.mubr.bf16.mxu0 0
    %410 = vmatmul.mubr.bf16.gmra.mrb[0].mxu0 %v292
    %v411 = vpop.f32.mrb[0].mxu0
    %v412 = vadd.f32 %v303, %v411
    %v413 = vpop.f32.mrb[0].mxu0
    %v414 = vpop.f32.mrb[0].mxu0
    %v415 = vadd.f32 %v303, %v414
    %v416 = vpop.f32.mrb[0].mxu0
    %417 = vmatprep.mubr.bf16.mxu0 0
    %418 = vmatmul.mubr.bf16.gmra.mrb[0].mxu0 %v293
    %v419 = vpop.f32.mrb[0].mxu0
    %v420 = vadd.f32 %v303, %v419
    %v421 = vpop.f32.mrb[0].mxu0
    %v422 = vpop.f32.mrb[0].mxu0
    %v423 = vadd.f32 %v303, %v422
    %v424 = vpop.f32.mrb[0].mxu0
    %425 = vmatprep.mubr.bf16.mxu0 0
    %426 = vmatmul.mubr.bf16.gmra.mrb[0].mxu0 %v294
    %v427 = vpop.f32.mrb[0].mxu0
    %v428 = vadd.f32 %v303, %v427
    %v429 = vpop.f32.mrb[0].mxu0
    %v430 = vpop.f32.mrb[0].mxu0
    %v431 = vadd.f32 %v303, %v430
    %v432 = vpop.f32.mrb[0].mxu0
    %433 = vmatprep.mubr.bf16.mxu0 0
    %434 = vmatmul.mubr.bf16.gmra.mrb[0].mxu0 %v295
    %v435 = vpop.f32.mrb[0].mxu0
    %v436 = vadd.f32 %v303, %v435
    %v437 = vpop.f32.mrb[0].mxu0
    %v438 = vpop.f32.mrb[0].mxu0
    %v439 = vadd.f32 %v303, %v438
    %v440 = vpop.f32.mrb[0].mxu0
    %441 = vmatprep.mubr.bf16.mxu0 0
    %442 = vmatmul.mubr.bf16.gmra.mrb[0].mxu0 %v296
    %v443 = vpop.f32.mrb[0].mxu0
    %v444 = vadd.f32 %v303, %v443
    %v445 = vpop.f32.mrb[0].mxu0
    %v446 = vpop.f32.mrb[0].mxu0
    %v447 = vadd.f32 %v303, %v446
    %v448 = vpop.f32.mrb[0].mxu0
    %449 = vdwg.mxu0
    %vm450 = vcmp.gt.f32.partialorder %v388, 0.0
    %vm451 = vcmp.gt.f32.partialorder %v391, 0.0
    %vm452 = vcmp.gt.f32.partialorder %v396, 0.0
    %vm453 = vcmp.gt.f32.partialorder %v399, 0.0
    %vm454 = vcmp.gt.f32.partialorder %v404, 0.0
    %vm455 = vcmp.gt.f32.partialorder %v407, 0.0
    %vm456 = vcmp.gt.f32.partialorder %v412, 0.0
    %vm457 = vcmp.gt.f32.partialorder %v415, 0.0
    %vm458 = vcmp.gt.f32.partialorder %v420, 0.0
    %vm459 = vcmp.gt.f32.partialorder %v423, 0.0
    %vm460 = vcmp.gt.f32.partialorder %v428, 0.0
    %vm461 = vcmp.gt.f32.partialorder %v431, 0.0
    %vm462 = vcmp.gt.f32.partialorder %v436, 0.0
    %vm463 = vcmp.gt.f32.partialorder %v439, 0.0
    %vm464 = vcmp.gt.f32.partialorder %v444, 0.0
    %vm465 = vcmp.gt.f32.partialorder %v447, 0.0
    %v466 = vmul.f32 %v388, 0.01
    %v467 = vmul.f32 %v391, 0.01
    %v468 = vmul.f32 %v396, 0.01
    %v469 = vmul.f32 %v399, 0.01
    %v470 = vmul.f32 %v404, 0.01
    %v471 = vmul.f32 %v407, 0.01
    %v472 = vmul.f32 %v412, 0.01
    %v473 = vmul.f32 %v415, 0.01
    %v474 = vmul.f32 %v420, 0.01
    %v475 = vmul.f32 %v423, 0.01
    %v476 = vmul.f32 %v428, 0.01
    %v477 = vmul.f32 %v431, 0.01
    %v478 = vmul.f32 %v436, 0.01
    %v479 = vmul.f32 %v439, 0.01
    %v480 = vmul.f32 %v444, 0.01
    %v481 = vmul.f32 %v447, 0.01
    %v482 = vsel %vm450, %v388, %v466
    %v483 = vsel %vm451, %v391, %v467
    %v484 = vsel %vm452, %v396, %v468
    %v485 = vsel %vm453, %v399, %v469
    %v486 = vsel %vm454, %v404, %v470
    %v487 = vsel %vm455, %v407, %v471
    %v488 = vsel %vm456, %v412, %v472
    %v489 = vsel %vm457, %v415, %v473
    %v490 = vsel %vm458, %v420, %v474
    %v491 = vsel %vm459, %v423, %v475
    %v492 = vsel %vm460, %v428, %v476
    %v493 = vsel %vm461, %v431, %v477
    %v494 = vsel %vm462, %v436, %v478
    %v495 = vsel %vm463, %v439, %v479
    %v496 = vsel %vm464, %v444, %v480
    %v497 = vsel %vm465, %v447, %v481
    %s498 = scalar_lea.vmem [#allocation2], 64
    %v499 = vld [vmem:[%s498] sm:$0xf]
    %v500 = vld [vmem:[%s498 + $0x4] sm:$0xf]
    %v501 = vld [vmem:[%s498 + $0x8] sm:$0xf]
    %v502 = vld [vmem:[%s498 + $0xc] sm:$0xf]
    %v503 = vld [vmem:[%s498 + $0x10] sm:$0xf]
    %v504 = vld [vmem:[%s498 + $0x14] sm:$0xf]
    %v505 = vld [vmem:[%s498 + $0x18] sm:$0xf]
    %v506 = vld [vmem:[%s498 + $0x1c] sm:$0xf]
    %v507 = vld [vmem:[%s498 + $0x20] sm:$0xf]
    %v508 = vld [vmem:[%s498 + $0x24] sm:$0xf]
    %v509 = vld [vmem:[%s498 + $0x28] sm:$0xf]
    %v510 = vld [vmem:[%s498 + $0x2c] sm:$0xf]
    %v511 = vld [vmem:[%s498 + $0x30] sm:$0xf]
    %v512 = vld [vmem:[%s498 + $0x34] sm:$0xf]
    %v513 = vld [vmem:[%s498 + $0x38] sm:$0xf]
    %v514 = vld [vmem:[%s498 + $0x3c] sm:$0xf]
    %v515 = vpack.c.bf16 %v483, %v482
    %v516 = vpack.c.bf16 %v485, %v484
    %v517 = vpack.c.bf16 %v487, %v486
    %v518 = vpack.c.bf16 %v489, %v488
    %v519 = vpack.c.bf16 %v491, %v490
    %v520 = vpack.c.bf16 %v493, %v492
    %v521 = vpack.c.bf16 %v495, %v494
    %v522 = vpack.c.bf16 %v497, %v496
    %s523 = scalar_lea.vmem %s9, 2
    %v524 = vld [vmem:[%s523] sm:$0x1]
    %v526 = vlaneseq
    %v527 = vshrl.u32 %v526, 7
    %v528 = vsub.s32 0, %v527
    %v529 = vrot.slane %v524, %v528
    %v547 = vunpack.c.l.b16 %v499
    %v548 = vunpack.c.l.b16 %v500
    %v549 = vunpack.c.l.b16 %v501
    %v550 = vunpack.c.l.b16 %v502
    %v551 = vunpack.c.l.b16 %v503
    %v552 = vunpack.c.l.b16 %v504
    %v553 = vunpack.c.l.b16 %v505
    %v554 = vunpack.c.l.b16 %v506
    %v555 = vunpack.c.l.b16 %v507
    %v556 = vunpack.c.l.b16 %v508
    %v557 = vunpack.c.l.b16 %v509
    %v558 = vunpack.c.l.b16 %v510
    %v559 = vunpack.c.l.b16 %v511
    %v560 = vunpack.c.l.b16 %v512
    %v561 = vunpack.c.l.b16 %v513
    %v562 = vunpack.c.l.b16 %v514
    %v563 = vpack.c.b16 %v548, %v547
    %v564 = vpack.c.b16 %v550, %v549
    %v565 = vpack.c.b16 %v552, %v551
    %v566 = vpack.c.b16 %v554, %v553
    %v567 = vpack.c.b16 %v556, %v555
    %v568 = vpack.c.b16 %v558, %v557
    %v569 = vpack.c.b16 %v560, %v559
    %v570 = vpack.c.b16 %v562, %v561
    %579 = vmatprep.subr.bf16.mxu0 0
    %580 = vmatpush1.bf16.msra.mxu0 %v563
    %581 = vmatprep.subr.bf16.mxu0 0
    %582 = vmatpush1.bf16.msra.mxu0 %v564
    %583 = vmatprep.subr.bf16.mxu0 0
    %584 = vmatpush1.bf16.msra.mxu0 %v565
    %585 = vmatprep.subr.bf16.mxu0 0
    %586 = vmatpush1.bf16.msra.mxu0 %v566
    %587 = vmatprep.subr.bf16.mxu0 0
    %588 = vmatpush1.bf16.msra.mxu0 %v567
    %589 = vmatprep.subr.bf16.mxu0 0
    %590 = vmatpush1.bf16.msra.mxu0 %v568
    %591 = vmatprep.subr.bf16.mxu0 0
    %592 = vmatpush1.bf16.msra.mxu0 %v569
    %593 = vmatprep.subr.bf16.mxu0 0
    %594 = vmatpush1.bf16.msra.mxu0 %v570
    %595 = vmatprep.subr.bf16.mxu0 0
    %596 = vmatpush1.bf16.msra.mxu0 0
    %597 = vmatprep.subr.bf16.mxu0 0
    %598 = vmatpush1.bf16.msra.mxu0 0
    %599 = vmatprep.subr.bf16.mxu0 0
    %600 = vmatpush1.bf16.msra.mxu0 0
    %601 = vmatprep.subr.bf16.mxu0 0
    %602 = vmatpush1.bf16.msra.mxu0 0
    %603 = vmatprep.subr.bf16.mxu0 0
    %604 = vmatpush1.bf16.msra.mxu0 0
    %605 = vmatprep.subr.bf16.mxu0 0
    %606 = vmatpush1.bf16.msra.mxu0 0
    %607 = vmatprep.subr.bf16.mxu0 0
    %608 = vmatpush1.bf16.msra.mxu0 0
    %609 = vmatprep.subr.bf16.mxu0 0
    %610 = vmatpush1.bf16.msra.mxu0 0
    %611 = vmatprep.mubr.bf16.mxu0 0
    %612 = vmatmul.mubr.bf16.gmra.mrb[0].mxu0 %v515
    %v613 = vpop.f32.mrb[0].mxu0
    %v614 = vadd.f32 %v529, %v613
    %v615 = vpop.f32.mrb[0].mxu0
    %v616 = vpop.f32.mrb[0].mxu0
    %v617 = vadd.f32 %v529, %v616
    %v618 = vpop.f32.mrb[0].mxu0
    %619 = vmatprep.mubr.bf16.mxu0 0
    %620 = vmatmul.mubr.bf16.gmra.mrb[0].mxu0 %v516
    %v621 = vpop.f32.mrb[0].mxu0
    %v622 = vadd.f32 %v529, %v621
    %v623 = vpop.f32.mrb[0].mxu0
    %v624 = vpop.f32.mrb[0].mxu0
    %v625 = vadd.f32 %v529, %v624
    %v626 = vpop.f32.mrb[0].mxu0
    %627 = vmatprep.mubr.bf16.mxu0 0
    %628 = vmatmul.mubr.bf16.gmra.mrb[0].mxu0 %v517
    %v629 = vpop.f32.mrb[0].mxu0
    %v630 = vadd.f32 %v529, %v629
    %v631 = vpop.f32.mrb[0].mxu0
    %v632 = vpop.f32.mrb[0].mxu0
    %v633 = vadd.f32 %v529, %v632
    %v634 = vpop.f32.mrb[0].mxu0
    %635 = vmatprep.mubr.bf16.mxu0 0
    %636 = vmatmul.mubr.bf16.gmra.mrb[0].mxu0 %v518
    %v637 = vpop.f32.mrb[0].mxu0
    %v638 = vadd.f32 %v529, %v637
    %v639 = vpop.f32.mrb[0].mxu0
    %v640 = vpop.f32.mrb[0].mxu0
    %v641 = vadd.f32 %v529, %v640
    %v642 = vpop.f32.mrb[0].mxu0
    %643 = vmatprep.mubr.bf16.mxu0 0
    %644 = vmatmul.mubr.bf16.gmra.mrb[0].mxu0 %v519
    %v645 = vpop.f32.mrb[0].mxu0
    %v646 = vadd.f32 %v529, %v645
    %v647 = vpop.f32.mrb[0].mxu0
    %v648 = vpop.f32.mrb[0].mxu0
    %v649 = vadd.f32 %v529, %v648
    %v650 = vpop.f32.mrb[0].mxu0
    %651 = vmatprep.mubr.bf16.mxu0 0
    %652 = vmatmul.mubr.bf16.gmra.mrb[0].mxu0 %v520
    %v653 = vpop.f32.mrb[0].mxu0
    %v654 = vadd.f32 %v529, %v653
    %v655 = vpop.f32.mrb[0].mxu0
    %v656 = vpop.f32.mrb[0].mxu0
    %v657 = vadd.f32 %v529, %v656
    %v658 = vpop.f32.mrb[0].mxu0
    %659 = vmatprep.mubr.bf16.mxu0 0
    %660 = vmatmul.mubr.bf16.gmra.mrb[0].mxu0 %v521
    %v661 = vpop.f32.mrb[0].mxu0
    %v662 = vadd.f32 %v529, %v661
    %v663 = vpop.f32.mrb[0].mxu0
    %v664 = vpop.f32.mrb[0].mxu0
    %v665 = vadd.f32 %v529, %v664
    %v666 = vpop.f32.mrb[0].mxu0
    %667 = vmatprep.mubr.bf16.mxu0 0
    %668 = vmatmul.mubr.bf16.gmra.mrb[0].mxu0 %v522
    %v669 = vpop.f32.mrb[0].mxu0
    %v670 = vadd.f32 %v529, %v669
    %v671 = vpop.f32.mrb[0].mxu0
    %v672 = vpop.f32.mrb[0].mxu0
    %v673 = vadd.f32 %v529, %v672
    %v674 = vpop.f32.mrb[0].mxu0
    %675 = vdwg.mxu0
    %v676 = vld [vmem:[%s1] sm:$0xff]
    %v677 = vld [vmem:[%s1 + $0x8] sm:$0xff]
    %v678 = vld [vmem:[%s1 + $0x10] sm:$0xff]
    %v679 = vld [vmem:[%s1 + $0x18] sm:$0xff]
    %v680 = vld [vmem:[%s1 + $0x20] sm:$0xff]
    %v681 = vld [vmem:[%s1 + $0x28] sm:$0xff]
    %v682 = vld [vmem:[%s5] sm:$0xf]
    %v683 = vld [vmem:[%s5 + $0x4] sm:$0xf]
    %v684 = vld [vmem:[%s5 + $0x8] sm:$0x7]
    %v685 = vpack.c.bf16 %v677, %v676
    %v686 = vpack.c.bf16 %v679, %v678
    %v687 = vpack.c.bf16 %v681, %v680
    %s688 = scalar_lea.vmem %s9, 3
    %v689 = vld [vmem:[%s688] sm:$0x1]
    %v691 = vlaneseq
    %v692 = vshrl.u32 %v691, 7
    %v693 = vsub.s32 0, %v692
    %v694 = vrot.slane %v689, %v693
    %v699 = vunpack.c.l.b16 %v682
    %v700 = vunpack.c.l.b16 %v683
    %v701 = vunpack.c.l.b16 %v684
    %v702 = vpack.c.b16 %v700, %v699
    %v703 = vpack.c.b16 %v701, %v701
    %vm705 = vcmask 171008
    %v707 = vsel %vm705, %v685, 0
    %v710 = vsel %vm705, %v686, 0
    %v713 = vsel %vm705, %v687, 0
    %vm715 = vcmask 1041408
    %v716 = vsel %vm715, 4294967295, 65535
    %v717 = vsel %vm121, %v716, 0
    %v719 = vand.u32 %v703, %v717
    %721 = vmatprep.subr.bf16.mxu0 0
    %722 = vmatpush1.bf16.msra.mxu0 %v702
    %723 = vmatprep.subr.bf16.mxu0 0
    %724 = vmatpush1.bf16.msra.mxu0 %v719
    %725 = vmatprep.subr.bf16.mxu0 0
    %726 = vmatpush1.bf16.msra.mxu0 0
    %727 = vmatprep.subr.bf16.mxu0 0
    %728 = vmatpush1.bf16.msra.mxu0 0
    %729 = vmatprep.subr.bf16.mxu0 0
    %730 = vmatpush1.bf16.msra.mxu0 0
    %731 = vmatprep.subr.bf16.mxu0 0
    %732 = vmatpush1.bf16.msra.mxu0 0
    %733 = vmatprep.subr.bf16.mxu0 0
    %734 = vmatpush1.bf16.msra.mxu0 0
    %735 = vmatprep.subr.bf16.mxu0 0
    %736 = vmatpush1.bf16.msra.mxu0 0
    %737 = vmatprep.subr.bf16.mxu0 0
    %738 = vmatpush1.bf16.msra.mxu0 0
    %739 = vmatprep.subr.bf16.mxu0 0
    %740 = vmatpush1.bf16.msra.mxu0 0
    %741 = vmatprep.subr.bf16.mxu0 0
    %742 = vmatpush1.bf16.msra.mxu0 0
    %743 = vmatprep.subr.bf16.mxu0 0
    %744 = vmatpush1.bf16.msra.mxu0 0
    %745 = vmatprep.subr.bf16.mxu0 0
    %746 = vmatpush1.bf16.msra.mxu0 0
    %747 = vmatprep.subr.bf16.mxu0 0
    %748 = vmatpush1.bf16.msra.mxu0 0
    %749 = vmatprep.subr.bf16.mxu0 0
    %750 = vmatpush1.bf16.msra.mxu0 0
    %751 = vmatprep.subr.bf16.mxu0 0
    %752 = vmatpush1.bf16.msra.mxu0 0
    %753 = vmatprep.mubr.bf16.mxu0 0
    %754 = vmatmul.mubr.bf16.gmra.mrb[0].mxu0 %v707
    %v755 = vpop.f32.mrb[0].mxu0
    %v756 = vadd.f32 %v694, %v755
    %v757 = vpop.f32.mrb[0].mxu0
    %v758 = vpop.f32.mrb[0].mxu0
    %v759 = vadd.f32 %v694, %v758
    %v760 = vpop.f32.mrb[0].mxu0
    %761 = vmatprep.mubr.bf16.mxu0 0
    %762 = vmatmul.mubr.bf16.gmra.mrb[0].mxu0 %v710
    %v763 = vpop.f32.mrb[0].mxu0
    %v764 = vadd.f32 %v694, %v763
    %v765 = vpop.f32.mrb[0].mxu0
    %v766 = vpop.f32.mrb[0].mxu0
    %v767 = vadd.f32 %v694, %v766
    %v768 = vpop.f32.mrb[0].mxu0
    %769 = vmatprep.mubr.bf16.mxu0 0
    %770 = vmatmul.mubr.bf16.gmra.mrb[0].mxu0 %v713
    %v771 = vpop.f32.mrb[0].mxu0
    %v772 = vadd.f32 %v694, %v771
    %v773 = vpop.f32.mrb[0].mxu0
    %v774 = vpop.f32.mrb[0].mxu0
    %v775 = vadd.f32 %v694, %v774
    %v776 = vpop.f32.mrb[0].mxu0
    %777 = vdwg.mxu0
    %vm778 = vcmp.gt.f32.partialorder %v756, 0.0
    %vm779 = vcmp.gt.f32.partialorder %v759, 0.0
    %vm780 = vcmp.gt.f32.partialorder %v764, 0.0
    %vm781 = vcmp.gt.f32.partialorder %v767, 0.0
    %vm782 = vcmp.gt.f32.partialorder %v772, 0.0
    %vm783 = vcmp.gt.f32.partialorder %v775, 0.0
    %v784 = vmul.f32 %v756, 0.01
    %v785 = vmul.f32 %v759, 0.01
    %v786 = vmul.f32 %v764, 0.01
    %v787 = vmul.f32 %v767, 0.01
    %v788 = vmul.f32 %v772, 0.01
    %v789 = vmul.f32 %v775, 0.01
    %v790 = vsel %vm778, %v756, %v784
    %v791 = vsel %vm779, %v759, %v785
    %v792 = vsel %vm780, %v764, %v786
    %v793 = vsel %vm781, %v767, %v787
    %v794 = vsel %vm782, %v772, %v788
    %v795 = vsel %vm783, %v775, %v789
    %s796 = scalar_lea.vmem [#allocation2], 128
    %v797 = vld [vmem:[%s796] sm:$0xf]
    %v798 = vld [vmem:[%s796 + $0x4] sm:$0xf]
    %v799 = vld [vmem:[%s796 + $0x8] sm:$0xf]
    %v800 = vld [vmem:[%s796 + $0xc] sm:$0xf]
    %v801 = vld [vmem:[%s796 + $0x10] sm:$0xf]
    %v802 = vld [vmem:[%s796 + $0x14] sm:$0xf]
    %v803 = vld [vmem:[%s796 + $0x18] sm:$0xf]
    %v804 = vld [vmem:[%s796 + $0x1c] sm:$0xf]
    %v805 = vld [vmem:[%s796 + $0x20] sm:$0xf]
    %v806 = vld [vmem:[%s796 + $0x24] sm:$0xf]
    %v807 = vld [vmem:[%s796 + $0x28] sm:$0xf]
    %v808 = vld [vmem:[%s796 + $0x2c] sm:$0xf]
    %v809 = vld [vmem:[%s796 + $0x30] sm:$0xf]
    %v810 = vld [vmem:[%s796 + $0x34] sm:$0xf]
    %v811 = vld [vmem:[%s796 + $0x38] sm:$0xf]
    %v812 = vld [vmem:[%s796 + $0x3c] sm:$0xf]
    %v813 = vpack.c.bf16 %v791, %v790
    %v814 = vpack.c.bf16 %v793, %v792
    %v815 = vpack.c.bf16 %v795, %v794
    %s816 = scalar_lea.vmem %s9, 4
    %v817 = vld [vmem:[%s816] sm:$0x1]
    %v819 = vlaneseq
    %v820 = vshrl.u32 %v819, 7
    %v821 = vsub.s32 0, %v820
    %v822 = vrot.slane %v817, %v821
    %v840 = vunpack.c.l.b16 %v797
    %v841 = vunpack.c.l.b16 %v798
    %v842 = vunpack.c.l.b16 %v799
    %v843 = vunpack.c.l.b16 %v800
    %v844 = vunpack.c.l.b16 %v801
    %v845 = vunpack.c.l.b16 %v802
    %v846 = vunpack.c.l.b16 %v803
    %v847 = vunpack.c.l.b16 %v804
    %v848 = vunpack.c.l.b16 %v805
    %v849 = vunpack.c.l.b16 %v806
    %v850 = vunpack.c.l.b16 %v807
    %v851 = vunpack.c.l.b16 %v808
    %v852 = vunpack.c.l.b16 %v809
    %v853 = vunpack.c.l.b16 %v810
    %v854 = vunpack.c.l.b16 %v811
    %v855 = vunpack.c.l.b16 %v812
    %v856 = vpack.c.b16 %v841, %v840
    %v857 = vpack.c.b16 %v843, %v842
    %v858 = vpack.c.b16 %v845, %v844
    %v859 = vpack.c.b16 %v847, %v846
    %v860 = vpack.c.b16 %v849, %v848
    %v861 = vpack.c.b16 %v851, %v850
    %v862 = vpack.c.b16 %v853, %v852
    %v863 = vpack.c.b16 %v855, %v854
    %872 = vmatprep.subr.bf16.mxu0 0
    %873 = vmatpush1.bf16.msra.mxu0 %v856
    %874 = vmatprep.subr.bf16.mxu0 0
    %875 = vmatpush1.bf16.msra.mxu0 %v857
    %876 = vmatprep.subr.bf16.mxu0 0
    %877 = vmatpush1.bf16.msra.mxu0 %v858
    %878 = vmatprep.subr.bf16.mxu0 0
    %879 = vmatpush1.bf16.msra.mxu0 %v859
    %880 = vmatprep.subr.bf16.mxu0 0
    %881 = vmatpush1.bf16.msra.mxu0 %v860
    %882 = vmatprep.subr.bf16.mxu0 0
    %883 = vmatpush1.bf16.msra.mxu0 %v861
    %884 = vmatprep.subr.bf16.mxu0 0
    %885 = vmatpush1.bf16.msra.mxu0 %v862
    %886 = vmatprep.subr.bf16.mxu0 0
    %887 = vmatpush1.bf16.msra.mxu0 %v863
    %888 = vmatprep.subr.bf16.mxu0 0
    %889 = vmatpush1.bf16.msra.mxu0 0
    %890 = vmatprep.subr.bf16.mxu0 0
    %891 = vmatpush1.bf16.msra.mxu0 0
    %892 = vmatprep.subr.bf16.mxu0 0
    %893 = vmatpush1.bf16.msra.mxu0 0
    %894 = vmatprep.subr.bf16.mxu0 0
    %895 = vmatpush1.bf16.msra.mxu0 0
    %896 = vmatprep.subr.bf16.mxu0 0
    %897 = vmatpush1.bf16.msra.mxu0 0
    %898 = vmatprep.subr.bf16.mxu0 0
    %899 = vmatpush1.bf16.msra.mxu0 0
    %900 = vmatprep.subr.bf16.mxu0 0
    %901 = vmatpush1.bf16.msra.mxu0 0
    %902 = vmatprep.subr.bf16.mxu0 0
    %903 = vmatpush1.bf16.msra.mxu0 0
    %904 = vmatprep.mubr.bf16.mxu0 0
    %905 = vmatmul.mubr.bf16.gmra.mrb[0].mxu0 %v813
    %v906 = vpop.f32.mrb[0].mxu0
    %v907 = vadd.f32 %v822, %v906
    %v908 = vpop.f32.mrb[0].mxu0
    %v909 = vpop.f32.mrb[0].mxu0
    %v910 = vadd.f32 %v822, %v909
    %v911 = vpop.f32.mrb[0].mxu0
    %912 = vmatprep.mubr.bf16.mxu0 0
    %913 = vmatmul.mubr.bf16.gmra.mrb[0].mxu0 %v814
    %v914 = vpop.f32.mrb[0].mxu0
    %v915 = vadd.f32 %v822, %v914
    %v916 = vpop.f32.mrb[0].mxu0
    %v917 = vpop.f32.mrb[0].mxu0
    %v918 = vadd.f32 %v822, %v917
    %v919 = vpop.f32.mrb[0].mxu0
    %920 = vmatprep.mubr.bf16.mxu0 0
    %921 = vmatmul.mubr.bf16.gmra.mrb[0].mxu0 %v815
    %v922 = vpop.f32.mrb[0].mxu0
    %v923 = vadd.f32 %v822, %v922
    %v924 = vpop.f32.mrb[0].mxu0
    %v925 = vpop.f32.mrb[0].mxu0
    %v926 = vadd.f32 %v822, %v925
    %v927 = vpop.f32.mrb[0].mxu0
    %928 = vdwg.mxu0
    %vm929 = vcmp.gt.f32.partialorder %v907, 0.0
    %vm930 = vcmp.gt.f32.partialorder %v910, 0.0
    %vm931 = vcmp.gt.f32.partialorder %v915, 0.0
    %vm932 = vcmp.gt.f32.partialorder %v918, 0.0
    %vm933 = vcmp.gt.f32.partialorder %v923, 0.0
    %vm934 = vcmp.gt.f32.partialorder %v926, 0.0
    %v935 = vmul.f32 %v907, 0.01
    %v936 = vmul.f32 %v910, 0.01
    %v937 = vmul.f32 %v915, 0.01
    %v938 = vmul.f32 %v918, 0.01
    %v939 = vmul.f32 %v923, 0.01
    %v940 = vmul.f32 %v926, 0.01
    %v941 = vsel %vm929, %v907, %v935
    %v942 = vsel %vm930, %v910, %v936
    %v943 = vsel %vm931, %v915, %v937
    %v944 = vsel %vm932, %v918, %v938
    %v945 = vsel %vm933, %v923, %v939
    %v946 = vsel %vm934, %v926, %v940
    %s947 = scalar_lea.vmem [#allocation2], 192
    %v948 = vld [vmem:[%s947] sm:$0xf]
    %v949 = vld [vmem:[%s947 + $0x4] sm:$0xf]
    %v950 = vld [vmem:[%s947 + $0x8] sm:$0xf]
    %v951 = vld [vmem:[%s947 + $0xc] sm:$0xf]
    %v952 = vld [vmem:[%s947 + $0x10] sm:$0xf]
    %v953 = vld [vmem:[%s947 + $0x14] sm:$0xf]
    %v954 = vld [vmem:[%s947 + $0x18] sm:$0xf]
    %v955 = vld [vmem:[%s947 + $0x1c] sm:$0xf]
    %v956 = vld [vmem:[%s947 + $0x20] sm:$0xf]
    %v957 = vld [vmem:[%s947 + $0x24] sm:$0xf]
    %v958 = vld [vmem:[%s947 + $0x28] sm:$0xf]
    %v959 = vld [vmem:[%s947 + $0x2c] sm:$0xf]
    %v960 = vld [vmem:[%s947 + $0x30] sm:$0xf]
    %v961 = vld [vmem:[%s947 + $0x34] sm:$0xf]
    %v962 = vld [vmem:[%s947 + $0x38] sm:$0xf]
    %v963 = vld [vmem:[%s947 + $0x3c] sm:$0xf]
    %v964 = vpack.c.bf16 %v942, %v941
    %v965 = vpack.c.bf16 %v944, %v943
    %v966 = vpack.c.bf16 %v946, %v945
    %s967 = scalar_lea.vmem %s9, 5
    %v968 = vld [vmem:[%s967] sm:$0x1]
    %v970 = vlaneseq
    %v971 = vshrl.u32 %v970, 7
    %v972 = vsub.s32 0, %v971
    %v973 = vrot.slane %v968, %v972
    %v991 = vunpack.c.l.b16 %v948
    %v992 = vunpack.c.l.b16 %v949
    %v993 = vunpack.c.l.b16 %v950
    %v994 = vunpack.c.l.b16 %v951
    %v995 = vunpack.c.l.b16 %v952
    %v996 = vunpack.c.l.b16 %v953
    %v997 = vunpack.c.l.b16 %v954
    %v998 = vunpack.c.l.b16 %v955
    %v999 = vunpack.c.l.b16 %v956
    %v1000 = vunpack.c.l.b16 %v957
    %v1001 = vunpack.c.l.b16 %v958
    %v1002 = vunpack.c.l.b16 %v959
    %v1003 = vunpack.c.l.b16 %v960
    %v1004 = vunpack.c.l.b16 %v961
    %v1005 = vunpack.c.l.b16 %v962
    %v1006 = vunpack.c.l.b16 %v963
    %v1007 = vpack.c.b16 %v992, %v991
    %v1008 = vpack.c.b16 %v994, %v993
    %v1009 = vpack.c.b16 %v996, %v995
    %v1010 = vpack.c.b16 %v998, %v997
    %v1011 = vpack.c.b16 %v1000, %v999
    %v1012 = vpack.c.b16 %v1002, %v1001
    %v1013 = vpack.c.b16 %v1004, %v1003
    %v1014 = vpack.c.b16 %v1006, %v1005
    %1023 = vmatprep.subr.bf16.mxu0 0
    %1024 = vmatpush1.bf16.msra.mxu0 %v1007
    %1025 = vmatprep.subr.bf16.mxu0 0
    %1026 = vmatpush1.bf16.msra.mxu0 %v1008
    %1027 = vmatprep.subr.bf16.mxu0 0
    %1028 = vmatpush1.bf16.msra.mxu0 %v1009
    %1029 = vmatprep.subr.bf16.mxu0 0
    %1030 = vmatpush1.bf16.msra.mxu0 %v1010
    %1031 = vmatprep.subr.bf16.mxu0 0
    %1032 = vmatpush1.bf16.msra.mxu0 %v1011
    %1033 = vmatprep.subr.bf16.mxu0 0
    %1034 = vmatpush1.bf16.msra.mxu0 %v1012
    %1035 = vmatprep.subr.bf16.mxu0 0
    %1036 = vmatpush1.bf16.msra.mxu0 %v1013
    %1037 = vmatprep.subr.bf16.mxu0 0
    %1038 = vmatpush1.bf16.msra.mxu0 %v1014
    %1039 = vmatprep.subr.bf16.mxu0 0
    %1040 = vmatpush1.bf16.msra.mxu0 0
    %1041 = vmatprep.subr.bf16.mxu0 0
    %1042 = vmatpush1.bf16.msra.mxu0 0
    %1043 = vmatprep.subr.bf16.mxu0 0
    %1044 = vmatpush1.bf16.msra.mxu0 0
    %1045 = vmatprep.subr.bf16.mxu0 0
    %1046 = vmatpush1.bf16.msra.mxu0 0
    %1047 = vmatprep.subr.bf16.mxu0 0
    %1048 = vmatpush1.bf16.msra.mxu0 0
    %1049 = vmatprep.subr.bf16.mxu0 0
    %1050 = vmatpush1.bf16.msra.mxu0 0
    %1051 = vmatprep.subr.bf16.mxu0 0
    %1052 = vmatpush1.bf16.msra.mxu0 0
    %1053 = vmatprep.subr.bf16.mxu0 0
    %1054 = vmatpush1.bf16.msra.mxu0 0
    %1055 = vmatprep.mubr.bf16.mxu0 0
    %1056 = vmatmul.mubr.bf16.gmra.mrb[0].mxu0 %v964
    %v1057 = vpop.f32.mrb[0].mxu0
    %v1058 = vadd.f32 %v973, %v1057
    %v1059 = vpop.f32.mrb[0].mxu0
    %v1060 = vpop.f32.mrb[0].mxu0
    %v1061 = vadd.f32 %v973, %v1060
    %v1062 = vpop.f32.mrb[0].mxu0
    %1063 = vmatprep.mubr.bf16.mxu0 0
    %1064 = vmatmul.mubr.bf16.gmra.mrb[0].mxu0 %v965
    %v1065 = vpop.f32.mrb[0].mxu0
    %v1066 = vadd.f32 %v973, %v1065
    %v1067 = vpop.f32.mrb[0].mxu0
    %v1068 = vpop.f32.mrb[0].mxu0
    %v1069 = vadd.f32 %v973, %v1068
    %v1070 = vpop.f32.mrb[0].mxu0
    %1071 = vmatprep.mubr.bf16.mxu0 0
    %1072 = vmatmul.mubr.bf16.gmra.mrb[0].mxu0 %v966
    %v1073 = vpop.f32.mrb[0].mxu0
    %v1074 = vadd.f32 %v973, %v1073
    %v1075 = vpop.f32.mrb[0].mxu0
    %v1076 = vpop.f32.mrb[0].mxu0
    %v1077 = vadd.f32 %v973, %v1076
    %v1078 = vpop.f32.mrb[0].mxu0
    %1079 = vdwg.mxu0
    %v1080 = vld [vmem:[%s2] sm:$0xf]
    %v1081 = vld [vmem:[%s2 + $0x4] sm:$0xf]
    %v1082 = vld [vmem:[%s2 + $0x8] sm:$0xf]
    %v1083 = vld [vmem:[%s2 + $0xc] sm:$0xf]
    %v1084 = vld [vmem:[%s2 + $0x10] sm:$0xf]
    %v1085 = vld [vmem:[%s2 + $0x14] sm:$0xf]
    %v1086 = vld [vmem:[%s2 + $0x18] sm:$0xf]
    %v1087 = vld [vmem:[%s2 + $0x1c] sm:$0xf]
    %v1088 = vld [vmem:[%s2 + $0x20] sm:$0xf]
    %v1089 = vld [vmem:[%s2 + $0x24] sm:$0xf]
    %v1090 = vld [vmem:[%s2 + $0x28] sm:$0xf]
    %v1091 = vld [vmem:[%s2 + $0x2c] sm:$0xf]
    %v1092 = vld [vmem:[%s3] sm:$0xf]
    %v1093 = vld [vmem:[%s3 + $0x4] sm:$0xf]
    %v1094 = vld [vmem:[%s3 + $0x8] sm:$0xf]
    %v1095 = vld [vmem:[%s3 + $0xc] sm:$0xf]
    %v1096 = vld [vmem:[%s3 + $0x10] sm:$0xf]
    %v1097 = vld [vmem:[%s3 + $0x14] sm:$0xf]
    %v1098 = vpack.c.bf16 %v617, %v614
    %v1099 = vpack.c.bf16 %v625, %v622
    %v1100 = vpack.c.bf16 %v633, %v630
    %v1101 = vpack.c.bf16 %v641, %v638
    %v1102 = vpack.c.bf16 %v649, %v646
    %v1103 = vpack.c.bf16 %v657, %v654
    %v1104 = vpack.c.bf16 %v665, %v662
    %v1105 = vpack.c.bf16 %v673, %v670
    %v1106 = vpack.c.bf16 %v1061, %v1058
    %v1107 = vpack.c.bf16 %v1069, %v1066
    %v1108 = vpack.c.bf16 %v1077, %v1074
    %v1121 = vunpack.c.l.b16 %v1080
    %v1122 = vunpack.c.l.b16 %v1081
    %v1123 = vunpack.c.l.b16 %v1082
    %v1124 = vunpack.c.l.b16 %v1083
    %v1125 = vunpack.c.l.b16 %v1084
    %v1126 = vunpack.c.l.b16 %v1085
    %v1127 = vunpack.c.l.b16 %v1086
    %v1128 = vunpack.c.l.b16 %v1087
    %v1129 = vunpack.c.l.b16 %v1088
    %v1130 = vunpack.c.l.b16 %v1089
    %v1131 = vunpack.c.l.b16 %v1090
    %v1132 = vunpack.c.l.b16 %v1091
    %v1133 = vpack.c.b16 %v1122, %v1121
    %v1134 = vpack.c.b16 %v1124, %v1123
    %v1135 = vpack.c.b16 %v1126, %v1125
    %v1136 = vpack.c.b16 %v1128, %v1127
    %v1137 = vpack.c.b16 %v1130, %v1129
    %v1138 = vpack.c.b16 %v1132, %v1131
    %1145 = vmatprep.subr.bf16.mxu0 0
    %1146 = vmatpush1.bf16.msra.mxu0 %v1098
    %1147 = vmatprep.subr.bf16.mxu0 0
    %1148 = vmatpush1.bf16.msra.mxu0 %v1099
    %1149 = vmatprep.subr.bf16.mxu0 0
    %1150 = vmatpush1.bf16.msra.mxu0 %v1100
    %1151 = vmatprep.subr.bf16.mxu0 0
    %1152 = vmatpush1.bf16.msra.mxu0 %v1101
    %1153 = vmatprep.subr.bf16.mxu0 0
    %1154 = vmatpush1.bf16.msra.mxu0 %v1102
    %1155 = vmatprep.subr.bf16.mxu0 0
    %1156 = vmatpush1.bf16.msra.mxu0 %v1103
    %1157 = vmatprep.subr.bf16.mxu0 0
    %1158 = vmatpush1.bf16.msra.mxu0 %v1104
    %1159 = vmatprep.subr.bf16.mxu0 0
    %1160 = vmatpush1.bf16.msra.mxu0 %v1105
    %1161 = vmatprep.subr.bf16.mxu0 0
    %1162 = vmatpush1.bf16.msra.mxu0 0
    %1163 = vmatprep.subr.bf16.mxu0 0
    %1164 = vmatpush1.bf16.msra.mxu0 0
    %1165 = vmatprep.subr.bf16.mxu0 0
    %1166 = vmatpush1.bf16.msra.mxu0 0
    %1167 = vmatprep.subr.bf16.mxu0 0
    %1168 = vmatpush1.bf16.msra.mxu0 0
    %1169 = vmatprep.subr.bf16.mxu0 0
    %1170 = vmatpush1.bf16.msra.mxu0 0
    %1171 = vmatprep.subr.bf16.mxu0 0
    %1172 = vmatpush1.bf16.msra.mxu0 0
    %1173 = vmatprep.subr.bf16.mxu0 0
    %1174 = vmatpush1.bf16.msra.mxu0 0
    %1175 = vmatprep.subr.bf16.mxu0 0
    %1176 = vmatpush1.bf16.msra.mxu0 0
    %1177 = vmatprep.mubr.bf16.mxu0 0
    %1178 = vmatmul.mubr.bf16.gmra.mrb[0].mxu0 %v1133
    %v1179 = vpop.f32.mrb[0].mxu0
    %v1180 = vadd.f32 0.0, %v1179
    %v1181 = vpop.f32.mrb[0].mxu0
    %v1182 = vpop.f32.mrb[0].mxu0
    %v1183 = vadd.f32 0.0, %v1182
    %v1184 = vpop.f32.mrb[0].mxu0
    %1185 = vmatprep.mubr.bf16.mxu0 0
    %1186 = vmatmul.mubr.bf16.gmra.mrb[0].mxu0 %v1134
    %v1187 = vpop.f32.mrb[0].mxu0
    %v1188 = vadd.f32 0.0, %v1187
    %v1189 = vpop.f32.mrb[0].mxu0
    %v1190 = vpop.f32.mrb[0].mxu0
    %v1191 = vadd.f32 0.0, %v1190
    %v1192 = vpop.f32.mrb[0].mxu0
    %1193 = vmatprep.mubr.bf16.mxu0 0
    %1194 = vmatmul.mubr.bf16.gmra.mrb[0].mxu0 %v1135
    %v1195 = vpop.f32.mrb[0].mxu0
    %v1196 = vadd.f32 0.0, %v1195
    %v1197 = vpop.f32.mrb[0].mxu0
    %v1198 = vpop.f32.mrb[0].mxu0
    %v1199 = vadd.f32 0.0, %v1198
    %v1200 = vpop.f32.mrb[0].mxu0
    %1201 = vmatprep.mubr.bf16.mxu0 0
    %1202 = vmatmul.mubr.bf16.gmra.mrb[0].mxu0 %v1136
    %v1203 = vpop.f32.mrb[0].mxu0
    %v1204 = vadd.f32 0.0, %v1203
    %v1205 = vpop.f32.mrb[0].mxu0
    %v1206 = vpop.f32.mrb[0].mxu0
    %v1207 = vadd.f32 0.0, %v1206
    %v1208 = vpop.f32.mrb[0].mxu0
    %1209 = vmatprep.mubr.bf16.mxu0 0
    %1210 = vmatmul.mubr.bf16.gmra.mrb[0].mxu0 %v1137
    %v1211 = vpop.f32.mrb[0].mxu0
    %v1212 = vadd.f32 0.0, %v1211
    %v1213 = vpop.f32.mrb[0].mxu0
    %v1214 = vpop.f32.mrb[0].mxu0
    %v1215 = vadd.f32 0.0, %v1214
    %v1216 = vpop.f32.mrb[0].mxu0
    %1217 = vmatprep.mubr.bf16.mxu0 0
    %1218 = vmatmul.mubr.bf16.gmra.mrb[0].mxu0 %v1138
    %v1219 = vpop.f32.mrb[0].mxu0
    %v1220 = vadd.f32 0.0, %v1219
    %v1221 = vpop.f32.mrb[0].mxu0
    %v1222 = vpop.f32.mrb[0].mxu0
    %v1223 = vadd.f32 0.0, %v1222
    %v1224 = vpop.f32.mrb[0].mxu0
    %1225 = vdwg.mxu0
    %v1226 = vpack.c.bf16 %v1207, %v1204
    %v1227 = vpack.c.bf16 %v1215, %v1212
    %v1228 = vpack.c.bf16 %v1223, %v1220
    %v1229 = vpack.c.bf16 %v1183, %v1180
    %v1230 = vpack.c.bf16 %v1191, %v1188
    %v1231 = vpack.c.bf16 %v1199, %v1196
    %v1232 = vld [vmem:[#allocation4] sm:$0xf]
    %v1233 = vld [vmem:[#allocation4 + $0x4] sm:$0xf]
    %v1234 = vld [vmem:[#allocation4 + $0x8] sm:$0xf]
    %v1235 = vld [vmem:[#allocation4 + $0xc] sm:$0xf]
    %v1236 = vld [vmem:[#allocation4 + $0x10] sm:$0xf]
    %v1237 = vld [vmem:[#allocation4 + $0x14] sm:$0xf]
    %v1238 = vld [vmem:[#allocation4 + $0x18] sm:$0xf]
    %v1239 = vld [vmem:[#allocation4 + $0x1c] sm:$0xf]
    %v1240 = vld [vmem:[#allocation4 + $0x20] sm:$0xf]
    %v1241 = vld [vmem:[#allocation4 + $0x24] sm:$0xf]
    %v1242 = vld [vmem:[#allocation4 + $0x28] sm:$0xf]
    %v1243 = vld [vmem:[#allocation4 + $0x2c] sm:$0xf]
    %v1244 = vld [vmem:[#allocation4 + $0x30] sm:$0xf]
    %v1245 = vld [vmem:[#allocation4 + $0x34] sm:$0xf]
    %v1246 = vld [vmem:[#allocation4 + $0x38] sm:$0xf]
    %v1247 = vld [vmem:[#allocation4 + $0x3c] sm:$0xf]
    %v1248 = vld [vmem:[#allocation4 + $0x40] sm:$0xf]
    %v1249 = vld [vmem:[#allocation4 + $0x44] sm:$0xf]
    %v1250 = vld [vmem:[#allocation4 + $0x48] sm:$0xf]
    %v1251 = vld [vmem:[#allocation4 + $0x4c] sm:$0xf]
    %v1252 = vld [vmem:[#allocation4 + $0x50] sm:$0xf]
    %v1253 = vld [vmem:[#allocation4 + $0x54] sm:$0xf]
    %v1254 = vld [vmem:[#allocation4 + $0x58] sm:$0xf]
    %v1255 = vld [vmem:[#allocation4 + $0x5c] sm:$0xf]
    %v1256 = vld [vmem:[#allocation4 + $0x60] sm:$0xf]
    %v1257 = vld [vmem:[#allocation4 + $0x64] sm:$0xf]
    %v1258 = vld [vmem:[#allocation4 + $0x68] sm:$0xf]
    %v1259 = vld [vmem:[#allocation4 + $0x6c] sm:$0xf]
    %v1260 = vld [vmem:[#allocation4 + $0x70] sm:$0xf]
    %v1261 = vld [vmem:[#allocation4 + $0x74] sm:$0xf]
    %v1262 = vld [vmem:[#allocation4 + $0x78] sm:$0xf]
    %v1263 = vld [vmem:[#allocation4 + $0x7c] sm:$0xf]
    %v1264 = vld [vmem:[#allocation4 + $0x80] sm:$0xf]
    %v1265 = vld [vmem:[#allocation4 + $0x84] sm:$0xf]
    %v1266 = vld [vmem:[#allocation4 + $0x88] sm:$0xf]
    %v1267 = vld [vmem:[#allocation4 + $0x8c] sm:$0xf]
    %v1268 = vld [vmem:[#allocation4 + $0x90] sm:$0xf]
    %v1269 = vld [vmem:[#allocation4 + $0x94] sm:$0xf]
    %v1270 = vld [vmem:[#allocation4 + $0x98] sm:$0xf]
    %v1271 = vld [vmem:[#allocation4 + $0x9c] sm:$0xf]
    %v1272 = vld [vmem:[#allocation4 + $0xa0] sm:$0xf]
    %v1273 = vld [vmem:[#allocation4 + $0xa4] sm:$0xf]
    %v1274 = vld [vmem:[#allocation4 + $0xa8] sm:$0xf]
    %v1275 = vld [vmem:[#allocation4 + $0xac] sm:$0xf]
    %v1276 = vld [vmem:[#allocation4 + $0xb0] sm:$0xf]
    %v1277 = vld [vmem:[#allocation4 + $0xb4] sm:$0xf]
    %v1278 = vld [vmem:[#allocation4 + $0xb8] sm:$0xf]
    %v1279 = vld [vmem:[#allocation4 + $0xbc] sm:$0xf]
    %s1280 = scalar_lea.vmem %s9, 9
    %v1281 = vld [vmem:[%s1280] sm:$0x1]
    %v1283 = vlaneseq
    %v1284 = vshrl.u32 %v1283, 7
    %v1285 = vsub.s32 0, %v1284
    %v1286 = vrot.slane %v1281, %v1285
    %v1336 = vunpack.c.l.b16 %v1232
    %v1337 = vunpack.c.l.b16 %v1233
    %v1338 = vunpack.c.l.b16 %v1234
    %v1339 = vunpack.c.l.b16 %v1235
    %v1340 = vunpack.c.l.b16 %v1236
    %v1341 = vunpack.c.l.b16 %v1237
    %v1342 = vunpack.c.l.b16 %v1238
    %v1343 = vunpack.c.l.b16 %v1239
    %v1344 = vunpack.c.l.b16 %v1240
    %v1345 = vunpack.c.l.b16 %v1241
    %v1346 = vunpack.c.l.b16 %v1242
    %v1347 = vunpack.c.l.b16 %v1243
    %v1348 = vunpack.c.l.b16 %v1244
    %v1349 = vunpack.c.l.b16 %v1245
    %v1350 = vunpack.c.l.b16 %v1246
    %v1351 = vunpack.c.l.b16 %v1247
    %v1352 = vunpack.c.l.b16 %v1248
    %v1353 = vunpack.c.l.b16 %v1249
    %v1354 = vunpack.c.l.b16 %v1250
    %v1355 = vunpack.c.l.b16 %v1251
    %v1356 = vunpack.c.l.b16 %v1252
    %v1357 = vunpack.c.l.b16 %v1253
    %v1358 = vunpack.c.l.b16 %v1254
    %v1359 = vunpack.c.l.b16 %v1255
    %v1360 = vunpack.c.l.b16 %v1256
    %v1361 = vunpack.c.l.b16 %v1257
    %v1362 = vunpack.c.l.b16 %v1258
    %v1363 = vunpack.c.l.b16 %v1259
    %v1364 = vunpack.c.l.b16 %v1260
    %v1365 = vunpack.c.l.b16 %v1261
    %v1366 = vunpack.c.l.b16 %v1262
    %v1367 = vunpack.c.l.b16 %v1263
    %v1368 = vunpack.c.l.b16 %v1264
    %v1369 = vunpack.c.l.b16 %v1265
    %v1370 = vunpack.c.l.b16 %v1266
    %v1371 = vunpack.c.l.b16 %v1267
    %v1372 = vunpack.c.l.b16 %v1268
    %v1373 = vunpack.c.l.b16 %v1269
    %v1374 = vunpack.c.l.b16 %v1270
    %v1375 = vunpack.c.l.b16 %v1271
    %v1376 = vunpack.c.l.b16 %v1272
    %v1377 = vunpack.c.l.b16 %v1273
    %v1378 = vunpack.c.l.b16 %v1274
    %v1379 = vunpack.c.l.b16 %v1275
    %v1380 = vunpack.c.l.b16 %v1276
    %v1381 = vunpack.c.l.b16 %v1277
    %v1382 = vunpack.c.l.b16 %v1278
    %v1383 = vunpack.c.l.b16 %v1279
    %v1384 = vpack.c.b16 %v1337, %v1336
    %v1385 = vpack.c.b16 %v1339, %v1338
    %v1386 = vpack.c.b16 %v1341, %v1340
    %v1387 = vpack.c.b16 %v1343, %v1342
    %v1388 = vpack.c.b16 %v1345, %v1344
    %v1389 = vpack.c.b16 %v1347, %v1346
    %v1390 = vpack.c.b16 %v1349, %v1348
    %v1391 = vpack.c.b16 %v1351, %v1350
    %v1392 = vpack.c.b16 %v1353, %v1352
    %v1393 = vpack.c.b16 %v1355, %v1354
    %v1394 = vpack.c.b16 %v1357, %v1356
    %v1395 = vpack.c.b16 %v1359, %v1358
    %v1396 = vpack.c.b16 %v1361, %v1360
    %v1397 = vpack.c.b16 %v1363, %v1362
    %v1398 = vpack.c.b16 %v1365, %v1364
    %v1399 = vpack.c.b16 %v1367, %v1366
    %v1400 = vpack.c.b16 %v1369, %v1368
    %v1401 = vpack.c.b16 %v1371, %v1370
    %v1402 = vpack.c.b16 %v1373, %v1372
    %v1403 = vpack.c.b16 %v1375, %v1374
    %v1404 = vpack.c.b16 %v1377, %v1376
    %v1405 = vpack.c.b16 %v1379, %v1378
    %v1406 = vpack.c.b16 %v1381, %v1380
    %v1407 = vpack.c.b16 %v1383, %v1382
    %1432 = vmatprep.subr.bf16.mxu0 0
    %1433 = vmatpush1.bf16.msra.mxu0 %v1384
    %1434 = vmatprep.subr.bf16.mxu0 0
    %1435 = vmatpush1.bf16.msra.mxu0 %v1385
    %1436 = vmatprep.subr.bf16.mxu0 0
    %1437 = vmatpush1.bf16.msra.mxu0 %v1386
    %1438 = vmatprep.subr.bf16.mxu0 0
    %1439 = vmatpush1.bf16.msra.mxu0 %v1387
    %1440 = vmatprep.subr.bf16.mxu0 0
    %1441 = vmatpush1.bf16.msra.mxu0 %v1388
    %1442 = vmatprep.subr.bf16.mxu0 0
    %1443 = vmatpush1.bf16.msra.mxu0 %v1389
    %1444 = vmatprep.subr.bf16.mxu0 0
    %1445 = vmatpush1.bf16.msra.mxu0 %v1390
    %1446 = vmatprep.subr.bf16.mxu0 0
    %1447 = vmatpush1.bf16.msra.mxu0 %v1391
    %1448 = vmatprep.subr.bf16.mxu0 0
    %1449 = vmatpush1.bf16.msra.mxu0 %v1392
    %1450 = vmatprep.subr.bf16.mxu0 0
    %1451 = vmatpush1.bf16.msra.mxu0 %v1393
    %1452 = vmatprep.subr.bf16.mxu0 0
    %1453 = vmatpush1.bf16.msra.mxu0 %v1394
    %1454 = vmatprep.subr.bf16.mxu0 0
    %1455 = vmatpush1.bf16.msra.mxu0 %v1395
    %1456 = vmatprep.subr.bf16.mxu0 0
    %1457 = vmatpush1.bf16.msra.mxu0 %v1396
    %1458 = vmatprep.subr.bf16.mxu0 0
    %1459 = vmatpush1.bf16.msra.mxu0 %v1397
    %1460 = vmatprep.subr.bf16.mxu0 0
    %1461 = vmatpush1.bf16.msra.mxu0 %v1398
    %1462 = vmatprep.subr.bf16.mxu0 0
    %1463 = vmatpush1.bf16.msra.mxu0 %v1399
    %1464 = vmatprep.mubr.bf16.mxu0 %v1229
    %1465 = vmatmul.mubr.bf16.gmra.mrb[0].mxu0 %v1226
    %v1466 = vpop.f32.mrb[0].mxu0
    %v1467 = vadd.f32 %v1286, %v1466
    %v1468 = vpop.f32.mrb[0].mxu0
    %v1469 = vpop.f32.mrb[0].mxu0
    %v1470 = vadd.f32 %v1286, %v1469
    %v1471 = vpop.f32.mrb[0].mxu0
    %1472 = vmatprep.mubr.bf16.mxu0 %v1230
    %1473 = vmatmul.mubr.bf16.gmra.mrb[0].mxu0 %v1227
    %v1474 = vpop.f32.mrb[0].mxu0
    %v1475 = vadd.f32 %v1286, %v1474
    %v1476 = vpop.f32.mrb[0].mxu0
    %v1477 = vpop.f32.mrb[0].mxu0
    %v1478 = vadd.f32 %v1286, %v1477
    %v1479 = vpop.f32.mrb[0].mxu0
    %1480 = vmatprep.mubr.bf16.mxu0 %v1231
    %1481 = vmatmul.mubr.bf16.gmra.mrb[0].mxu0 %v1228
    %v1482 = vpop.f32.mrb[0].mxu0
    %v1483 = vadd.f32 %v1286, %v1482
    %v1484 = vpop.f32.mrb[0].mxu0
    %v1485 = vpop.f32.mrb[0].mxu0
    %v1486 = vadd.f32 %v1286, %v1485
    %v1487 = vpop.f32.mrb[0].mxu0
    %1488 = vdwg.mxu0
    %1489 = vmatprep.subr.bf16.mxu0 0
    %1490 = vmatpush1.bf16.msra.mxu0 %v1400
    %1491 = vmatprep.subr.bf16.mxu0 0
    %1492 = vmatpush1.bf16.msra.mxu0 %v1401
    %1493 = vmatprep.subr.bf16.mxu0 0
    %1494 = vmatpush1.bf16.msra.mxu0 %v1402
    %1495 = vmatprep.subr.bf16.mxu0 0
    %1496 = vmatpush1.bf16.msra.mxu0 %v1403
    %1497 = vmatprep.subr.bf16.mxu0 0
    %1498 = vmatpush1.bf16.msra.mxu0 %v1404
    %1499 = vmatprep.subr.bf16.mxu0 0
    %1500 = vmatpush1.bf16.msra.mxu0 %v1405
    %1501 = vmatprep.subr.bf16.mxu0 0
    %1502 = vmatpush1.bf16.msra.mxu0 %v1406
    %1503 = vmatprep.subr.bf16.mxu0 0
    %1504 = vmatpush1.bf16.msra.mxu0 %v1407
    %1505 = vmatprep.subr.bf16.mxu0 0
    %1506 = vmatpush1.bf16.msra.mxu0 0
    %1507 = vmatprep.subr.bf16.mxu0 0
    %1508 = vmatpush1.bf16.msra.mxu0 0
    %1509 = vmatprep.subr.bf16.mxu0 0
    %1510 = vmatpush1.bf16.msra.mxu0 0
    %1511 = vmatprep.subr.bf16.mxu0 0
    %1512 = vmatpush1.bf16.msra.mxu0 0
    %1513 = vmatprep.subr.bf16.mxu0 0
    %1514 = vmatpush1.bf16.msra.mxu0 0
    %1515 = vmatprep.subr.bf16.mxu0 0
    %1516 = vmatpush1.bf16.msra.mxu0 0
    %1517 = vmatprep.subr.bf16.mxu0 0
    %1518 = vmatpush1.bf16.msra.mxu0 0
    %1519 = vmatprep.subr.bf16.mxu0 0
    %1520 = vmatpush1.bf16.msra.mxu0 0
    %1521 = vmatprep.mubr.bf16.mxu0 0
    %1522 = vmatmul.mubr.bf16.gmra.mrb[0].mxu0 %v1106
    %v1523 = vpop.f32.mrb[0].mxu0
    %v1524 = vadd.f32 %v1467, %v1523
    %v1525 = vpop.f32.mrb[0].mxu0
    %v1526 = vpop.f32.mrb[0].mxu0
    %v1527 = vadd.f32 %v1470, %v1526
    %v1528 = vpop.f32.mrb[0].mxu0
    %1529 = vmatprep.mubr.bf16.mxu0 0
    %1530 = vmatmul.mubr.bf16.gmra.mrb[0].mxu0 %v1107
    %v1531 = vpop.f32.mrb[0].mxu0
    %v1532 = vadd.f32 %v1475, %v1531
    %v1533 = vpop.f32.mrb[0].mxu0
    %v1534 = vpop.f32.mrb[0].mxu0
    %v1535 = vadd.f32 %v1478, %v1534
    %v1536 = vpop.f32.mrb[0].mxu0
    %1537 = vmatprep.mubr.bf16.mxu0 0
    %1538 = vmatmul.mubr.bf16.gmra.mrb[0].mxu0 %v1108
    %v1539 = vpop.f32.mrb[0].mxu0
    %v1540 = vadd.f32 %v1483, %v1539
    %v1541 = vpop.f32.mrb[0].mxu0
    %v1542 = vpop.f32.mrb[0].mxu0
    %v1543 = vadd.f32 %v1486, %v1542
    %v1544 = vpop.f32.mrb[0].mxu0
    %1545 = vdwg.mxu0
    %vm1546 = vcmp.gt.f32.partialorder %v1524, 0.0
    %vm1547 = vcmp.gt.f32.partialorder %v1527, 0.0
    %vm1548 = vcmp.gt.f32.partialorder %v1532, 0.0
    %vm1549 = vcmp.gt.f32.partialorder %v1535, 0.0
    %vm1550 = vcmp.gt.f32.partialorder %v1540, 0.0
    %vm1551 = vcmp.gt.f32.partialorder %v1543, 0.0
    %v1552 = vmul.f32 %v1524, 0.01
    %v1553 = vmul.f32 %v1527, 0.01
    %v1554 = vmul.f32 %v1532, 0.01
    %v1555 = vmul.f32 %v1535, 0.01
    %v1556 = vmul.f32 %v1540, 0.01
    %v1557 = vmul.f32 %v1543, 0.01
    %v1558 = vsel %vm1546, %v1524, %v1552
    %v1559 = vsel %vm1547, %v1527, %v1553
    %v1560 = vsel %vm1548, %v1532, %v1554
    %v1561 = vsel %vm1549, %v1535, %v1555
    %v1562 = vsel %vm1550, %v1540, %v1556
    %v1563 = vsel %vm1551, %v1543, %v1557
    %s1564 = scalar_lea.vmem [#allocation2], 448
    %v1565 = vld [vmem:[%s1564] sm:$0xf]
    %v1566 = vld [vmem:[%s1564 + $0x4] sm:$0xf]
    %v1567 = vld [vmem:[%s1564 + $0x8] sm:$0xf]
    %v1568 = vld [vmem:[%s1564 + $0xc] sm:$0xf]
    %v1569 = vld [vmem:[%s1564 + $0x10] sm:$0xf]
    %v1570 = vld [vmem:[%s1564 + $0x14] sm:$0xf]
    %v1571 = vld [vmem:[%s1564 + $0x18] sm:$0xf]
    %v1572 = vld [vmem:[%s1564 + $0x1c] sm:$0xf]
    %v1573 = vld [vmem:[%s1564 + $0x20] sm:$0xf]
    %v1574 = vld [vmem:[%s1564 + $0x24] sm:$0xf]
    %v1575 = vld [vmem:[%s1564 + $0x28] sm:$0xf]
    %v1576 = vld [vmem:[%s1564 + $0x2c] sm:$0xf]
    %v1577 = vld [vmem:[%s1564 + $0x30] sm:$0xf]
    %v1578 = vld [vmem:[%s1564 + $0x34] sm:$0xf]
    %v1579 = vld [vmem:[%s1564 + $0x38] sm:$0xf]
    %v1580 = vld [vmem:[%s1564 + $0x3c] sm:$0xf]
    %v1581 = vpack.c.bf16 %v1559, %v1558
    %v1582 = vpack.c.bf16 %v1561, %v1560
    %v1583 = vpack.c.bf16 %v1563, %v1562
    %s1584 = scalar_lea.vmem %s9, 10
    %v1585 = vld [vmem:[%s1584] sm:$0x1]
    %v1587 = vlaneseq
    %v1588 = vshrl.u32 %v1587, 7
    %v1589 = vsub.s32 0, %v1588
    %v1590 = vrot.slane %v1585, %v1589
    %v1608 = vunpack.c.l.b16 %v1565
    %v1609 = vunpack.c.l.b16 %v1566
    %v1610 = vunpack.c.l.b16 %v1567
    %v1611 = vunpack.c.l.b16 %v1568
    %v1612 = vunpack.c.l.b16 %v1569
    %v1613 = vunpack.c.l.b16 %v1570
    %v1614 = vunpack.c.l.b16 %v1571
    %v1615 = vunpack.c.l.b16 %v1572
    %v1616 = vunpack.c.l.b16 %v1573
    %v1617 = vunpack.c.l.b16 %v1574
    %v1618 = vunpack.c.l.b16 %v1575
    %v1619 = vunpack.c.l.b16 %v1576
    %v1620 = vunpack.c.l.b16 %v1577
    %v1621 = vunpack.c.l.b16 %v1578
    %v1622 = vunpack.c.l.b16 %v1579
    %v1623 = vunpack.c.l.b16 %v1580
    %v1624 = vpack.c.b16 %v1609, %v1608
    %v1625 = vpack.c.b16 %v1611, %v1610
    %v1626 = vpack.c.b16 %v1613, %v1612
    %v1627 = vpack.c.b16 %v1615, %v1614
    %v1628 = vpack.c.b16 %v1617, %v1616
    %v1629 = vpack.c.b16 %v1619, %v1618
    %v1630 = vpack.c.b16 %v1621, %v1620
    %v1631 = vpack.c.b16 %v1623, %v1622
    %1640 = vmatprep.subr.bf16.mxu0 0
    %1641 = vmatpush1.bf16.msra.mxu0 %v1624
    %1642 = vmatprep.subr.bf16.mxu0 0
    %1643 = vmatpush1.bf16.msra.mxu0 %v1625
    %1644 = vmatprep.subr.bf16.mxu0 0
    %1645 = vmatpush1.bf16.msra.mxu0 %v1626
    %1646 = vmatprep.subr.bf16.mxu0 0
    %1647 = vmatpush1.bf16.msra.mxu0 %v1627
    %1648 = vmatprep.subr.bf16.mxu0 0
    %1649 = vmatpush1.bf16.msra.mxu0 %v1628
    %1650 = vmatprep.subr.bf16.mxu0 0
    %1651 = vmatpush1.bf16.msra.mxu0 %v1629
    %1652 = vmatprep.subr.bf16.mxu0 0
    %1653 = vmatpush1.bf16.msra.mxu0 %v1630
    %1654 = vmatprep.subr.bf16.mxu0 0
    %1655 = vmatpush1.bf16.msra.mxu0 %v1631
    %1656 = vmatprep.subr.bf16.mxu0 0
    %1657 = vmatpush1.bf16.msra.mxu0 0
    %1658 = vmatprep.subr.bf16.mxu0 0
    %1659 = vmatpush1.bf16.msra.mxu0 0
    %1660 = vmatprep.subr.bf16.mxu0 0
    %1661 = vmatpush1.bf16.msra.mxu0 0
    %1662 = vmatprep.subr.bf16.mxu0 0
    %1663 = vmatpush1.bf16.msra.mxu0 0
    %1664 = vmatprep.subr.bf16.mxu0 0
    %1665 = vmatpush1.bf16.msra.mxu0 0
    %1666 = vmatprep.subr.bf16.mxu0 0
    %1667 = vmatpush1.bf16.msra.mxu0 0
    %1668 = vmatprep.subr.bf16.mxu0 0
    %1669 = vmatpush1.bf16.msra.mxu0 0
    %1670 = vmatprep.subr.bf16.mxu0 0
    %1671 = vmatpush1.bf16.msra.mxu0 0
    %1672 = vmatprep.mubr.bf16.mxu0 0
    %1673 = vmatmul.mubr.bf16.gmra.mrb[0].mxu0 %v1581
    %v1674 = vpop.f32.mrb[0].mxu0
    %v1675 = vadd.f32 %v1590, %v1674
    %v1676 = vpop.f32.mrb[0].mxu0
    %v1677 = vpop.f32.mrb[0].mxu0
    %v1678 = vadd.f32 %v1590, %v1677
    %v1679 = vpop.f32.mrb[0].mxu0
    %1680 = vmatprep.mubr.bf16.mxu0 0
    %1681 = vmatmul.mubr.bf16.gmra.mrb[0].mxu0 %v1582
    %v1682 = vpop.f32.mrb[0].mxu0
    %v1683 = vadd.f32 %v1590, %v1682
    %v1684 = vpop.f32.mrb[0].mxu0
    %v1685 = vpop.f32.mrb[0].mxu0
    %v1686 = vadd.f32 %v1590, %v1685
    %v1687 = vpop.f32.mrb[0].mxu0
    %1688 = vmatprep.mubr.bf16.mxu0 0
    %1689 = vmatmul.mubr.bf16.gmra.mrb[0].mxu0 %v1583
    %v1690 = vpop.f32.mrb[0].mxu0
    %v1691 = vadd.f32 %v1590, %v1690
    %v1692 = vpop.f32.mrb[0].mxu0
    %v1693 = vpop.f32.mrb[0].mxu0
    %v1694 = vadd.f32 %v1590, %v1693
    %v1695 = vpop.f32.mrb[0].mxu0
    %1696 = vdwg.mxu0
    %vm1697 = vcmp.gt.f32.partialorder %v1675, 0.0
    %vm1698 = vcmp.gt.f32.partialorder %v1678, 0.0
    %vm1699 = vcmp.gt.f32.partialorder %v1683, 0.0
    %vm1700 = vcmp.gt.f32.partialorder %v1686, 0.0
    %vm1701 = vcmp.gt.f32.partialorder %v1691, 0.0
    %vm1702 = vcmp.gt.f32.partialorder %v1694, 0.0
    %v1703 = vmul.f32 %v1675, 0.01
    %v1704 = vmul.f32 %v1678, 0.01
    %v1705 = vmul.f32 %v1683, 0.01
    %v1706 = vmul.f32 %v1686, 0.01
    %v1707 = vmul.f32 %v1691, 0.01
    %v1708 = vmul.f32 %v1694, 0.01
    %v1709 = vsel %vm1697, %v1675, %v1703
    %v1710 = vsel %vm1698, %v1678, %v1704
    %v1711 = vsel %vm1699, %v1683, %v1705
    %v1712 = vsel %vm1700, %v1686, %v1706
    %v1713 = vsel %vm1701, %v1691, %v1707
    %v1714 = vsel %vm1702, %v1694, %v1708
    %s1715 = scalar_lea.vmem [#allocation2], 512
    %v1716 = vld [vmem:[%s1715] sm:$0xf]
    %v1717 = vld [vmem:[%s1715 + $0x4] sm:$0xf]
    %v1718 = vld [vmem:[%s1715 + $0x8] sm:$0xf]
    %v1719 = vld [vmem:[%s1715 + $0xc] sm:$0xf]
    %v1720 = vld [vmem:[%s1715 + $0x10] sm:$0xf]
    %v1721 = vld [vmem:[%s1715 + $0x14] sm:$0xf]
    %v1722 = vld [vmem:[%s1715 + $0x18] sm:$0xf]
    %v1723 = vld [vmem:[%s1715 + $0x1c] sm:$0xf]
    %v1724 = vld [vmem:[%s1715 + $0x20] sm:$0xf]
    %v1725 = vld [vmem:[%s1715 + $0x24] sm:$0xf]
    %v1726 = vld [vmem:[%s1715 + $0x28] sm:$0xf]
    %v1727 = vld [vmem:[%s1715 + $0x2c] sm:$0xf]
    %v1728 = vld [vmem:[%s1715 + $0x30] sm:$0xf]
    %v1729 = vld [vmem:[%s1715 + $0x34] sm:$0xf]
    %v1730 = vld [vmem:[%s1715 + $0x38] sm:$0xf]
    %v1731 = vld [vmem:[%s1715 + $0x3c] sm:$0xf]
    %v1732 = vpack.c.bf16 %v1710, %v1709
    %v1733 = vpack.c.bf16 %v1712, %v1711
    %v1734 = vpack.c.bf16 %v1714, %v1713
    %s1735 = scalar_lea.vmem %s9, 11
    %v1736 = vld [vmem:[%s1735] sm:$0x1]
    %v1738 = vlaneseq
    %v1739 = vshrl.u32 %v1738, 7
    %v1740 = vsub.s32 0, %v1739
    %v1741 = vrot.slane %v1736, %v1740
    %v1759 = vunpack.c.l.b16 %v1716
    %v1760 = vunpack.c.l.b16 %v1717
    %v1761 = vunpack.c.l.b16 %v1718
    %v1762 = vunpack.c.l.b16 %v1719
    %v1763 = vunpack.c.l.b16 %v1720
    %v1764 = vunpack.c.l.b16 %v1721
    %v1765 = vunpack.c.l.b16 %v1722
    %v1766 = vunpack.c.l.b16 %v1723
    %v1767 = vunpack.c.l.b16 %v1724
    %v1768 = vunpack.c.l.b16 %v1725
    %v1769 = vunpack.c.l.b16 %v1726
    %v1770 = vunpack.c.l.b16 %v1727
    %v1771 = vunpack.c.l.b16 %v1728
    %v1772 = vunpack.c.l.b16 %v1729
    %v1773 = vunpack.c.l.b16 %v1730
    %v1774 = vunpack.c.l.b16 %v1731
    %v1775 = vpack.c.b16 %v1760, %v1759
    %v1776 = vpack.c.b16 %v1762, %v1761
    %v1777 = vpack.c.b16 %v1764, %v1763
    %v1778 = vpack.c.b16 %v1766, %v1765
    %v1779 = vpack.c.b16 %v1768, %v1767
    %v1780 = vpack.c.b16 %v1770, %v1769
    %v1781 = vpack.c.b16 %v1772, %v1771
    %v1782 = vpack.c.b16 %v1774, %v1773
    %1791 = vmatprep.subr.bf16.mxu0 0
    %1792 = vmatpush1.bf16.msra.mxu0 %v1775
    %1793 = vmatprep.subr.bf16.mxu0 0
    %1794 = vmatpush1.bf16.msra.mxu0 %v1776
    %1795 = vmatprep.subr.bf16.mxu0 0
    %1796 = vmatpush1.bf16.msra.mxu0 %v1777
    %1797 = vmatprep.subr.bf16.mxu0 0
    %1798 = vmatpush1.bf16.msra.mxu0 %v1778
    %1799 = vmatprep.subr.bf16.mxu0 0
    %1800 = vmatpush1.bf16.msra.mxu0 %v1779
    %1801 = vmatprep.subr.bf16.mxu0 0
    %1802 = vmatpush1.bf16.msra.mxu0 %v1780
    %1803 = vmatprep.subr.bf16.mxu0 0
    %1804 = vmatpush1.bf16.msra.mxu0 %v1781
    %1805 = vmatprep.subr.bf16.mxu0 0
    %1806 = vmatpush1.bf16.msra.mxu0 %v1782
    %1807 = vmatprep.subr.bf16.mxu0 0
    %1808 = vmatpush1.bf16.msra.mxu0 0
    %1809 = vmatprep.subr.bf16.mxu0 0
    %1810 = vmatpush1.bf16.msra.mxu0 0
    %1811 = vmatprep.subr.bf16.mxu0 0
    %1812 = vmatpush1.bf16.msra.mxu0 0
    %1813 = vmatprep.subr.bf16.mxu0 0
    %1814 = vmatpush1.bf16.msra.mxu0 0
    %1815 = vmatprep.subr.bf16.mxu0 0
    %1816 = vmatpush1.bf16.msra.mxu0 0
    %1817 = vmatprep.subr.bf16.mxu0 0
    %1818 = vmatpush1.bf16.msra.mxu0 0
    %1819 = vmatprep.subr.bf16.mxu0 0
    %1820 = vmatpush1.bf16.msra.mxu0 0
    %1821 = vmatprep.subr.bf16.mxu0 0
    %1822 = vmatpush1.bf16.msra.mxu0 0
    %1823 = vmatprep.mubr.bf16.mxu0 0
    %1824 = vmatmul.mubr.bf16.gmra.mrb[0].mxu0 %v1732
    %v1825 = vpop.f32.mrb[0].mxu0
    %v1826 = vadd.f32 %v1741, %v1825
    %v1827 = vpop.f32.mrb[0].mxu0
    %v1828 = vpop.f32.mrb[0].mxu0
    %v1829 = vadd.f32 %v1741, %v1828
    %v1830 = vpop.f32.mrb[0].mxu0
    %1831 = vmatprep.mubr.bf16.mxu0 0
    %1832 = vmatmul.mubr.bf16.gmra.mrb[0].mxu0 %v1733
    %v1833 = vpop.f32.mrb[0].mxu0
    %v1834 = vadd.f32 %v1741, %v1833
    %v1835 = vpop.f32.mrb[0].mxu0
    %v1836 = vpop.f32.mrb[0].mxu0
    %v1837 = vadd.f32 %v1741, %v1836
    %v1838 = vpop.f32.mrb[0].mxu0
    %1839 = vmatprep.mubr.bf16.mxu0 0
    %1840 = vmatmul.mubr.bf16.gmra.mrb[0].mxu0 %v1734
    %v1841 = vpop.f32.mrb[0].mxu0
    %v1842 = vadd.f32 %v1741, %v1841
    %v1843 = vpop.f32.mrb[0].mxu0
    %v1844 = vpop.f32.mrb[0].mxu0
    %v1845 = vadd.f32 %v1741, %v1844
    %v1846 = vpop.f32.mrb[0].mxu0
    %1847 = vdwg.mxu0
    %v1848 = vpack.c.bf16 %v1829, %v1826
    %v1849 = vpack.c.bf16 %v1837, %v1834
    %v1850 = vpack.c.bf16 %v1845, %v1842
    %v1857 = vunpack.c.l.b16 %v1092
    %v1858 = vunpack.c.l.b16 %v1093
    %v1859 = vunpack.c.l.b16 %v1094
    %v1860 = vunpack.c.l.b16 %v1095
    %v1861 = vunpack.c.l.b16 %v1096
    %v1862 = vunpack.c.l.b16 %v1097
    %v1863 = vpack.c.b16 %v1858, %v1857
    %v1864 = vpack.c.b16 %v1860, %v1859
    %v1865 = vpack.c.b16 %v1862, %v1861
    %1869 = vxpose.xlu0.c.b16.start [1/8] %v1863, 128
    %1870 = vxpose.xlu0.c.b16.cont [2/8] %v1864, 128
    %1871 = vxpose.xlu0.c.b16.cont [3/8] %v1865, 128
    %1872 = vxpose.xlu0.c.b16.cont [4/8] 0, 128
    %1873 = vxpose.xlu0.c.b16.cont [5/8] 0, 128
    %1874 = vxpose.xlu0.c.b16.cont [6/8] 0, 128
    %1875 = vxpose.xlu0.c.b16.cont [7/8] 0, 128
    %1876 = vxpose.xlu0.c.b16.end [8/8] 0, 128
    %v1877 = vpop.trf.xlu0
    %v1878 = vpop.trf.xlu0
    %v1879 = vpop.trf.xlu0
    %v1880 = vpop.trf.xlu0
    %v1881 = vpop.trf.xlu0
    %v1882 = vpop.trf.xlu0
    %v1883 = vpop.trf.xlu0
    %v1884 = vpop.trf.xlu0
    %vm1885 = vcmask 392192
    %v1887 = vsel %vm1885, %v1877, 0
    %v1890 = vsel %vm1885, %v1878, 0
    %v1893 = vsel %vm1885, %v1879, 0
    %v1896 = vsel %vm1885, %v1880, 0
    %v1899 = vsel %vm1885, %v1881, 0
    %v1902 = vsel %vm1885, %v1882, 0
    %v1905 = vsel %vm1885, %v1883, 0
    %v1908 = vsel %vm1885, %v1884, 0
    %1910 = vmatprep.subr.bf16.mxu0 0
    %1911 = vmatpush1.bf16.msra.mxu0 %v1848
    %1912 = vmatprep.subr.bf16.mxu0 0
    %1913 = vmatpush1.bf16.msra.mxu0 %v1849
    %1914 = vmatprep.subr.bf16.mxu0 0
    %1915 = vmatpush1.bf16.msra.mxu0 %v1850
    %1916 = vmatprep.subr.bf16.mxu0 0
    %1917 = vmatpush1.bf16.msra.mxu0 0
    %1918 = vmatprep.subr.bf16.mxu0 0
    %1919 = vmatpush1.bf16.msra.mxu0 0
    %1920 = vmatprep.subr.bf16.mxu0 0
    %1921 = vmatpush1.bf16.msra.mxu0 0
    %1922 = vmatprep.subr.bf16.mxu0 0
    %1923 = vmatpush1.bf16.msra.mxu0 0
    %1924 = vmatprep.subr.bf16.mxu0 0
    %1925 = vmatpush1.bf16.msra.mxu0 0
    %1926 = vmatprep.subr.bf16.mxu0 0
    %1927 = vmatpush1.bf16.msra.mxu0 0
    %1928 = vmatprep.subr.bf16.mxu0 0
    %1929 = vmatpush1.bf16.msra.mxu0 0
    %1930 = vmatprep.subr.bf16.mxu0 0
    %1931 = vmatpush1.bf16.msra.mxu0 0
    %1932 = vmatprep.subr.bf16.mxu0 0
    %1933 = vmatpush1.bf16.msra.mxu0 0
    %1934 = vmatprep.subr.bf16.mxu0 0
    %1935 = vmatpush1.bf16.msra.mxu0 0
    %1936 = vmatprep.subr.bf16.mxu0 0
    %1937 = vmatpush1.bf16.msra.mxu0 0
    %1938 = vmatprep.subr.bf16.mxu0 0
    %1939 = vmatpush1.bf16.msra.mxu0 0
    %1940 = vmatprep.subr.bf16.mxu0 0
    %1941 = vmatpush1.bf16.msra.mxu0 0
    %1942 = vmatprep.mubr.bf16.mxu0 0
    %1943 = vmatmul.mubr.bf16.gmra.mrb[0].mxu0 %v1887
    %v1944 = vpop.f32.mrb[0].mxu0
    %v1945 = vadd.f32 0.0, %v1944
    %v1946 = vpop.f32.mrb[0].mxu0
    %v1947 = vpop.f32.mrb[0].mxu0
    %v1948 = vadd.f32 0.0, %v1947
    %v1949 = vpop.f32.mrb[0].mxu0
    %1950 = vmatprep.mubr.bf16.mxu0 0
    %1951 = vmatmul.mubr.bf16.gmra.mrb[0].mxu0 %v1890
    %v1952 = vpop.f32.mrb[0].mxu0
    %v1953 = vadd.f32 0.0, %v1952
    %v1954 = vpop.f32.mrb[0].mxu0
    %v1955 = vpop.f32.mrb[0].mxu0
    %v1956 = vadd.f32 0.0, %v1955
    %v1957 = vpop.f32.mrb[0].mxu0
    %1958 = vmatprep.mubr.bf16.mxu0 0
    %1959 = vmatmul.mubr.bf16.gmra.mrb[0].mxu0 %v1893
    %v1960 = vpop.f32.mrb[0].mxu0
    %v1961 = vadd.f32 0.0, %v1960
    %v1962 = vpop.f32.mrb[0].mxu0
    %v1963 = vpop.f32.mrb[0].mxu0
    %v1964 = vadd.f32 0.0, %v1963
    %v1965 = vpop.f32.mrb[0].mxu0
    %1966 = vmatprep.mubr.bf16.mxu0 0
    %1967 = vmatmul.mubr.bf16.gmra.mrb[0].mxu0 %v1896
    %v1968 = vpop.f32.mrb[0].mxu0
    %v1969 = vadd.f32 0.0, %v1968
    %v1970 = vpop.f32.mrb[0].mxu0
    %v1971 = vpop.f32.mrb[0].mxu0
    %v1972 = vadd.f32 0.0, %v1971
    %v1973 = vpop.f32.mrb[0].mxu0
    %1974 = vmatprep.mubr.bf16.mxu0 0
    %1975 = vmatmul.mubr.bf16.gmra.mrb[0].mxu0 %v1899
    %v1976 = vpop.f32.mrb[0].mxu0
    %v1977 = vadd.f32 0.0, %v1976
    %v1978 = vpop.f32.mrb[0].mxu0
    %v1979 = vpop.f32.mrb[0].mxu0
    %v1980 = vadd.f32 0.0, %v1979
    %v1981 = vpop.f32.mrb[0].mxu0
    %1982 = vmatprep.mubr.bf16.mxu0 0
    %1983 = vmatmul.mubr.bf16.gmra.mrb[0].mxu0 %v1902
    %v1984 = vpop.f32.mrb[0].mxu0
    %v1985 = vadd.f32 0.0, %v1984
    %v1986 = vpop.f32.mrb[0].mxu0
    %v1987 = vpop.f32.mrb[0].mxu0
    %v1988 = vadd.f32 0.0, %v1987
    %v1989 = vpop.f32.mrb[0].mxu0
    %1990 = vmatprep.mubr.bf16.mxu0 0
    %1991 = vmatmul.mubr.bf16.gmra.mrb[0].mxu0 %v1905
    %v1992 = vpop.f32.mrb[0].mxu0
    %v1993 = vadd.f32 0.0, %v1992
    %v1994 = vpop.f32.mrb[0].mxu0
    %v1995 = vpop.f32.mrb[0].mxu0
    %v1996 = vadd.f32 0.0, %v1995
    %v1997 = vpop.f32.mrb[0].mxu0
    %1998 = vmatprep.mubr.bf16.mxu0 0
    %1999 = vmatmul.mubr.bf16.gmra.mrb[0].mxu0 %v1908
    %v2000 = vpop.f32.mrb[0].mxu0
    %v2001 = vadd.f32 0.0, %v2000
    %v2002 = vpop.f32.mrb[0].mxu0
    %v2003 = vpop.f32.mrb[0].mxu0
    %v2004 = vadd.f32 0.0, %v2003
    %v2005 = vpop.f32.mrb[0].mxu0
    %2006 = vdwg.mxu0
    %v2007 = vpack.c.bf16 %v1948, %v1945
    %v2008 = vpack.c.bf16 %v1956, %v1953
    %v2009 = vpack.c.bf16 %v1964, %v1961
    %v2010 = vpack.c.bf16 %v1972, %v1969
    %v2011 = vpack.c.bf16 %v1980, %v1977
    %v2012 = vpack.c.bf16 %v1988, %v1985
    %v2013 = vpack.c.bf16 %v1996, %v1993
    %v2014 = vpack.c.bf16 %v2004, %v2001
    %v2015 = vld [vmem:[%s8] sm:$0xf]
    %v2016 = vld [vmem:[%s8 + $0x4] sm:$0xf]
    %v2017 = vld [vmem:[%s8 + $0x8] sm:$0xf]
    %v2018 = vld [vmem:[%s8 + $0xc] sm:$0xf]
    %v2019 = vld [vmem:[%s8 + $0x10] sm:$0xf]
    %v2020 = vld [vmem:[%s8 + $0x14] sm:$0xf]
    %v2021 = vld [vmem:[%s8 + $0x18] sm:$0xf]
    %v2022 = vld [vmem:[%s8 + $0x1c] sm:$0xf]
    %v2023 = vld [vmem:[%s8 + $0x20] sm:$0xf]
    %v2024 = vld [vmem:[%s8 + $0x24] sm:$0xf]
    %v2025 = vld [vmem:[%s8 + $0x28] sm:$0xf]
    %v2026 = vld [vmem:[%s8 + $0x2c] sm:$0xf]
    %v2027 = vld [vmem:[%s8 + $0x30] sm:$0xf]
    %v2028 = vld [vmem:[%s8 + $0x34] sm:$0xf]
    %v2029 = vld [vmem:[%s8 + $0x38] sm:$0xf]
    %v2030 = vld [vmem:[%s8 + $0x3c] sm:$0xf]
    %v2031 = vld [vmem:[%s8 + $0x40] sm:$0xf]
    %v2032 = vld [vmem:[%s8 + $0x44] sm:$0xf]
    %v2033 = vld [vmem:[%s8 + $0x48] sm:$0xf]
    %v2034 = vld [vmem:[%s8 + $0x4c] sm:$0xf]
    %v2035 = vld [vmem:[%s8 + $0x50] sm:$0xf]
    %v2036 = vld [vmem:[%s8 + $0x54] sm:$0xf]
    %v2037 = vld [vmem:[%s8 + $0x58] sm:$0xf]
    %v2038 = vld [vmem:[%s8 + $0x5c] sm:$0xf]
    %v2039 = vld [vmem:[%s8 + $0x60] sm:$0xf]
    %v2040 = vld [vmem:[%s8 + $0x64] sm:$0xf]
    %v2041 = vld [vmem:[%s8 + $0x68] sm:$0xf]
    %v2042 = vld [vmem:[%s8 + $0x6c] sm:$0xf]
    %v2043 = vld [vmem:[%s8 + $0x70] sm:$0xf]
    %v2044 = vld [vmem:[%s8 + $0x74] sm:$0xf]
    %v2045 = vld [vmem:[%s8 + $0x78] sm:$0xf]
    %v2046 = vld [vmem:[%s8 + $0x7c] sm:$0xf]
    %s2047 = scalar_lea.vmem %s9, 12
    %v2048 = vld [vmem:[%s2047] sm:$0x1]
    %v2050 = vlaneseq
    %v2051 = vshrl.u32 %v2050, 7
    %v2052 = vsub.s32 0, %v2051
    %v2053 = vrot.slane %v2048, %v2052
    %v2087 = vunpack.c.l.b16 %v2015
    %v2088 = vunpack.c.l.b16 %v2016
    %v2089 = vunpack.c.l.b16 %v2017
    %v2090 = vunpack.c.l.b16 %v2018
    %v2091 = vunpack.c.l.b16 %v2019
    %v2092 = vunpack.c.l.b16 %v2020
    %v2093 = vunpack.c.l.b16 %v2021
    %v2094 = vunpack.c.l.b16 %v2022
    %v2095 = vunpack.c.l.b16 %v2023
    %v2096 = vunpack.c.l.b16 %v2024
    %v2097 = vunpack.c.l.b16 %v2025
    %v2098 = vunpack.c.l.b16 %v2026
    %v2099 = vunpack.c.l.b16 %v2027
    %v2100 = vunpack.c.l.b16 %v2028
    %v2101 = vunpack.c.l.b16 %v2029
    %v2102 = vunpack.c.l.b16 %v2030
    %v2103 = vunpack.c.l.b16 %v2031
    %v2104 = vunpack.c.l.b16 %v2032
    %v2105 = vunpack.c.l.b16 %v2033
    %v2106 = vunpack.c.l.b16 %v2034
    %v2107 = vunpack.c.l.b16 %v2035
    %v2108 = vunpack.c.l.b16 %v2036
    %v2109 = vunpack.c.l.b16 %v2037
    %v2110 = vunpack.c.l.b16 %v2038
    %v2111 = vunpack.c.l.b16 %v2039
    %v2112 = vunpack.c.l.b16 %v2040
    %v2113 = vunpack.c.l.b16 %v2041
    %v2114 = vunpack.c.l.b16 %v2042
    %v2115 = vunpack.c.l.b16 %v2043
    %v2116 = vunpack.c.l.b16 %v2044
    %v2117 = vunpack.c.l.b16 %v2045
    %v2118 = vunpack.c.l.b16 %v2046
    %v2119 = vpack.c.b16 %v2088, %v2087
    %v2120 = vpack.c.b16 %v2090, %v2089
    %v2121 = vpack.c.b16 %v2092, %v2091
    %v2122 = vpack.c.b16 %v2094, %v2093
    %v2123 = vpack.c.b16 %v2096, %v2095
    %v2124 = vpack.c.b16 %v2098, %v2097
    %v2125 = vpack.c.b16 %v2100, %v2099
    %v2126 = vpack.c.b16 %v2102, %v2101
    %v2127 = vpack.c.b16 %v2104, %v2103
    %v2128 = vpack.c.b16 %v2106, %v2105
    %v2129 = vpack.c.b16 %v2108, %v2107
    %v2130 = vpack.c.b16 %v2110, %v2109
    %v2131 = vpack.c.b16 %v2112, %v2111
    %v2132 = vpack.c.b16 %v2114, %v2113
    %v2133 = vpack.c.b16 %v2116, %v2115
    %v2134 = vpack.c.b16 %v2118, %v2117
    %2151 = vmatprep.subr.bf16.mxu0 0
    %2152 = vmatpush1.bf16.msra.mxu0 %v2119
    %2153 = vmatprep.subr.bf16.mxu0 0
    %2154 = vmatpush1.bf16.msra.mxu0 %v2120
    %2155 = vmatprep.subr.bf16.mxu0 0
    %2156 = vmatpush1.bf16.msra.mxu0 %v2121
    %2157 = vmatprep.subr.bf16.mxu0 0
    %2158 = vmatpush1.bf16.msra.mxu0 %v2122
    %2159 = vmatprep.subr.bf16.mxu0 0
    %2160 = vmatpush1.bf16.msra.mxu0 %v2123
    %2161 = vmatprep.subr.bf16.mxu0 0
    %2162 = vmatpush1.bf16.msra.mxu0 %v2124
    %2163 = vmatprep.subr.bf16.mxu0 0
    %2164 = vmatpush1.bf16.msra.mxu0 %v2125
    %2165 = vmatprep.subr.bf16.mxu0 0
    %2166 = vmatpush1.bf16.msra.mxu0 %v2126
    %2167 = vmatprep.subr.bf16.mxu0 0
    %2168 = vmatpush1.bf16.msra.mxu0 %v2127
    %2169 = vmatprep.subr.bf16.mxu0 0
    %2170 = vmatpush1.bf16.msra.mxu0 %v2128
    %2171 = vmatprep.subr.bf16.mxu0 0
    %2172 = vmatpush1.bf16.msra.mxu0 %v2129
    %2173 = vmatprep.subr.bf16.mxu0 0
    %2174 = vmatpush1.bf16.msra.mxu0 %v2130
    %2175 = vmatprep.subr.bf16.mxu0 0
    %2176 = vmatpush1.bf16.msra.mxu0 %v2131
    %2177 = vmatprep.subr.bf16.mxu0 0
    %2178 = vmatpush1.bf16.msra.mxu0 %v2132
    %2179 = vmatprep.subr.bf16.mxu0 0
    %2180 = vmatpush1.bf16.msra.mxu0 %v2133
    %2181 = vmatprep.subr.bf16.mxu0 0
    %2182 = vmatpush1.bf16.msra.mxu0 %v2134
    %2183 = vmatprep.mubr.bf16.mxu0 %v2007
    %2184 = vmatmul.mubr.bf16.gmra.mrb[0].mxu0 %v1098
    %v2185 = vpop.f32.mrb[0].mxu0
    %v2186 = vadd.f32 %v2053, %v2185
    %v2187 = vpop.f32.mrb[0].mxu0
    %v2188 = vpop.f32.mrb[0].mxu0
    %v2189 = vadd.f32 %v2053, %v2188
    %v2190 = vpop.f32.mrb[0].mxu0
    %2191 = vmatprep.mubr.bf16.mxu0 %v2008
    %2192 = vmatmul.mubr.bf16.gmra.mrb[0].mxu0 %v1099
    %v2193 = vpop.f32.mrb[0].mxu0
    %v2194 = vadd.f32 %v2053, %v2193
    %v2195 = vpop.f32.mrb[0].mxu0
    %v2196 = vpop.f32.mrb[0].mxu0
    %v2197 = vadd.f32 %v2053, %v2196
    %v2198 = vpop.f32.mrb[0].mxu0
    %2199 = vmatprep.mubr.bf16.mxu0 %v2009
    %2200 = vmatmul.mubr.bf16.gmra.mrb[0].mxu0 %v1100
    %v2201 = vpop.f32.mrb[0].mxu0
    %v2202 = vadd.f32 %v2053, %v2201
    %v2203 = vpop.f32.mrb[0].mxu0
    %v2204 = vpop.f32.mrb[0].mxu0
    %v2205 = vadd.f32 %v2053, %v2204
    %v2206 = vpop.f32.mrb[0].mxu0
    %2207 = vmatprep.mubr.bf16.mxu0 %v2010
    %2208 = vmatmul.mubr.bf16.gmra.mrb[0].mxu0 %v1101
    %v2209 = vpop.f32.mrb[0].mxu0
    %v2210 = vadd.f32 %v2053, %v2209
    %v2211 = vpop.f32.mrb[0].mxu0
    %v2212 = vpop.f32.mrb[0].mxu0
    %v2213 = vadd.f32 %v2053, %v2212
    %v2214 = vpop.f32.mrb[0].mxu0
    %2215 = vmatprep.mubr.bf16.mxu0 %v2011
    %2216 = vmatmul.mubr.bf16.gmra.mrb[0].mxu0 %v1102
    %v2217 = vpop.f32.mrb[0].mxu0
    %v2218 = vadd.f32 %v2053, %v2217
    %v2219 = vpop.f32.mrb[0].mxu0
    %v2220 = vpop.f32.mrb[0].mxu0
    %v2221 = vadd.f32 %v2053, %v2220
    %v2222 = vpop.f32.mrb[0].mxu0
    %2223 = vmatprep.mubr.bf16.mxu0 %v2012
    %2224 = vmatmul.mubr.bf16.gmra.mrb[0].mxu0 %v1103
    %v2225 = vpop.f32.mrb[0].mxu0
    %v2226 = vadd.f32 %v2053, %v2225
    %v2227 = vpop.f32.mrb[0].mxu0
    %v2228 = vpop.f32.mrb[0].mxu0
    %v2229 = vadd.f32 %v2053, %v2228
    %v2230 = vpop.f32.mrb[0].mxu0
    %2231 = vmatprep.mubr.bf16.mxu0 %v2013
    %2232 = vmatmul.mubr.bf16.gmra.mrb[0].mxu0 %v1104
    %v2233 = vpop.f32.mrb[0].mxu0
    %v2234 = vadd.f32 %v2053, %v2233
    %v2235 = vpop.f32.mrb[0].mxu0
    %v2236 = vpop.f32.mrb[0].mxu0
    %v2237 = vadd.f32 %v2053, %v2236
    %v2238 = vpop.f32.mrb[0].mxu0
    %2239 = vmatprep.mubr.bf16.mxu0 %v2014
    %2240 = vmatmul.mubr.bf16.gmra.mrb[0].mxu0 %v1105
    %v2241 = vpop.f32.mrb[0].mxu0
    %v2242 = vadd.f32 %v2053, %v2241
    %v2243 = vpop.f32.mrb[0].mxu0
    %v2244 = vpop.f32.mrb[0].mxu0
    %v2245 = vadd.f32 %v2053, %v2244
    %v2246 = vpop.f32.mrb[0].mxu0
    %2247 = vdwg.mxu0
    %vm2248 = vcmp.gt.f32.partialorder %v2186, 0.0
    %vm2249 = vcmp.gt.f32.partialorder %v2189, 0.0
    %vm2250 = vcmp.gt.f32.partialorder %v2194, 0.0
    %vm2251 = vcmp.gt.f32.partialorder %v2197, 0.0
    %vm2252 = vcmp.gt.f32.partialorder %v2202, 0.0
    %vm2253 = vcmp.gt.f32.partialorder %v2205, 0.0
    %vm2254 = vcmp.gt.f32.partialorder %v2210, 0.0
    %vm2255 = vcmp.gt.f32.partialorder %v2213, 0.0
    %vm2256 = vcmp.gt.f32.partialorder %v2218, 0.0
    %vm2257 = vcmp.gt.f32.partialorder %v2221, 0.0
    %vm2258 = vcmp.gt.f32.partialorder %v2226, 0.0
    %vm2259 = vcmp.gt.f32.partialorder %v2229, 0.0
    %vm2260 = vcmp.gt.f32.partialorder %v2234, 0.0
    %vm2261 = vcmp.gt.f32.partialorder %v2237, 0.0
    %vm2262 = vcmp.gt.f32.partialorder %v2242, 0.0
    %vm2263 = vcmp.gt.f32.partialorder %v2245, 0.0
    %v2264 = vmul.f32 %v2186, 0.01
    %v2265 = vmul.f32 %v2189, 0.01
    %v2266 = vmul.f32 %v2194, 0.01
    %v2267 = vmul.f32 %v2197, 0.01
    %v2268 = vmul.f32 %v2202, 0.01
    %v2269 = vmul.f32 %v2205, 0.01
    %v2270 = vmul.f32 %v2210, 0.01
    %v2271 = vmul.f32 %v2213, 0.01
    %v2272 = vmul.f32 %v2218, 0.01
    %v2273 = vmul.f32 %v2221, 0.01
    %v2274 = vmul.f32 %v2226, 0.01
    %v2275 = vmul.f32 %v2229, 0.01
    %v2276 = vmul.f32 %v2234, 0.01
    %v2277 = vmul.f32 %v2237, 0.01
    %v2278 = vmul.f32 %v2242, 0.01
    %v2279 = vmul.f32 %v2245, 0.01
    %v2280 = vsel %vm2248, %v2186, %v2264
    %v2281 = vsel %vm2249, %v2189, %v2265
    %v2282 = vsel %vm2250, %v2194, %v2266
    %v2283 = vsel %vm2251, %v2197, %v2267
    %v2284 = vsel %vm2252, %v2202, %v2268
    %v2285 = vsel %vm2253, %v2205, %v2269
    %v2286 = vsel %vm2254, %v2210, %v2270
    %v2287 = vsel %vm2255, %v2213, %v2271
    %v2288 = vsel %vm2256, %v2218, %v2272
    %v2289 = vsel %vm2257, %v2221, %v2273
    %v2290 = vsel %vm2258, %v2226, %v2274
    %v2291 = vsel %vm2259, %v2229, %v2275
    %v2292 = vsel %vm2260, %v2234, %v2276
    %v2293 = vsel %vm2261, %v2237, %v2277
    %v2294 = vsel %vm2262, %v2242, %v2278
    %v2295 = vsel %vm2263, %v2245, %v2279
    %s2296 = scalar_lea.vmem [#allocation2], 576
    %v2297 = vld [vmem:[%s2296] sm:$0xf]
    %v2298 = vld [vmem:[%s2296 + $0x4] sm:$0xf]
    %v2299 = vld [vmem:[%s2296 + $0x8] sm:$0xf]
    %v2300 = vld [vmem:[%s2296 + $0xc] sm:$0xf]
    %v2301 = vld [vmem:[%s2296 + $0x10] sm:$0xf]
    %v2302 = vld [vmem:[%s2296 + $0x14] sm:$0xf]
    %v2303 = vld [vmem:[%s2296 + $0x18] sm:$0xf]
    %v2304 = vld [vmem:[%s2296 + $0x1c] sm:$0xf]
    %v2305 = vld [vmem:[%s2296 + $0x20] sm:$0xf]
    %v2306 = vld [vmem:[%s2296 + $0x24] sm:$0xf]
    %v2307 = vld [vmem:[%s2296 + $0x28] sm:$0xf]
    %v2308 = vld [vmem:[%s2296 + $0x2c] sm:$0xf]
    %v2309 = vld [vmem:[%s2296 + $0x30] sm:$0xf]
    %v2310 = vld [vmem:[%s2296 + $0x34] sm:$0xf]
    %v2311 = vld [vmem:[%s2296 + $0x38] sm:$0xf]
    %v2312 = vld [vmem:[%s2296 + $0x3c] sm:$0xf]
    %v2313 = vpack.c.bf16 %v2281, %v2280
    %v2314 = vpack.c.bf16 %v2283, %v2282
    %v2315 = vpack.c.bf16 %v2285, %v2284
    %v2316 = vpack.c.bf16 %v2287, %v2286
    %v2317 = vpack.c.bf16 %v2289, %v2288
    %v2318 = vpack.c.bf16 %v2291, %v2290
    %v2319 = vpack.c.bf16 %v2293, %v2292
    %v2320 = vpack.c.bf16 %v2295, %v2294
    %s2321 = scalar_lea.vmem %s9, 13
    %v2322 = vld [vmem:[%s2321] sm:$0x1]
    %v2324 = vlaneseq
    %v2325 = vshrl.u32 %v2324, 7
    %v2326 = vsub.s32 0, %v2325
    %v2327 = vrot.slane %v2322, %v2326
    %v2345 = vunpack.c.l.b16 %v2297
    %v2346 = vunpack.c.l.b16 %v2298
    %v2347 = vunpack.c.l.b16 %v2299
    %v2348 = vunpack.c.l.b16 %v2300
    %v2349 = vunpack.c.l.b16 %v2301
    %v2350 = vunpack.c.l.b16 %v2302
    %v2351 = vunpack.c.l.b16 %v2303
    %v2352 = vunpack.c.l.b16 %v2304
    %v2353 = vunpack.c.l.b16 %v2305
    %v2354 = vunpack.c.l.b16 %v2306
    %v2355 = vunpack.c.l.b16 %v2307
    %v2356 = vunpack.c.l.b16 %v2308
    %v2357 = vunpack.c.l.b16 %v2309
    %v2358 = vunpack.c.l.b16 %v2310
    %v2359 = vunpack.c.l.b16 %v2311
    %v2360 = vunpack.c.l.b16 %v2312
    %v2361 = vpack.c.b16 %v2346, %v2345
    %v2362 = vpack.c.b16 %v2348, %v2347
    %v2363 = vpack.c.b16 %v2350, %v2349
    %v2364 = vpack.c.b16 %v2352, %v2351
    %v2365 = vpack.c.b16 %v2354, %v2353
    %v2366 = vpack.c.b16 %v2356, %v2355
    %v2367 = vpack.c.b16 %v2358, %v2357
    %v2368 = vpack.c.b16 %v2360, %v2359
    %2377 = vmatprep.subr.bf16.mxu0 0
    %2378 = vmatpush1.bf16.msra.mxu0 %v2361
    %2379 = vmatprep.subr.bf16.mxu0 0
    %2380 = vmatpush1.bf16.msra.mxu0 %v2362
    %2381 = vmatprep.subr.bf16.mxu0 0
    %2382 = vmatpush1.bf16.msra.mxu0 %v2363
    %2383 = vmatprep.subr.bf16.mxu0 0
    %2384 = vmatpush1.bf16.msra.mxu0 %v2364
    %2385 = vmatprep.subr.bf16.mxu0 0
    %2386 = vmatpush1.bf16.msra.mxu0 %v2365
    %2387 = vmatprep.subr.bf16.mxu0 0
    %2388 = vmatpush1.bf16.msra.mxu0 %v2366
    %2389 = vmatprep.subr.bf16.mxu0 0
    %2390 = vmatpush1.bf16.msra.mxu0 %v2367
    %2391 = vmatprep.subr.bf16.mxu0 0
    %2392 = vmatpush1.bf16.msra.mxu0 %v2368
    %2393 = vmatprep.subr.bf16.mxu0 0
    %2394 = vmatpush1.bf16.msra.mxu0 0
    %2395 = vmatprep.subr.bf16.mxu0 0
    %2396 = vmatpush1.bf16.msra.mxu0 0
    %2397 = vmatprep.subr.bf16.mxu0 0
    %2398 = vmatpush1.bf16.msra.mxu0 0
    %2399 = vmatprep.subr.bf16.mxu0 0
    %2400 = vmatpush1.bf16.msra.mxu0 0
    %2401 = vmatprep.subr.bf16.mxu0 0
    %2402 = vmatpush1.bf16.msra.mxu0 0
    %2403 = vmatprep.subr.bf16.mxu0 0
    %2404 = vmatpush1.bf16.msra.mxu0 0
    %2405 = vmatprep.subr.bf16.mxu0 0
    %2406 = vmatpush1.bf16.msra.mxu0 0
    %2407 = vmatprep.subr.bf16.mxu0 0
    %2408 = vmatpush1.bf16.msra.mxu0 0
    %2409 = vmatprep.mubr.bf16.mxu0 0
    %2410 = vmatmul.mubr.bf16.gmra.mrb[0].mxu0 %v2313
    %v2411 = vpop.f32.mrb[0].mxu0
    %v2412 = vadd.f32 %v2327, %v2411
    %v2413 = vpop.f32.mrb[0].mxu0
    %v2414 = vpop.f32.mrb[0].mxu0
    %v2415 = vadd.f32 %v2327, %v2414
    %v2416 = vpop.f32.mrb[0].mxu0
    %2417 = vmatprep.mubr.bf16.mxu0 0
    %2418 = vmatmul.mubr.bf16.gmra.mrb[0].mxu0 %v2314
    %v2419 = vpop.f32.mrb[0].mxu0
    %v2420 = vadd.f32 %v2327, %v2419
    %v2421 = vpop.f32.mrb[0].mxu0
    %v2422 = vpop.f32.mrb[0].mxu0
    %v2423 = vadd.f32 %v2327, %v2422
    %v2424 = vpop.f32.mrb[0].mxu0
    %2425 = vmatprep.mubr.bf16.mxu0 0
    %2426 = vmatmul.mubr.bf16.gmra.mrb[0].mxu0 %v2315
    %v2427 = vpop.f32.mrb[0].mxu0
    %v2428 = vadd.f32 %v2327, %v2427
    %v2429 = vpop.f32.mrb[0].mxu0
    %v2430 = vpop.f32.mrb[0].mxu0
    %v2431 = vadd.f32 %v2327, %v2430
    %v2432 = vpop.f32.mrb[0].mxu0
    %2433 = vmatprep.mubr.bf16.mxu0 0
    %2434 = vmatmul.mubr.bf16.gmra.mrb[0].mxu0 %v2316
    %v2435 = vpop.f32.mrb[0].mxu0
    %v2436 = vadd.f32 %v2327, %v2435
    %v2437 = vpop.f32.mrb[0].mxu0
    %v2438 = vpop.f32.mrb[0].mxu0
    %v2439 = vadd.f32 %v2327, %v2438
    %v2440 = vpop.f32.mrb[0].mxu0
    %2441 = vmatprep.mubr.bf16.mxu0 0
    %2442 = vmatmul.mubr.bf16.gmra.mrb[0].mxu0 %v2317
    %v2443 = vpop.f32.mrb[0].mxu0
    %v2444 = vadd.f32 %v2327, %v2443
    %v2445 = vpop.f32.mrb[0].mxu0
    %v2446 = vpop.f32.mrb[0].mxu0
    %v2447 = vadd.f32 %v2327, %v2446
    %v2448 = vpop.f32.mrb[0].mxu0
    %2449 = vmatprep.mubr.bf16.mxu0 0
    %2450 = vmatmul.mubr.bf16.gmra.mrb[0].mxu0 %v2318
    %v2451 = vpop.f32.mrb[0].mxu0
    %v2452 = vadd.f32 %v2327, %v2451
    %v2453 = vpop.f32.mrb[0].mxu0
    %v2454 = vpop.f32.mrb[0].mxu0
    %v2455 = vadd.f32 %v2327, %v2454
    %v2456 = vpop.f32.mrb[0].mxu0
    %2457 = vmatprep.mubr.bf16.mxu0 0
    %2458 = vmatmul.mubr.bf16.gmra.mrb[0].mxu0 %v2319
    %v2459 = vpop.f32.mrb[0].mxu0
    %v2460 = vadd.f32 %v2327, %v2459
    %v2461 = vpop.f32.mrb[0].mxu0
    %v2462 = vpop.f32.mrb[0].mxu0
    %v2463 = vadd.f32 %v2327, %v2462
    %v2464 = vpop.f32.mrb[0].mxu0
    %2465 = vmatprep.mubr.bf16.mxu0 0
    %2466 = vmatmul.mubr.bf16.gmra.mrb[0].mxu0 %v2320
    %v2467 = vpop.f32.mrb[0].mxu0
    %v2468 = vadd.f32 %v2327, %v2467
    %v2469 = vpop.f32.mrb[0].mxu0
    %v2470 = vpop.f32.mrb[0].mxu0
    %v2471 = vadd.f32 %v2327, %v2470
    %v2472 = vpop.f32.mrb[0].mxu0
    %2473 = vdwg.mxu0
    %vm2474 = vcmp.gt.f32.partialorder %v2412, 0.0
    %vm2475 = vcmp.gt.f32.partialorder %v2415, 0.0
    %vm2476 = vcmp.gt.f32.partialorder %v2420, 0.0
    %vm2477 = vcmp.gt.f32.partialorder %v2423, 0.0
    %vm2478 = vcmp.gt.f32.partialorder %v2428, 0.0
    %vm2479 = vcmp.gt.f32.partialorder %v2431, 0.0
    %vm2480 = vcmp.gt.f32.partialorder %v2436, 0.0
    %vm2481 = vcmp.gt.f32.partialorder %v2439, 0.0
    %vm2482 = vcmp.gt.f32.partialorder %v2444, 0.0
    %vm2483 = vcmp.gt.f32.partialorder %v2447, 0.0
    %vm2484 = vcmp.gt.f32.partialorder %v2452, 0.0
    %vm2485 = vcmp.gt.f32.partialorder %v2455, 0.0
    %vm2486 = vcmp.gt.f32.partialorder %v2460, 0.0
    %vm2487 = vcmp.gt.f32.partialorder %v2463, 0.0
    %vm2488 = vcmp.gt.f32.partialorder %v2468, 0.0
    %vm2489 = vcmp.gt.f32.partialorder %v2471, 0.0
    %v2490 = vmul.f32 %v2412, 0.01
    %v2491 = vmul.f32 %v2415, 0.01
    %v2492 = vmul.f32 %v2420, 0.01
    %v2493 = vmul.f32 %v2423, 0.01
    %v2494 = vmul.f32 %v2428, 0.01
    %v2495 = vmul.f32 %v2431, 0.01
    %v2496 = vmul.f32 %v2436, 0.01
    %v2497 = vmul.f32 %v2439, 0.01
    %v2498 = vmul.f32 %v2444, 0.01
    %v2499 = vmul.f32 %v2447, 0.01
    %v2500 = vmul.f32 %v2452, 0.01
    %v2501 = vmul.f32 %v2455, 0.01
    %v2502 = vmul.f32 %v2460, 0.01
    %v2503 = vmul.f32 %v2463, 0.01
    %v2504 = vmul.f32 %v2468, 0.01
    %v2505 = vmul.f32 %v2471, 0.01
    %v2506 = vsel %vm2474, %v2412, %v2490
    %v2507 = vsel %vm2475, %v2415, %v2491
    %v2508 = vsel %vm2476, %v2420, %v2492
    %v2509 = vsel %vm2477, %v2423, %v2493
    %v2510 = vsel %vm2478, %v2428, %v2494
    %v2511 = vsel %vm2479, %v2431, %v2495
    %v2512 = vsel %vm2480, %v2436, %v2496
    %v2513 = vsel %vm2481, %v2439, %v2497
    %v2514 = vsel %vm2482, %v2444, %v2498
    %v2515 = vsel %vm2483, %v2447, %v2499
    %v2516 = vsel %vm2484, %v2452, %v2500
    %v2517 = vsel %vm2485, %v2455, %v2501
    %v2518 = vsel %vm2486, %v2460, %v2502
    %v2519 = vsel %vm2487, %v2463, %v2503
    %v2520 = vsel %vm2488, %v2468, %v2504
    %v2521 = vsel %vm2489, %v2471, %v2505
    %s2522 = scalar_lea.vmem [#allocation2], 640
    %v2523 = vld [vmem:[%s2522] sm:$0xf]
    %v2524 = vld [vmem:[%s2522 + $0x4] sm:$0xf]
    %v2525 = vld [vmem:[%s2522 + $0x8] sm:$0xf]
    %v2526 = vld [vmem:[%s2522 + $0xc] sm:$0xf]
    %v2527 = vld [vmem:[%s2522 + $0x10] sm:$0xf]
    %v2528 = vld [vmem:[%s2522 + $0x14] sm:$0xf]
    %v2529 = vld [vmem:[%s2522 + $0x18] sm:$0xf]
    %v2530 = vld [vmem:[%s2522 + $0x1c] sm:$0xf]
    %v2531 = vld [vmem:[%s2522 + $0x20] sm:$0xf]
    %v2532 = vld [vmem:[%s2522 + $0x24] sm:$0xf]
    %v2533 = vld [vmem:[%s2522 + $0x28] sm:$0xf]
    %v2534 = vld [vmem:[%s2522 + $0x2c] sm:$0xf]
    %v2535 = vld [vmem:[%s2522 + $0x30] sm:$0xf]
    %v2536 = vld [vmem:[%s2522 + $0x34] sm:$0xf]
    %v2537 = vld [vmem:[%s2522 + $0x38] sm:$0xf]
    %v2538 = vld [vmem:[%s2522 + $0x3c] sm:$0xf]
    %v2539 = vpack.c.bf16 %v2507, %v2506
    %v2540 = vpack.c.bf16 %v2509, %v2508
    %v2541 = vpack.c.bf16 %v2511, %v2510
    %v2542 = vpack.c.bf16 %v2513, %v2512
    %v2543 = vpack.c.bf16 %v2515, %v2514
    %v2544 = vpack.c.bf16 %v2517, %v2516
    %v2545 = vpack.c.bf16 %v2519, %v2518
    %v2546 = vpack.c.bf16 %v2521, %v2520
    %s2547 = scalar_lea.vmem %s9, 14
    %v2548 = vld [vmem:[%s2547] sm:$0x1]
    %v2550 = vlaneseq
    %v2551 = vshrl.u32 %v2550, 7
    %v2552 = vsub.s32 0, %v2551
    %v2553 = vrot.slane %v2548, %v2552
    %v2571 = vunpack.c.l.b16 %v2523
    %v2572 = vunpack.c.l.b16 %v2524
    %v2573 = vunpack.c.l.b16 %v2525
    %v2574 = vunpack.c.l.b16 %v2526
    %v2575 = vunpack.c.l.b16 %v2527
    %v2576 = vunpack.c.l.b16 %v2528
    %v2577 = vunpack.c.l.b16 %v2529
    %v2578 = vunpack.c.l.b16 %v2530
    %v2579 = vunpack.c.l.b16 %v2531
    %v2580 = vunpack.c.l.b16 %v2532
    %v2581 = vunpack.c.l.b16 %v2533
    %v2582 = vunpack.c.l.b16 %v2534
    %v2583 = vunpack.c.l.b16 %v2535
    %v2584 = vunpack.c.l.b16 %v2536
    %v2585 = vunpack.c.l.b16 %v2537
    %v2586 = vunpack.c.l.b16 %v2538
    %v2587 = vpack.c.b16 %v2572, %v2571
    %v2588 = vpack.c.b16 %v2574, %v2573
    %v2589 = vpack.c.b16 %v2576, %v2575
    %v2590 = vpack.c.b16 %v2578, %v2577
    %v2591 = vpack.c.b16 %v2580, %v2579
    %v2592 = vpack.c.b16 %v2582, %v2581
    %v2593 = vpack.c.b16 %v2584, %v2583
    %v2594 = vpack.c.b16 %v2586, %v2585
    %2603 = vmatprep.subr.bf16.mxu0 0
    %2604 = vmatpush1.bf16.msra.mxu0 %v2587
    %2605 = vmatprep.subr.bf16.mxu0 0
    %2606 = vmatpush1.bf16.msra.mxu0 %v2588
    %2607 = vmatprep.subr.bf16.mxu0 0
    %2608 = vmatpush1.bf16.msra.mxu0 %v2589
    %2609 = vmatprep.subr.bf16.mxu0 0
    %2610 = vmatpush1.bf16.msra.mxu0 %v2590
    %2611 = vmatprep.subr.bf16.mxu0 0
    %2612 = vmatpush1.bf16.msra.mxu0 %v2591
    %2613 = vmatprep.subr.bf16.mxu0 0
    %2614 = vmatpush1.bf16.msra.mxu0 %v2592
    %2615 = vmatprep.subr.bf16.mxu0 0
    %2616 = vmatpush1.bf16.msra.mxu0 %v2593
    %2617 = vmatprep.subr.bf16.mxu0 0
    %2618 = vmatpush1.bf16.msra.mxu0 %v2594
    %2619 = vmatprep.subr.bf16.mxu0 0
    %2620 = vmatpush1.bf16.msra.mxu0 0
    %2621 = vmatprep.subr.bf16.mxu0 0
    %2622 = vmatpush1.bf16.msra.mxu0 0
    %2623 = vmatprep.subr.bf16.mxu0 0
    %2624 = vmatpush1.bf16.msra.mxu0 0
    %2625 = vmatprep.subr.bf16.mxu0 0
    %2626 = vmatpush1.bf16.msra.mxu0 0
    %2627 = vmatprep.subr.bf16.mxu0 0
    %2628 = vmatpush1.bf16.msra.mxu0 0
    %2629 = vmatprep.subr.bf16.mxu0 0
    %2630 = vmatpush1.bf16.msra.mxu0 0
    %2631 = vmatprep.subr.bf16.mxu0 0
    %2632 = vmatpush1.bf16.msra.mxu0 0
    %2633 = vmatprep.subr.bf16.mxu0 0
    %2634 = vmatpush1.bf16.msra.mxu0 0
    %2635 = vmatprep.mubr.bf16.mxu0 0
    %2636 = vmatmul.mubr.bf16.gmra.mrb[0].mxu0 %v2539
    %v2637 = vpop.f32.mrb[0].mxu0
    %v2638 = vadd.f32 %v2553, %v2637
    %v2639 = vpop.f32.mrb[0].mxu0
    %v2640 = vpop.f32.mrb[0].mxu0
    %v2641 = vadd.f32 %v2553, %v2640
    %v2642 = vpop.f32.mrb[0].mxu0
    %2643 = vmatprep.mubr.bf16.mxu0 0
    %2644 = vmatmul.mubr.bf16.gmra.mrb[0].mxu0 %v2540
    %v2645 = vpop.f32.mrb[0].mxu0
    %v2646 = vadd.f32 %v2553, %v2645
    %v2647 = vpop.f32.mrb[0].mxu0
    %v2648 = vpop.f32.mrb[0].mxu0
    %v2649 = vadd.f32 %v2553, %v2648
    %v2650 = vpop.f32.mrb[0].mxu0
    %2651 = vmatprep.mubr.bf16.mxu0 0
    %2652 = vmatmul.mubr.bf16.gmra.mrb[0].mxu0 %v2541
    %v2653 = vpop.f32.mrb[0].mxu0
    %v2654 = vadd.f32 %v2553, %v2653
    %v2655 = vpop.f32.mrb[0].mxu0
    %v2656 = vpop.f32.mrb[0].mxu0
    %v2657 = vadd.f32 %v2553, %v2656
    %v2658 = vpop.f32.mrb[0].mxu0
    %2659 = vmatprep.mubr.bf16.mxu0 0
    %2660 = vmatmul.mubr.bf16.gmra.mrb[0].mxu0 %v2542
    %v2661 = vpop.f32.mrb[0].mxu0
    %v2662 = vadd.f32 %v2553, %v2661
    %v2663 = vpop.f32.mrb[0].mxu0
    %v2664 = vpop.f32.mrb[0].mxu0
    %v2665 = vadd.f32 %v2553, %v2664
    %v2666 = vpop.f32.mrb[0].mxu0
    %2667 = vmatprep.mubr.bf16.mxu0 0
    %2668 = vmatmul.mubr.bf16.gmra.mrb[0].mxu0 %v2543
    %v2669 = vpop.f32.mrb[0].mxu0
    %v2670 = vadd.f32 %v2553, %v2669
    %v2671 = vpop.f32.mrb[0].mxu0
    %v2672 = vpop.f32.mrb[0].mxu0
    %v2673 = vadd.f32 %v2553, %v2672
    %v2674 = vpop.f32.mrb[0].mxu0
    %2675 = vmatprep.mubr.bf16.mxu0 0
    %2676 = vmatmul.mubr.bf16.gmra.mrb[0].mxu0 %v2544
    %v2677 = vpop.f32.mrb[0].mxu0
    %v2678 = vadd.f32 %v2553, %v2677
    %v2679 = vpop.f32.mrb[0].mxu0
    %v2680 = vpop.f32.mrb[0].mxu0
    %v2681 = vadd.f32 %v2553, %v2680
    %v2682 = vpop.f32.mrb[0].mxu0
    %2683 = vmatprep.mubr.bf16.mxu0 0
    %2684 = vmatmul.mubr.bf16.gmra.mrb[0].mxu0 %v2545
    %v2685 = vpop.f32.mrb[0].mxu0
    %v2686 = vadd.f32 %v2553, %v2685
    %v2687 = vpop.f32.mrb[0].mxu0
    %v2688 = vpop.f32.mrb[0].mxu0
    %v2689 = vadd.f32 %v2553, %v2688
    %v2690 = vpop.f32.mrb[0].mxu0
    %2691 = vmatprep.mubr.bf16.mxu0 0
    %2692 = vmatmul.mubr.bf16.gmra.mrb[0].mxu0 %v2546
    %v2693 = vpop.f32.mrb[0].mxu0
    %v2694 = vadd.f32 %v2553, %v2693
    %v2695 = vpop.f32.mrb[0].mxu0
    %v2696 = vpop.f32.mrb[0].mxu0
    %v2697 = vadd.f32 %v2553, %v2696
    %v2698 = vpop.f32.mrb[0].mxu0
    %2699 = vdwg.mxu0
    %v2700 = vadd.f32 %v614, %v2638
    %v2701 = vadd.f32 %v617, %v2641
    %v2702 = vadd.f32 %v622, %v2646
    %v2703 = vadd.f32 %v625, %v2649
    %v2704 = vadd.f32 %v630, %v2654
    %v2705 = vadd.f32 %v633, %v2657
    %v2706 = vadd.f32 %v638, %v2662
    %v2707 = vadd.f32 %v641, %v2665
    %v2708 = vadd.f32 %v646, %v2670
    %v2709 = vadd.f32 %v649, %v2673
    %v2710 = vadd.f32 %v654, %v2678
    %v2711 = vadd.f32 %v657, %v2681
    %v2712 = vadd.f32 %v662, %v2686
    %v2713 = vadd.f32 %v665, %v2689
    %v2714 = vadd.f32 %v670, %v2694
    %v2715 = vadd.f32 %v673, %v2697
    %v2716 = vadd.f32 %v1058, %v1826
    %v2717 = vadd.f32 %v1061, %v1829
    %v2718 = vadd.f32 %v1066, %v1834
    %v2719 = vadd.f32 %v1069, %v1837
    %v2720 = vadd.f32 %v1074, %v1842
    %v2721 = vadd.f32 %v1077, %v1845
    %v2722 = vpack.c.bf16 %v2701, %v2700
    %v2723 = vpack.c.bf16 %v2703, %v2702
    %v2724 = vpack.c.bf16 %v2705, %v2704
    %v2725 = vpack.c.bf16 %v2707, %v2706
    %v2726 = vpack.c.bf16 %v2709, %v2708
    %v2727 = vpack.c.bf16 %v2711, %v2710
    %v2728 = vpack.c.bf16 %v2713, %v2712
    %v2729 = vpack.c.bf16 %v2715, %v2714
    %v2730 = vpack.c.bf16 %v2717, %v2716
    %v2731 = vpack.c.bf16 %v2719, %v2718
    %v2732 = vpack.c.bf16 %v2721, %v2720
    %2733 = vmatprep.subr.bf16.mxu0 0
    %2734 = vmatpush1.bf16.msra.mxu0 %v2722
    %2735 = vmatprep.subr.bf16.mxu0 0
    %2736 = vmatpush1.bf16.msra.mxu0 %v2723
    %2737 = vmatprep.subr.bf16.mxu0 0
    %2738 = vmatpush1.bf16.msra.mxu0 %v2724
    %2739 = vmatprep.subr.bf16.mxu0 0
    %2740 = vmatpush1.bf16.msra.mxu0 %v2725
    %2741 = vmatprep.subr.bf16.mxu0 0
    %2742 = vmatpush1.bf16.msra.mxu0 %v2726
    %2743 = vmatprep.subr.bf16.mxu0 0
    %2744 = vmatpush1.bf16.msra.mxu0 %v2727
    %2745 = vmatprep.subr.bf16.mxu0 0
    %2746 = vmatpush1.bf16.msra.mxu0 %v2728
    %2747 = vmatprep.subr.bf16.mxu0 0
    %2748 = vmatpush1.bf16.msra.mxu0 %v2729
    %2749 = vmatprep.subr.bf16.mxu0 0
    %2750 = vmatpush1.bf16.msra.mxu0 0
    %2751 = vmatprep.subr.bf16.mxu0 0
    %2752 = vmatpush1.bf16.msra.mxu0 0
    %2753 = vmatprep.subr.bf16.mxu0 0
    %2754 = vmatpush1.bf16.msra.mxu0 0
    %2755 = vmatprep.subr.bf16.mxu0 0
    %2756 = vmatpush1.bf16.msra.mxu0 0
    %2757 = vmatprep.subr.bf16.mxu0 0
    %2758 = vmatpush1.bf16.msra.mxu0 0
    %2759 = vmatprep.subr.bf16.mxu0 0
    %2760 = vmatpush1.bf16.msra.mxu0 0
    %2761 = vmatprep.subr.bf16.mxu0 0
    %2762 = vmatpush1.bf16.msra.mxu0 0
    %2763 = vmatprep.subr.bf16.mxu0 0
    %2764 = vmatpush1.bf16.msra.mxu0 0
    %2765 = vmatprep.mubr.bf16.mxu0 0
    %2766 = vmatmul.mubr.bf16.gmra.mrb[0].mxu0 %v1133
    %v2767 = vpop.f32.mrb[0].mxu0
    %v2768 = vadd.f32 0.0, %v2767
    %v2769 = vpop.f32.mrb[0].mxu0
    %v2770 = vpop.f32.mrb[0].mxu0
    %v2771 = vadd.f32 0.0, %v2770
    %v2772 = vpop.f32.mrb[0].mxu0
    %2773 = vmatprep.mubr.bf16.mxu0 0
    %2774 = vmatmul.mubr.bf16.gmra.mrb[0].mxu0 %v1134
    %v2775 = vpop.f32.mrb[0].mxu0
    %v2776 = vadd.f32 0.0, %v2775
    %v2777 = vpop.f32.mrb[0].mxu0
    %v2778 = vpop.f32.mrb[0].mxu0
    %v2779 = vadd.f32 0.0, %v2778
    %v2780 = vpop.f32.mrb[0].mxu0
    %2781 = vmatprep.mubr.bf16.mxu0 0
    %2782 = vmatmul.mubr.bf16.gmra.mrb[0].mxu0 %v1135
    %v2783 = vpop.f32.mrb[0].mxu0
    %v2784 = vadd.f32 0.0, %v2783
    %v2785 = vpop.f32.mrb[0].mxu0
    %v2786 = vpop.f32.mrb[0].mxu0
    %v2787 = vadd.f32 0.0, %v2786
    %v2788 = vpop.f32.mrb[0].mxu0
    %2789 = vmatprep.mubr.bf16.mxu0 0
    %2790 = vmatmul.mubr.bf16.gmra.mrb[0].mxu0 %v1136
    %v2791 = vpop.f32.mrb[0].mxu0
    %v2792 = vadd.f32 0.0, %v2791
    %v2793 = vpop.f32.mrb[0].mxu0
    %v2794 = vpop.f32.mrb[0].mxu0
    %v2795 = vadd.f32 0.0, %v2794
    %v2796 = vpop.f32.mrb[0].mxu0
    %2797 = vmatprep.mubr.bf16.mxu0 0
    %2798 = vmatmul.mubr.bf16.gmra.mrb[0].mxu0 %v1137
    %v2799 = vpop.f32.mrb[0].mxu0
    %v2800 = vadd.f32 0.0, %v2799
    %v2801 = vpop.f32.mrb[0].mxu0
    %v2802 = vpop.f32.mrb[0].mxu0
    %v2803 = vadd.f32 0.0, %v2802
    %v2804 = vpop.f32.mrb[0].mxu0
    %2805 = vmatprep.mubr.bf16.mxu0 0
    %2806 = vmatmul.mubr.bf16.gmra.mrb[0].mxu0 %v1138
    %v2807 = vpop.f32.mrb[0].mxu0
    %v2808 = vadd.f32 0.0, %v2807
    %v2809 = vpop.f32.mrb[0].mxu0
    %v2810 = vpop.f32.mrb[0].mxu0
    %v2811 = vadd.f32 0.0, %v2810
    %v2812 = vpop.f32.mrb[0].mxu0
    %2813 = vdwg.mxu0
    %v2814 = vpack.c.bf16 %v2795, %v2792
    %v2815 = vpack.c.bf16 %v2803, %v2800
    %v2816 = vpack.c.bf16 %v2811, %v2808
    %v2817 = vpack.c.bf16 %v2771, %v2768
    %v2818 = vpack.c.bf16 %v2779, %v2776
    %v2819 = vpack.c.bf16 %v2787, %v2784
    %s2820 = scalar_lea.vmem [#allocation4], 192
    %v2821 = vld [vmem:[%s2820] sm:$0xf]
    %v2822 = vld [vmem:[%s2820 + $0x4] sm:$0xf]
    %v2823 = vld [vmem:[%s2820 + $0x8] sm:$0xf]
    %v2824 = vld [vmem:[%s2820 + $0xc] sm:$0xf]
    %v2825 = vld [vmem:[%s2820 + $0x10] sm:$0xf]
    %v2826 = vld [vmem:[%s2820 + $0x14] sm:$0xf]
    %v2827 = vld [vmem:[%s2820 + $0x18] sm:$0xf]
    %v2828 = vld [vmem:[%s2820 + $0x1c] sm:$0xf]
    %v2829 = vld [vmem:[%s2820 + $0x20] sm:$0xf]
    %v2830 = vld [vmem:[%s2820 + $0x24] sm:$0xf]
    %v2831 = vld [vmem:[%s2820 + $0x28] sm:$0xf]
    %v2832 = vld [vmem:[%s2820 + $0x2c] sm:$0xf]
    %v2833 = vld [vmem:[%s2820 + $0x30] sm:$0xf]
    %v2834 = vld [vmem:[%s2820 + $0x34] sm:$0xf]
    %v2835 = vld [vmem:[%s2820 + $0x38] sm:$0xf]
    %v2836 = vld [vmem:[%s2820 + $0x3c] sm:$0xf]
    %v2837 = vld [vmem:[%s2820 + $0x40] sm:$0xf]
    %v2838 = vld [vmem:[%s2820 + $0x44] sm:$0xf]
    %v2839 = vld [vmem:[%s2820 + $0x48] sm:$0xf]
    %v2840 = vld [vmem:[%s2820 + $0x4c] sm:$0xf]
    %v2841 = vld [vmem:[%s2820 + $0x50] sm:$0xf]
    %v2842 = vld [vmem:[%s2820 + $0x54] sm:$0xf]
    %v2843 = vld [vmem:[%s2820 + $0x58] sm:$0xf]
    %v2844 = vld [vmem:[%s2820 + $0x5c] sm:$0xf]
    %v2845 = vld [vmem:[%s2820 + $0x60] sm:$0xf]
    %v2846 = vld [vmem:[%s2820 + $0x64] sm:$0xf]
    %v2847 = vld [vmem:[%s2820 + $0x68] sm:$0xf]
    %v2848 = vld [vmem:[%s2820 + $0x6c] sm:$0xf]
    %v2849 = vld [vmem:[%s2820 + $0x70] sm:$0xf]
    %v2850 = vld [vmem:[%s2820 + $0x74] sm:$0xf]
    %v2851 = vld [vmem:[%s2820 + $0x78] sm:$0xf]
    %v2852 = vld [vmem:[%s2820 + $0x7c] sm:$0xf]
    %v2853 = vld [vmem:[%s2820 + $0x80] sm:$0xf]
    %v2854 = vld [vmem:[%s2820 + $0x84] sm:$0xf]
    %v2855 = vld [vmem:[%s2820 + $0x88] sm:$0xf]
    %v2856 = vld [vmem:[%s2820 + $0x8c] sm:$0xf]
    %v2857 = vld [vmem:[%s2820 + $0x90] sm:$0xf]
    %v2858 = vld [vmem:[%s2820 + $0x94] sm:$0xf]
    %v2859 = vld [vmem:[%s2820 + $0x98] sm:$0xf]
    %v2860 = vld [vmem:[%s2820 + $0x9c] sm:$0xf]
    %v2861 = vld [vmem:[%s2820 + $0xa0] sm:$0xf]
    %v2862 = vld [vmem:[%s2820 + $0xa4] sm:$0xf]
    %v2863 = vld [vmem:[%s2820 + $0xa8] sm:$0xf]
    %v2864 = vld [vmem:[%s2820 + $0xac] sm:$0xf]
    %v2865 = vld [vmem:[%s2820 + $0xb0] sm:$0xf]
    %v2866 = vld [vmem:[%s2820 + $0xb4] sm:$0xf]
    %v2867 = vld [vmem:[%s2820 + $0xb8] sm:$0xf]
    %v2868 = vld [vmem:[%s2820 + $0xbc] sm:$0xf]
    %s2869 = scalar_lea.vmem %s9, 15
    %v2870 = vld [vmem:[%s2869] sm:$0x1]
    %v2872 = vlaneseq
    %v2873 = vshrl.u32 %v2872, 7
    %v2874 = vsub.s32 0, %v2873
    %v2875 = vrot.slane %v2870, %v2874
    %v2925 = vunpack.c.l.b16 %v2821
    %v2926 = vunpack.c.l.b16 %v2822
    %v2927 = vunpack.c.l.b16 %v2823
    %v2928 = vunpack.c.l.b16 %v2824
    %v2929 = vunpack.c.l.b16 %v2825
    %v2930 = vunpack.c.l.b16 %v2826
    %v2931 = vunpack.c.l.b16 %v2827
    %v2932 = vunpack.c.l.b16 %v2828
    %v2933 = vunpack.c.l.b16 %v2829
    %v2934 = vunpack.c.l.b16 %v2830
    %v2935 = vunpack.c.l.b16 %v2831
    %v2936 = vunpack.c.l.b16 %v2832
    %v2937 = vunpack.c.l.b16 %v2833
    %v2938 = vunpack.c.l.b16 %v2834
    %v2939 = vunpack.c.l.b16 %v2835
    %v2940 = vunpack.c.l.b16 %v2836
    %v2941 = vunpack.c.l.b16 %v2837
    %v2942 = vunpack.c.l.b16 %v2838
    %v2943 = vunpack.c.l.b16 %v2839
    %v2944 = vunpack.c.l.b16 %v2840
    %v2945 = vunpack.c.l.b16 %v2841
    %v2946 = vunpack.c.l.b16 %v2842
    %v2947 = vunpack.c.l.b16 %v2843
    %v2948 = vunpack.c.l.b16 %v2844
    %v2949 = vunpack.c.l.b16 %v2845
    %v2950 = vunpack.c.l.b16 %v2846
    %v2951 = vunpack.c.l.b16 %v2847
    %v2952 = vunpack.c.l.b16 %v2848
    %v2953 = vunpack.c.l.b16 %v2849
    %v2954 = vunpack.c.l.b16 %v2850
    %v2955 = vunpack.c.l.b16 %v2851
    %v2956 = vunpack.c.l.b16 %v2852
    %v2957 = vunpack.c.l.b16 %v2853
    %v2958 = vunpack.c.l.b16 %v2854
    %v2959 = vunpack.c.l.b16 %v2855
    %v2960 = vunpack.c.l.b16 %v2856
    %v2961 = vunpack.c.l.b16 %v2857
    %v2962 = vunpack.c.l.b16 %v2858
    %v2963 = vunpack.c.l.b16 %v2859
    %v2964 = vunpack.c.l.b16 %v2860
    %v2965 = vunpack.c.l.b16 %v2861
    %v2966 = vunpack.c.l.b16 %v2862
    %v2967 = vunpack.c.l.b16 %v2863
    %v2968 = vunpack.c.l.b16 %v2864
    %v2969 = vunpack.c.l.b16 %v2865
    %v2970 = vunpack.c.l.b16 %v2866
    %v2971 = vunpack.c.l.b16 %v2867
    %v2972 = vunpack.c.l.b16 %v2868
    %v2973 = vpack.c.b16 %v2926, %v2925
    %v2974 = vpack.c.b16 %v2928, %v2927
    %v2975 = vpack.c.b16 %v2930, %v2929
    %v2976 = vpack.c.b16 %v2932, %v2931
    %v2977 = vpack.c.b16 %v2934, %v2933
    %v2978 = vpack.c.b16 %v2936, %v2935
    %v2979 = vpack.c.b16 %v2938, %v2937
    %v2980 = vpack.c.b16 %v2940, %v2939
    %v2981 = vpack.c.b16 %v2942, %v2941
    %v2982 = vpack.c.b16 %v2944, %v2943
    %v2983 = vpack.c.b16 %v2946, %v2945
    %v2984 = vpack.c.b16 %v2948, %v2947
    %v2985 = vpack.c.b16 %v2950, %v2949
    %v2986 = vpack.c.b16 %v2952, %v2951
    %v2987 = vpack.c.b16 %v2954, %v2953
    %v2988 = vpack.c.b16 %v2956, %v2955
    %v2989 = vpack.c.b16 %v2958, %v2957
    %v2990 = vpack.c.b16 %v2960, %v2959
    %v2991 = vpack.c.b16 %v2962, %v2961
    %v2992 = vpack.c.b16 %v2964, %v2963
    %v2993 = vpack.c.b16 %v2966, %v2965
    %v2994 = vpack.c.b16 %v2968, %v2967
    %v2995 = vpack.c.b16 %v2970, %v2969
    %v2996 = vpack.c.b16 %v2972, %v2971
    %3021 = vmatprep.subr.bf16.mxu0 0
    %3022 = vmatpush1.bf16.msra.mxu0 %v2973
    %3023 = vmatprep.subr.bf16.mxu0 0
    %3024 = vmatpush1.bf16.msra.mxu0 %v2974
    %3025 = vmatprep.subr.bf16.mxu0 0
    %3026 = vmatpush1.bf16.msra.mxu0 %v2975
    %3027 = vmatprep.subr.bf16.mxu0 0
    %3028 = vmatpush1.bf16.msra.mxu0 %v2976
    %3029 = vmatprep.subr.bf16.mxu0 0
    %3030 = vmatpush1.bf16.msra.mxu0 %v2977
    %3031 = vmatprep.subr.bf16.mxu0 0
    %3032 = vmatpush1.bf16.msra.mxu0 %v2978
    %3033 = vmatprep.subr.bf16.mxu0 0
    %3034 = vmatpush1.bf16.msra.mxu0 %v2979
    %3035 = vmatprep.subr.bf16.mxu0 0
    %3036 = vmatpush1.bf16.msra.mxu0 %v2980
    %3037 = vmatprep.subr.bf16.mxu0 0
    %3038 = vmatpush1.bf16.msra.mxu0 %v2981
    %3039 = vmatprep.subr.bf16.mxu0 0
    %3040 = vmatpush1.bf16.msra.mxu0 %v2982
    %3041 = vmatprep.subr.bf16.mxu0 0
    %3042 = vmatpush1.bf16.msra.mxu0 %v2983
    %3043 = vmatprep.subr.bf16.mxu0 0
    %3044 = vmatpush1.bf16.msra.mxu0 %v2984
    %3045 = vmatprep.subr.bf16.mxu0 0
    %3046 = vmatpush1.bf16.msra.mxu0 %v2985
    %3047 = vmatprep.subr.bf16.mxu0 0
    %3048 = vmatpush1.bf16.msra.mxu0 %v2986
    %3049 = vmatprep.subr.bf16.mxu0 0
    %3050 = vmatpush1.bf16.msra.mxu0 %v2987
    %3051 = vmatprep.subr.bf16.mxu0 0
    %3052 = vmatpush1.bf16.msra.mxu0 %v2988
    %3053 = vmatprep.mubr.bf16.mxu0 %v2817
    %3054 = vmatmul.mubr.bf16.gmra.mrb[0].mxu0 %v2814
    %v3055 = vpop.f32.mrb[0].mxu0
    %v3056 = vadd.f32 %v2875, %v3055
    %v3057 = vpop.f32.mrb[0].mxu0
    %v3058 = vpop.f32.mrb[0].mxu0
    %v3059 = vadd.f32 %v2875, %v3058
    %v3060 = vpop.f32.mrb[0].mxu0
    %3061 = vmatprep.mubr.bf16.mxu0 %v2818
    %3062 = vmatmul.mubr.bf16.gmra.mrb[0].mxu0 %v2815
    %v3063 = vpop.f32.mrb[0].mxu0
    %v3064 = vadd.f32 %v2875, %v3063
    %v3065 = vpop.f32.mrb[0].mxu0
    %v3066 = vpop.f32.mrb[0].mxu0
    %v3067 = vadd.f32 %v2875, %v3066
    %v3068 = vpop.f32.mrb[0].mxu0
    %3069 = vmatprep.mubr.bf16.mxu0 %v2819
    %3070 = vmatmul.mubr.bf16.gmra.mrb[0].mxu0 %v2816
    %v3071 = vpop.f32.mrb[0].mxu0
    %v3072 = vadd.f32 %v2875, %v3071
    %v3073 = vpop.f32.mrb[0].mxu0
    %v3074 = vpop.f32.mrb[0].mxu0
    %v3075 = vadd.f32 %v2875, %v3074
    %v3076 = vpop.f32.mrb[0].mxu0
    %3077 = vdwg.mxu0
    %3078 = vmatprep.subr.bf16.mxu0 0
    %3079 = vmatpush1.bf16.msra.mxu0 %v2989
    %3080 = vmatprep.subr.bf16.mxu0 0
    %3081 = vmatpush1.bf16.msra.mxu0 %v2990
    %3082 = vmatprep.subr.bf16.mxu0 0
    %3083 = vmatpush1.bf16.msra.mxu0 %v2991
    %3084 = vmatprep.subr.bf16.mxu0 0
    %3085 = vmatpush1.bf16.msra.mxu0 %v2992
    %3086 = vmatprep.subr.bf16.mxu0 0
    %3087 = vmatpush1.bf16.msra.mxu0 %v2993
    %3088 = vmatprep.subr.bf16.mxu0 0
    %3089 = vmatpush1.bf16.msra.mxu0 %v2994
    %3090 = vmatprep.subr.bf16.mxu0 0
    %3091 = vmatpush1.bf16.msra.mxu0 %v2995
    %3092 = vmatprep.subr.bf16.mxu0 0
    %3093 = vmatpush1.bf16.msra.mxu0 %v2996
    %3094 = vmatprep.subr.bf16.mxu0 0
    %3095 = vmatpush1.bf16.msra.mxu0 0
    %3096 = vmatprep.subr.bf16.mxu0 0
    %3097 = vmatpush1.bf16.msra.mxu0 0
    %3098 = vmatprep.subr.bf16.mxu0 0
    %3099 = vmatpush1.bf16.msra.mxu0 0
    %3100 = vmatprep.subr.bf16.mxu0 0
    %3101 = vmatpush1.bf16.msra.mxu0 0
    %3102 = vmatprep.subr.bf16.mxu0 0
    %3103 = vmatpush1.bf16.msra.mxu0 0
    %3104 = vmatprep.subr.bf16.mxu0 0
    %3105 = vmatpush1.bf16.msra.mxu0 0
    %3106 = vmatprep.subr.bf16.mxu0 0
    %3107 = vmatpush1.bf16.msra.mxu0 0
    %3108 = vmatprep.subr.bf16.mxu0 0
    %3109 = vmatpush1.bf16.msra.mxu0 0
    %3110 = vmatprep.mubr.bf16.mxu0 0
    %3111 = vmatmul.mubr.bf16.gmra.mrb[0].mxu0 %v2730
    %v3112 = vpop.f32.mrb[0].mxu0
    %v3113 = vadd.f32 %v3056, %v3112
    %v3114 = vpop.f32.mrb[0].mxu0
    %v3115 = vpop.f32.mrb[0].mxu0
    %v3116 = vadd.f32 %v3059, %v3115
    %v3117 = vpop.f32.mrb[0].mxu0
    %3118 = vmatprep.mubr.bf16.mxu0 0
    %3119 = vmatmul.mubr.bf16.gmra.mrb[0].mxu0 %v2731
    %v3120 = vpop.f32.mrb[0].mxu0
    %v3121 = vadd.f32 %v3064, %v3120
    %v3122 = vpop.f32.mrb[0].mxu0
    %v3123 = vpop.f32.mrb[0].mxu0
    %v3124 = vadd.f32 %v3067, %v3123
    %v3125 = vpop.f32.mrb[0].mxu0
    %3126 = vmatprep.mubr.bf16.mxu0 0
    %3127 = vmatmul.mubr.bf16.gmra.mrb[0].mxu0 %v2732
    %v3128 = vpop.f32.mrb[0].mxu0
    %v3129 = vadd.f32 %v3072, %v3128
    %v3130 = vpop.f32.mrb[0].mxu0
    %v3131 = vpop.f32.mrb[0].mxu0
    %v3132 = vadd.f32 %v3075, %v3131
    %v3133 = vpop.f32.mrb[0].mxu0
    %3134 = vdwg.mxu0
    %vm3135 = vcmp.gt.f32.partialorder %v3113, 0.0
    %vm3136 = vcmp.gt.f32.partialorder %v3116, 0.0
    %vm3137 = vcmp.gt.f32.partialorder %v3121, 0.0
    %vm3138 = vcmp.gt.f32.partialorder %v3124, 0.0
    %vm3139 = vcmp.gt.f32.partialorder %v3129, 0.0
    %vm3140 = vcmp.gt.f32.partialorder %v3132, 0.0
    %v3141 = vmul.f32 %v3113, 0.01
    %v3142 = vmul.f32 %v3116, 0.01
    %v3143 = vmul.f32 %v3121, 0.01
    %v3144 = vmul.f32 %v3124, 0.01
    %v3145 = vmul.f32 %v3129, 0.01
    %v3146 = vmul.f32 %v3132, 0.01
    %v3147 = vsel %vm3135, %v3113, %v3141
    %v3148 = vsel %vm3136, %v3116, %v3142
    %v3149 = vsel %vm3137, %v3121, %v3143
    %v3150 = vsel %vm3138, %v3124, %v3144
    %v3151 = vsel %vm3139, %v3129, %v3145
    %v3152 = vsel %vm3140, %v3132, %v3146
    %s3153 = scalar_lea.vmem [#allocation2], 704
    %v3154 = vld [vmem:[%s3153] sm:$0xf]
    %v3155 = vld [vmem:[%s3153 + $0x4] sm:$0xf]
    %v3156 = vld [vmem:[%s3153 + $0x8] sm:$0xf]
    %v3157 = vld [vmem:[%s3153 + $0xc] sm:$0xf]
    %v3158 = vld [vmem:[%s3153 + $0x10] sm:$0xf]
    %v3159 = vld [vmem:[%s3153 + $0x14] sm:$0xf]
    %v3160 = vld [vmem:[%s3153 + $0x18] sm:$0xf]
    %v3161 = vld [vmem:[%s3153 + $0x1c] sm:$0xf]
    %v3162 = vld [vmem:[%s3153 + $0x20] sm:$0xf]
    %v3163 = vld [vmem:[%s3153 + $0x24] sm:$0xf]
    %v3164 = vld [vmem:[%s3153 + $0x28] sm:$0xf]
    %v3165 = vld [vmem:[%s3153 + $0x2c] sm:$0xf]
    %v3166 = vld [vmem:[%s3153 + $0x30] sm:$0xf]
    %v3167 = vld [vmem:[%s3153 + $0x34] sm:$0xf]
    %v3168 = vld [vmem:[%s3153 + $0x38] sm:$0xf]
    %v3169 = vld [vmem:[%s3153 + $0x3c] sm:$0xf]
    %v3170 = vpack.c.bf16 %v3148, %v3147
    %v3171 = vpack.c.bf16 %v3150, %v3149
    %v3172 = vpack.c.bf16 %v3152, %v3151
    %s3173 = scalar_lea.vmem %s9, 16
    %v3174 = vld [vmem:[%s3173] sm:$0x1]
    %v3176 = vlaneseq
    %v3177 = vshrl.u32 %v3176, 7
    %v3178 = vsub.s32 0, %v3177
    %v3179 = vrot.slane %v3174, %v3178
    %v3197 = vunpack.c.l.b16 %v3154
    %v3198 = vunpack.c.l.b16 %v3155
    %v3199 = vunpack.c.l.b16 %v3156
    %v3200 = vunpack.c.l.b16 %v3157
    %v3201 = vunpack.c.l.b16 %v3158
    %v3202 = vunpack.c.l.b16 %v3159
    %v3203 = vunpack.c.l.b16 %v3160
    %v3204 = vunpack.c.l.b16 %v3161
    %v3205 = vunpack.c.l.b16 %v3162
    %v3206 = vunpack.c.l.b16 %v3163
    %v3207 = vunpack.c.l.b16 %v3164
    %v3208 = vunpack.c.l.b16 %v3165
    %v3209 = vunpack.c.l.b16 %v3166
    %v3210 = vunpack.c.l.b16 %v3167
    %v3211 = vunpack.c.l.b16 %v3168
    %v3212 = vunpack.c.l.b16 %v3169
    %v3213 = vpack.c.b16 %v3198, %v3197
    %v3214 = vpack.c.b16 %v3200, %v3199
    %v3215 = vpack.c.b16 %v3202, %v3201
    %v3216 = vpack.c.b16 %v3204, %v3203
    %v3217 = vpack.c.b16 %v3206, %v3205
    %v3218 = vpack.c.b16 %v3208, %v3207
    %v3219 = vpack.c.b16 %v3210, %v3209
    %v3220 = vpack.c.b16 %v3212, %v3211
    %3229 = vmatprep.subr.bf16.mxu0 0
    %3230 = vmatpush1.bf16.msra.mxu0 %v3213
    %3231 = vmatprep.subr.bf16.mxu0 0
    %3232 = vmatpush1.bf16.msra.mxu0 %v3214
    %3233 = vmatprep.subr.bf16.mxu0 0
    %3234 = vmatpush1.bf16.msra.mxu0 %v3215
    %3235 = vmatprep.subr.bf16.mxu0 0
    %3236 = vmatpush1.bf16.msra.mxu0 %v3216
    %3237 = vmatprep.subr.bf16.mxu0 0
    %3238 = vmatpush1.bf16.msra.mxu0 %v3217
    %3239 = vmatprep.subr.bf16.mxu0 0
    %3240 = vmatpush1.bf16.msra.mxu0 %v3218
    %3241 = vmatprep.subr.bf16.mxu0 0
    %3242 = vmatpush1.bf16.msra.mxu0 %v3219
    %3243 = vmatprep.subr.bf16.mxu0 0
    %3244 = vmatpush1.bf16.msra.mxu0 %v3220
    %3245 = vmatprep.subr.bf16.mxu0 0
    %3246 = vmatpush1.bf16.msra.mxu0 0
    %3247 = vmatprep.subr.bf16.mxu0 0
    %3248 = vmatpush1.bf16.msra.mxu0 0
    %3249 = vmatprep.subr.bf16.mxu0 0
    %3250 = vmatpush1.bf16.msra.mxu0 0
    %3251 = vmatprep.subr.bf16.mxu0 0
    %3252 = vmatpush1.bf16.msra.mxu0 0
    %3253 = vmatprep.subr.bf16.mxu0 0
    %3254 = vmatpush1.bf16.msra.mxu0 0
    %3255 = vmatprep.subr.bf16.mxu0 0
    %3256 = vmatpush1.bf16.msra.mxu0 0
    %3257 = vmatprep.subr.bf16.mxu0 0
    %3258 = vmatpush1.bf16.msra.mxu0 0
    %3259 = vmatprep.subr.bf16.mxu0 0
    %3260 = vmatpush1.bf16.msra.mxu0 0
    %3261 = vmatprep.mubr.bf16.mxu0 0
    %3262 = vmatmul.mubr.bf16.gmra.mrb[0].mxu0 %v3170
    %v3263 = vpop.f32.mrb[0].mxu0
    %v3264 = vadd.f32 %v3179, %v3263
    %v3265 = vpop.f32.mrb[0].mxu0
    %v3266 = vpop.f32.mrb[0].mxu0
    %v3267 = vadd.f32 %v3179, %v3266
    %v3268 = vpop.f32.mrb[0].mxu0
    %3269 = vmatprep.mubr.bf16.mxu0 0
    %3270 = vmatmul.mubr.bf16.gmra.mrb[0].mxu0 %v3171
    %v3271 = vpop.f32.mrb[0].mxu0
    %v3272 = vadd.f32 %v3179, %v3271
    %v3273 = vpop.f32.mrb[0].mxu0
    %v3274 = vpop.f32.mrb[0].mxu0
    %v3275 = vadd.f32 %v3179, %v3274
    %v3276 = vpop.f32.mrb[0].mxu0
    %3277 = vmatprep.mubr.bf16.mxu0 0
    %3278 = vmatmul.mubr.bf16.gmra.mrb[0].mxu0 %v3172
    %v3279 = vpop.f32.mrb[0].mxu0
    %v3280 = vadd.f32 %v3179, %v3279
    %v3281 = vpop.f32.mrb[0].mxu0
    %v3282 = vpop.f32.mrb[0].mxu0
    %v3283 = vadd.f32 %v3179, %v3282
    %v3284 = vpop.f32.mrb[0].mxu0
    %3285 = vdwg.mxu0
    %vm3286 = vcmp.gt.f32.partialorder %v3264, 0.0
    %vm3287 = vcmp.gt.f32.partialorder %v3267, 0.0
    %vm3288 = vcmp.gt.f32.partialorder %v3272, 0.0
    %vm3289 = vcmp.gt.f32.partialorder %v3275, 0.0
    %vm3290 = vcmp.gt.f32.partialorder %v3280, 0.0
    %vm3291 = vcmp.gt.f32.partialorder %v3283, 0.0
    %v3292 = vmul.f32 %v3264, 0.01
    %v3293 = vmul.f32 %v3267, 0.01
    %v3294 = vmul.f32 %v3272, 0.01
    %v3295 = vmul.f32 %v3275, 0.01
    %v3296 = vmul.f32 %v3280, 0.01
    %v3297 = vmul.f32 %v3283, 0.01
    %v3298 = vsel %vm3286, %v3264, %v3292
    %v3299 = vsel %vm3287, %v3267, %v3293
    %v3300 = vsel %vm3288, %v3272, %v3294
    %v3301 = vsel %vm3289, %v3275, %v3295
    %v3302 = vsel %vm3290, %v3280, %v3296
    %v3303 = vsel %vm3291, %v3283, %v3297
    %s3304 = scalar_lea.vmem [#allocation2], 768
    %v3305 = vld [vmem:[%s3304] sm:$0xf]
    %v3306 = vld [vmem:[%s3304 + $0x4] sm:$0xf]
    %v3307 = vld [vmem:[%s3304 + $0x8] sm:$0xf]
    %v3308 = vld [vmem:[%s3304 + $0xc] sm:$0xf]
    %v3309 = vld [vmem:[%s3304 + $0x10] sm:$0xf]
    %v3310 = vld [vmem:[%s3304 + $0x14] sm:$0xf]
    %v3311 = vld [vmem:[%s3304 + $0x18] sm:$0xf]
    %v3312 = vld [vmem:[%s3304 + $0x1c] sm:$0xf]
    %v3313 = vld [vmem:[%s3304 + $0x20] sm:$0xf]
    %v3314 = vld [vmem:[%s3304 + $0x24] sm:$0xf]
    %v3315 = vld [vmem:[%s3304 + $0x28] sm:$0xf]
    %v3316 = vld [vmem:[%s3304 + $0x2c] sm:$0xf]
    %v3317 = vld [vmem:[%s3304 + $0x30] sm:$0xf]
    %v3318 = vld [vmem:[%s3304 + $0x34] sm:$0xf]
    %v3319 = vld [vmem:[%s3304 + $0x38] sm:$0xf]
    %v3320 = vld [vmem:[%s3304 + $0x3c] sm:$0xf]
    %v3321 = vpack.c.bf16 %v3299, %v3298
    %v3322 = vpack.c.bf16 %v3301, %v3300
    %v3323 = vpack.c.bf16 %v3303, %v3302
    %s3324 = scalar_lea.vmem %s9, 17
    %v3325 = vld [vmem:[%s3324] sm:$0x1]
    %v3327 = vlaneseq
    %v3328 = vshrl.u32 %v3327, 7
    %v3329 = vsub.s32 0, %v3328
    %v3330 = vrot.slane %v3325, %v3329
    %v3348 = vunpack.c.l.b16 %v3305
    %v3349 = vunpack.c.l.b16 %v3306
    %v3350 = vunpack.c.l.b16 %v3307
    %v3351 = vunpack.c.l.b16 %v3308
    %v3352 = vunpack.c.l.b16 %v3309
    %v3353 = vunpack.c.l.b16 %v3310
    %v3354 = vunpack.c.l.b16 %v3311
    %v3355 = vunpack.c.l.b16 %v3312
    %v3356 = vunpack.c.l.b16 %v3313
    %v3357 = vunpack.c.l.b16 %v3314
    %v3358 = vunpack.c.l.b16 %v3315
    %v3359 = vunpack.c.l.b16 %v3316
    %v3360 = vunpack.c.l.b16 %v3317
    %v3361 = vunpack.c.l.b16 %v3318
    %v3362 = vunpack.c.l.b16 %v3319
    %v3363 = vunpack.c.l.b16 %v3320
    %v3364 = vpack.c.b16 %v3349, %v3348
    %v3365 = vpack.c.b16 %v3351, %v3350
    %v3366 = vpack.c.b16 %v3353, %v3352
    %v3367 = vpack.c.b16 %v3355, %v3354
    %v3368 = vpack.c.b16 %v3357, %v3356
    %v3369 = vpack.c.b16 %v3359, %v3358
    %v3370 = vpack.c.b16 %v3361, %v3360
    %v3371 = vpack.c.b16 %v3363, %v3362
    %3380 = vmatprep.subr.bf16.mxu0 0
    %3381 = vmatpush1.bf16.msra.mxu0 %v3364
    %3382 = vmatprep.subr.bf16.mxu0 0
    %3383 = vmatpush1.bf16.msra.mxu0 %v3365
    %3384 = vmatprep.subr.bf16.mxu0 0
    %3385 = vmatpush1.bf16.msra.mxu0 %v3366
    %3386 = vmatprep.subr.bf16.mxu0 0
    %3387 = vmatpush1.bf16.msra.mxu0 %v3367
    %3388 = vmatprep.subr.bf16.mxu0 0
    %3389 = vmatpush1.bf16.msra.mxu0 %v3368
    %3390 = vmatprep.subr.bf16.mxu0 0
    %3391 = vmatpush1.bf16.msra.mxu0 %v3369
    %3392 = vmatprep.subr.bf16.mxu0 0
    %3393 = vmatpush1.bf16.msra.mxu0 %v3370
    %3394 = vmatprep.subr.bf16.mxu0 0
    %3395 = vmatpush1.bf16.msra.mxu0 %v3371
    %3396 = vmatprep.subr.bf16.mxu0 0
    %3397 = vmatpush1.bf16.msra.mxu0 0
    %3398 = vmatprep.subr.bf16.mxu0 0
    %3399 = vmatpush1.bf16.msra.mxu0 0
    %3400 = vmatprep.subr.bf16.mxu0 0
    %3401 = vmatpush1.bf16.msra.mxu0 0
    %3402 = vmatprep.subr.bf16.mxu0 0
    %3403 = vmatpush1.bf16.msra.mxu0 0
    %3404 = vmatprep.subr.bf16.mxu0 0
    %3405 = vmatpush1.bf16.msra.mxu0 0
    %3406 = vmatprep.subr.bf16.mxu0 0
    %3407 = vmatpush1.bf16.msra.mxu0 0
    %3408 = vmatprep.subr.bf16.mxu0 0
    %3409 = vmatpush1.bf16.msra.mxu0 0
    %3410 = vmatprep.subr.bf16.mxu0 0
    %3411 = vmatpush1.bf16.msra.mxu0 0
    %3412 = vmatprep.mubr.bf16.mxu0 0
    %3413 = vmatmul.mubr.bf16.gmra.mrb[0].mxu0 %v3321
    %v3414 = vpop.f32.mrb[0].mxu0
    %v3415 = vadd.f32 %v3330, %v3414
    %v3416 = vpop.f32.mrb[0].mxu0
    %v3417 = vpop.f32.mrb[0].mxu0
    %v3418 = vadd.f32 %v3330, %v3417
    %v3419 = vpop.f32.mrb[0].mxu0
    %3420 = vmatprep.mubr.bf16.mxu0 0
    %3421 = vmatmul.mubr.bf16.gmra.mrb[0].mxu0 %v3322
    %v3422 = vpop.f32.mrb[0].mxu0
    %v3423 = vadd.f32 %v3330, %v3422
    %v3424 = vpop.f32.mrb[0].mxu0
    %v3425 = vpop.f32.mrb[0].mxu0
    %v3426 = vadd.f32 %v3330, %v3425
    %v3427 = vpop.f32.mrb[0].mxu0
    %3428 = vmatprep.mubr.bf16.mxu0 0
    %3429 = vmatmul.mubr.bf16.gmra.mrb[0].mxu0 %v3323
    %v3430 = vpop.f32.mrb[0].mxu0
    %v3431 = vadd.f32 %v3330, %v3430
    %v3432 = vpop.f32.mrb[0].mxu0
    %v3433 = vpop.f32.mrb[0].mxu0
    %v3434 = vadd.f32 %v3330, %v3433
    %v3435 = vpop.f32.mrb[0].mxu0
    %3436 = vdwg.mxu0
    %v3437 = vpack.c.bf16 %v3418, %v3415
    %v3438 = vpack.c.bf16 %v3426, %v3423
    %v3439 = vpack.c.bf16 %v3434, %v3431
    %3440 = vmatprep.subr.bf16.mxu0 0
    %3441 = vmatpush1.bf16.msra.mxu0 %v3437
    %3442 = vmatprep.subr.bf16.mxu0 0
    %3443 = vmatpush1.bf16.msra.mxu0 %v3438
    %3444 = vmatprep.subr.bf16.mxu0 0
    %3445 = vmatpush1.bf16.msra.mxu0 %v3439
    %3446 = vmatprep.subr.bf16.mxu0 0
    %3447 = vmatpush1.bf16.msra.mxu0 0
    %3448 = vmatprep.subr.bf16.mxu0 0
    %3449 = vmatpush1.bf16.msra.mxu0 0
    %3450 = vmatprep.subr.bf16.mxu0 0
    %3451 = vmatpush1.bf16.msra.mxu0 0
    %3452 = vmatprep.subr.bf16.mxu0 0
    %3453 = vmatpush1.bf16.msra.mxu0 0
    %3454 = vmatprep.subr.bf16.mxu0 0
    %3455 = vmatpush1.bf16.msra.mxu0 0
    %3456 = vmatprep.subr.bf16.mxu0 0
    %3457 = vmatpush1.bf16.msra.mxu0 0
    %3458 = vmatprep.subr.bf16.mxu0 0
    %3459 = vmatpush1.bf16.msra.mxu0 0
    %3460 = vmatprep.subr.bf16.mxu0 0
    %3461 = vmatpush1.bf16.msra.mxu0 0
    %3462 = vmatprep.subr.bf16.mxu0 0
    %3463 = vmatpush1.bf16.msra.mxu0 0
    %3464 = vmatprep.subr.bf16.mxu0 0
    %3465 = vmatpush1.bf16.msra.mxu0 0
    %3466 = vmatprep.subr.bf16.mxu0 0
    %3467 = vmatpush1.bf16.msra.mxu0 0
    %3468 = vmatprep.subr.bf16.mxu0 0
    %3469 = vmatpush1.bf16.msra.mxu0 0
    %3470 = vmatprep.subr.bf16.mxu0 0
    %3471 = vmatpush1.bf16.msra.mxu0 0
    %3472 = vmatprep.mubr.bf16.mxu0 0
    %3473 = vmatmul.mubr.bf16.gmra.mrb[0].mxu0 %v1887
    %v3474 = vpop.f32.mrb[0].mxu0
    %v3475 = vadd.f32 0.0, %v3474
    %v3476 = vpop.f32.mrb[0].mxu0
    %v3477 = vpop.f32.mrb[0].mxu0
    %v3478 = vadd.f32 0.0, %v3477
    %v3479 = vpop.f32.mrb[0].mxu0
    %3480 = vmatprep.mubr.bf16.mxu0 0
    %3481 = vmatmul.mubr.bf16.gmra.mrb[0].mxu0 %v1890
    %v3482 = vpop.f32.mrb[0].mxu0
    %v3483 = vadd.f32 0.0, %v3482
    %v3484 = vpop.f32.mrb[0].mxu0
    %v3485 = vpop.f32.mrb[0].mxu0
    %v3486 = vadd.f32 0.0, %v3485
    %v3487 = vpop.f32.mrb[0].mxu0
    %3488 = vmatprep.mubr.bf16.mxu0 0
    %3489 = vmatmul.mubr.bf16.gmra.mrb[0].mxu0 %v1893
    %v3490 = vpop.f32.mrb[0].mxu0
    %v3491 = vadd.f32 0.0, %v3490
    %v3492 = vpop.f32.mrb[0].mxu0
    %v3493 = vpop.f32.mrb[0].mxu0
    %v3494 = vadd.f32 0.0, %v3493
    %v3495 = vpop.f32.mrb[0].mxu0
    %3496 = vmatprep.mubr.bf16.mxu0 0
    %3497 = vmatmul.mubr.bf16.gmra.mrb[0].mxu0 %v1896
    %v3498 = vpop.f32.mrb[0].mxu0
    %v3499 = vadd.f32 0.0, %v3498
    %v3500 = vpop.f32.mrb[0].mxu0
    %v3501 = vpop.f32.mrb[0].mxu0
    %v3502 = vadd.f32 0.0, %v3501
    %v3503 = vpop.f32.mrb[0].mxu0
    %3504 = vmatprep.mubr.bf16.mxu0 0
    %3505 = vmatmul.mubr.bf16.gmra.mrb[0].mxu0 %v1899
    %v3506 = vpop.f32.mrb[0].mxu0
    %v3507 = vadd.f32 0.0, %v3506
    %v3508 = vpop.f32.mrb[0].mxu0
    %v3509 = vpop.f32.mrb[0].mxu0
    %v3510 = vadd.f32 0.0, %v3509
    %v3511 = vpop.f32.mrb[0].mxu0
    %3512 = vmatprep.mubr.bf16.mxu0 0
    %3513 = vmatmul.mubr.bf16.gmra.mrb[0].mxu0 %v1902
    %v3514 = vpop.f32.mrb[0].mxu0
    %v3515 = vadd.f32 0.0, %v3514
    %v3516 = vpop.f32.mrb[0].mxu0
    %v3517 = vpop.f32.mrb[0].mxu0
    %v3518 = vadd.f32 0.0, %v3517
    %v3519 = vpop.f32.mrb[0].mxu0
    %3520 = vmatprep.mubr.bf16.mxu0 0
    %3521 = vmatmul.mubr.bf16.gmra.mrb[0].mxu0 %v1905
    %v3522 = vpop.f32.mrb[0].mxu0
    %v3523 = vadd.f32 0.0, %v3522
    %v3524 = vpop.f32.mrb[0].mxu0
    %v3525 = vpop.f32.mrb[0].mxu0
    %v3526 = vadd.f32 0.0, %v3525
    %v3527 = vpop.f32.mrb[0].mxu0
    %3528 = vmatprep.mubr.bf16.mxu0 0
    %3529 = vmatmul.mubr.bf16.gmra.mrb[0].mxu0 %v1908
    %v3530 = vpop.f32.mrb[0].mxu0
    %v3531 = vadd.f32 0.0, %v3530
    %v3532 = vpop.f32.mrb[0].mxu0
    %v3533 = vpop.f32.mrb[0].mxu0
    %v3534 = vadd.f32 0.0, %v3533
    %v3535 = vpop.f32.mrb[0].mxu0
    %3536 = vdwg.mxu0
    %v3537 = vpack.c.bf16 %v3478, %v3475
    %v3538 = vpack.c.bf16 %v3486, %v3483
    %v3539 = vpack.c.bf16 %v3494, %v3491
    %v3540 = vpack.c.bf16 %v3502, %v3499
    %v3541 = vpack.c.bf16 %v3510, %v3507
    %v3542 = vpack.c.bf16 %v3518, %v3515
    %v3543 = vpack.c.bf16 %v3526, %v3523
    %v3544 = vpack.c.bf16 %v3534, %v3531
    %s3545 = scalar_lea.vmem %s8, 128
    %v3546 = vld [vmem:[%s3545] sm:$0xf]
    %v3547 = vld [vmem:[%s3545 + $0x4] sm:$0xf]
    %v3548 = vld [vmem:[%s3545 + $0x8] sm:$0xf]
    %v3549 = vld [vmem:[%s3545 + $0xc] sm:$0xf]
    %v3550 = vld [vmem:[%s3545 + $0x10] sm:$0xf]
    %v3551 = vld [vmem:[%s3545 + $0x14] sm:$0xf]
    %v3552 = vld [vmem:[%s3545 + $0x18] sm:$0xf]
    %v3553 = vld [vmem:[%s3545 + $0x1c] sm:$0xf]
    %v3554 = vld [vmem:[%s3545 + $0x20] sm:$0xf]
    %v3555 = vld [vmem:[%s3545 + $0x24] sm:$0xf]
    %v3556 = vld [vmem:[%s3545 + $0x28] sm:$0xf]
    %v3557 = vld [vmem:[%s3545 + $0x2c] sm:$0xf]
    %v3558 = vld [vmem:[%s3545 + $0x30] sm:$0xf]
    %v3559 = vld [vmem:[%s3545 + $0x34] sm:$0xf]
    %v3560 = vld [vmem:[%s3545 + $0x38] sm:$0xf]
    %v3561 = vld [vmem:[%s3545 + $0x3c] sm:$0xf]
    %v3562 = vld [vmem:[%s3545 + $0x40] sm:$0xf]
    %v3563 = vld [vmem:[%s3545 + $0x44] sm:$0xf]
    %v3564 = vld [vmem:[%s3545 + $0x48] sm:$0xf]
    %v3565 = vld [vmem:[%s3545 + $0x4c] sm:$0xf]
    %v3566 = vld [vmem:[%s3545 + $0x50] sm:$0xf]
    %v3567 = vld [vmem:[%s3545 + $0x54] sm:$0xf]
    %v3568 = vld [vmem:[%s3545 + $0x58] sm:$0xf]
    %v3569 = vld [vmem:[%s3545 + $0x5c] sm:$0xf]
    %v3570 = vld [vmem:[%s3545 + $0x60] sm:$0xf]
    %v3571 = vld [vmem:[%s3545 + $0x64] sm:$0xf]
    %v3572 = vld [vmem:[%s3545 + $0x68] sm:$0xf]
    %v3573 = vld [vmem:[%s3545 + $0x6c] sm:$0xf]
    %v3574 = vld [vmem:[%s3545 + $0x70] sm:$0xf]
    %v3575 = vld [vmem:[%s3545 + $0x74] sm:$0xf]
    %v3576 = vld [vmem:[%s3545 + $0x78] sm:$0xf]
    %v3577 = vld [vmem:[%s3545 + $0x7c] sm:$0xf]
    %s3578 = scalar_lea.vmem %s9, 18
    %v3579 = vld [vmem:[%s3578] sm:$0x1]
    %v3581 = vlaneseq
    %v3582 = vshrl.u32 %v3581, 7
    %v3583 = vsub.s32 0, %v3582
    %v3584 = vrot.slane %v3579, %v3583
    %v3618 = vunpack.c.l.b16 %v3546
    %v3619 = vunpack.c.l.b16 %v3547
    %v3620 = vunpack.c.l.b16 %v3548
    %v3621 = vunpack.c.l.b16 %v3549
    %v3622 = vunpack.c.l.b16 %v3550
    %v3623 = vunpack.c.l.b16 %v3551
    %v3624 = vunpack.c.l.b16 %v3552
    %v3625 = vunpack.c.l.b16 %v3553
    %v3626 = vunpack.c.l.b16 %v3554
    %v3627 = vunpack.c.l.b16 %v3555
    %v3628 = vunpack.c.l.b16 %v3556
    %v3629 = vunpack.c.l.b16 %v3557
    %v3630 = vunpack.c.l.b16 %v3558
    %v3631 = vunpack.c.l.b16 %v3559
    %v3632 = vunpack.c.l.b16 %v3560
    %v3633 = vunpack.c.l.b16 %v3561
    %v3634 = vunpack.c.l.b16 %v3562
    %v3635 = vunpack.c.l.b16 %v3563
    %v3636 = vunpack.c.l.b16 %v3564
    %v3637 = vunpack.c.l.b16 %v3565
    %v3638 = vunpack.c.l.b16 %v3566
    %v3639 = vunpack.c.l.b16 %v3567
    %v3640 = vunpack.c.l.b16 %v3568
    %v3641 = vunpack.c.l.b16 %v3569
    %v3642 = vunpack.c.l.b16 %v3570
    %v3643 = vunpack.c.l.b16 %v3571
    %v3644 = vunpack.c.l.b16 %v3572
    %v3645 = vunpack.c.l.b16 %v3573
    %v3646 = vunpack.c.l.b16 %v3574
    %v3647 = vunpack.c.l.b16 %v3575
    %v3648 = vunpack.c.l.b16 %v3576
    %v3649 = vunpack.c.l.b16 %v3577
    %v3650 = vpack.c.b16 %v3619, %v3618
    %v3651 = vpack.c.b16 %v3621, %v3620
    %v3652 = vpack.c.b16 %v3623, %v3622
    %v3653 = vpack.c.b16 %v3625, %v3624
    %v3654 = vpack.c.b16 %v3627, %v3626
    %v3655 = vpack.c.b16 %v3629, %v3628
    %v3656 = vpack.c.b16 %v3631, %v3630
    %v3657 = vpack.c.b16 %v3633, %v3632
    %v3658 = vpack.c.b16 %v3635, %v3634
    %v3659 = vpack.c.b16 %v3637, %v3636
    %v3660 = vpack.c.b16 %v3639, %v3638
    %v3661 = vpack.c.b16 %v3641, %v3640
    %v3662 = vpack.c.b16 %v3643, %v3642
    %v3663 = vpack.c.b16 %v3645, %v3644
    %v3664 = vpack.c.b16 %v3647, %v3646
    %v3665 = vpack.c.b16 %v3649, %v3648
    %3682 = vmatprep.subr.bf16.mxu0 0
    %3683 = vmatpush1.bf16.msra.mxu0 %v3650
    %3684 = vmatprep.subr.bf16.mxu0 0
    %3685 = vmatpush1.bf16.msra.mxu0 %v3651
    %3686 = vmatprep.subr.bf16.mxu0 0
    %3687 = vmatpush1.bf16.msra.mxu0 %v3652
    %3688 = vmatprep.subr.bf16.mxu0 0
    %3689 = vmatpush1.bf16.msra.mxu0 %v3653
    %3690 = vmatprep.subr.bf16.mxu0 0
    %3691 = vmatpush1.bf16.msra.mxu0 %v3654
    %3692 = vmatprep.subr.bf16.mxu0 0
    %3693 = vmatpush1.bf16.msra.mxu0 %v3655
    %3694 = vmatprep.subr.bf16.mxu0 0
    %3695 = vmatpush1.bf16.msra.mxu0 %v3656
    %3696 = vmatprep.subr.bf16.mxu0 0
    %3697 = vmatpush1.bf16.msra.mxu0 %v3657
    %3698 = vmatprep.subr.bf16.mxu0 0
    %3699 = vmatpush1.bf16.msra.mxu0 %v3658
    %3700 = vmatprep.subr.bf16.mxu0 0
    %3701 = vmatpush1.bf16.msra.mxu0 %v3659
    %3702 = vmatprep.subr.bf16.mxu0 0
    %3703 = vmatpush1.bf16.msra.mxu0 %v3660
    %3704 = vmatprep.subr.bf16.mxu0 0
    %3705 = vmatpush1.bf16.msra.mxu0 %v3661
    %3706 = vmatprep.subr.bf16.mxu0 0
    %3707 = vmatpush1.bf16.msra.mxu0 %v3662
    %3708 = vmatprep.subr.bf16.mxu0 0
    %3709 = vmatpush1.bf16.msra.mxu0 %v3663
    %3710 = vmatprep.subr.bf16.mxu0 0
    %3711 = vmatpush1.bf16.msra.mxu0 %v3664
    %3712 = vmatprep.subr.bf16.mxu0 0
    %3713 = vmatpush1.bf16.msra.mxu0 %v3665
    %3714 = vmatprep.mubr.bf16.mxu0 %v3537
    %3715 = vmatmul.mubr.bf16.gmra.mrb[0].mxu0 %v2722
    %v3716 = vpop.f32.mrb[0].mxu0
    %v3717 = vadd.f32 %v3584, %v3716
    %v3718 = vpop.f32.mrb[0].mxu0
    %v3719 = vpop.f32.mrb[0].mxu0
    %v3720 = vadd.f32 %v3584, %v3719
    %v3721 = vpop.f32.mrb[0].mxu0
    %3722 = vmatprep.mubr.bf16.mxu0 %v3538
    %3723 = vmatmul.mubr.bf16.gmra.mrb[0].mxu0 %v2723
    %v3724 = vpop.f32.mrb[0].mxu0
    %v3725 = vadd.f32 %v3584, %v3724
    %v3726 = vpop.f32.mrb[0].mxu0
    %v3727 = vpop.f32.mrb[0].mxu0
    %v3728 = vadd.f32 %v3584, %v3727
    %v3729 = vpop.f32.mrb[0].mxu0
    %3730 = vmatprep.mubr.bf16.mxu0 %v3539
    %3731 = vmatmul.mubr.bf16.gmra.mrb[0].mxu0 %v2724
    %v3732 = vpop.f32.mrb[0].mxu0
    %v3733 = vadd.f32 %v3584, %v3732
    %v3734 = vpop.f32.mrb[0].mxu0
    %v3735 = vpop.f32.mrb[0].mxu0
    %v3736 = vadd.f32 %v3584, %v3735
    %v3737 = vpop.f32.mrb[0].mxu0
    %3738 = vmatprep.mubr.bf16.mxu0 %v3540
    %3739 = vmatmul.mubr.bf16.gmra.mrb[0].mxu0 %v2725
    %v3740 = vpop.f32.mrb[0].mxu0
    %v3741 = vadd.f32 %v3584, %v3740
    %v3742 = vpop.f32.mrb[0].mxu0
    %v3743 = vpop.f32.mrb[0].mxu0
    %v3744 = vadd.f32 %v3584, %v3743
    %v3745 = vpop.f32.mrb[0].mxu0
    %3746 = vmatprep.mubr.bf16.mxu0 %v3541
    %3747 = vmatmul.mubr.bf16.gmra.mrb[0].mxu0 %v2726
    %v3748 = vpop.f32.mrb[0].mxu0
    %v3749 = vadd.f32 %v3584, %v3748
    %v3750 = vpop.f32.mrb[0].mxu0
    %v3751 = vpop.f32.mrb[0].mxu0
    %v3752 = vadd.f32 %v3584, %v3751
    %v3753 = vpop.f32.mrb[0].mxu0
    %3754 = vmatprep.mubr.bf16.mxu0 %v3542
    %3755 = vmatmul.mubr.bf16.gmra.mrb[0].mxu0 %v2727
    %v3756 = vpop.f32.mrb[0].mxu0
    %v3757 = vadd.f32 %v3584, %v3756
    %v3758 = vpop.f32.mrb[0].mxu0
    %v3759 = vpop.f32.mrb[0].mxu0
    %v3760 = vadd.f32 %v3584, %v3759
    %v3761 = vpop.f32.mrb[0].mxu0
    %3762 = vmatprep.mubr.bf16.mxu0 %v3543
    %3763 = vmatmul.mubr.bf16.gmra.mrb[0].mxu0 %v2728
    %v3764 = vpop.f32.mrb[0].mxu0
    %v3765 = vadd.f32 %v3584, %v3764
    %v3766 = vpop.f32.mrb[0].mxu0
    %v3767 = vpop.f32.mrb[0].mxu0
    %v3768 = vadd.f32 %v3584, %v3767
    %v3769 = vpop.f32.mrb[0].mxu0
    %3770 = vmatprep.mubr.bf16.mxu0 %v3544
    %3771 = vmatmul.mubr.bf16.gmra.mrb[0].mxu0 %v2729
    %v3772 = vpop.f32.mrb[0].mxu0
    %v3773 = vadd.f32 %v3584, %v3772
    %v3774 = vpop.f32.mrb[0].mxu0
    %v3775 = vpop.f32.mrb[0].mxu0
    %v3776 = vadd.f32 %v3584, %v3775
    %v3777 = vpop.f32.mrb[0].mxu0
    %3778 = vdwg.mxu0
    %vm3779 = vcmp.gt.f32.partialorder %v3717, 0.0
    %vm3780 = vcmp.gt.f32.partialorder %v3720, 0.0
    %vm3781 = vcmp.gt.f32.partialorder %v3725, 0.0
    %vm3782 = vcmp.gt.f32.partialorder %v3728, 0.0
    %vm3783 = vcmp.gt.f32.partialorder %v3733, 0.0
    %vm3784 = vcmp.gt.f32.partialorder %v3736, 0.0
    %vm3785 = vcmp.gt.f32.partialorder %v3741, 0.0
    %vm3786 = vcmp.gt.f32.partialorder %v3744, 0.0
    %vm3787 = vcmp.gt.f32.partialorder %v3749, 0.0
    %vm3788 = vcmp.gt.f32.partialorder %v3752, 0.0
    %vm3789 = vcmp.gt.f32.partialorder %v3757, 0.0
    %vm3790 = vcmp.gt.f32.partialorder %v3760, 0.0
    %vm3791 = vcmp.gt.f32.partialorder %v3765, 0.0
    %vm3792 = vcmp.gt.f32.partialorder %v3768, 0.0
    %vm3793 = vcmp.gt.f32.partialorder %v3773, 0.0
    %vm3794 = vcmp.gt.f32.partialorder %v3776, 0.0
    %v3795 = vmul.f32 %v3717, 0.01
    %v3796 = vmul.f32 %v3720, 0.01
    %v3797 = vmul.f32 %v3725, 0.01
    %v3798 = vmul.f32 %v3728, 0.01
    %v3799 = vmul.f32 %v3733, 0.01
    %v3800 = vmul.f32 %v3736, 0.01
    %v3801 = vmul.f32 %v3741, 0.01
    %v3802 = vmul.f32 %v3744, 0.01
    %v3803 = vmul.f32 %v3749, 0.01
    %v3804 = vmul.f32 %v3752, 0.01
    %v3805 = vmul.f32 %v3757, 0.01
    %v3806 = vmul.f32 %v3760, 0.01
    %v3807 = vmul.f32 %v3765, 0.01
    %v3808 = vmul.f32 %v3768, 0.01
    %v3809 = vmul.f32 %v3773, 0.01
    %v3810 = vmul.f32 %v3776, 0.01
    %v3811 = vsel %vm3779, %v3717, %v3795
    %v3812 = vsel %vm3780, %v3720, %v3796
    %v3813 = vsel %vm3781, %v3725, %v3797
    %v3814 = vsel %vm3782, %v3728, %v3798
    %v3815 = vsel %vm3783, %v3733, %v3799
    %v3816 = vsel %vm3784, %v3736, %v3800
    %v3817 = vsel %vm3785, %v3741, %v3801
    %v3818 = vsel %vm3786, %v3744, %v3802
    %v3819 = vsel %vm3787, %v3749, %v3803
    %v3820 = vsel %vm3788, %v3752, %v3804
    %v3821 = vsel %vm3789, %v3757, %v3805
    %v3822 = vsel %vm3790, %v3760, %v3806
    %v3823 = vsel %vm3791, %v3765, %v3807
    %v3824 = vsel %vm3792, %v3768, %v3808
    %v3825 = vsel %vm3793, %v3773, %v3809
    %v3826 = vsel %vm3794, %v3776, %v3810
    %s3827 = scalar_lea.vmem [#allocation2], 832
    %v3828 = vld [vmem:[%s3827] sm:$0xf]
    %v3829 = vld [vmem:[%s3827 + $0x4] sm:$0xf]
    %v3830 = vld [vmem:[%s3827 + $0x8] sm:$0xf]
    %v3831 = vld [vmem:[%s3827 + $0xc] sm:$0xf]
    %v3832 = vld [vmem:[%s3827 + $0x10] sm:$0xf]
    %v3833 = vld [vmem:[%s3827 + $0x14] sm:$0xf]
    %v3834 = vld [vmem:[%s3827 + $0x18] sm:$0xf]
    %v3835 = vld [vmem:[%s3827 + $0x1c] sm:$0xf]
    %v3836 = vld [vmem:[%s3827 + $0x20] sm:$0xf]
    %v3837 = vld [vmem:[%s3827 + $0x24] sm:$0xf]
    %v3838 = vld [vmem:[%s3827 + $0x28] sm:$0xf]
    %v3839 = vld [vmem:[%s3827 + $0x2c] sm:$0xf]
    %v3840 = vld [vmem:[%s3827 + $0x30] sm:$0xf]
    %v3841 = vld [vmem:[%s3827 + $0x34] sm:$0xf]
    %v3842 = vld [vmem:[%s3827 + $0x38] sm:$0xf]
    %v3843 = vld [vmem:[%s3827 + $0x3c] sm:$0xf]
    %v3844 = vpack.c.bf16 %v3812, %v3811
    %v3845 = vpack.c.bf16 %v3814, %v3813
    %v3846 = vpack.c.bf16 %v3816, %v3815
    %v3847 = vpack.c.bf16 %v3818, %v3817
    %v3848 = vpack.c.bf16 %v3820, %v3819
    %v3849 = vpack.c.bf16 %v3822, %v3821
    %v3850 = vpack.c.bf16 %v3824, %v3823
    %v3851 = vpack.c.bf16 %v3826, %v3825
    %s3852 = scalar_lea.vmem %s9, 19
    %v3853 = vld [vmem:[%s3852] sm:$0x1]
    %v3855 = vlaneseq
    %v3856 = vshrl.u32 %v3855, 7
    %v3857 = vsub.s32 0, %v3856
    %v3858 = vrot.slane %v3853, %v3857
    %v3876 = vunpack.c.l.b16 %v3828
    %v3877 = vunpack.c.l.b16 %v3829
    %v3878 = vunpack.c.l.b16 %v3830
    %v3879 = vunpack.c.l.b16 %v3831
    %v3880 = vunpack.c.l.b16 %v3832
    %v3881 = vunpack.c.l.b16 %v3833
    %v3882 = vunpack.c.l.b16 %v3834
    %v3883 = vunpack.c.l.b16 %v3835
    %v3884 = vunpack.c.l.b16 %v3836
    %v3885 = vunpack.c.l.b16 %v3837
    %v3886 = vunpack.c.l.b16 %v3838
    %v3887 = vunpack.c.l.b16 %v3839
    %v3888 = vunpack.c.l.b16 %v3840
    %v3889 = vunpack.c.l.b16 %v3841
    %v3890 = vunpack.c.l.b16 %v3842
    %v3891 = vunpack.c.l.b16 %v3843
    %v3892 = vpack.c.b16 %v3877, %v3876
    %v3893 = vpack.c.b16 %v3879, %v3878
    %v3894 = vpack.c.b16 %v3881, %v3880
    %v3895 = vpack.c.b16 %v3883, %v3882
    %v3896 = vpack.c.b16 %v3885, %v3884
    %v3897 = vpack.c.b16 %v3887, %v3886
    %v3898 = vpack.c.b16 %v3889, %v3888
    %v3899 = vpack.c.b16 %v3891, %v3890
    %3908 = vmatprep.subr.bf16.mxu0 0
    %3909 = vmatpush1.bf16.msra.mxu0 %v3892
    %3910 = vmatprep.subr.bf16.mxu0 0
    %3911 = vmatpush1.bf16.msra.mxu0 %v3893
    %3912 = vmatprep.subr.bf16.mxu0 0
    %3913 = vmatpush1.bf16.msra.mxu0 %v3894
    %3914 = vmatprep.subr.bf16.mxu0 0
    %3915 = vmatpush1.bf16.msra.mxu0 %v3895
    %3916 = vmatprep.subr.bf16.mxu0 0
    %3917 = vmatpush1.bf16.msra.mxu0 %v3896
    %3918 = vmatprep.subr.bf16.mxu0 0
    %3919 = vmatpush1.bf16.msra.mxu0 %v3897
    %3920 = vmatprep.subr.bf16.mxu0 0
    %3921 = vmatpush1.bf16.msra.mxu0 %v3898
    %3922 = vmatprep.subr.bf16.mxu0 0
    %3923 = vmatpush1.bf16.msra.mxu0 %v3899
    %3924 = vmatprep.subr.bf16.mxu0 0
    %3925 = vmatpush1.bf16.msra.mxu0 0
    %3926 = vmatprep.subr.bf16.mxu0 0
    %3927 = vmatpush1.bf16.msra.mxu0 0
    %3928 = vmatprep.subr.bf16.mxu0 0
    %3929 = vmatpush1.bf16.msra.mxu0 0
    %3930 = vmatprep.subr.bf16.mxu0 0
    %3931 = vmatpush1.bf16.msra.mxu0 0
    %3932 = vmatprep.subr.bf16.mxu0 0
    %3933 = vmatpush1.bf16.msra.mxu0 0
    %3934 = vmatprep.subr.bf16.mxu0 0
    %3935 = vmatpush1.bf16.msra.mxu0 0
    %3936 = vmatprep.subr.bf16.mxu0 0
    %3937 = vmatpush1.bf16.msra.mxu0 0
    %3938 = vmatprep.subr.bf16.mxu0 0
    %3939 = vmatpush1.bf16.msra.mxu0 0
    %3940 = vmatprep.mubr.bf16.mxu0 0
    %3941 = vmatmul.mubr.bf16.gmra.mrb[0].mxu0 %v3844
    %v3942 = vpop.f32.mrb[0].mxu0
    %v3943 = vadd.f32 %v3858, %v3942
    %v3944 = vpop.f32.mrb[0].mxu0
    %v3945 = vpop.f32.mrb[0].mxu0
    %v3946 = vadd.f32 %v3858, %v3945
    %v3947 = vpop.f32.mrb[0].mxu0
    %3948 = vmatprep.mubr.bf16.mxu0 0
    %3949 = vmatmul.mubr.bf16.gmra.mrb[0].mxu0 %v3845
    %v3950 = vpop.f32.mrb[0].mxu0
    %v3951 = vadd.f32 %v3858, %v3950
    %v3952 = vpop.f32.mrb[0].mxu0
    %v3953 = vpop.f32.mrb[0].mxu0
    %v3954 = vadd.f32 %v3858, %v3953
    %v3955 = vpop.f32.mrb[0].mxu0
    %3956 = vmatprep.mubr.bf16.mxu0 0
    %3957 = vmatmul.mubr.bf16.gmra.mrb[0].mxu0 %v3846
    %v3958 = vpop.f32.mrb[0].mxu0
    %v3959 = vadd.f32 %v3858, %v3958
    %v3960 = vpop.f32.mrb[0].mxu0
    %v3961 = vpop.f32.mrb[0].mxu0
    %v3962 = vadd.f32 %v3858, %v3961
    %v3963 = vpop.f32.mrb[0].mxu0
    %3964 = vmatprep.mubr.bf16.mxu0 0
    %3965 = vmatmul.mubr.bf16.gmra.mrb[0].mxu0 %v3847
    %v3966 = vpop.f32.mrb[0].mxu0
    %v3967 = vadd.f32 %v3858, %v3966
    %v3968 = vpop.f32.mrb[0].mxu0
    %v3969 = vpop.f32.mrb[0].mxu0
    %v3970 = vadd.f32 %v3858, %v3969
    %v3971 = vpop.f32.mrb[0].mxu0
    %3972 = vmatprep.mubr.bf16.mxu0 0
    %3973 = vmatmul.mubr.bf16.gmra.mrb[0].mxu0 %v3848
    %v3974 = vpop.f32.mrb[0].mxu0
    %v3975 = vadd.f32 %v3858, %v3974
    %v3976 = vpop.f32.mrb[0].mxu0
    %v3977 = vpop.f32.mrb[0].mxu0
    %v3978 = vadd.f32 %v3858, %v3977
    %v3979 = vpop.f32.mrb[0].mxu0
    %3980 = vmatprep.mubr.bf16.mxu0 0
    %3981 = vmatmul.mubr.bf16.gmra.mrb[0].mxu0 %v3849
    %v3982 = vpop.f32.mrb[0].mxu0
    %v3983 = vadd.f32 %v3858, %v3982
    %v3984 = vpop.f32.mrb[0].mxu0
    %v3985 = vpop.f32.mrb[0].mxu0
    %v3986 = vadd.f32 %v3858, %v3985
    %v3987 = vpop.f32.mrb[0].mxu0
    %3988 = vmatprep.mubr.bf16.mxu0 0
    %3989 = vmatmul.mubr.bf16.gmra.mrb[0].mxu0 %v3850
    %v3990 = vpop.f32.mrb[0].mxu0
    %v3991 = vadd.f32 %v3858, %v3990
    %v3992 = vpop.f32.mrb[0].mxu0
    %v3993 = vpop.f32.mrb[0].mxu0
    %v3994 = vadd.f32 %v3858, %v3993
    %v3995 = vpop.f32.mrb[0].mxu0
    %3996 = vmatprep.mubr.bf16.mxu0 0
    %3997 = vmatmul.mubr.bf16.gmra.mrb[0].mxu0 %v3851
    %v3998 = vpop.f32.mrb[0].mxu0
    %v3999 = vadd.f32 %v3858, %v3998
    %v4000 = vpop.f32.mrb[0].mxu0
    %v4001 = vpop.f32.mrb[0].mxu0
    %v4002 = vadd.f32 %v3858, %v4001
    %v4003 = vpop.f32.mrb[0].mxu0
    %4004 = vdwg.mxu0
    %vm4005 = vcmp.gt.f32.partialorder %v3943, 0.0
    %vm4006 = vcmp.gt.f32.partialorder %v3946, 0.0
    %vm4007 = vcmp.gt.f32.partialorder %v3951, 0.0
    %vm4008 = vcmp.gt.f32.partialorder %v3954, 0.0
    %vm4009 = vcmp.gt.f32.partialorder %v3959, 0.0
    %vm4010 = vcmp.gt.f32.partialorder %v3962, 0.0
    %vm4011 = vcmp.gt.f32.partialorder %v3967, 0.0
    %vm4012 = vcmp.gt.f32.partialorder %v3970, 0.0
    %vm4013 = vcmp.gt.f32.partialorder %v3975, 0.0
    %vm4014 = vcmp.gt.f32.partialorder %v3978, 0.0
    %vm4015 = vcmp.gt.f32.partialorder %v3983, 0.0
    %vm4016 = vcmp.gt.f32.partialorder %v3986, 0.0
    %vm4017 = vcmp.gt.f32.partialorder %v3991, 0.0
    %vm4018 = vcmp.gt.f32.partialorder %v3994, 0.0
    %vm4019 = vcmp.gt.f32.partialorder %v3999, 0.0
    %vm4020 = vcmp.gt.f32.partialorder %v4002, 0.0
    %v4021 = vmul.f32 %v3943, 0.01
    %v4022 = vmul.f32 %v3946, 0.01
    %v4023 = vmul.f32 %v3951, 0.01
    %v4024 = vmul.f32 %v3954, 0.01
    %v4025 = vmul.f32 %v3959, 0.01
    %v4026 = vmul.f32 %v3962, 0.01
    %v4027 = vmul.f32 %v3967, 0.01
    %v4028 = vmul.f32 %v3970, 0.01
    %v4029 = vmul.f32 %v3975, 0.01
    %v4030 = vmul.f32 %v3978, 0.01
    %v4031 = vmul.f32 %v3983, 0.01
    %v4032 = vmul.f32 %v3986, 0.01
    %v4033 = vmul.f32 %v3991, 0.01
    %v4034 = vmul.f32 %v3994, 0.01
    %v4035 = vmul.f32 %v3999, 0.01
    %v4036 = vmul.f32 %v4002, 0.01
    %v4037 = vsel %vm4005, %v3943, %v4021
    %v4038 = vsel %vm4006, %v3946, %v4022
    %v4039 = vsel %vm4007, %v3951, %v4023
    %v4040 = vsel %vm4008, %v3954, %v4024
    %v4041 = vsel %vm4009, %v3959, %v4025
    %v4042 = vsel %vm4010, %v3962, %v4026
    %v4043 = vsel %vm4011, %v3967, %v4027
    %v4044 = vsel %vm4012, %v3970, %v4028
    %v4045 = vsel %vm4013, %v3975, %v4029
    %v4046 = vsel %vm4014, %v3978, %v4030
    %v4047 = vsel %vm4015, %v3983, %v4031
    %v4048 = vsel %vm4016, %v3986, %v4032
    %v4049 = vsel %vm4017, %v3991, %v4033
    %v4050 = vsel %vm4018, %v3994, %v4034
    %v4051 = vsel %vm4019, %v3999, %v4035
    %v4052 = vsel %vm4020, %v4002, %v4036
    %s4053 = scalar_lea.vmem [#allocation2], 896
    %v4054 = vld [vmem:[%s4053] sm:$0xf]
    %v4055 = vld [vmem:[%s4053 + $0x4] sm:$0xf]
    %v4056 = vld [vmem:[%s4053 + $0x8] sm:$0xf]
    %v4057 = vld [vmem:[%s4053 + $0xc] sm:$0xf]
    %v4058 = vld [vmem:[%s4053 + $0x10] sm:$0xf]
    %v4059 = vld [vmem:[%s4053 + $0x14] sm:$0xf]
    %v4060 = vld [vmem:[%s4053 + $0x18] sm:$0xf]
    %v4061 = vld [vmem:[%s4053 + $0x1c] sm:$0xf]
    %v4062 = vld [vmem:[%s4053 + $0x20] sm:$0xf]
    %v4063 = vld [vmem:[%s4053 + $0x24] sm:$0xf]
    %v4064 = vld [vmem:[%s4053 + $0x28] sm:$0xf]
    %v4065 = vld [vmem:[%s4053 + $0x2c] sm:$0xf]
    %v4066 = vld [vmem:[%s4053 + $0x30] sm:$0xf]
    %v4067 = vld [vmem:[%s4053 + $0x34] sm:$0xf]
    %v4068 = vld [vmem:[%s4053 + $0x38] sm:$0xf]
    %v4069 = vld [vmem:[%s4053 + $0x3c] sm:$0xf]
    %v4070 = vpack.c.bf16 %v4038, %v4037
    %v4071 = vpack.c.bf16 %v4040, %v4039
    %v4072 = vpack.c.bf16 %v4042, %v4041
    %v4073 = vpack.c.bf16 %v4044, %v4043
    %v4074 = vpack.c.bf16 %v4046, %v4045
    %v4075 = vpack.c.bf16 %v4048, %v4047
    %v4076 = vpack.c.bf16 %v4050, %v4049
    %v4077 = vpack.c.bf16 %v4052, %v4051
    %s4078 = scalar_lea.vmem %s9, 20
    %v4079 = vld [vmem:[%s4078] sm:$0x1]
    %v4081 = vlaneseq
    %v4082 = vshrl.u32 %v4081, 7
    %v4083 = vsub.s32 0, %v4082
    %v4084 = vrot.slane %v4079, %v4083
    %v4102 = vunpack.c.l.b16 %v4054
    %v4103 = vunpack.c.l.b16 %v4055
    %v4104 = vunpack.c.l.b16 %v4056
    %v4105 = vunpack.c.l.b16 %v4057
    %v4106 = vunpack.c.l.b16 %v4058
    %v4107 = vunpack.c.l.b16 %v4059
    %v4108 = vunpack.c.l.b16 %v4060
    %v4109 = vunpack.c.l.b16 %v4061
    %v4110 = vunpack.c.l.b16 %v4062
    %v4111 = vunpack.c.l.b16 %v4063
    %v4112 = vunpack.c.l.b16 %v4064
    %v4113 = vunpack.c.l.b16 %v4065
    %v4114 = vunpack.c.l.b16 %v4066
    %v4115 = vunpack.c.l.b16 %v4067
    %v4116 = vunpack.c.l.b16 %v4068
    %v4117 = vunpack.c.l.b16 %v4069
    %v4118 = vpack.c.b16 %v4103, %v4102
    %v4119 = vpack.c.b16 %v4105, %v4104
    %v4120 = vpack.c.b16 %v4107, %v4106
    %v4121 = vpack.c.b16 %v4109, %v4108
    %v4122 = vpack.c.b16 %v4111, %v4110
    %v4123 = vpack.c.b16 %v4113, %v4112
    %v4124 = vpack.c.b16 %v4115, %v4114
    %v4125 = vpack.c.b16 %v4117, %v4116
    %4134 = vmatprep.subr.bf16.mxu0 0
    %4135 = vmatpush1.bf16.msra.mxu0 %v4118
    %4136 = vmatprep.subr.bf16.mxu0 0
    %4137 = vmatpush1.bf16.msra.mxu0 %v4119
    %4138 = vmatprep.subr.bf16.mxu0 0
    %4139 = vmatpush1.bf16.msra.mxu0 %v4120
    %4140 = vmatprep.subr.bf16.mxu0 0
    %4141 = vmatpush1.bf16.msra.mxu0 %v4121
    %4142 = vmatprep.subr.bf16.mxu0 0
    %4143 = vmatpush1.bf16.msra.mxu0 %v4122
    %4144 = vmatprep.subr.bf16.mxu0 0
    %4145 = vmatpush1.bf16.msra.mxu0 %v4123
    %4146 = vmatprep.subr.bf16.mxu0 0
    %4147 = vmatpush1.bf16.msra.mxu0 %v4124
    %4148 = vmatprep.subr.bf16.mxu0 0
    %4149 = vmatpush1.bf16.msra.mxu0 %v4125
    %4150 = vmatprep.subr.bf16.mxu0 0
    %4151 = vmatpush1.bf16.msra.mxu0 0
    %4152 = vmatprep.subr.bf16.mxu0 0
    %4153 = vmatpush1.bf16.msra.mxu0 0
    %4154 = vmatprep.subr.bf16.mxu0 0
    %4155 = vmatpush1.bf16.msra.mxu0 0
    %4156 = vmatprep.subr.bf16.mxu0 0
    %4157 = vmatpush1.bf16.msra.mxu0 0
    %4158 = vmatprep.subr.bf16.mxu0 0
    %4159 = vmatpush1.bf16.msra.mxu0 0
    %4160 = vmatprep.subr.bf16.mxu0 0
    %4161 = vmatpush1.bf16.msra.mxu0 0
    %4162 = vmatprep.subr.bf16.mxu0 0
    %4163 = vmatpush1.bf16.msra.mxu0 0
    %4164 = vmatprep.subr.bf16.mxu0 0
    %4165 = vmatpush1.bf16.msra.mxu0 0
    %4166 = vmatprep.mubr.bf16.mxu0 0
    %4167 = vmatmul.mubr.bf16.gmra.mrb[0].mxu0 %v4070
    %v4168 = vpop.f32.mrb[0].mxu0
    %v4169 = vadd.f32 %v4084, %v4168
    %v4170 = vpop.f32.mrb[0].mxu0
    %v4171 = vpop.f32.mrb[0].mxu0
    %v4172 = vadd.f32 %v4084, %v4171
    %v4173 = vpop.f32.mrb[0].mxu0
    %4174 = vmatprep.mubr.bf16.mxu0 0
    %4175 = vmatmul.mubr.bf16.gmra.mrb[0].mxu0 %v4071
    %v4176 = vpop.f32.mrb[0].mxu0
    %v4177 = vadd.f32 %v4084, %v4176
    %v4178 = vpop.f32.mrb[0].mxu0
    %v4179 = vpop.f32.mrb[0].mxu0
    %v4180 = vadd.f32 %v4084, %v4179
    %v4181 = vpop.f32.mrb[0].mxu0
    %4182 = vmatprep.mubr.bf16.mxu0 0
    %4183 = vmatmul.mubr.bf16.gmra.mrb[0].mxu0 %v4072
    %v4184 = vpop.f32.mrb[0].mxu0
    %v4185 = vadd.f32 %v4084, %v4184
    %v4186 = vpop.f32.mrb[0].mxu0
    %v4187 = vpop.f32.mrb[0].mxu0
    %v4188 = vadd.f32 %v4084, %v4187
    %v4189 = vpop.f32.mrb[0].mxu0
    %4190 = vmatprep.mubr.bf16.mxu0 0
    %4191 = vmatmul.mubr.bf16.gmra.mrb[0].mxu0 %v4073
    %v4192 = vpop.f32.mrb[0].mxu0
    %v4193 = vadd.f32 %v4084, %v4192
    %v4194 = vpop.f32.mrb[0].mxu0
    %v4195 = vpop.f32.mrb[0].mxu0
    %v4196 = vadd.f32 %v4084, %v4195
    %v4197 = vpop.f32.mrb[0].mxu0
    %4198 = vmatprep.mubr.bf16.mxu0 0
    %4199 = vmatmul.mubr.bf16.gmra.mrb[0].mxu0 %v4074
    %v4200 = vpop.f32.mrb[0].mxu0
    %v4201 = vadd.f32 %v4084, %v4200
    %v4202 = vpop.f32.mrb[0].mxu0
    %v4203 = vpop.f32.mrb[0].mxu0
    %v4204 = vadd.f32 %v4084, %v4203
    %v4205 = vpop.f32.mrb[0].mxu0
    %4206 = vmatprep.mubr.bf16.mxu0 0
    %4207 = vmatmul.mubr.bf16.gmra.mrb[0].mxu0 %v4075
    %v4208 = vpop.f32.mrb[0].mxu0
    %v4209 = vadd.f32 %v4084, %v4208
    %v4210 = vpop.f32.mrb[0].mxu0
    %v4211 = vpop.f32.mrb[0].mxu0
    %v4212 = vadd.f32 %v4084, %v4211
    %v4213 = vpop.f32.mrb[0].mxu0
    %4214 = vmatprep.mubr.bf16.mxu0 0
    %4215 = vmatmul.mubr.bf16.gmra.mrb[0].mxu0 %v4076
    %v4216 = vpop.f32.mrb[0].mxu0
    %v4217 = vadd.f32 %v4084, %v4216
    %v4218 = vpop.f32.mrb[0].mxu0
    %v4219 = vpop.f32.mrb[0].mxu0
    %v4220 = vadd.f32 %v4084, %v4219
    %v4221 = vpop.f32.mrb[0].mxu0
    %4222 = vmatprep.mubr.bf16.mxu0 0
    %4223 = vmatmul.mubr.bf16.gmra.mrb[0].mxu0 %v4077
    %v4224 = vpop.f32.mrb[0].mxu0
    %v4225 = vadd.f32 %v4084, %v4224
    %v4226 = vpop.f32.mrb[0].mxu0
    %v4227 = vpop.f32.mrb[0].mxu0
    %v4228 = vadd.f32 %v4084, %v4227
    %v4229 = vpop.f32.mrb[0].mxu0
    %4230 = vdwg.mxu0
    %v4231 = vadd.f32 %v2700, %v4169
    %v4232 = vadd.f32 %v2701, %v4172
    %v4233 = vadd.f32 %v2702, %v4177
    %v4234 = vadd.f32 %v2703, %v4180
    %v4235 = vadd.f32 %v2704, %v4185
    %v4236 = vadd.f32 %v2705, %v4188
    %v4237 = vadd.f32 %v2706, %v4193
    %v4238 = vadd.f32 %v2707, %v4196
    %v4239 = vadd.f32 %v2708, %v4201
    %v4240 = vadd.f32 %v2709, %v4204
    %v4241 = vadd.f32 %v2710, %v4209
    %v4242 = vadd.f32 %v2711, %v4212
    %v4243 = vadd.f32 %v2712, %v4217
    %v4244 = vadd.f32 %v2713, %v4220
    %v4245 = vadd.f32 %v2714, %v4225
    %v4246 = vadd.f32 %v2715, %v4228
    %v4247 = vadd.f32 %v2716, %v3415
    %v4248 = vadd.f32 %v2717, %v3418
    %v4249 = vadd.f32 %v2718, %v3423
    %v4250 = vadd.f32 %v2719, %v3426
    %v4251 = vadd.f32 %v2720, %v3431
    %v4252 = vadd.f32 %v2721, %v3434
    %v4253 = vpack.c.bf16 %v4232, %v4231
    %v4254 = vpack.c.bf16 %v4234, %v4233
    %v4255 = vpack.c.bf16 %v4236, %v4235
    %v4256 = vpack.c.bf16 %v4238, %v4237
    %v4257 = vpack.c.bf16 %v4240, %v4239
    %v4258 = vpack.c.bf16 %v4242, %v4241
    %v4259 = vpack.c.bf16 %v4244, %v4243
    %v4260 = vpack.c.bf16 %v4246, %v4245
    %v4261 = vpack.c.bf16 %v4248, %v4247
    %v4262 = vpack.c.bf16 %v4250, %v4249
    %v4263 = vpack.c.bf16 %v4252, %v4251
    %4264 = vmatprep.subr.bf16.mxu0 0
    %4265 = vmatpush1.bf16.msra.mxu0 %v4253
    %4266 = vmatprep.subr.bf16.mxu0 0
    %4267 = vmatpush1.bf16.msra.mxu0 %v4254
    %4268 = vmatprep.subr.bf16.mxu0 0
    %4269 = vmatpush1.bf16.msra.mxu0 %v4255
    %4270 = vmatprep.subr.bf16.mxu0 0
    %4271 = vmatpush1.bf16.msra.mxu0 %v4256
    %4272 = vmatprep.subr.bf16.mxu0 0
    %4273 = vmatpush1.bf16.msra.mxu0 %v4257
    %4274 = vmatprep.subr.bf16.mxu0 0
    %4275 = vmatpush1.bf16.msra.mxu0 %v4258
    %4276 = vmatprep.subr.bf16.mxu0 0
    %4277 = vmatpush1.bf16.msra.mxu0 %v4259
    %4278 = vmatprep.subr.bf16.mxu0 0
    %4279 = vmatpush1.bf16.msra.mxu0 %v4260
    %4280 = vmatprep.subr.bf16.mxu0 0
    %4281 = vmatpush1.bf16.msra.mxu0 0
    %4282 = vmatprep.subr.bf16.mxu0 0
    %4283 = vmatpush1.bf16.msra.mxu0 0
    %4284 = vmatprep.subr.bf16.mxu0 0
    %4285 = vmatpush1.bf16.msra.mxu0 0
    %4286 = vmatprep.subr.bf16.mxu0 0
    %4287 = vmatpush1.bf16.msra.mxu0 0
    %4288 = vmatprep.subr.bf16.mxu0 0
    %4289 = vmatpush1.bf16.msra.mxu0 0
    %4290 = vmatprep.subr.bf16.mxu0 0
    %4291 = vmatpush1.bf16.msra.mxu0 0
    %4292 = vmatprep.subr.bf16.mxu0 0
    %4293 = vmatpush1.bf16.msra.mxu0 0
    %4294 = vmatprep.subr.bf16.mxu0 0
    %4295 = vmatpush1.bf16.msra.mxu0 0
    %4296 = vmatprep.mubr.bf16.mxu0 0
    %4297 = vmatmul.mubr.bf16.gmra.mrb[0].mxu0 %v1133
    %v4298 = vpop.f32.mrb[0].mxu0
    %v4299 = vadd.f32 0.0, %v4298
    %v4300 = vpop.f32.mrb[0].mxu0
    %v4301 = vpop.f32.mrb[0].mxu0
    %v4302 = vadd.f32 0.0, %v4301
    %v4303 = vpop.f32.mrb[0].mxu0
    %4304 = vmatprep.mubr.bf16.mxu0 0
    %4305 = vmatmul.mubr.bf16.gmra.mrb[0].mxu0 %v1134
    %v4306 = vpop.f32.mrb[0].mxu0
    %v4307 = vadd.f32 0.0, %v4306
    %v4308 = vpop.f32.mrb[0].mxu0
    %v4309 = vpop.f32.mrb[0].mxu0
    %v4310 = vadd.f32 0.0, %v4309
    %v4311 = vpop.f32.mrb[0].mxu0
    %4312 = vmatprep.mubr.bf16.mxu0 0
    %4313 = vmatmul.mubr.bf16.gmra.mrb[0].mxu0 %v1135
    %v4314 = vpop.f32.mrb[0].mxu0
    %v4315 = vadd.f32 0.0, %v4314
    %v4316 = vpop.f32.mrb[0].mxu0
    %v4317 = vpop.f32.mrb[0].mxu0
    %v4318 = vadd.f32 0.0, %v4317
    %v4319 = vpop.f32.mrb[0].mxu0
    %4320 = vmatprep.mubr.bf16.mxu0 0
    %4321 = vmatmul.mubr.bf16.gmra.mrb[0].mxu0 %v1136
    %v4322 = vpop.f32.mrb[0].mxu0
    %v4323 = vadd.f32 0.0, %v4322
    %v4324 = vpop.f32.mrb[0].mxu0
    %v4325 = vpop.f32.mrb[0].mxu0
    %v4326 = vadd.f32 0.0, %v4325
    %v4327 = vpop.f32.mrb[0].mxu0
    %4328 = vmatprep.mubr.bf16.mxu0 0
    %4329 = vmatmul.mubr.bf16.gmra.mrb[0].mxu0 %v1137
    %v4330 = vpop.f32.mrb[0].mxu0
    %v4331 = vadd.f32 0.0, %v4330
    %v4332 = vpop.f32.mrb[0].mxu0
    %v4333 = vpop.f32.mrb[0].mxu0
    %v4334 = vadd.f32 0.0, %v4333
    %v4335 = vpop.f32.mrb[0].mxu0
    %4336 = vmatprep.mubr.bf16.mxu0 0
    %4337 = vmatmul.mubr.bf16.gmra.mrb[0].mxu0 %v1138
    %v4338 = vpop.f32.mrb[0].mxu0
    %v4339 = vadd.f32 0.0, %v4338
    %v4340 = vpop.f32.mrb[0].mxu0
    %v4341 = vpop.f32.mrb[0].mxu0
    %v4342 = vadd.f32 0.0, %v4341
    %v4343 = vpop.f32.mrb[0].mxu0
    %4344 = vdwg.mxu0
    %v4345 = vpack.c.bf16 %v4326, %v4323
    %v4346 = vpack.c.bf16 %v4334, %v4331
    %v4347 = vpack.c.bf16 %v4342, %v4339
    %v4348 = vpack.c.bf16 %v4302, %v4299
    %v4349 = vpack.c.bf16 %v4310, %v4307
    %v4350 = vpack.c.bf16 %v4318, %v4315
    %s4351 = scalar_lea.vmem [#allocation4], 384
    %v4352 = vld [vmem:[%s4351] sm:$0xf]
    %v4353 = vld [vmem:[%s4351 + $0x4] sm:$0xf]
    %v4354 = vld [vmem:[%s4351 + $0x8] sm:$0xf]
    %v4355 = vld [vmem:[%s4351 + $0xc] sm:$0xf]
    %v4356 = vld [vmem:[%s4351 + $0x10] sm:$0xf]
    %v4357 = vld [vmem:[%s4351 + $0x14] sm:$0xf]
    %v4358 = vld [vmem:[%s4351 + $0x18] sm:$0xf]
    %v4359 = vld [vmem:[%s4351 + $0x1c] sm:$0xf]
    %v4360 = vld [vmem:[%s4351 + $0x20] sm:$0xf]
    %v4361 = vld [vmem:[%s4351 + $0x24] sm:$0xf]
    %v4362 = vld [vmem:[%s4351 + $0x28] sm:$0xf]
    %v4363 = vld [vmem:[%s4351 + $0x2c] sm:$0xf]
    %v4364 = vld [vmem:[%s4351 + $0x30] sm:$0xf]
    %v4365 = vld [vmem:[%s4351 + $0x34] sm:$0xf]
    %v4366 = vld [vmem:[%s4351 + $0x38] sm:$0xf]
    %v4367 = vld [vmem:[%s4351 + $0x3c] sm:$0xf]
    %v4368 = vld [vmem:[%s4351 + $0x40] sm:$0xf]
    %v4369 = vld [vmem:[%s4351 + $0x44] sm:$0xf]
    %v4370 = vld [vmem:[%s4351 + $0x48] sm:$0xf]
    %v4371 = vld [vmem:[%s4351 + $0x4c] sm:$0xf]
    %v4372 = vld [vmem:[%s4351 + $0x50] sm:$0xf]
    %v4373 = vld [vmem:[%s4351 + $0x54] sm:$0xf]
    %v4374 = vld [vmem:[%s4351 + $0x58] sm:$0xf]
    %v4375 = vld [vmem:[%s4351 + $0x5c] sm:$0xf]
    %v4376 = vld [vmem:[%s4351 + $0x60] sm:$0xf]
    %v4377 = vld [vmem:[%s4351 + $0x64] sm:$0xf]
    %v4378 = vld [vmem:[%s4351 + $0x68] sm:$0xf]
    %v4379 = vld [vmem:[%s4351 + $0x6c] sm:$0xf]
    %v4380 = vld [vmem:[%s4351 + $0x70] sm:$0xf]
    %v4381 = vld [vmem:[%s4351 + $0x74] sm:$0xf]
    %v4382 = vld [vmem:[%s4351 + $0x78] sm:$0xf]
    %v4383 = vld [vmem:[%s4351 + $0x7c] sm:$0xf]
    %v4384 = vld [vmem:[%s4351 + $0x80] sm:$0xf]
    %v4385 = vld [vmem:[%s4351 + $0x84] sm:$0xf]
    %v4386 = vld [vmem:[%s4351 + $0x88] sm:$0xf]
    %v4387 = vld [vmem:[%s4351 + $0x8c] sm:$0xf]
    %v4388 = vld [vmem:[%s4351 + $0x90] sm:$0xf]
    %v4389 = vld [vmem:[%s4351 + $0x94] sm:$0xf]
    %v4390 = vld [vmem:[%s4351 + $0x98] sm:$0xf]
    %v4391 = vld [vmem:[%s4351 + $0x9c] sm:$0xf]
    %v4392 = vld [vmem:[%s4351 + $0xa0] sm:$0xf]
    %v4393 = vld [vmem:[%s4351 + $0xa4] sm:$0xf]
    %v4394 = vld [vmem:[%s4351 + $0xa8] sm:$0xf]
    %v4395 = vld [vmem:[%s4351 + $0xac] sm:$0xf]
    %v4396 = vld [vmem:[%s4351 + $0xb0] sm:$0xf]
    %v4397 = vld [vmem:[%s4351 + $0xb4] sm:$0xf]
    %v4398 = vld [vmem:[%s4351 + $0xb8] sm:$0xf]
    %v4399 = vld [vmem:[%s4351 + $0xbc] sm:$0xf]
    %s4400 = scalar_lea.vmem %s9, 21
    %v4401 = vld [vmem:[%s4400] sm:$0x1]
    %v4403 = vlaneseq
    %v4404 = vshrl.u32 %v4403, 7
    %v4405 = vsub.s32 0, %v4404
    %v4406 = vrot.slane %v4401, %v4405
    %v4456 = vunpack.c.l.b16 %v4352
    %v4457 = vunpack.c.l.b16 %v4353
    %v4458 = vunpack.c.l.b16 %v4354
    %v4459 = vunpack.c.l.b16 %v4355
    %v4460 = vunpack.c.l.b16 %v4356
    %v4461 = vunpack.c.l.b16 %v4357
    %v4462 = vunpack.c.l.b16 %v4358
    %v4463 = vunpack.c.l.b16 %v4359
    %v4464 = vunpack.c.l.b16 %v4360
    %v4465 = vunpack.c.l.b16 %v4361
    %v4466 = vunpack.c.l.b16 %v4362
    %v4467 = vunpack.c.l.b16 %v4363
    %v4468 = vunpack.c.l.b16 %v4364
    %v4469 = vunpack.c.l.b16 %v4365
    %v4470 = vunpack.c.l.b16 %v4366
    %v4471 = vunpack.c.l.b16 %v4367
    %v4472 = vunpack.c.l.b16 %v4368
    %v4473 = vunpack.c.l.b16 %v4369
    %v4474 = vunpack.c.l.b16 %v4370
    %v4475 = vunpack.c.l.b16 %v4371
    %v4476 = vunpack.c.l.b16 %v4372
    %v4477 = vunpack.c.l.b16 %v4373
    %v4478 = vunpack.c.l.b16 %v4374
    %v4479 = vunpack.c.l.b16 %v4375
    %v4480 = vunpack.c.l.b16 %v4376
    %v4481 = vunpack.c.l.b16 %v4377
    %v4482 = vunpack.c.l.b16 %v4378
    %v4483 = vunpack.c.l.b16 %v4379
    %v4484 = vunpack.c.l.b16 %v4380
    %v4485 = vunpack.c.l.b16 %v4381
    %v4486 = vunpack.c.l.b16 %v4382
    %v4487 = vunpack.c.l.b16 %v4383
    %v4488 = vunpack.c.l.b16 %v4384
    %v4489 = vunpack.c.l.b16 %v4385
    %v4490 = vunpack.c.l.b16 %v4386
    %v4491 = vunpack.c.l.b16 %v4387
    %v4492 = vunpack.c.l.b16 %v4388
    %v4493 = vunpack.c.l.b16 %v4389
    %v4494 = vunpack.c.l.b16 %v4390
    %v4495 = vunpack.c.l.b16 %v4391
    %v4496 = vunpack.c.l.b16 %v4392
    %v4497 = vunpack.c.l.b16 %v4393
    %v4498 = vunpack.c.l.b16 %v4394
    %v4499 = vunpack.c.l.b16 %v4395
    %v4500 = vunpack.c.l.b16 %v4396
    %v4501 = vunpack.c.l.b16 %v4397
    %v4502 = vunpack.c.l.b16 %v4398
    %v4503 = vunpack.c.l.b16 %v4399
    %v4504 = vpack.c.b16 %v4457, %v4456
    %v4505 = vpack.c.b16 %v4459, %v4458
    %v4506 = vpack.c.b16 %v4461, %v4460
    %v4507 = vpack.c.b16 %v4463, %v4462
    %v4508 = vpack.c.b16 %v4465, %v4464
    %v4509 = vpack.c.b16 %v4467, %v4466
    %v4510 = vpack.c.b16 %v4469, %v4468
    %v4511 = vpack.c.b16 %v4471, %v4470
    %v4512 = vpack.c.b16 %v4473, %v4472
    %v4513 = vpack.c.b16 %v4475, %v4474
    %v4514 = vpack.c.b16 %v4477, %v4476
    %v4515 = vpack.c.b16 %v4479, %v4478
    %v4516 = vpack.c.b16 %v4481, %v4480
    %v4517 = vpack.c.b16 %v4483, %v4482
    %v4518 = vpack.c.b16 %v4485, %v4484
    %v4519 = vpack.c.b16 %v4487, %v4486
    %v4520 = vpack.c.b16 %v4489, %v4488
    %v4521 = vpack.c.b16 %v4491, %v4490
    %v4522 = vpack.c.b16 %v4493, %v4492
    %v4523 = vpack.c.b16 %v4495, %v4494
    %v4524 = vpack.c.b16 %v4497, %v4496
    %v4525 = vpack.c.b16 %v4499, %v4498
    %v4526 = vpack.c.b16 %v4501, %v4500
    %v4527 = vpack.c.b16 %v4503, %v4502
    %4552 = vmatprep.subr.bf16.mxu0 0
    %4553 = vmatpush1.bf16.msra.mxu0 %v4504
    %4554 = vmatprep.subr.bf16.mxu0 0
    %4555 = vmatpush1.bf16.msra.mxu0 %v4505
    %4556 = vmatprep.subr.bf16.mxu0 0
    %4557 = vmatpush1.bf16.msra.mxu0 %v4506
    %4558 = vmatprep.subr.bf16.mxu0 0
    %4559 = vmatpush1.bf16.msra.mxu0 %v4507
    %4560 = vmatprep.subr.bf16.mxu0 0
    %4561 = vmatpush1.bf16.msra.mxu0 %v4508
    %4562 = vmatprep.subr.bf16.mxu0 0
    %4563 = vmatpush1.bf16.msra.mxu0 %v4509
    %4564 = vmatprep.subr.bf16.mxu0 0
    %4565 = vmatpush1.bf16.msra.mxu0 %v4510
    %4566 = vmatprep.subr.bf16.mxu0 0
    %4567 = vmatpush1.bf16.msra.mxu0 %v4511
    %4568 = vmatprep.subr.bf16.mxu0 0
    %4569 = vmatpush1.bf16.msra.mxu0 %v4512
    %4570 = vmatprep.subr.bf16.mxu0 0
    %4571 = vmatpush1.bf16.msra.mxu0 %v4513
    %4572 = vmatprep.subr.bf16.mxu0 0
    %4573 = vmatpush1.bf16.msra.mxu0 %v4514
    %4574 = vmatprep.subr.bf16.mxu0 0
    %4575 = vmatpush1.bf16.msra.mxu0 %v4515
    %4576 = vmatprep.subr.bf16.mxu0 0
    %4577 = vmatpush1.bf16.msra.mxu0 %v4516
    %4578 = vmatprep.subr.bf16.mxu0 0
    %4579 = vmatpush1.bf16.msra.mxu0 %v4517
    %4580 = vmatprep.subr.bf16.mxu0 0
    %4581 = vmatpush1.bf16.msra.mxu0 %v4518
    %4582 = vmatprep.subr.bf16.mxu0 0
    %4583 = vmatpush1.bf16.msra.mxu0 %v4519
    %4584 = vmatprep.mubr.bf16.mxu0 %v4348
    %4585 = vmatmul.mubr.bf16.gmra.mrb[0].mxu0 %v4345
    %v4586 = vpop.f32.mrb[0].mxu0
    %v4587 = vadd.f32 %v4406, %v4586
    %v4588 = vpop.f32.mrb[0].mxu0
    %v4589 = vpop.f32.mrb[0].mxu0
    %v4590 = vadd.f32 %v4406, %v4589
    %v4591 = vpop.f32.mrb[0].mxu0
    %4592 = vmatprep.mubr.bf16.mxu0 %v4349
    %4593 = vmatmul.mubr.bf16.gmra.mrb[0].mxu0 %v4346
    %v4594 = vpop.f32.mrb[0].mxu0
    %v4595 = vadd.f32 %v4406, %v4594
    %v4596 = vpop.f32.mrb[0].mxu0
    %v4597 = vpop.f32.mrb[0].mxu0
    %v4598 = vadd.f32 %v4406, %v4597
    %v4599 = vpop.f32.mrb[0].mxu0
    %4600 = vmatprep.mubr.bf16.mxu0 %v4350
    %4601 = vmatmul.mubr.bf16.gmra.mrb[0].mxu0 %v4347
    %v4602 = vpop.f32.mrb[0].mxu0
    %v4603 = vadd.f32 %v4406, %v4602
    %v4604 = vpop.f32.mrb[0].mxu0
    %v4605 = vpop.f32.mrb[0].mxu0
    %v4606 = vadd.f32 %v4406, %v4605
    %v4607 = vpop.f32.mrb[0].mxu0
    %4608 = vdwg.mxu0
    %4609 = vmatprep.subr.bf16.mxu0 0
    %4610 = vmatpush1.bf16.msra.mxu0 %v4520
    %4611 = vmatprep.subr.bf16.mxu0 0
    %4612 = vmatpush1.bf16.msra.mxu0 %v4521
    %4613 = vmatprep.subr.bf16.mxu0 0
    %4614 = vmatpush1.bf16.msra.mxu0 %v4522
    %4615 = vmatprep.subr.bf16.mxu0 0
    %4616 = vmatpush1.bf16.msra.mxu0 %v4523
    %4617 = vmatprep.subr.bf16.mxu0 0
    %4618 = vmatpush1.bf16.msra.mxu0 %v4524
    %4619 = vmatprep.subr.bf16.mxu0 0
    %4620 = vmatpush1.bf16.msra.mxu0 %v4525
    %4621 = vmatprep.subr.bf16.mxu0 0
    %4622 = vmatpush1.bf16.msra.mxu0 %v4526
    %4623 = vmatprep.subr.bf16.mxu0 0
    %4624 = vmatpush1.bf16.msra.mxu0 %v4527
    %4625 = vmatprep.subr.bf16.mxu0 0
    %4626 = vmatpush1.bf16.msra.mxu0 0
    %4627 = vmatprep.subr.bf16.mxu0 0
    %4628 = vmatpush1.bf16.msra.mxu0 0
    %4629 = vmatprep.subr.bf16.mxu0 0
    %4630 = vmatpush1.bf16.msra.mxu0 0
    %4631 = vmatprep.subr.bf16.mxu0 0
    %4632 = vmatpush1.bf16.msra.mxu0 0
    %4633 = vmatprep.subr.bf16.mxu0 0
    %4634 = vmatpush1.bf16.msra.mxu0 0
    %4635 = vmatprep.subr.bf16.mxu0 0
    %4636 = vmatpush1.bf16.msra.mxu0 0
    %4637 = vmatprep.subr.bf16.mxu0 0
    %4638 = vmatpush1.bf16.msra.mxu0 0
    %4639 = vmatprep.subr.bf16.mxu0 0
    %4640 = vmatpush1.bf16.msra.mxu0 0
    %4641 = vmatprep.mubr.bf16.mxu0 0
    %4642 = vmatmul.mubr.bf16.gmra.mrb[0].mxu0 %v4261
    %v4643 = vpop.f32.mrb[0].mxu0
    %v4644 = vadd.f32 %v4587, %v4643
    %v4645 = vpop.f32.mrb[0].mxu0
    %v4646 = vpop.f32.mrb[0].mxu0
    %v4647 = vadd.f32 %v4590, %v4646
    %v4648 = vpop.f32.mrb[0].mxu0
    %4649 = vmatprep.mubr.bf16.mxu0 0
    %4650 = vmatmul.mubr.bf16.gmra.mrb[0].mxu0 %v4262
    %v4651 = vpop.f32.mrb[0].mxu0
    %v4652 = vadd.f32 %v4595, %v4651
    %v4653 = vpop.f32.mrb[0].mxu0
    %v4654 = vpop.f32.mrb[0].mxu0
    %v4655 = vadd.f32 %v4598, %v4654
    %v4656 = vpop.f32.mrb[0].mxu0
    %4657 = vmatprep.mubr.bf16.mxu0 0
    %4658 = vmatmul.mubr.bf16.gmra.mrb[0].mxu0 %v4263
    %v4659 = vpop.f32.mrb[0].mxu0
    %v4660 = vadd.f32 %v4603, %v4659
    %v4661 = vpop.f32.mrb[0].mxu0
    %v4662 = vpop.f32.mrb[0].mxu0
    %v4663 = vadd.f32 %v4606, %v4662
    %v4664 = vpop.f32.mrb[0].mxu0
    %4665 = vdwg.mxu0
    %vm4666 = vcmp.gt.f32.partialorder %v4644, 0.0
    %vm4667 = vcmp.gt.f32.partialorder %v4647, 0.0
    %vm4668 = vcmp.gt.f32.partialorder %v4652, 0.0
    %vm4669 = vcmp.gt.f32.partialorder %v4655, 0.0
    %vm4670 = vcmp.gt.f32.partialorder %v4660, 0.0
    %vm4671 = vcmp.gt.f32.partialorder %v4663, 0.0
    %v4672 = vmul.f32 %v4644, 0.01
    %v4673 = vmul.f32 %v4647, 0.01
    %v4674 = vmul.f32 %v4652, 0.01
    %v4675 = vmul.f32 %v4655, 0.01
    %v4676 = vmul.f32 %v4660, 0.01
    %v4677 = vmul.f32 %v4663, 0.01
    %v4678 = vsel %vm4666, %v4644, %v4672
    %v4679 = vsel %vm4667, %v4647, %v4673
    %v4680 = vsel %vm4668, %v4652, %v4674
    %v4681 = vsel %vm4669, %v4655, %v4675
    %v4682 = vsel %vm4670, %v4660, %v4676
    %v4683 = vsel %vm4671, %v4663, %v4677
    %s4684 = scalar_lea.vmem [#allocation2], 960
    %v4685 = vld [vmem:[%s4684] sm:$0xf]
    %v4686 = vld [vmem:[%s4684 + $0x4] sm:$0xf]
    %v4687 = vld [vmem:[%s4684 + $0x8] sm:$0xf]
    %v4688 = vld [vmem:[%s4684 + $0xc] sm:$0xf]
    %v4689 = vld [vmem:[%s4684 + $0x10] sm:$0xf]
    %v4690 = vld [vmem:[%s4684 + $0x14] sm:$0xf]
    %v4691 = vld [vmem:[%s4684 + $0x18] sm:$0xf]
    %v4692 = vld [vmem:[%s4684 + $0x1c] sm:$0xf]
    %v4693 = vld [vmem:[%s4684 + $0x20] sm:$0xf]
    %v4694 = vld [vmem:[%s4684 + $0x24] sm:$0xf]
    %v4695 = vld [vmem:[%s4684 + $0x28] sm:$0xf]
    %v4696 = vld [vmem:[%s4684 + $0x2c] sm:$0xf]
    %v4697 = vld [vmem:[%s4684 + $0x30] sm:$0xf]
    %v4698 = vld [vmem:[%s4684 + $0x34] sm:$0xf]
    %v4699 = vld [vmem:[%s4684 + $0x38] sm:$0xf]
    %v4700 = vld [vmem:[%s4684 + $0x3c] sm:$0xf]
    %v4701 = vpack.c.bf16 %v4679, %v4678
    %v4702 = vpack.c.bf16 %v4681, %v4680
    %v4703 = vpack.c.bf16 %v4683, %v4682
    %s4704 = scalar_lea.vmem %s9, 22
    %v4705 = vld [vmem:[%s4704] sm:$0x1]
    %v4707 = vlaneseq
    %v4708 = vshrl.u32 %v4707, 7
    %v4709 = vsub.s32 0, %v4708
    %v4710 = vrot.slane %v4705, %v4709
    %v4728 = vunpack.c.l.b16 %v4685
    %v4729 = vunpack.c.l.b16 %v4686
    %v4730 = vunpack.c.l.b16 %v4687
    %v4731 = vunpack.c.l.b16 %v4688
    %v4732 = vunpack.c.l.b16 %v4689
    %v4733 = vunpack.c.l.b16 %v4690
    %v4734 = vunpack.c.l.b16 %v4691
    %v4735 = vunpack.c.l.b16 %v4692
    %v4736 = vunpack.c.l.b16 %v4693
    %v4737 = vunpack.c.l.b16 %v4694
    %v4738 = vunpack.c.l.b16 %v4695
    %v4739 = vunpack.c.l.b16 %v4696
    %v4740 = vunpack.c.l.b16 %v4697
    %v4741 = vunpack.c.l.b16 %v4698
    %v4742 = vunpack.c.l.b16 %v4699
    %v4743 = vunpack.c.l.b16 %v4700
    %v4744 = vpack.c.b16 %v4729, %v4728
    %v4745 = vpack.c.b16 %v4731, %v4730
    %v4746 = vpack.c.b16 %v4733, %v4732
    %v4747 = vpack.c.b16 %v4735, %v4734
    %v4748 = vpack.c.b16 %v4737, %v4736
    %v4749 = vpack.c.b16 %v4739, %v4738
    %v4750 = vpack.c.b16 %v4741, %v4740
    %v4751 = vpack.c.b16 %v4743, %v4742
    %4760 = vmatprep.subr.bf16.mxu0 0
    %4761 = vmatpush1.bf16.msra.mxu0 %v4744
    %4762 = vmatprep.subr.bf16.mxu0 0
    %4763 = vmatpush1.bf16.msra.mxu0 %v4745
    %4764 = vmatprep.subr.bf16.mxu0 0
    %4765 = vmatpush1.bf16.msra.mxu0 %v4746
    %4766 = vmatprep.subr.bf16.mxu0 0
    %4767 = vmatpush1.bf16.msra.mxu0 %v4747
    %4768 = vmatprep.subr.bf16.mxu0 0
    %4769 = vmatpush1.bf16.msra.mxu0 %v4748
    %4770 = vmatprep.subr.bf16.mxu0 0
    %4771 = vmatpush1.bf16.msra.mxu0 %v4749
    %4772 = vmatprep.subr.bf16.mxu0 0
    %4773 = vmatpush1.bf16.msra.mxu0 %v4750
    %4774 = vmatprep.subr.bf16.mxu0 0
    %4775 = vmatpush1.bf16.msra.mxu0 %v4751
    %4776 = vmatprep.subr.bf16.mxu0 0
    %4777 = vmatpush1.bf16.msra.mxu0 0
    %4778 = vmatprep.subr.bf16.mxu0 0
    %4779 = vmatpush1.bf16.msra.mxu0 0
    %4780 = vmatprep.subr.bf16.mxu0 0
    %4781 = vmatpush1.bf16.msra.mxu0 0
    %4782 = vmatprep.subr.bf16.mxu0 0
    %4783 = vmatpush1.bf16.msra.mxu0 0
    %4784 = vmatprep.subr.bf16.mxu0 0
    %4785 = vmatpush1.bf16.msra.mxu0 0
    %4786 = vmatprep.subr.bf16.mxu0 0
    %4787 = vmatpush1.bf16.msra.mxu0 0
    %4788 = vmatprep.subr.bf16.mxu0 0
    %4789 = vmatpush1.bf16.msra.mxu0 0
    %4790 = vmatprep.subr.bf16.mxu0 0
    %4791 = vmatpush1.bf16.msra.mxu0 0
    %4792 = vmatprep.mubr.bf16.mxu0 0
    %4793 = vmatmul.mubr.bf16.gmra.mrb[0].mxu0 %v4701
    %v4794 = vpop.f32.mrb[0].mxu0
    %v4795 = vadd.f32 %v4710, %v4794
    %v4796 = vpop.f32.mrb[0].mxu0
    %v4797 = vpop.f32.mrb[0].mxu0
    %v4798 = vadd.f32 %v4710, %v4797
    %v4799 = vpop.f32.mrb[0].mxu0
    %4800 = vmatprep.mubr.bf16.mxu0 0
    %4801 = vmatmul.mubr.bf16.gmra.mrb[0].mxu0 %v4702
    %v4802 = vpop.f32.mrb[0].mxu0
    %v4803 = vadd.f32 %v4710, %v4802
    %v4804 = vpop.f32.mrb[0].mxu0
    %v4805 = vpop.f32.mrb[0].mxu0
    %v4806 = vadd.f32 %v4710, %v4805
    %v4807 = vpop.f32.mrb[0].mxu0
    %4808 = vmatprep.mubr.bf16.mxu0 0
    %4809 = vmatmul.mubr.bf16.gmra.mrb[0].mxu0 %v4703
    %v4810 = vpop.f32.mrb[0].mxu0
    %v4811 = vadd.f32 %v4710, %v4810
    %v4812 = vpop.f32.mrb[0].mxu0
    %v4813 = vpop.f32.mrb[0].mxu0
    %v4814 = vadd.f32 %v4710, %v4813
    %v4815 = vpop.f32.mrb[0].mxu0
    %4816 = vdwg.mxu0
    %vm4817 = vcmp.gt.f32.partialorder %v4795, 0.0
    %vm4818 = vcmp.gt.f32.partialorder %v4798, 0.0
    %vm4819 = vcmp.gt.f32.partialorder %v4803, 0.0
    %vm4820 = vcmp.gt.f32.partialorder %v4806, 0.0
    %vm4821 = vcmp.gt.f32.partialorder %v4811, 0.0
    %vm4822 = vcmp.gt.f32.partialorder %v4814, 0.0
    %v4823 = vmul.f32 %v4795, 0.01
    %v4824 = vmul.f32 %v4798, 0.01
    %v4825 = vmul.f32 %v4803, 0.01
    %v4826 = vmul.f32 %v4806, 0.01
    %v4827 = vmul.f32 %v4811, 0.01
    %v4828 = vmul.f32 %v4814, 0.01
    %v4829 = vsel %vm4817, %v4795, %v4823
    %v4830 = vsel %vm4818, %v4798, %v4824
    %v4831 = vsel %vm4819, %v4803, %v4825
    %v4832 = vsel %vm4820, %v4806, %v4826
    %v4833 = vsel %vm4821, %v4811, %v4827
    %v4834 = vsel %vm4822, %v4814, %v4828
    %s4835 = scalar_lea.vmem [#allocation2], 1024
    %v4836 = vld [vmem:[%s4835] sm:$0xf]
    %v4837 = vld [vmem:[%s4835 + $0x4] sm:$0xf]
    %v4838 = vld [vmem:[%s4835 + $0x8] sm:$0xf]
    %v4839 = vld [vmem:[%s4835 + $0xc] sm:$0xf]
    %v4840 = vld [vmem:[%s4835 + $0x10] sm:$0xf]
    %v4841 = vld [vmem:[%s4835 + $0x14] sm:$0xf]
    %v4842 = vld [vmem:[%s4835 + $0x18] sm:$0xf]
    %v4843 = vld [vmem:[%s4835 + $0x1c] sm:$0xf]
    %v4844 = vld [vmem:[%s4835 + $0x20] sm:$0xf]
    %v4845 = vld [vmem:[%s4835 + $0x24] sm:$0xf]
    %v4846 = vld [vmem:[%s4835 + $0x28] sm:$0xf]
    %v4847 = vld [vmem:[%s4835 + $0x2c] sm:$0xf]
    %v4848 = vld [vmem:[%s4835 + $0x30] sm:$0xf]
    %v4849 = vld [vmem:[%s4835 + $0x34] sm:$0xf]
    %v4850 = vld [vmem:[%s4835 + $0x38] sm:$0xf]
    %v4851 = vld [vmem:[%s4835 + $0x3c] sm:$0xf]
    %v4852 = vpack.c.bf16 %v4830, %v4829
    %v4853 = vpack.c.bf16 %v4832, %v4831
    %v4854 = vpack.c.bf16 %v4834, %v4833
    %s4855 = scalar_lea.vmem %s9, 23
    %v4856 = vld [vmem:[%s4855] sm:$0x1]
    %v4858 = vlaneseq
    %v4859 = vshrl.u32 %v4858, 7
    %v4860 = vsub.s32 0, %v4859
    %v4861 = vrot.slane %v4856, %v4860
    %v4879 = vunpack.c.l.b16 %v4836
    %v4880 = vunpack.c.l.b16 %v4837
    %v4881 = vunpack.c.l.b16 %v4838
    %v4882 = vunpack.c.l.b16 %v4839
    %v4883 = vunpack.c.l.b16 %v4840
    %v4884 = vunpack.c.l.b16 %v4841
    %v4885 = vunpack.c.l.b16 %v4842
    %v4886 = vunpack.c.l.b16 %v4843
    %v4887 = vunpack.c.l.b16 %v4844
    %v4888 = vunpack.c.l.b16 %v4845
    %v4889 = vunpack.c.l.b16 %v4846
    %v4890 = vunpack.c.l.b16 %v4847
    %v4891 = vunpack.c.l.b16 %v4848
    %v4892 = vunpack.c.l.b16 %v4849
    %v4893 = vunpack.c.l.b16 %v4850
    %v4894 = vunpack.c.l.b16 %v4851
    %v4895 = vpack.c.b16 %v4880, %v4879
    %v4896 = vpack.c.b16 %v4882, %v4881
    %v4897 = vpack.c.b16 %v4884, %v4883
    %v4898 = vpack.c.b16 %v4886, %v4885
    %v4899 = vpack.c.b16 %v4888, %v4887
    %v4900 = vpack.c.b16 %v4890, %v4889
    %v4901 = vpack.c.b16 %v4892, %v4891
    %v4902 = vpack.c.b16 %v4894, %v4893
    %4911 = vmatprep.subr.bf16.mxu0 0
    %4912 = vmatpush1.bf16.msra.mxu0 %v4895
    %4913 = vmatprep.subr.bf16.mxu0 0
    %4914 = vmatpush1.bf16.msra.mxu0 %v4896
    %4915 = vmatprep.subr.bf16.mxu0 0
    %4916 = vmatpush1.bf16.msra.mxu0 %v4897
    %4917 = vmatprep.subr.bf16.mxu0 0
    %4918 = vmatpush1.bf16.msra.mxu0 %v4898
    %4919 = vmatprep.subr.bf16.mxu0 0
    %4920 = vmatpush1.bf16.msra.mxu0 %v4899
    %4921 = vmatprep.subr.bf16.mxu0 0
    %4922 = vmatpush1.bf16.msra.mxu0 %v4900
    %4923 = vmatprep.subr.bf16.mxu0 0
    %4924 = vmatpush1.bf16.msra.mxu0 %v4901
    %4925 = vmatprep.subr.bf16.mxu0 0
    %4926 = vmatpush1.bf16.msra.mxu0 %v4902
    %4927 = vmatprep.subr.bf16.mxu0 0
    %4928 = vmatpush1.bf16.msra.mxu0 0
    %4929 = vmatprep.subr.bf16.mxu0 0
    %4930 = vmatpush1.bf16.msra.mxu0 0
    %4931 = vmatprep.subr.bf16.mxu0 0
    %4932 = vmatpush1.bf16.msra.mxu0 0
    %4933 = vmatprep.subr.bf16.mxu0 0
    %4934 = vmatpush1.bf16.msra.mxu0 0
    %4935 = vmatprep.subr.bf16.mxu0 0
    %4936 = vmatpush1.bf16.msra.mxu0 0
    %4937 = vmatprep.subr.bf16.mxu0 0
    %4938 = vmatpush1.bf16.msra.mxu0 0
    %4939 = vmatprep.subr.bf16.mxu0 0
    %4940 = vmatpush1.bf16.msra.mxu0 0
    %4941 = vmatprep.subr.bf16.mxu0 0
    %4942 = vmatpush1.bf16.msra.mxu0 0
    %4943 = vmatprep.mubr.bf16.mxu0 0
    %4944 = vmatmul.mubr.bf16.gmra.mrb[0].mxu0 %v4852
    %v4945 = vpop.f32.mrb[0].mxu0
    %v4946 = vadd.f32 %v4861, %v4945
    %v4947 = vpop.f32.mrb[0].mxu0
    %v4948 = vpop.f32.mrb[0].mxu0
    %v4949 = vadd.f32 %v4861, %v4948
    %v4950 = vpop.f32.mrb[0].mxu0
    %4951 = vmatprep.mubr.bf16.mxu0 0
    %4952 = vmatmul.mubr.bf16.gmra.mrb[0].mxu0 %v4853
    %v4953 = vpop.f32.mrb[0].mxu0
    %v4954 = vadd.f32 %v4861, %v4953
    %v4955 = vpop.f32.mrb[0].mxu0
    %v4956 = vpop.f32.mrb[0].mxu0
    %v4957 = vadd.f32 %v4861, %v4956
    %v4958 = vpop.f32.mrb[0].mxu0
    %4959 = vmatprep.mubr.bf16.mxu0 0
    %4960 = vmatmul.mubr.bf16.gmra.mrb[0].mxu0 %v4854
    %v4961 = vpop.f32.mrb[0].mxu0
    %v4962 = vadd.f32 %v4861, %v4961
    %v4963 = vpop.f32.mrb[0].mxu0
    %v4964 = vpop.f32.mrb[0].mxu0
    %v4965 = vadd.f32 %v4861, %v4964
    %v4966 = vpop.f32.mrb[0].mxu0
    %4967 = vdwg.mxu0
    %v4968 = vpack.c.bf16 %v4949, %v4946
    %v4969 = vpack.c.bf16 %v4957, %v4954
    %v4970 = vpack.c.bf16 %v4965, %v4962
    %4971 = vmatprep.subr.bf16.mxu0 0
    %4972 = vmatpush1.bf16.msra.mxu0 %v4968
    %4973 = vmatprep.subr.bf16.mxu0 0
    %4974 = vmatpush1.bf16.msra.mxu0 %v4969
    %4975 = vmatprep.subr.bf16.mxu0 0
    %4976 = vmatpush1.bf16.msra.mxu0 %v4970
    %4977 = vmatprep.subr.bf16.mxu0 0
    %4978 = vmatpush1.bf16.msra.mxu0 0
    %4979 = vmatprep.subr.bf16.mxu0 0
    %4980 = vmatpush1.bf16.msra.mxu0 0
    %4981 = vmatprep.subr.bf16.mxu0 0
    %4982 = vmatpush1.bf16.msra.mxu0 0
    %4983 = vmatprep.subr.bf16.mxu0 0
    %4984 = vmatpush1.bf16.msra.mxu0 0
    %4985 = vmatprep.subr.bf16.mxu0 0
    %4986 = vmatpush1.bf16.msra.mxu0 0
    %4987 = vmatprep.subr.bf16.mxu0 0
    %4988 = vmatpush1.bf16.msra.mxu0 0
    %4989 = vmatprep.subr.bf16.mxu0 0
    %4990 = vmatpush1.bf16.msra.mxu0 0
    %4991 = vmatprep.subr.bf16.mxu0 0
    %4992 = vmatpush1.bf16.msra.mxu0 0
    %4993 = vmatprep.subr.bf16.mxu0 0
    %4994 = vmatpush1.bf16.msra.mxu0 0
    %4995 = vmatprep.subr.bf16.mxu0 0
    %4996 = vmatpush1.bf16.msra.mxu0 0
    %4997 = vmatprep.subr.bf16.mxu0 0
    %4998 = vmatpush1.bf16.msra.mxu0 0
    %4999 = vmatprep.subr.bf16.mxu0 0
    %5000 = vmatpush1.bf16.msra.mxu0 0
    %5001 = vmatprep.subr.bf16.mxu0 0
    %5002 = vmatpush1.bf16.msra.mxu0 0
    %5003 = vmatprep.mubr.bf16.mxu0 0
    %5004 = vmatmul.mubr.bf16.gmra.mrb[0].mxu0 %v1887
    %v5005 = vpop.f32.mrb[0].mxu0
    %v5006 = vadd.f32 0.0, %v5005
    %v5007 = vpop.f32.mrb[0].mxu0
    %v5008 = vpop.f32.mrb[0].mxu0
    %v5009 = vadd.f32 0.0, %v5008
    %v5010 = vpop.f32.mrb[0].mxu0
    %5011 = vmatprep.mubr.bf16.mxu0 0
    %5012 = vmatmul.mubr.bf16.gmra.mrb[0].mxu0 %v1890
    %v5013 = vpop.f32.mrb[0].mxu0
    %v5014 = vadd.f32 0.0, %v5013
    %v5015 = vpop.f32.mrb[0].mxu0
    %v5016 = vpop.f32.mrb[0].mxu0
    %v5017 = vadd.f32 0.0, %v5016
    %v5018 = vpop.f32.mrb[0].mxu0
    %5019 = vmatprep.mubr.bf16.mxu0 0
    %5020 = vmatmul.mubr.bf16.gmra.mrb[0].mxu0 %v1893
    %v5021 = vpop.f32.mrb[0].mxu0
    %v5022 = vadd.f32 0.0, %v5021
    %v5023 = vpop.f32.mrb[0].mxu0
    %v5024 = vpop.f32.mrb[0].mxu0
    %v5025 = vadd.f32 0.0, %v5024
    %v5026 = vpop.f32.mrb[0].mxu0
    %5027 = vmatprep.mubr.bf16.mxu0 0
    %5028 = vmatmul.mubr.bf16.gmra.mrb[0].mxu0 %v1896
    %v5029 = vpop.f32.mrb[0].mxu0
    %v5030 = vadd.f32 0.0, %v5029
    %v5031 = vpop.f32.mrb[0].mxu0
    %v5032 = vpop.f32.mrb[0].mxu0
    %v5033 = vadd.f32 0.0, %v5032
    %v5034 = vpop.f32.mrb[0].mxu0
    %5035 = vmatprep.mubr.bf16.mxu0 0
    %5036 = vmatmul.mubr.bf16.gmra.mrb[0].mxu0 %v1899
    %v5037 = vpop.f32.mrb[0].mxu0
    %v5038 = vadd.f32 0.0, %v5037
    %v5039 = vpop.f32.mrb[0].mxu0
    %v5040 = vpop.f32.mrb[0].mxu0
    %v5041 = vadd.f32 0.0, %v5040
    %v5042 = vpop.f32.mrb[0].mxu0
    %5043 = vmatprep.mubr.bf16.mxu0 0
    %5044 = vmatmul.mubr.bf16.gmra.mrb[0].mxu0 %v1902
    %v5045 = vpop.f32.mrb[0].mxu0
    %v5046 = vadd.f32 0.0, %v5045
    %v5047 = vpop.f32.mrb[0].mxu0
    %v5048 = vpop.f32.mrb[0].mxu0
    %v5049 = vadd.f32 0.0, %v5048
    %v5050 = vpop.f32.mrb[0].mxu0
    %5051 = vmatprep.mubr.bf16.mxu0 0
    %5052 = vmatmul.mubr.bf16.gmra.mrb[0].mxu0 %v1905
    %v5053 = vpop.f32.mrb[0].mxu0
    %v5054 = vadd.f32 0.0, %v5053
    %v5055 = vpop.f32.mrb[0].mxu0
    %v5056 = vpop.f32.mrb[0].mxu0
    %v5057 = vadd.f32 0.0, %v5056
    %v5058 = vpop.f32.mrb[0].mxu0
    %5059 = vmatprep.mubr.bf16.mxu0 0
    %5060 = vmatmul.mubr.bf16.gmra.mrb[0].mxu0 %v1908
    %v5061 = vpop.f32.mrb[0].mxu0
    %v5062 = vadd.f32 0.0, %v5061
    %v5063 = vpop.f32.mrb[0].mxu0
    %v5064 = vpop.f32.mrb[0].mxu0
    %v5065 = vadd.f32 0.0, %v5064
    %v5066 = vpop.f32.mrb[0].mxu0
    %5067 = vdwg.mxu0
    %v5068 = vpack.c.bf16 %v5009, %v5006
    %v5069 = vpack.c.bf16 %v5017, %v5014
    %v5070 = vpack.c.bf16 %v5025, %v5022
    %v5071 = vpack.c.bf16 %v5033, %v5030
    %v5072 = vpack.c.bf16 %v5041, %v5038
    %v5073 = vpack.c.bf16 %v5049, %v5046
    %v5074 = vpack.c.bf16 %v5057, %v5054
    %v5075 = vpack.c.bf16 %v5065, %v5062
    %s5076 = scalar_lea.vmem %s8, 256
    %v5077 = vld [vmem:[%s5076] sm:$0xf]
    %v5078 = vld [vmem:[%s5076 + $0x4] sm:$0xf]
    %v5079 = vld [vmem:[%s5076 + $0x8] sm:$0xf]
    %v5080 = vld [vmem:[%s5076 + $0xc] sm:$0xf]
    %v5081 = vld [vmem:[%s5076 + $0x10] sm:$0xf]
    %v5082 = vld [vmem:[%s5076 + $0x14] sm:$0xf]
    %v5083 = vld [vmem:[%s5076 + $0x18] sm:$0xf]
    %v5084 = vld [vmem:[%s5076 + $0x1c] sm:$0xf]
    %v5085 = vld [vmem:[%s5076 + $0x20] sm:$0xf]
    %v5086 = vld [vmem:[%s5076 + $0x24] sm:$0xf]
    %v5087 = vld [vmem:[%s5076 + $0x28] sm:$0xf]
    %v5088 = vld [vmem:[%s5076 + $0x2c] sm:$0xf]
    %v5089 = vld [vmem:[%s5076 + $0x30] sm:$0xf]
    %v5090 = vld [vmem:[%s5076 + $0x34] sm:$0xf]
    %v5091 = vld [vmem:[%s5076 + $0x38] sm:$0xf]
    %v5092 = vld [vmem:[%s5076 + $0x3c] sm:$0xf]
    %v5093 = vld [vmem:[%s5076 + $0x40] sm:$0xf]
    %v5094 = vld [vmem:[%s5076 + $0x44] sm:$0xf]
    %v5095 = vld [vmem:[%s5076 + $0x48] sm:$0xf]
    %v5096 = vld [vmem:[%s5076 + $0x4c] sm:$0xf]
    %v5097 = vld [vmem:[%s5076 + $0x50] sm:$0xf]
    %v5098 = vld [vmem:[%s5076 + $0x54] sm:$0xf]
    %v5099 = vld [vmem:[%s5076 + $0x58] sm:$0xf]
    %v5100 = vld [vmem:[%s5076 + $0x5c] sm:$0xf]
    %v5101 = vld [vmem:[%s5076 + $0x60] sm:$0xf]
    %v5102 = vld [vmem:[%s5076 + $0x64] sm:$0xf]
    %v5103 = vld [vmem:[%s5076 + $0x68] sm:$0xf]
    %v5104 = vld [vmem:[%s5076 + $0x6c] sm:$0xf]
    %v5105 = vld [vmem:[%s5076 + $0x70] sm:$0xf]
    %v5106 = vld [vmem:[%s5076 + $0x74] sm:$0xf]
    %v5107 = vld [vmem:[%s5076 + $0x78] sm:$0xf]
    %v5108 = vld [vmem:[%s5076 + $0x7c] sm:$0xf]
    %s5109 = scalar_lea.vmem %s9, 24
    %v5110 = vld [vmem:[%s5109] sm:$0x1]
    %v5112 = vlaneseq
    %v5113 = vshrl.u32 %v5112, 7
    %v5114 = vsub.s32 0, %v5113
    %v5115 = vrot.slane %v5110, %v5114
    %v5149 = vunpack.c.l.b16 %v5077
    %v5150 = vunpack.c.l.b16 %v5078
    %v5151 = vunpack.c.l.b16 %v5079
    %v5152 = vunpack.c.l.b16 %v5080
    %v5153 = vunpack.c.l.b16 %v5081
    %v5154 = vunpack.c.l.b16 %v5082
    %v5155 = vunpack.c.l.b16 %v5083
    %v5156 = vunpack.c.l.b16 %v5084
    %v5157 = vunpack.c.l.b16 %v5085
    %v5158 = vunpack.c.l.b16 %v5086
    %v5159 = vunpack.c.l.b16 %v5087
    %v5160 = vunpack.c.l.b16 %v5088
    %v5161 = vunpack.c.l.b16 %v5089
    %v5162 = vunpack.c.l.b16 %v5090
    %v5163 = vunpack.c.l.b16 %v5091
    %v5164 = vunpack.c.l.b16 %v5092
    %v5165 = vunpack.c.l.b16 %v5093
    %v5166 = vunpack.c.l.b16 %v5094
    %v5167 = vunpack.c.l.b16 %v5095
    %v5168 = vunpack.c.l.b16 %v5096
    %v5169 = vunpack.c.l.b16 %v5097
    %v5170 = vunpack.c.l.b16 %v5098
    %v5171 = vunpack.c.l.b16 %v5099
    %v5172 = vunpack.c.l.b16 %v5100
    %v5173 = vunpack.c.l.b16 %v5101
    %v5174 = vunpack.c.l.b16 %v5102
    %v5175 = vunpack.c.l.b16 %v5103
    %v5176 = vunpack.c.l.b16 %v5104
    %v5177 = vunpack.c.l.b16 %v5105
    %v5178 = vunpack.c.l.b16 %v5106
    %v5179 = vunpack.c.l.b16 %v5107
    %v5180 = vunpack.c.l.b16 %v5108
    %v5181 = vpack.c.b16 %v5150, %v5149
    %v5182 = vpack.c.b16 %v5152, %v5151
    %v5183 = vpack.c.b16 %v5154, %v5153
    %v5184 = vpack.c.b16 %v5156, %v5155
    %v5185 = vpack.c.b16 %v5158, %v5157
    %v5186 = vpack.c.b16 %v5160, %v5159
    %v5187 = vpack.c.b16 %v5162, %v5161
    %v5188 = vpack.c.b16 %v5164, %v5163
    %v5189 = vpack.c.b16 %v5166, %v5165
    %v5190 = vpack.c.b16 %v5168, %v5167
    %v5191 = vpack.c.b16 %v5170, %v5169
    %v5192 = vpack.c.b16 %v5172, %v5171
    %v5193 = vpack.c.b16 %v5174, %v5173
    %v5194 = vpack.c.b16 %v5176, %v5175
    %v5195 = vpack.c.b16 %v5178, %v5177
    %v5196 = vpack.c.b16 %v5180, %v5179
    %5213 = vmatprep.subr.bf16.mxu0 0
    %5214 = vmatpush1.bf16.msra.mxu0 %v5181
    %5215 = vmatprep.subr.bf16.mxu0 0
    %5216 = vmatpush1.bf16.msra.mxu0 %v5182
    %5217 = vmatprep.subr.bf16.mxu0 0
    %5218 = vmatpush1.bf16.msra.mxu0 %v5183
    %5219 = vmatprep.subr.bf16.mxu0 0
    %5220 = vmatpush1.bf16.msra.mxu0 %v5184
    %5221 = vmatprep.subr.bf16.mxu0 0
    %5222 = vmatpush1.bf16.msra.mxu0 %v5185
    %5223 = vmatprep.subr.bf16.mxu0 0
    %5224 = vmatpush1.bf16.msra.mxu0 %v5186
    %5225 = vmatprep.subr.bf16.mxu0 0
    %5226 = vmatpush1.bf16.msra.mxu0 %v5187
    %5227 = vmatprep.subr.bf16.mxu0 0
    %5228 = vmatpush1.bf16.msra.mxu0 %v5188
    %5229 = vmatprep.subr.bf16.mxu0 0
    %5230 = vmatpush1.bf16.msra.mxu0 %v5189
    %5231 = vmatprep.subr.bf16.mxu0 0
    %5232 = vmatpush1.bf16.msra.mxu0 %v5190
    %5233 = vmatprep.subr.bf16.mxu0 0
    %5234 = vmatpush1.bf16.msra.mxu0 %v5191
    %5235 = vmatprep.subr.bf16.mxu0 0
    %5236 = vmatpush1.bf16.msra.mxu0 %v5192
    %5237 = vmatprep.subr.bf16.mxu0 0
    %5238 = vmatpush1.bf16.msra.mxu0 %v5193
    %5239 = vmatprep.subr.bf16.mxu0 0
    %5240 = vmatpush1.bf16.msra.mxu0 %v5194
    %5241 = vmatprep.subr.bf16.mxu0 0
    %5242 = vmatpush1.bf16.msra.mxu0 %v5195
    %5243 = vmatprep.subr.bf16.mxu0 0
    %5244 = vmatpush1.bf16.msra.mxu0 %v5196
    %5245 = vmatprep.mubr.bf16.mxu0 %v5068
    %5246 = vmatmul.mubr.bf16.gmra.mrb[0].mxu0 %v4253
    %v5247 = vpop.f32.mrb[0].mxu0
    %v5248 = vadd.f32 %v5115, %v5247
    %v5249 = vpop.f32.mrb[0].mxu0
    %v5250 = vpop.f32.mrb[0].mxu0
    %v5251 = vadd.f32 %v5115, %v5250
    %v5252 = vpop.f32.mrb[0].mxu0
    %5253 = vmatprep.mubr.bf16.mxu0 %v5069
    %5254 = vmatmul.mubr.bf16.gmra.mrb[0].mxu0 %v4254
    %v5255 = vpop.f32.mrb[0].mxu0
    %v5256 = vadd.f32 %v5115, %v5255
    %v5257 = vpop.f32.mrb[0].mxu0
    %v5258 = vpop.f32.mrb[0].mxu0
    %v5259 = vadd.f32 %v5115, %v5258
    %v5260 = vpop.f32.mrb[0].mxu0
    %5261 = vmatprep.mubr.bf16.mxu0 %v5070
    %5262 = vmatmul.mubr.bf16.gmra.mrb[0].mxu0 %v4255
    %v5263 = vpop.f32.mrb[0].mxu0
    %v5264 = vadd.f32 %v5115, %v5263
    %v5265 = vpop.f32.mrb[0].mxu0
    %v5266 = vpop.f32.mrb[0].mxu0
    %v5267 = vadd.f32 %v5115, %v5266
    %v5268 = vpop.f32.mrb[0].mxu0
    %5269 = vmatprep.mubr.bf16.mxu0 %v5071
    %5270 = vmatmul.mubr.bf16.gmra.mrb[0].mxu0 %v4256
    %v5271 = vpop.f32.mrb[0].mxu0
    %v5272 = vadd.f32 %v5115, %v5271
    %v5273 = vpop.f32.mrb[0].mxu0
    %v5274 = vpop.f32.mrb[0].mxu0
    %v5275 = vadd.f32 %v5115, %v5274
    %v5276 = vpop.f32.mrb[0].mxu0
    %5277 = vmatprep.mubr.bf16.mxu0 %v5072
    %5278 = vmatmul.mubr.bf16.gmra.mrb[0].mxu0 %v4257
    %v5279 = vpop.f32.mrb[0].mxu0
    %v5280 = vadd.f32 %v5115, %v5279
    %v5281 = vpop.f32.mrb[0].mxu0
    %v5282 = vpop.f32.mrb[0].mxu0
    %v5283 = vadd.f32 %v5115, %v5282
    %v5284 = vpop.f32.mrb[0].mxu0
    %5285 = vmatprep.mubr.bf16.mxu0 %v5073
    %5286 = vmatmul.mubr.bf16.gmra.mrb[0].mxu0 %v4258
    %v5287 = vpop.f32.mrb[0].mxu0
    %v5288 = vadd.f32 %v5115, %v5287
    %v5289 = vpop.f32.mrb[0].mxu0
    %v5290 = vpop.f32.mrb[0].mxu0
    %v5291 = vadd.f32 %v5115, %v5290
    %v5292 = vpop.f32.mrb[0].mxu0
    %5293 = vmatprep.mubr.bf16.mxu0 %v5074
    %5294 = vmatmul.mubr.bf16.gmra.mrb[0].mxu0 %v4259
    %v5295 = vpop.f32.mrb[0].mxu0
    %v5296 = vadd.f32 %v5115, %v5295
    %v5297 = vpop.f32.mrb[0].mxu0
    %v5298 = vpop.f32.mrb[0].mxu0
    %v5299 = vadd.f32 %v5115, %v5298
    %v5300 = vpop.f32.mrb[0].mxu0
    %5301 = vmatprep.mubr.bf16.mxu0 %v5075
    %5302 = vmatmul.mubr.bf16.gmra.mrb[0].mxu0 %v4260
    %v5303 = vpop.f32.mrb[0].mxu0
    %v5304 = vadd.f32 %v5115, %v5303
    %v5305 = vpop.f32.mrb[0].mxu0
    %v5306 = vpop.f32.mrb[0].mxu0
    %v5307 = vadd.f32 %v5115, %v5306
    %v5308 = vpop.f32.mrb[0].mxu0
    %5309 = vdwg.mxu0
    %vm5310 = vcmp.gt.f32.partialorder %v5248, 0.0
    %vm5311 = vcmp.gt.f32.partialorder %v5251, 0.0
    %vm5312 = vcmp.gt.f32.partialorder %v5256, 0.0
    %vm5313 = vcmp.gt.f32.partialorder %v5259, 0.0
    %vm5314 = vcmp.gt.f32.partialorder %v5264, 0.0
    %vm5315 = vcmp.gt.f32.partialorder %v5267, 0.0
    %vm5316 = vcmp.gt.f32.partialorder %v5272, 0.0
    %vm5317 = vcmp.gt.f32.partialorder %v5275, 0.0
    %vm5318 = vcmp.gt.f32.partialorder %v5280, 0.0
    %vm5319 = vcmp.gt.f32.partialorder %v5283, 0.0
    %vm5320 = vcmp.gt.f32.partialorder %v5288, 0.0
    %vm5321 = vcmp.gt.f32.partialorder %v5291, 0.0
    %vm5322 = vcmp.gt.f32.partialorder %v5296, 0.0
    %vm5323 = vcmp.gt.f32.partialorder %v5299, 0.0
    %vm5324 = vcmp.gt.f32.partialorder %v5304, 0.0
    %vm5325 = vcmp.gt.f32.partialorder %v5307, 0.0
    %v5326 = vmul.f32 %v5248, 0.01
    %v5327 = vmul.f32 %v5251, 0.01
    %v5328 = vmul.f32 %v5256, 0.01
    %v5329 = vmul.f32 %v5259, 0.01
    %v5330 = vmul.f32 %v5264, 0.01
    %v5331 = vmul.f32 %v5267, 0.01
    %v5332 = vmul.f32 %v5272, 0.01
    %v5333 = vmul.f32 %v5275, 0.01
    %v5334 = vmul.f32 %v5280, 0.01
    %v5335 = vmul.f32 %v5283, 0.01
    %v5336 = vmul.f32 %v5288, 0.01
    %v5337 = vmul.f32 %v5291, 0.01
    %v5338 = vmul.f32 %v5296, 0.01
    %v5339 = vmul.f32 %v5299, 0.01
    %v5340 = vmul.f32 %v5304, 0.01
    %v5341 = vmul.f32 %v5307, 0.01
    %v5342 = vsel %vm5310, %v5248, %v5326
    %v5343 = vsel %vm5311, %v5251, %v5327
    %v5344 = vsel %vm5312, %v5256, %v5328
    %v5345 = vsel %vm5313, %v5259, %v5329
    %v5346 = vsel %vm5314, %v5264, %v5330
    %v5347 = vsel %vm5315, %v5267, %v5331
    %v5348 = vsel %vm5316, %v5272, %v5332
    %v5349 = vsel %vm5317, %v5275, %v5333
    %v5350 = vsel %vm5318, %v5280, %v5334
    %v5351 = vsel %vm5319, %v5283, %v5335
    %v5352 = vsel %vm5320, %v5288, %v5336
    %v5353 = vsel %vm5321, %v5291, %v5337
    %v5354 = vsel %vm5322, %v5296, %v5338
    %v5355 = vsel %vm5323, %v5299, %v5339
    %v5356 = vsel %vm5324, %v5304, %v5340
    %v5357 = vsel %vm5325, %v5307, %v5341
    %s5358 = scalar_lea.vmem [#allocation2], 1088
    %v5359 = vld [vmem:[%s5358] sm:$0xf]
    %v5360 = vld [vmem:[%s5358 + $0x4] sm:$0xf]
    %v5361 = vld [vmem:[%s5358 + $0x8] sm:$0xf]
    %v5362 = vld [vmem:[%s5358 + $0xc] sm:$0xf]
    %v5363 = vld [vmem:[%s5358 + $0x10] sm:$0xf]
    %v5364 = vld [vmem:[%s5358 + $0x14] sm:$0xf]
    %v5365 = vld [vmem:[%s5358 + $0x18] sm:$0xf]
    %v5366 = vld [vmem:[%s5358 + $0x1c] sm:$0xf]
    %v5367 = vld [vmem:[%s5358 + $0x20] sm:$0xf]
    %v5368 = vld [vmem:[%s5358 + $0x24] sm:$0xf]
    %v5369 = vld [vmem:[%s5358 + $0x28] sm:$0xf]
    %v5370 = vld [vmem:[%s5358 + $0x2c] sm:$0xf]
    %v5371 = vld [vmem:[%s5358 + $0x30] sm:$0xf]
    %v5372 = vld [vmem:[%s5358 + $0x34] sm:$0xf]
    %v5373 = vld [vmem:[%s5358 + $0x38] sm:$0xf]
    %v5374 = vld [vmem:[%s5358 + $0x3c] sm:$0xf]
    %v5375 = vpack.c.bf16 %v5343, %v5342
    %v5376 = vpack.c.bf16 %v5345, %v5344
    %v5377 = vpack.c.bf16 %v5347, %v5346
    %v5378 = vpack.c.bf16 %v5349, %v5348
    %v5379 = vpack.c.bf16 %v5351, %v5350
    %v5380 = vpack.c.bf16 %v5353, %v5352
    %v5381 = vpack.c.bf16 %v5355, %v5354
    %v5382 = vpack.c.bf16 %v5357, %v5356
    %s5383 = scalar_lea.vmem %s9, 25
    %v5384 = vld [vmem:[%s5383] sm:$0x1]
    %v5386 = vlaneseq
    %v5387 = vshrl.u32 %v5386, 7
    %v5388 = vsub.s32 0, %v5387
    %v5389 = vrot.slane %v5384, %v5388
    %v5407 = vunpack.c.l.b16 %v5359
    %v5408 = vunpack.c.l.b16 %v5360
    %v5409 = vunpack.c.l.b16 %v5361
    %v5410 = vunpack.c.l.b16 %v5362
    %v5411 = vunpack.c.l.b16 %v5363
    %v5412 = vunpack.c.l.b16 %v5364
    %v5413 = vunpack.c.l.b16 %v5365
    %v5414 = vunpack.c.l.b16 %v5366
    %v5415 = vunpack.c.l.b16 %v5367
    %v5416 = vunpack.c.l.b16 %v5368
    %v5417 = vunpack.c.l.b16 %v5369
    %v5418 = vunpack.c.l.b16 %v5370
    %v5419 = vunpack.c.l.b16 %v5371
    %v5420 = vunpack.c.l.b16 %v5372
    %v5421 = vunpack.c.l.b16 %v5373
    %v5422 = vunpack.c.l.b16 %v5374
    %v5423 = vpack.c.b16 %v5408, %v5407
    %v5424 = vpack.c.b16 %v5410, %v5409
    %v5425 = vpack.c.b16 %v5412, %v5411
    %v5426 = vpack.c.b16 %v5414, %v5413
    %v5427 = vpack.c.b16 %v5416, %v5415
    %v5428 = vpack.c.b16 %v5418, %v5417
    %v5429 = vpack.c.b16 %v5420, %v5419
    %v5430 = vpack.c.b16 %v5422, %v5421
    %5439 = vmatprep.subr.bf16.mxu0 0
    %5440 = vmatpush1.bf16.msra.mxu0 %v5423
    %5441 = vmatprep.subr.bf16.mxu0 0
    %5442 = vmatpush1.bf16.msra.mxu0 %v5424
    %5443 = vmatprep.subr.bf16.mxu0 0
    %5444 = vmatpush1.bf16.msra.mxu0 %v5425
    %5445 = vmatprep.subr.bf16.mxu0 0
    %5446 = vmatpush1.bf16.msra.mxu0 %v5426
    %5447 = vmatprep.subr.bf16.mxu0 0
    %5448 = vmatpush1.bf16.msra.mxu0 %v5427
    %5449 = vmatprep.subr.bf16.mxu0 0
    %5450 = vmatpush1.bf16.msra.mxu0 %v5428
    %5451 = vmatprep.subr.bf16.mxu0 0
    %5452 = vmatpush1.bf16.msra.mxu0 %v5429
    %5453 = vmatprep.subr.bf16.mxu0 0
    %5454 = vmatpush1.bf16.msra.mxu0 %v5430
    %5455 = vmatprep.subr.bf16.mxu0 0
    %5456 = vmatpush1.bf16.msra.mxu0 0
    %5457 = vmatprep.subr.bf16.mxu0 0
    %5458 = vmatpush1.bf16.msra.mxu0 0
    %5459 = vmatprep.subr.bf16.mxu0 0
    %5460 = vmatpush1.bf16.msra.mxu0 0
    %5461 = vmatprep.subr.bf16.mxu0 0
    %5462 = vmatpush1.bf16.msra.mxu0 0
    %5463 = vmatprep.subr.bf16.mxu0 0
    %5464 = vmatpush1.bf16.msra.mxu0 0
    %5465 = vmatprep.subr.bf16.mxu0 0
    %5466 = vmatpush1.bf16.msra.mxu0 0
    %5467 = vmatprep.subr.bf16.mxu0 0
    %5468 = vmatpush1.bf16.msra.mxu0 0
    %5469 = vmatprep.subr.bf16.mxu0 0
    %5470 = vmatpush1.bf16.msra.mxu0 0
    %5471 = vmatprep.mubr.bf16.mxu0 0
    %5472 = vmatmul.mubr.bf16.gmra.mrb[0].mxu0 %v5375
    %v5473 = vpop.f32.mrb[0].mxu0
    %v5474 = vadd.f32 %v5389, %v5473
    %v5475 = vpop.f32.mrb[0].mxu0
    %v5476 = vpop.f32.mrb[0].mxu0
    %v5477 = vadd.f32 %v5389, %v5476
    %v5478 = vpop.f32.mrb[0].mxu0
    %5479 = vmatprep.mubr.bf16.mxu0 0
    %5480 = vmatmul.mubr.bf16.gmra.mrb[0].mxu0 %v5376
    %v5481 = vpop.f32.mrb[0].mxu0
    %v5482 = vadd.f32 %v5389, %v5481
    %v5483 = vpop.f32.mrb[0].mxu0
    %v5484 = vpop.f32.mrb[0].mxu0
    %v5485 = vadd.f32 %v5389, %v5484
    %v5486 = vpop.f32.mrb[0].mxu0
    %5487 = vmatprep.mubr.bf16.mxu0 0
    %5488 = vmatmul.mubr.bf16.gmra.mrb[0].mxu0 %v5377
    %v5489 = vpop.f32.mrb[0].mxu0
    %v5490 = vadd.f32 %v5389, %v5489
    %v5491 = vpop.f32.mrb[0].mxu0
    %v5492 = vpop.f32.mrb[0].mxu0
    %v5493 = vadd.f32 %v5389, %v5492
    %v5494 = vpop.f32.mrb[0].mxu0
    %5495 = vmatprep.mubr.bf16.mxu0 0
    %5496 = vmatmul.mubr.bf16.gmra.mrb[0].mxu0 %v5378
    %v5497 = vpop.f32.mrb[0].mxu0
    %v5498 = vadd.f32 %v5389, %v5497
    %v5499 = vpop.f32.mrb[0].mxu0
    %v5500 = vpop.f32.mrb[0].mxu0
    %v5501 = vadd.f32 %v5389, %v5500
    %v5502 = vpop.f32.mrb[0].mxu0
    %5503 = vmatprep.mubr.bf16.mxu0 0
    %5504 = vmatmul.mubr.bf16.gmra.mrb[0].mxu0 %v5379
    %v5505 = vpop.f32.mrb[0].mxu0
    %v5506 = vadd.f32 %v5389, %v5505
    %v5507 = vpop.f32.mrb[0].mxu0
    %v5508 = vpop.f32.mrb[0].mxu0
    %v5509 = vadd.f32 %v5389, %v5508
    %v5510 = vpop.f32.mrb[0].mxu0
    %5511 = vmatprep.mubr.bf16.mxu0 0
    %5512 = vmatmul.mubr.bf16.gmra.mrb[0].mxu0 %v5380
    %v5513 = vpop.f32.mrb[0].mxu0
    %v5514 = vadd.f32 %v5389, %v5513
    %v5515 = vpop.f32.mrb[0].mxu0
    %v5516 = vpop.f32.mrb[0].mxu0
    %v5517 = vadd.f32 %v5389, %v5516
    %v5518 = vpop.f32.mrb[0].mxu0
    %5519 = vmatprep.mubr.bf16.mxu0 0
    %5520 = vmatmul.mubr.bf16.gmra.mrb[0].mxu0 %v5381
    %v5521 = vpop.f32.mrb[0].mxu0
    %v5522 = vadd.f32 %v5389, %v5521
    %v5523 = vpop.f32.mrb[0].mxu0
    %v5524 = vpop.f32.mrb[0].mxu0
    %v5525 = vadd.f32 %v5389, %v5524
    %v5526 = vpop.f32.mrb[0].mxu0
    %5527 = vmatprep.mubr.bf16.mxu0 0
    %5528 = vmatmul.mubr.bf16.gmra.mrb[0].mxu0 %v5382
    %v5529 = vpop.f32.mrb[0].mxu0
    %v5530 = vadd.f32 %v5389, %v5529
    %v5531 = vpop.f32.mrb[0].mxu0
    %v5532 = vpop.f32.mrb[0].mxu0
    %v5533 = vadd.f32 %v5389, %v5532
    %v5534 = vpop.f32.mrb[0].mxu0
    %5535 = vdwg.mxu0
    %vm5536 = vcmp.gt.f32.partialorder %v5474, 0.0
    %vm5537 = vcmp.gt.f32.partialorder %v5477, 0.0
    %vm5538 = vcmp.gt.f32.partialorder %v5482, 0.0
    %vm5539 = vcmp.gt.f32.partialorder %v5485, 0.0
    %vm5540 = vcmp.gt.f32.partialorder %v5490, 0.0
    %vm5541 = vcmp.gt.f32.partialorder %v5493, 0.0
    %vm5542 = vcmp.gt.f32.partialorder %v5498, 0.0
    %vm5543 = vcmp.gt.f32.partialorder %v5501, 0.0
    %vm5544 = vcmp.gt.f32.partialorder %v5506, 0.0
    %vm5545 = vcmp.gt.f32.partialorder %v5509, 0.0
    %vm5546 = vcmp.gt.f32.partialorder %v5514, 0.0
    %vm5547 = vcmp.gt.f32.partialorder %v5517, 0.0
    %vm5548 = vcmp.gt.f32.partialorder %v5522, 0.0
    %vm5549 = vcmp.gt.f32.partialorder %v5525, 0.0
    %vm5550 = vcmp.gt.f32.partialorder %v5530, 0.0
    %vm5551 = vcmp.gt.f32.partialorder %v5533, 0.0
    %v5552 = vmul.f32 %v5474, 0.01
    %v5553 = vmul.f32 %v5477, 0.01
    %v5554 = vmul.f32 %v5482, 0.01
    %v5555 = vmul.f32 %v5485, 0.01
    %v5556 = vmul.f32 %v5490, 0.01
    %v5557 = vmul.f32 %v5493, 0.01
    %v5558 = vmul.f32 %v5498, 0.01
    %v5559 = vmul.f32 %v5501, 0.01
    %v5560 = vmul.f32 %v5506, 0.01
    %v5561 = vmul.f32 %v5509, 0.01
    %v5562 = vmul.f32 %v5514, 0.01
    %v5563 = vmul.f32 %v5517, 0.01
    %v5564 = vmul.f32 %v5522, 0.01
    %v5565 = vmul.f32 %v5525, 0.01
    %v5566 = vmul.f32 %v5530, 0.01
    %v5567 = vmul.f32 %v5533, 0.01
    %v5568 = vsel %vm5536, %v5474, %v5552
    %v5569 = vsel %vm5537, %v5477, %v5553
    %v5570 = vsel %vm5538, %v5482, %v5554
    %v5571 = vsel %vm5539, %v5485, %v5555
    %v5572 = vsel %vm5540, %v5490, %v5556
    %v5573 = vsel %vm5541, %v5493, %v5557
    %v5574 = vsel %vm5542, %v5498, %v5558
    %v5575 = vsel %vm5543, %v5501, %v5559
    %v5576 = vsel %vm5544, %v5506, %v5560
    %v5577 = vsel %vm5545, %v5509, %v5561
    %v5578 = vsel %vm5546, %v5514, %v5562
    %v5579 = vsel %vm5547, %v5517, %v5563
    %v5580 = vsel %vm5548, %v5522, %v5564
    %v5581 = vsel %vm5549, %v5525, %v5565
    %v5582 = vsel %vm5550, %v5530, %v5566
    %v5583 = vsel %vm5551, %v5533, %v5567
    %s5584 = scalar_lea.vmem [#allocation2], 1152
    %v5585 = vld [vmem:[%s5584] sm:$0xf]
    %v5586 = vld [vmem:[%s5584 + $0x4] sm:$0xf]
    %v5587 = vld [vmem:[%s5584 + $0x8] sm:$0xf]
    %v5588 = vld [vmem:[%s5584 + $0xc] sm:$0xf]
    %v5589 = vld [vmem:[%s5584 + $0x10] sm:$0xf]
    %v5590 = vld [vmem:[%s5584 + $0x14] sm:$0xf]
    %v5591 = vld [vmem:[%s5584 + $0x18] sm:$0xf]
    %v5592 = vld [vmem:[%s5584 + $0x1c] sm:$0xf]
    %v5593 = vld [vmem:[%s5584 + $0x20] sm:$0xf]
    %v5594 = vld [vmem:[%s5584 + $0x24] sm:$0xf]
    %v5595 = vld [vmem:[%s5584 + $0x28] sm:$0xf]
    %v5596 = vld [vmem:[%s5584 + $0x2c] sm:$0xf]
    %v5597 = vld [vmem:[%s5584 + $0x30] sm:$0xf]
    %v5598 = vld [vmem:[%s5584 + $0x34] sm:$0xf]
    %v5599 = vld [vmem:[%s5584 + $0x38] sm:$0xf]
    %v5600 = vld [vmem:[%s5584 + $0x3c] sm:$0xf]
    %v5601 = vpack.c.bf16 %v5569, %v5568
    %v5602 = vpack.c.bf16 %v5571, %v5570
    %v5603 = vpack.c.bf16 %v5573, %v5572
    %v5604 = vpack.c.bf16 %v5575, %v5574
    %v5605 = vpack.c.bf16 %v5577, %v5576
    %v5606 = vpack.c.bf16 %v5579, %v5578
    %v5607 = vpack.c.bf16 %v5581, %v5580
    %v5608 = vpack.c.bf16 %v5583, %v5582
    %s5609 = scalar_lea.vmem %s9, 26
    %v5610 = vld [vmem:[%s5609] sm:$0x1]
    %v5612 = vlaneseq
    %v5613 = vshrl.u32 %v5612, 7
    %v5614 = vsub.s32 0, %v5613
    %v5615 = vrot.slane %v5610, %v5614
    %v5633 = vunpack.c.l.b16 %v5585
    %v5634 = vunpack.c.l.b16 %v5586
    %v5635 = vunpack.c.l.b16 %v5587
    %v5636 = vunpack.c.l.b16 %v5588
    %v5637 = vunpack.c.l.b16 %v5589
    %v5638 = vunpack.c.l.b16 %v5590
    %v5639 = vunpack.c.l.b16 %v5591
    %v5640 = vunpack.c.l.b16 %v5592
    %v5641 = vunpack.c.l.b16 %v5593
    %v5642 = vunpack.c.l.b16 %v5594
    %v5643 = vunpack.c.l.b16 %v5595
    %v5644 = vunpack.c.l.b16 %v5596
    %v5645 = vunpack.c.l.b16 %v5597
    %v5646 = vunpack.c.l.b16 %v5598
    %v5647 = vunpack.c.l.b16 %v5599
    %v5648 = vunpack.c.l.b16 %v5600
    %v5649 = vpack.c.b16 %v5634, %v5633
    %v5650 = vpack.c.b16 %v5636, %v5635
    %v5651 = vpack.c.b16 %v5638, %v5637
    %v5652 = vpack.c.b16 %v5640, %v5639
    %v5653 = vpack.c.b16 %v5642, %v5641
    %v5654 = vpack.c.b16 %v5644, %v5643
    %v5655 = vpack.c.b16 %v5646, %v5645
    %v5656 = vpack.c.b16 %v5648, %v5647
    %5665 = vmatprep.subr.bf16.mxu0 0
    %5666 = vmatpush1.bf16.msra.mxu0 %v5649
    %5667 = vmatprep.subr.bf16.mxu0 0
    %5668 = vmatpush1.bf16.msra.mxu0 %v5650
    %5669 = vmatprep.subr.bf16.mxu0 0
    %5670 = vmatpush1.bf16.msra.mxu0 %v5651
    %5671 = vmatprep.subr.bf16.mxu0 0
    %5672 = vmatpush1.bf16.msra.mxu0 %v5652
    %5673 = vmatprep.subr.bf16.mxu0 0
    %5674 = vmatpush1.bf16.msra.mxu0 %v5653
    %5675 = vmatprep.subr.bf16.mxu0 0
    %5676 = vmatpush1.bf16.msra.mxu0 %v5654
    %5677 = vmatprep.subr.bf16.mxu0 0
    %5678 = vmatpush1.bf16.msra.mxu0 %v5655
    %5679 = vmatprep.subr.bf16.mxu0 0
    %5680 = vmatpush1.bf16.msra.mxu0 %v5656
    %5681 = vmatprep.subr.bf16.mxu0 0
    %5682 = vmatpush1.bf16.msra.mxu0 0
    %5683 = vmatprep.subr.bf16.mxu0 0
    %5684 = vmatpush1.bf16.msra.mxu0 0
    %5685 = vmatprep.subr.bf16.mxu0 0
    %5686 = vmatpush1.bf16.msra.mxu0 0
    %5687 = vmatprep.subr.bf16.mxu0 0
    %5688 = vmatpush1.bf16.msra.mxu0 0
    %5689 = vmatprep.subr.bf16.mxu0 0
    %5690 = vmatpush1.bf16.msra.mxu0 0
    %5691 = vmatprep.subr.bf16.mxu0 0
    %5692 = vmatpush1.bf16.msra.mxu0 0
    %5693 = vmatprep.subr.bf16.mxu0 0
    %5694 = vmatpush1.bf16.msra.mxu0 0
    %5695 = vmatprep.subr.bf16.mxu0 0
    %5696 = vmatpush1.bf16.msra.mxu0 0
    %5697 = vmatprep.mubr.bf16.mxu0 0
    %5698 = vmatmul.mubr.bf16.gmra.mrb[0].mxu0 %v5601
    %v5699 = vpop.f32.mrb[0].mxu0
    %v5700 = vadd.f32 %v5615, %v5699
    %v5701 = vpop.f32.mrb[0].mxu0
    %v5702 = vpop.f32.mrb[0].mxu0
    %v5703 = vadd.f32 %v5615, %v5702
    %v5704 = vpop.f32.mrb[0].mxu0
    %5705 = vmatprep.mubr.bf16.mxu0 0
    %5706 = vmatmul.mubr.bf16.gmra.mrb[0].mxu0 %v5602
    %v5707 = vpop.f32.mrb[0].mxu0
    %v5708 = vadd.f32 %v5615, %v5707
    %v5709 = vpop.f32.mrb[0].mxu0
    %v5710 = vpop.f32.mrb[0].mxu0
    %v5711 = vadd.f32 %v5615, %v5710
    %v5712 = vpop.f32.mrb[0].mxu0
    %5713 = vmatprep.mubr.bf16.mxu0 0
    %5714 = vmatmul.mubr.bf16.gmra.mrb[0].mxu0 %v5603
    %v5715 = vpop.f32.mrb[0].mxu0
    %v5716 = vadd.f32 %v5615, %v5715
    %v5717 = vpop.f32.mrb[0].mxu0
    %v5718 = vpop.f32.mrb[0].mxu0
    %v5719 = vadd.f32 %v5615, %v5718
    %v5720 = vpop.f32.mrb[0].mxu0
    %5721 = vmatprep.mubr.bf16.mxu0 0
    %5722 = vmatmul.mubr.bf16.gmra.mrb[0].mxu0 %v5604
    %v5723 = vpop.f32.mrb[0].mxu0
    %v5724 = vadd.f32 %v5615, %v5723
    %v5725 = vpop.f32.mrb[0].mxu0
    %v5726 = vpop.f32.mrb[0].mxu0
    %v5727 = vadd.f32 %v5615, %v5726
    %v5728 = vpop.f32.mrb[0].mxu0
    %5729 = vmatprep.mubr.bf16.mxu0 0
    %5730 = vmatmul.mubr.bf16.gmra.mrb[0].mxu0 %v5605
    %v5731 = vpop.f32.mrb[0].mxu0
    %v5732 = vadd.f32 %v5615, %v5731
    %v5733 = vpop.f32.mrb[0].mxu0
    %v5734 = vpop.f32.mrb[0].mxu0
    %v5735 = vadd.f32 %v5615, %v5734
    %v5736 = vpop.f32.mrb[0].mxu0
    %5737 = vmatprep.mubr.bf16.mxu0 0
    %5738 = vmatmul.mubr.bf16.gmra.mrb[0].mxu0 %v5606
    %v5739 = vpop.f32.mrb[0].mxu0
    %v5740 = vadd.f32 %v5615, %v5739
    %v5741 = vpop.f32.mrb[0].mxu0
    %v5742 = vpop.f32.mrb[0].mxu0
    %v5743 = vadd.f32 %v5615, %v5742
    %v5744 = vpop.f32.mrb[0].mxu0
    %5745 = vmatprep.mubr.bf16.mxu0 0
    %5746 = vmatmul.mubr.bf16.gmra.mrb[0].mxu0 %v5607
    %v5747 = vpop.f32.mrb[0].mxu0
    %v5748 = vadd.f32 %v5615, %v5747
    %v5749 = vpop.f32.mrb[0].mxu0
    %v5750 = vpop.f32.mrb[0].mxu0
    %v5751 = vadd.f32 %v5615, %v5750
    %v5752 = vpop.f32.mrb[0].mxu0
    %5753 = vmatprep.mubr.bf16.mxu0 0
    %5754 = vmatmul.mubr.bf16.gmra.mrb[0].mxu0 %v5608
    %v5755 = vpop.f32.mrb[0].mxu0
    %v5756 = vadd.f32 %v5615, %v5755
    %v5757 = vpop.f32.mrb[0].mxu0
    %v5758 = vpop.f32.mrb[0].mxu0
    %v5759 = vadd.f32 %v5615, %v5758
    %v5760 = vpop.f32.mrb[0].mxu0
    %5761 = vdwg.mxu0
    %v5762 = vadd.f32 %v4231, %v5700
    %v5763 = vadd.f32 %v4232, %v5703
    %v5764 = vadd.f32 %v4233, %v5708
    %v5765 = vadd.f32 %v4234, %v5711
    %v5766 = vadd.f32 %v4235, %v5716
    %v5767 = vadd.f32 %v4236, %v5719
    %v5768 = vadd.f32 %v4237, %v5724
    %v5769 = vadd.f32 %v4238, %v5727
    %v5770 = vadd.f32 %v4239, %v5732
    %v5771 = vadd.f32 %v4240, %v5735
    %v5772 = vadd.f32 %v4241, %v5740
    %v5773 = vadd.f32 %v4242, %v5743
    %v5774 = vadd.f32 %v4243, %v5748
    %v5775 = vadd.f32 %v4244, %v5751
    %v5776 = vadd.f32 %v4245, %v5756
    %v5777 = vadd.f32 %v4246, %v5759
    %s5778 = scalar_lea.vmem [#allocation2], 256
    %v5779 = vld [vmem:[%s5778] sm:$0xf]
    %v5780 = vld [vmem:[%s5778 + $0x4] sm:$0xf]
    %v5781 = vld [vmem:[%s5778 + $0x8] sm:$0xf]
    %v5782 = vld [vmem:[%s5778 + $0xc] sm:$0xf]
    %v5783 = vld [vmem:[%s5778 + $0x10] sm:$0xf]
    %v5784 = vld [vmem:[%s5778 + $0x14] sm:$0xf]
    %v5785 = vld [vmem:[%s5778 + $0x18] sm:$0xf]
    %v5786 = vld [vmem:[%s5778 + $0x1c] sm:$0xf]
    %v5787 = vld [vmem:[%s5778 + $0x20] sm:$0xf]
    %v5788 = vld [vmem:[%s5778 + $0x24] sm:$0xf]
    %v5789 = vld [vmem:[%s5778 + $0x28] sm:$0xf]
    %v5790 = vld [vmem:[%s5778 + $0x2c] sm:$0xf]
    %v5791 = vld [vmem:[%s5778 + $0x30] sm:$0xf]
    %v5792 = vld [vmem:[%s5778 + $0x34] sm:$0xf]
    %v5793 = vld [vmem:[%s5778 + $0x38] sm:$0xf]
    %v5794 = vld [vmem:[%s5778 + $0x3c] sm:$0xf]
    %v5795 = vpack.c.bf16 %v5763, %v5762
    %v5796 = vpack.c.bf16 %v5765, %v5764
    %v5797 = vpack.c.bf16 %v5767, %v5766
    %v5798 = vpack.c.bf16 %v5769, %v5768
    %v5799 = vpack.c.bf16 %v5771, %v5770
    %v5800 = vpack.c.bf16 %v5773, %v5772
    %v5801 = vpack.c.bf16 %v5775, %v5774
    %v5802 = vpack.c.bf16 %v5777, %v5776
    %s5803 = scalar_lea.vmem %s9, 6
    %v5804 = vld [vmem:[%s5803] sm:$0x1]
    %v5806 = vlaneseq
    %v5807 = vshrl.u32 %v5806, 7
    %v5808 = vsub.s32 0, %v5807
    %v5809 = vrot.slane %v5804, %v5808
    %v5827 = vunpack.c.l.b16 %v5779
    %v5828 = vunpack.c.l.b16 %v5780
    %v5829 = vunpack.c.l.b16 %v5781
    %v5830 = vunpack.c.l.b16 %v5782
    %v5831 = vunpack.c.l.b16 %v5783
    %v5832 = vunpack.c.l.b16 %v5784
    %v5833 = vunpack.c.l.b16 %v5785
    %v5834 = vunpack.c.l.b16 %v5786
    %v5835 = vunpack.c.l.b16 %v5787
    %v5836 = vunpack.c.l.b16 %v5788
    %v5837 = vunpack.c.l.b16 %v5789
    %v5838 = vunpack.c.l.b16 %v5790
    %v5839 = vunpack.c.l.b16 %v5791
    %v5840 = vunpack.c.l.b16 %v5792
    %v5841 = vunpack.c.l.b16 %v5793
    %v5842 = vunpack.c.l.b16 %v5794
    %v5843 = vpack.c.b16 %v5828, %v5827
    %v5844 = vpack.c.b16 %v5830, %v5829
    %v5845 = vpack.c.b16 %v5832, %v5831
    %v5846 = vpack.c.b16 %v5834, %v5833
    %v5847 = vpack.c.b16 %v5836, %v5835
    %v5848 = vpack.c.b16 %v5838, %v5837
    %v5849 = vpack.c.b16 %v5840, %v5839
    %v5850 = vpack.c.b16 %v5842, %v5841
    %5859 = vmatprep.subr.bf16.mxu0 0
    %5860 = vmatpush1.bf16.msra.mxu0 %v5843
    %5861 = vmatprep.subr.bf16.mxu0 0
    %5862 = vmatpush1.bf16.msra.mxu0 %v5844
    %5863 = vmatprep.subr.bf16.mxu0 0
    %5864 = vmatpush1.bf16.msra.mxu0 %v5845
    %5865 = vmatprep.subr.bf16.mxu0 0
    %5866 = vmatpush1.bf16.msra.mxu0 %v5846
    %5867 = vmatprep.subr.bf16.mxu0 0
    %5868 = vmatpush1.bf16.msra.mxu0 %v5847
    %5869 = vmatprep.subr.bf16.mxu0 0
    %5870 = vmatpush1.bf16.msra.mxu0 %v5848
    %5871 = vmatprep.subr.bf16.mxu0 0
    %5872 = vmatpush1.bf16.msra.mxu0 %v5849
    %5873 = vmatprep.subr.bf16.mxu0 0
    %5874 = vmatpush1.bf16.msra.mxu0 %v5850
    %5875 = vmatprep.subr.bf16.mxu0 0
    %5876 = vmatpush1.bf16.msra.mxu0 0
    %5877 = vmatprep.subr.bf16.mxu0 0
    %5878 = vmatpush1.bf16.msra.mxu0 0
    %5879 = vmatprep.subr.bf16.mxu0 0
    %5880 = vmatpush1.bf16.msra.mxu0 0
    %5881 = vmatprep.subr.bf16.mxu0 0
    %5882 = vmatpush1.bf16.msra.mxu0 0
    %5883 = vmatprep.subr.bf16.mxu0 0
    %5884 = vmatpush1.bf16.msra.mxu0 0
    %5885 = vmatprep.subr.bf16.mxu0 0
    %5886 = vmatpush1.bf16.msra.mxu0 0
    %5887 = vmatprep.subr.bf16.mxu0 0
    %5888 = vmatpush1.bf16.msra.mxu0 0
    %5889 = vmatprep.subr.bf16.mxu0 0
    %5890 = vmatpush1.bf16.msra.mxu0 0
    %5891 = vmatprep.mubr.bf16.mxu0 0
    %5892 = vmatmul.mubr.bf16.gmra.mrb[0].mxu0 %v5795
    %v5893 = vpop.f32.mrb[0].mxu0
    %v5894 = vadd.f32 %v5809, %v5893
    %v5895 = vpop.f32.mrb[0].mxu0
    %v5896 = vpop.f32.mrb[0].mxu0
    %v5897 = vadd.f32 %v5809, %v5896
    %v5898 = vpop.f32.mrb[0].mxu0
    %5899 = vmatprep.mubr.bf16.mxu0 0
    %5900 = vmatmul.mubr.bf16.gmra.mrb[0].mxu0 %v5796
    %v5901 = vpop.f32.mrb[0].mxu0
    %v5902 = vadd.f32 %v5809, %v5901
    %v5903 = vpop.f32.mrb[0].mxu0
    %v5904 = vpop.f32.mrb[0].mxu0
    %v5905 = vadd.f32 %v5809, %v5904
    %v5906 = vpop.f32.mrb[0].mxu0
    %5907 = vmatprep.mubr.bf16.mxu0 0
    %5908 = vmatmul.mubr.bf16.gmra.mrb[0].mxu0 %v5797
    %v5909 = vpop.f32.mrb[0].mxu0
    %v5910 = vadd.f32 %v5809, %v5909
    %v5911 = vpop.f32.mrb[0].mxu0
    %v5912 = vpop.f32.mrb[0].mxu0
    %v5913 = vadd.f32 %v5809, %v5912
    %v5914 = vpop.f32.mrb[0].mxu0
    %5915 = vmatprep.mubr.bf16.mxu0 0
    %5916 = vmatmul.mubr.bf16.gmra.mrb[0].mxu0 %v5798
    %v5917 = vpop.f32.mrb[0].mxu0
    %v5918 = vadd.f32 %v5809, %v5917
    %v5919 = vpop.f32.mrb[0].mxu0
    %v5920 = vpop.f32.mrb[0].mxu0
    %v5921 = vadd.f32 %v5809, %v5920
    %v5922 = vpop.f32.mrb[0].mxu0
    %5923 = vmatprep.mubr.bf16.mxu0 0
    %5924 = vmatmul.mubr.bf16.gmra.mrb[0].mxu0 %v5799
    %v5925 = vpop.f32.mrb[0].mxu0
    %v5926 = vadd.f32 %v5809, %v5925
    %v5927 = vpop.f32.mrb[0].mxu0
    %v5928 = vpop.f32.mrb[0].mxu0
    %v5929 = vadd.f32 %v5809, %v5928
    %v5930 = vpop.f32.mrb[0].mxu0
    %5931 = vmatprep.mubr.bf16.mxu0 0
    %5932 = vmatmul.mubr.bf16.gmra.mrb[0].mxu0 %v5800
    %v5933 = vpop.f32.mrb[0].mxu0
    %v5934 = vadd.f32 %v5809, %v5933
    %v5935 = vpop.f32.mrb[0].mxu0
    %v5936 = vpop.f32.mrb[0].mxu0
    %v5937 = vadd.f32 %v5809, %v5936
    %v5938 = vpop.f32.mrb[0].mxu0
    %5939 = vmatprep.mubr.bf16.mxu0 0
    %5940 = vmatmul.mubr.bf16.gmra.mrb[0].mxu0 %v5801
    %v5941 = vpop.f32.mrb[0].mxu0
    %v5942 = vadd.f32 %v5809, %v5941
    %v5943 = vpop.f32.mrb[0].mxu0
    %v5944 = vpop.f32.mrb[0].mxu0
    %v5945 = vadd.f32 %v5809, %v5944
    %v5946 = vpop.f32.mrb[0].mxu0
    %5947 = vmatprep.mubr.bf16.mxu0 0
    %5948 = vmatmul.mubr.bf16.gmra.mrb[0].mxu0 %v5802
    %v5949 = vpop.f32.mrb[0].mxu0
    %v5950 = vadd.f32 %v5809, %v5949
    %v5951 = vpop.f32.mrb[0].mxu0
    %v5952 = vpop.f32.mrb[0].mxu0
    %v5953 = vadd.f32 %v5809, %v5952
    %v5954 = vpop.f32.mrb[0].mxu0
    %5955 = vdwg.mxu0
    %vm5956 = vcmp.gt.f32.partialorder %v5894, 0.0
    %vm5957 = vcmp.gt.f32.partialorder %v5897, 0.0
    %vm5958 = vcmp.gt.f32.partialorder %v5902, 0.0
    %vm5959 = vcmp.gt.f32.partialorder %v5905, 0.0
    %vm5960 = vcmp.gt.f32.partialorder %v5910, 0.0
    %vm5961 = vcmp.gt.f32.partialorder %v5913, 0.0
    %vm5962 = vcmp.gt.f32.partialorder %v5918, 0.0
    %vm5963 = vcmp.gt.f32.partialorder %v5921, 0.0
    %vm5964 = vcmp.gt.f32.partialorder %v5926, 0.0
    %vm5965 = vcmp.gt.f32.partialorder %v5929, 0.0
    %vm5966 = vcmp.gt.f32.partialorder %v5934, 0.0
    %vm5967 = vcmp.gt.f32.partialorder %v5937, 0.0
    %vm5968 = vcmp.gt.f32.partialorder %v5942, 0.0
    %vm5969 = vcmp.gt.f32.partialorder %v5945, 0.0
    %vm5970 = vcmp.gt.f32.partialorder %v5950, 0.0
    %vm5971 = vcmp.gt.f32.partialorder %v5953, 0.0
    %v5972 = vmul.f32 %v5894, 0.01
    %v5973 = vmul.f32 %v5897, 0.01
    %v5974 = vmul.f32 %v5902, 0.01
    %v5975 = vmul.f32 %v5905, 0.01
    %v5976 = vmul.f32 %v5910, 0.01
    %v5977 = vmul.f32 %v5913, 0.01
    %v5978 = vmul.f32 %v5918, 0.01
    %v5979 = vmul.f32 %v5921, 0.01
    %v5980 = vmul.f32 %v5926, 0.01
    %v5981 = vmul.f32 %v5929, 0.01
    %v5982 = vmul.f32 %v5934, 0.01
    %v5983 = vmul.f32 %v5937, 0.01
    %v5984 = vmul.f32 %v5942, 0.01
    %v5985 = vmul.f32 %v5945, 0.01
    %v5986 = vmul.f32 %v5950, 0.01
    %v5987 = vmul.f32 %v5953, 0.01
    %v5988 = vsel %vm5956, %v5894, %v5972
    %v5989 = vsel %vm5957, %v5897, %v5973
    %v5990 = vsel %vm5958, %v5902, %v5974
    %v5991 = vsel %vm5959, %v5905, %v5975
    %v5992 = vsel %vm5960, %v5910, %v5976
    %v5993 = vsel %vm5961, %v5913, %v5977
    %v5994 = vsel %vm5962, %v5918, %v5978
    %v5995 = vsel %vm5963, %v5921, %v5979
    %v5996 = vsel %vm5964, %v5926, %v5980
    %v5997 = vsel %vm5965, %v5929, %v5981
    %v5998 = vsel %vm5966, %v5934, %v5982
    %v5999 = vsel %vm5967, %v5937, %v5983
    %v6000 = vsel %vm5968, %v5942, %v5984
    %v6001 = vsel %vm5969, %v5945, %v5985
    %v6002 = vsel %vm5970, %v5950, %v5986
    %v6003 = vsel %vm5971, %v5953, %v5987
    %s6004 = scalar_lea.vmem [#allocation2], 320
    %v6005 = vld [vmem:[%s6004] sm:$0xf]
    %v6006 = vld [vmem:[%s6004 + $0x4] sm:$0xf]
    %v6007 = vld [vmem:[%s6004 + $0x8] sm:$0xf]
    %v6008 = vld [vmem:[%s6004 + $0xc] sm:$0xf]
    %v6009 = vld [vmem:[%s6004 + $0x10] sm:$0xf]
    %v6010 = vld [vmem:[%s6004 + $0x14] sm:$0xf]
    %v6011 = vld [vmem:[%s6004 + $0x18] sm:$0xf]
    %v6012 = vld [vmem:[%s6004 + $0x1c] sm:$0xf]
    %v6013 = vld [vmem:[%s6004 + $0x20] sm:$0xf]
    %v6014 = vld [vmem:[%s6004 + $0x24] sm:$0xf]
    %v6015 = vld [vmem:[%s6004 + $0x28] sm:$0xf]
    %v6016 = vld [vmem:[%s6004 + $0x2c] sm:$0xf]
    %v6017 = vld [vmem:[%s6004 + $0x30] sm:$0xf]
    %v6018 = vld [vmem:[%s6004 + $0x34] sm:$0xf]
    %v6019 = vld [vmem:[%s6004 + $0x38] sm:$0xf]
    %v6020 = vld [vmem:[%s6004 + $0x3c] sm:$0xf]
    %v6021 = vpack.c.bf16 %v5989, %v5988
    %v6022 = vpack.c.bf16 %v5991, %v5990
    %v6023 = vpack.c.bf16 %v5993, %v5992
    %v6024 = vpack.c.bf16 %v5995, %v5994
    %v6025 = vpack.c.bf16 %v5997, %v5996
    %v6026 = vpack.c.bf16 %v5999, %v5998
    %v6027 = vpack.c.bf16 %v6001, %v6000
    %v6028 = vpack.c.bf16 %v6003, %v6002
    %s6029 = scalar_lea.vmem %s9, 7
    %v6030 = vld [vmem:[%s6029] sm:$0x1]
    %v6032 = vlaneseq
    %v6033 = vshrl.u32 %v6032, 7
    %v6034 = vsub.s32 0, %v6033
    %v6035 = vrot.slane %v6030, %v6034
    %v6053 = vunpack.c.l.b16 %v6005
    %v6054 = vunpack.c.l.b16 %v6006
    %v6055 = vunpack.c.l.b16 %v6007
    %v6056 = vunpack.c.l.b16 %v6008
    %v6057 = vunpack.c.l.b16 %v6009
    %v6058 = vunpack.c.l.b16 %v6010
    %v6059 = vunpack.c.l.b16 %v6011
    %v6060 = vunpack.c.l.b16 %v6012
    %v6061 = vunpack.c.l.b16 %v6013
    %v6062 = vunpack.c.l.b16 %v6014
    %v6063 = vunpack.c.l.b16 %v6015
    %v6064 = vunpack.c.l.b16 %v6016
    %v6065 = vunpack.c.l.b16 %v6017
    %v6066 = vunpack.c.l.b16 %v6018
    %v6067 = vunpack.c.l.b16 %v6019
    %v6068 = vunpack.c.l.b16 %v6020
    %v6069 = vpack.c.b16 %v6054, %v6053
    %v6070 = vpack.c.b16 %v6056, %v6055
    %v6071 = vpack.c.b16 %v6058, %v6057
    %v6072 = vpack.c.b16 %v6060, %v6059
    %v6073 = vpack.c.b16 %v6062, %v6061
    %v6074 = vpack.c.b16 %v6064, %v6063
    %v6075 = vpack.c.b16 %v6066, %v6065
    %v6076 = vpack.c.b16 %v6068, %v6067
    %6085 = vmatprep.subr.bf16.mxu0 0
    %6086 = vmatpush1.bf16.msra.mxu0 %v6069
    %6087 = vmatprep.subr.bf16.mxu0 0
    %6088 = vmatpush1.bf16.msra.mxu0 %v6070
    %6089 = vmatprep.subr.bf16.mxu0 0
    %6090 = vmatpush1.bf16.msra.mxu0 %v6071
    %6091 = vmatprep.subr.bf16.mxu0 0
    %6092 = vmatpush1.bf16.msra.mxu0 %v6072
    %6093 = vmatprep.subr.bf16.mxu0 0
    %6094 = vmatpush1.bf16.msra.mxu0 %v6073
    %6095 = vmatprep.subr.bf16.mxu0 0
    %6096 = vmatpush1.bf16.msra.mxu0 %v6074
    %6097 = vmatprep.subr.bf16.mxu0 0
    %6098 = vmatpush1.bf16.msra.mxu0 %v6075
    %6099 = vmatprep.subr.bf16.mxu0 0
    %6100 = vmatpush1.bf16.msra.mxu0 %v6076
    %6101 = vmatprep.subr.bf16.mxu0 0
    %6102 = vmatpush1.bf16.msra.mxu0 0
    %6103 = vmatprep.subr.bf16.mxu0 0
    %6104 = vmatpush1.bf16.msra.mxu0 0
    %6105 = vmatprep.subr.bf16.mxu0 0
    %6106 = vmatpush1.bf16.msra.mxu0 0
    %6107 = vmatprep.subr.bf16.mxu0 0
    %6108 = vmatpush1.bf16.msra.mxu0 0
    %6109 = vmatprep.subr.bf16.mxu0 0
    %6110 = vmatpush1.bf16.msra.mxu0 0
    %6111 = vmatprep.subr.bf16.mxu0 0
    %6112 = vmatpush1.bf16.msra.mxu0 0
    %6113 = vmatprep.subr.bf16.mxu0 0
    %6114 = vmatpush1.bf16.msra.mxu0 0
    %6115 = vmatprep.subr.bf16.mxu0 0
    %6116 = vmatpush1.bf16.msra.mxu0 0
    %6117 = vmatprep.mubr.bf16.mxu0 0
    %6118 = vmatmul.mubr.bf16.gmra.mrb[0].mxu0 %v6021
    %v6119 = vpop.f32.mrb[0].mxu0
    %v6120 = vadd.f32 %v6035, %v6119
    %v6121 = vpop.f32.mrb[0].mxu0
    %v6122 = vpop.f32.mrb[0].mxu0
    %v6123 = vadd.f32 %v6035, %v6122
    %v6124 = vpop.f32.mrb[0].mxu0
    %6125 = vmatprep.mubr.bf16.mxu0 0
    %6126 = vmatmul.mubr.bf16.gmra.mrb[0].mxu0 %v6022
    %v6127 = vpop.f32.mrb[0].mxu0
    %v6128 = vadd.f32 %v6035, %v6127
    %v6129 = vpop.f32.mrb[0].mxu0
    %v6130 = vpop.f32.mrb[0].mxu0
    %v6131 = vadd.f32 %v6035, %v6130
    %v6132 = vpop.f32.mrb[0].mxu0
    %6133 = vmatprep.mubr.bf16.mxu0 0
    %6134 = vmatmul.mubr.bf16.gmra.mrb[0].mxu0 %v6023
    %v6135 = vpop.f32.mrb[0].mxu0
    %v6136 = vadd.f32 %v6035, %v6135
    %v6137 = vpop.f32.mrb[0].mxu0
    %v6138 = vpop.f32.mrb[0].mxu0
    %v6139 = vadd.f32 %v6035, %v6138
    %v6140 = vpop.f32.mrb[0].mxu0
    %6141 = vmatprep.mubr.bf16.mxu0 0
    %6142 = vmatmul.mubr.bf16.gmra.mrb[0].mxu0 %v6024
    %v6143 = vpop.f32.mrb[0].mxu0
    %v6144 = vadd.f32 %v6035, %v6143
    %v6145 = vpop.f32.mrb[0].mxu0
    %v6146 = vpop.f32.mrb[0].mxu0
    %v6147 = vadd.f32 %v6035, %v6146
    %v6148 = vpop.f32.mrb[0].mxu0
    %6149 = vmatprep.mubr.bf16.mxu0 0
    %6150 = vmatmul.mubr.bf16.gmra.mrb[0].mxu0 %v6025
    %v6151 = vpop.f32.mrb[0].mxu0
    %v6152 = vadd.f32 %v6035, %v6151
    %v6153 = vpop.f32.mrb[0].mxu0
    %v6154 = vpop.f32.mrb[0].mxu0
    %v6155 = vadd.f32 %v6035, %v6154
    %v6156 = vpop.f32.mrb[0].mxu0
    %6157 = vmatprep.mubr.bf16.mxu0 0
    %6158 = vmatmul.mubr.bf16.gmra.mrb[0].mxu0 %v6026
    %v6159 = vpop.f32.mrb[0].mxu0
    %v6160 = vadd.f32 %v6035, %v6159
    %v6161 = vpop.f32.mrb[0].mxu0
    %v6162 = vpop.f32.mrb[0].mxu0
    %v6163 = vadd.f32 %v6035, %v6162
    %v6164 = vpop.f32.mrb[0].mxu0
    %6165 = vmatprep.mubr.bf16.mxu0 0
    %6166 = vmatmul.mubr.bf16.gmra.mrb[0].mxu0 %v6027
    %v6167 = vpop.f32.mrb[0].mxu0
    %v6168 = vadd.f32 %v6035, %v6167
    %v6169 = vpop.f32.mrb[0].mxu0
    %v6170 = vpop.f32.mrb[0].mxu0
    %v6171 = vadd.f32 %v6035, %v6170
    %v6172 = vpop.f32.mrb[0].mxu0
    %6173 = vmatprep.mubr.bf16.mxu0 0
    %6174 = vmatmul.mubr.bf16.gmra.mrb[0].mxu0 %v6028
    %v6175 = vpop.f32.mrb[0].mxu0
    %v6176 = vadd.f32 %v6035, %v6175
    %v6177 = vpop.f32.mrb[0].mxu0
    %v6178 = vpop.f32.mrb[0].mxu0
    %v6179 = vadd.f32 %v6035, %v6178
    %v6180 = vpop.f32.mrb[0].mxu0
    %6181 = vdwg.mxu0
    %vm6182 = vcmp.gt.f32.partialorder %v6120, 0.0
    %vm6183 = vcmp.gt.f32.partialorder %v6123, 0.0
    %vm6184 = vcmp.gt.f32.partialorder %v6128, 0.0
    %vm6185 = vcmp.gt.f32.partialorder %v6131, 0.0
    %vm6186 = vcmp.gt.f32.partialorder %v6136, 0.0
    %vm6187 = vcmp.gt.f32.partialorder %v6139, 0.0
    %vm6188 = vcmp.gt.f32.partialorder %v6144, 0.0
    %vm6189 = vcmp.gt.f32.partialorder %v6147, 0.0
    %vm6190 = vcmp.gt.f32.partialorder %v6152, 0.0
    %vm6191 = vcmp.gt.f32.partialorder %v6155, 0.0
    %vm6192 = vcmp.gt.f32.partialorder %v6160, 0.0
    %vm6193 = vcmp.gt.f32.partialorder %v6163, 0.0
    %vm6194 = vcmp.gt.f32.partialorder %v6168, 0.0
    %vm6195 = vcmp.gt.f32.partialorder %v6171, 0.0
    %vm6196 = vcmp.gt.f32.partialorder %v6176, 0.0
    %vm6197 = vcmp.gt.f32.partialorder %v6179, 0.0
    %v6198 = vmul.f32 %v6120, 0.01
    %v6199 = vmul.f32 %v6123, 0.01
    %v6200 = vmul.f32 %v6128, 0.01
    %v6201 = vmul.f32 %v6131, 0.01
    %v6202 = vmul.f32 %v6136, 0.01
    %v6203 = vmul.f32 %v6139, 0.01
    %v6204 = vmul.f32 %v6144, 0.01
    %v6205 = vmul.f32 %v6147, 0.01
    %v6206 = vmul.f32 %v6152, 0.01
    %v6207 = vmul.f32 %v6155, 0.01
    %v6208 = vmul.f32 %v6160, 0.01
    %v6209 = vmul.f32 %v6163, 0.01
    %v6210 = vmul.f32 %v6168, 0.01
    %v6211 = vmul.f32 %v6171, 0.01
    %v6212 = vmul.f32 %v6176, 0.01
    %v6213 = vmul.f32 %v6179, 0.01
    %v6214 = vsel %vm6182, %v6120, %v6198
    %v6215 = vsel %vm6183, %v6123, %v6199
    %v6216 = vsel %vm6184, %v6128, %v6200
    %v6217 = vsel %vm6185, %v6131, %v6201
    %v6218 = vsel %vm6186, %v6136, %v6202
    %v6219 = vsel %vm6187, %v6139, %v6203
    %v6220 = vsel %vm6188, %v6144, %v6204
    %v6221 = vsel %vm6189, %v6147, %v6205
    %v6222 = vsel %vm6190, %v6152, %v6206
    %v6223 = vsel %vm6191, %v6155, %v6207
    %v6224 = vsel %vm6192, %v6160, %v6208
    %v6225 = vsel %vm6193, %v6163, %v6209
    %v6226 = vsel %vm6194, %v6168, %v6210
    %v6227 = vsel %vm6195, %v6171, %v6211
    %v6228 = vsel %vm6196, %v6176, %v6212
    %v6229 = vsel %vm6197, %v6179, %v6213
    %s6230 = scalar_lea.vmem [#allocation2], 384
    %v6231 = vld [vmem:[%s6230] sm:$0xf]
    %v6232 = vld [vmem:[%s6230 + $0x4] sm:$0xf]
    %v6233 = vld [vmem:[%s6230 + $0x8] sm:$0xf]
    %v6234 = vld [vmem:[%s6230 + $0xc] sm:$0xf]
    %v6235 = vld [vmem:[%s6230 + $0x10] sm:$0xf]
    %v6236 = vld [vmem:[%s6230 + $0x14] sm:$0xf]
    %v6237 = vld [vmem:[%s6230 + $0x18] sm:$0xf]
    %v6238 = vld [vmem:[%s6230 + $0x1c] sm:$0xf]
    %v6239 = vld [vmem:[%s6230 + $0x20] sm:$0xf]
    %v6240 = vld [vmem:[%s6230 + $0x24] sm:$0xf]
    %v6241 = vld [vmem:[%s6230 + $0x28] sm:$0xf]
    %v6242 = vld [vmem:[%s6230 + $0x2c] sm:$0xf]
    %v6243 = vld [vmem:[%s6230 + $0x30] sm:$0xf]
    %v6244 = vld [vmem:[%s6230 + $0x34] sm:$0xf]
    %v6245 = vld [vmem:[%s6230 + $0x38] sm:$0xf]
    %v6246 = vld [vmem:[%s6230 + $0x3c] sm:$0xf]
    %v6247 = vpack.c.bf16 %v6215, %v6214
    %v6248 = vpack.c.bf16 %v6217, %v6216
    %v6249 = vpack.c.bf16 %v6219, %v6218
    %v6250 = vpack.c.bf16 %v6221, %v6220
    %v6251 = vpack.c.bf16 %v6223, %v6222
    %v6252 = vpack.c.bf16 %v6225, %v6224
    %v6253 = vpack.c.bf16 %v6227, %v6226
    %v6254 = vpack.c.bf16 %v6229, %v6228
    %s6255 = scalar_lea.vmem %s9, 8
    %v6256 = vld [vmem:[%s6255] sm:$0x1]
    %v6258 = vlaneseq
    %v6259 = vshrl.u32 %v6258, 7
    %v6260 = vsub.s32 0, %v6259
    %v6261 = vrot.slane %v6256, %v6260
    %v6279 = vunpack.c.l.b16 %v6231
    %v6280 = vunpack.c.l.b16 %v6232
    %v6281 = vunpack.c.l.b16 %v6233
    %v6282 = vunpack.c.l.b16 %v6234
    %v6283 = vunpack.c.l.b16 %v6235
    %v6284 = vunpack.c.l.b16 %v6236
    %v6285 = vunpack.c.l.b16 %v6237
    %v6286 = vunpack.c.l.b16 %v6238
    %v6287 = vunpack.c.l.b16 %v6239
    %v6288 = vunpack.c.l.b16 %v6240
    %v6289 = vunpack.c.l.b16 %v6241
    %v6290 = vunpack.c.l.b16 %v6242
    %v6291 = vunpack.c.l.b16 %v6243
    %v6292 = vunpack.c.l.b16 %v6244
    %v6293 = vunpack.c.l.b16 %v6245
    %v6294 = vunpack.c.l.b16 %v6246
    %v6295 = vpack.c.b16 %v6280, %v6279
    %v6296 = vpack.c.b16 %v6282, %v6281
    %v6297 = vpack.c.b16 %v6284, %v6283
    %v6298 = vpack.c.b16 %v6286, %v6285
    %v6299 = vpack.c.b16 %v6288, %v6287
    %v6300 = vpack.c.b16 %v6290, %v6289
    %v6301 = vpack.c.b16 %v6292, %v6291
    %v6302 = vpack.c.b16 %v6294, %v6293
    %6311 = vmatprep.subr.bf16.mxu0 0
    %6312 = vmatpush1.bf16.msra.mxu0 %v6295
    %6313 = vmatprep.subr.bf16.mxu0 0
    %6314 = vmatpush1.bf16.msra.mxu0 %v6296
    %6315 = vmatprep.subr.bf16.mxu0 0
    %6316 = vmatpush1.bf16.msra.mxu0 %v6297
    %6317 = vmatprep.subr.bf16.mxu0 0
    %6318 = vmatpush1.bf16.msra.mxu0 %v6298
    %6319 = vmatprep.subr.bf16.mxu0 0
    %6320 = vmatpush1.bf16.msra.mxu0 %v6299
    %6321 = vmatprep.subr.bf16.mxu0 0
    %6322 = vmatpush1.bf16.msra.mxu0 %v6300
    %6323 = vmatprep.subr.bf16.mxu0 0
    %6324 = vmatpush1.bf16.msra.mxu0 %v6301
    %6325 = vmatprep.subr.bf16.mxu0 0
    %6326 = vmatpush1.bf16.msra.mxu0 %v6302
    %6327 = vmatprep.subr.bf16.mxu0 0
    %6328 = vmatpush1.bf16.msra.mxu0 0
    %6329 = vmatprep.subr.bf16.mxu0 0
    %6330 = vmatpush1.bf16.msra.mxu0 0
    %6331 = vmatprep.subr.bf16.mxu0 0
    %6332 = vmatpush1.bf16.msra.mxu0 0
    %6333 = vmatprep.subr.bf16.mxu0 0
    %6334 = vmatpush1.bf16.msra.mxu0 0
    %6335 = vmatprep.subr.bf16.mxu0 0
    %6336 = vmatpush1.bf16.msra.mxu0 0
    %6337 = vmatprep.subr.bf16.mxu0 0
    %6338 = vmatpush1.bf16.msra.mxu0 0
    %6339 = vmatprep.subr.bf16.mxu0 0
    %6340 = vmatpush1.bf16.msra.mxu0 0
    %6341 = vmatprep.subr.bf16.mxu0 0
    %6342 = vmatpush1.bf16.msra.mxu0 0
    %6343 = vmatprep.mubr.bf16.mxu0 0
    %6344 = vmatmul.mubr.bf16.gmra.mrb[0].mxu0 %v6247
    %v6345 = vpop.f32.mrb[0].mxu0
    %v6346 = vadd.f32 %v6261, %v6345
    %v6347 = vpop.f32.mrb[0].mxu0
    %v6348 = vpop.f32.mrb[0].mxu0
    %v6349 = vadd.f32 %v6261, %v6348
    %v6350 = vpop.f32.mrb[0].mxu0
    %6351 = vmatprep.mubr.bf16.mxu0 0
    %6352 = vmatmul.mubr.bf16.gmra.mrb[0].mxu0 %v6248
    %v6353 = vpop.f32.mrb[0].mxu0
    %v6354 = vadd.f32 %v6261, %v6353
    %v6355 = vpop.f32.mrb[0].mxu0
    %v6356 = vpop.f32.mrb[0].mxu0
    %v6357 = vadd.f32 %v6261, %v6356
    %v6358 = vpop.f32.mrb[0].mxu0
    %6359 = vmatprep.mubr.bf16.mxu0 0
    %6360 = vmatmul.mubr.bf16.gmra.mrb[0].mxu0 %v6249
    %v6361 = vpop.f32.mrb[0].mxu0
    %v6362 = vadd.f32 %v6261, %v6361
    %v6363 = vpop.f32.mrb[0].mxu0
    %v6364 = vpop.f32.mrb[0].mxu0
    %v6365 = vadd.f32 %v6261, %v6364
    %v6366 = vpop.f32.mrb[0].mxu0
    %6367 = vmatprep.mubr.bf16.mxu0 0
    %6368 = vmatmul.mubr.bf16.gmra.mrb[0].mxu0 %v6250
    %v6369 = vpop.f32.mrb[0].mxu0
    %v6370 = vadd.f32 %v6261, %v6369
    %v6371 = vpop.f32.mrb[0].mxu0
    %v6372 = vpop.f32.mrb[0].mxu0
    %v6373 = vadd.f32 %v6261, %v6372
    %v6374 = vpop.f32.mrb[0].mxu0
    %6375 = vmatprep.mubr.bf16.mxu0 0
    %6376 = vmatmul.mubr.bf16.gmra.mrb[0].mxu0 %v6251
    %v6377 = vpop.f32.mrb[0].mxu0
    %v6378 = vadd.f32 %v6261, %v6377
    %v6379 = vpop.f32.mrb[0].mxu0
    %v6380 = vpop.f32.mrb[0].mxu0
    %v6381 = vadd.f32 %v6261, %v6380
    %v6382 = vpop.f32.mrb[0].mxu0
    %6383 = vmatprep.mubr.bf16.mxu0 0
    %6384 = vmatmul.mubr.bf16.gmra.mrb[0].mxu0 %v6252
    %v6385 = vpop.f32.mrb[0].mxu0
    %v6386 = vadd.f32 %v6261, %v6385
    %v6387 = vpop.f32.mrb[0].mxu0
    %v6388 = vpop.f32.mrb[0].mxu0
    %v6389 = vadd.f32 %v6261, %v6388
    %v6390 = vpop.f32.mrb[0].mxu0
    %6391 = vmatprep.mubr.bf16.mxu0 0
    %6392 = vmatmul.mubr.bf16.gmra.mrb[0].mxu0 %v6253
    %v6393 = vpop.f32.mrb[0].mxu0
    %v6394 = vadd.f32 %v6261, %v6393
    %v6395 = vpop.f32.mrb[0].mxu0
    %v6396 = vpop.f32.mrb[0].mxu0
    %v6397 = vadd.f32 %v6261, %v6396
    %v6398 = vpop.f32.mrb[0].mxu0
    %6399 = vmatprep.mubr.bf16.mxu0 0
    %6400 = vmatmul.mubr.bf16.gmra.mrb[0].mxu0 %v6254
    %v6401 = vpop.f32.mrb[0].mxu0
    %v6402 = vadd.f32 %v6261, %v6401
    %v6403 = vpop.f32.mrb[0].mxu0
    %v6404 = vpop.f32.mrb[0].mxu0
    %v6405 = vadd.f32 %v6261, %v6404
    %v6406 = vpop.f32.mrb[0].mxu0
    %6407 = vdwg.mxu0
    %6408 = vst [vmem:[%s10] sm:$0xff] %v6346
    %6409 = vst [vmem:[%s10 + $0x8] sm:$0xff] %v6349
    %6410 = vst [vmem:[%s10 + $0x10] sm:$0xff] %v6354
    %6411 = vst [vmem:[%s10 + $0x18] sm:$0xff] %v6357
    %6412 = vst [vmem:[%s10 + $0x20] sm:$0xff] %v6362
    %6413 = vst [vmem:[%s10 + $0x28] sm:$0xff] %v6365
    %6414 = vst [vmem:[%s10 + $0x30] sm:$0xff] %v6370
    %6415 = vst [vmem:[%s10 + $0x38] sm:$0xff] %v6373
    %6416 = vst [vmem:[%s10 + $0x40] sm:$0xff] %v6378
    %6417 = vst [vmem:[%s10 + $0x48] sm:$0xff] %v6381
    %6418 = vst [vmem:[%s10 + $0x50] sm:$0xff] %v6386
    %6419 = vst [vmem:[%s10 + $0x58] sm:$0xff] %v6389
    %6420 = vst [vmem:[%s10 + $0x60] sm:$0xff] %v6394
    %6421 = vst [vmem:[%s10 + $0x68] sm:$0xff] %v6397
    %6422 = vst [vmem:[%s10 + $0x70] sm:$0xff] %v6402
    %6423 = vst [vmem:[%s10 + $0x78] sm:$0xff] %v6405
    // Predicated region
    $region50: #{forward.1} parent=1 // pred_check
      _
    $region51: #{forward.1} parent=1 // pred_check_branch
      %6425 = sbr.rel (0) target = $region53
    $region52: #{forward.1} parent=1 // pred_region
      _
    $region53: #{forward.1} parent=1 // pred_fallthru
      _
    // Predicated region
    $region54: #{forward.1} parent=1 // pred_check
      _
    $region55: #{forward.1} parent=1 // pred_check_branch
      %6427 = sbr.rel (0) target = $region57
    $region56: #{forward.1} parent=1 // pred_region
      _
    $region57: #{forward.1} parent=1 // pred_fallthru
      _
    %6428 = vsyncpa [#allocation3], 1
    %6429 = vsyncpa [#allocation5], 1

</llo_original>
